<compile_context>
chip_gen: v7x
topology: tpu7x:2x2x1
jax: 0.10.0
libtpu: 0.0.40
codegen_flags: <defaults>
</compile_context>

<pallas_src>
import functools

import jax
import jax.numpy as jnp
from jax.experimental import pallas as pl
from jax.experimental.pallas import tpu as pltpu


# ----------------------------------------------------------------------------
# Kernel 1: linear  out = z @ W + b  (W pre-permuted to NHWC column order)
# ----------------------------------------------------------------------------
def _linear_kernel(z_ref, w_ref, b_ref, o_ref):
    acc = jnp.dot(z_ref[...], w_ref[...], preferred_element_type=jnp.float32)
    o_ref[...] = (acc + b_ref[...]).astype(o_ref.dtype)


def linear_op(z_bf16, w_bf16, b_f32, *, tn=512):
    B, L = z_bf16.shape
    N = w_bf16.shape[1]
    TN = min(N, tn)                          # N is a multiple of 128
    return pl.pallas_call(
        _linear_kernel,
        grid=(pl.cdiv(N, TN),),
        in_specs=[
            pl.BlockSpec((B, L), lambda j: (0, 0)),
            pl.BlockSpec((L, TN), lambda j: (0, j)),
            pl.BlockSpec((1, TN), lambda j: (0, j)),
        ],
        out_specs=pl.BlockSpec((B, TN), lambda j: (0, j)),
        out_shape=jax.ShapeDtypeStruct((B, N), jnp.bfloat16),
        compiler_params=pltpu.CompilerParams(dimension_semantics=("parallel",)),
    )(z_bf16, w_bf16, b_f32)


# ----------------------------------------------------------------------------
# Kernel 2: BatchNorm batch statistics -> (scale, shift) affine
#   input x2d: (rows, C) bf16, gb: (2, C) = [gamma; beta]
#   output: (2, C) f32 = [gamma*rstd ; beta - mean*gamma*rstd]
# ----------------------------------------------------------------------------
def _bn_stats_kernel(x_ref, gb_ref, stats_ref, *, eps, count):
    i = pl.program_id(0)

    @pl.when(i == 0)
    def _():
        stats_ref[...] = jnp.zeros_like(stats_ref)

    x = x_ref[...].astype(jnp.float32)
    stats_ref[0:1, :] += jnp.sum(x, axis=0, keepdims=True)
    stats_ref[1:2, :] += jnp.sum(x * x, axis=0, keepdims=True)

    @pl.when(i == pl.num_programs(0) - 1)
    def _():
        mean = stats_ref[0:1, :] / count
        var = stats_ref[1:2, :] / count - mean * mean
        rstd = jax.lax.rsqrt(var + eps)
        scale = gb_ref[0:1, :] * rstd
        stats_ref[0:1, :] = scale
        stats_ref[1:2, :] = gb_ref[1:2, :] - mean * scale


def bn_stats_op(x2d, gb, *, eps, rows_per_step):
    rows, C = x2d.shape
    nsteps = rows // rows_per_step
    return pl.pallas_call(
        functools.partial(_bn_stats_kernel, eps=eps, count=float(rows)),
        grid=(nsteps,),
        in_specs=[
            pl.BlockSpec((rows_per_step, C), lambda i: (i, 0)),
            pl.BlockSpec((2, C), lambda i: (0, 0)),
        ],
        out_specs=pl.BlockSpec((2, C), lambda i: (0, 0)),
        out_shape=jax.ShapeDtypeStruct((2, C), jnp.float32),
        compiler_params=pltpu.CompilerParams(dimension_semantics=("arbitrary",)),
    )(x2d, gb)


# ----------------------------------------------------------------------------
# Kernel 3: fused [prev-BN affine (+LeakyReLU) -> upsample x2 -> pad 1 ->
#                  conv 3x3] + accumulation of next-BN channel statistics.
#   src2d   : (B * s * src_stride, Cin) bf16  (one image = s rows of pitch
#             src_stride; only the first s columns of each pitch row are valid)
#   aff_in  : (2, Cin)  scale/shift of the BN applied to this conv's input
#   gb_out  : (2, Cout) gamma/beta of the BN that follows this conv
#   out     : (B * H*(W+2), Cout) bf16 raw conv output, "wide" rows
#   stats   : (2, Cout) scale/shift of the following BN
# ----------------------------------------------------------------------------
def _conv_up_kernel(src_ref, aff_ref, gb_ref, w_ref, mask_ref,
                    out_ref, stats_ref, xpad_ref, *,
                    s, src_stride, eps, slope_in, count):
    W = 2 * s                              # upsampled spatial size (H == W)
    Wp = W + 2                             # padded / wide row pitch
    nwide = W * Wp                         # rows of the wide output (H * Wp)
    cout = w_ref.shape[-1]
    b = pl.program_id(0)

    @pl.when(b == 0)
    def _():
        # Zero once: pad border + slack rows stay zero for every image.
        xpad_ref[...] = jnp.zeros_like(xpad_ref)
        stats_ref[...] = jnp.zeros_like(stats_ref)

    scale = aff_ref[0:1, :]
    shift = aff_ref[1:2, :]

    # Fused input path: BN affine (+LeakyReLU) -> nearest 2x upsample -> 1px
    # zero pad, written row-by-row into the flat padded VMEM scratch.
    for i in range(s):
        slab = src_ref[i * src_stride:i * src_stride + s, :].astype(jnp.float32)
        slab = slab * scale + shift
        if slope_in is not None:
            slab = jnp.where(slab >= 0, slab, slope_in * slab)
        wide = jnp.repeat(slab, 2, axis=0)             # width x2 -> (W, Cin)
        base = (2 * i + 1) * Wp + 1
        xpad_ref[base:base + W, :] = wide              # upsampled row 2i
        xpad_ref[base + Wp:base + Wp + W, :] = wide    # upsampled row 2i + 1

    # 3x3 conv: the 9 taps are sublane-shifted windows of the flat padded
    # input fed straight to the MXU (bf16 operands, f32 accumulation).
    acc = jnp.zeros((nwide, cout), jnp.float32)
    for dy in range(3):
        for dx in range(3):
            off = dy * Wp + dx
            win = xpad_ref[off:off + nwide, :].astype(jnp.bfloat16)
            acc = acc + jnp.dot(win, w_ref[dy, dx],
                                preferred_element_type=jnp.float32)

    out_ref[...] = acc.astype(out_ref.dtype)           # dense, lane-aligned store

    # Per-channel sum / sum-of-squares over valid pixels only (the mask kills
    # the 2 junk columns per wide row), accumulated across the batch grid.
    av = acc * mask_ref[...]
    stats_ref[0:1, :] += jnp.sum(av, axis=0, keepdims=True)
    stats_ref[1:2, :] += jnp.sum(av * acc, axis=0, keepdims=True)

    @pl.when(b == pl.num_programs(0) - 1)
    def _():
        mean = stats_ref[0:1, :] / count
        var = stats_ref[1:2, :] / count - mean * mean
        rstd = jax.lax.rsqrt(var + eps)
        sc = gb_ref[0:1, :] * rstd
        stats_ref[0:1, :] = sc
        stats_ref[1:2, :] = gb_ref[1:2, :] - mean * sc


def conv_up_op(src2d, aff_in, gb_out, w, *, s, src_stride, eps, slope_in, batch):
    cin = src2d.shape[1]
    cout = w.shape[-1]
    H = 2 * s
    W = H
    Wp = W + 2
    Hp = H + 2
    rows_in = s * src_stride
    rows_out = H * Wp
    r_scr = (((Hp * Wp + 2) + 7) // 8) * 8              # flat pad scratch rows
    count = float(batch * H * W)                        # valid pixels for BN

    # Validity mask for the 2 junk columns of each wide output row.
    mask = (jnp.arange(rows_out) % Wp < W).astype(jnp.float32).reshape(rows_out, 1)

    kern = functools.partial(_conv_up_kernel, s=s, src_stride=src_stride,
                             eps=eps, slope_in=slope_in, count=count)
    return pl.pallas_call(
        kern,
        grid=(batch,),
        in_specs=[
            pl.BlockSpec((rows_in, cin), lambda b: (b, 0)),
            pl.BlockSpec((2, cin), lambda b: (0, 0)),
            pl.BlockSpec((2, cout), lambda b: (0, 0)),
            pl.BlockSpec((3, 3, cin, cout), lambda b: (0, 0, 0, 0)),
            pl.BlockSpec((rows_out, 1), lambda b: (0, 0)),
        ],
        out_specs=[
            pl.BlockSpec((rows_out, cout), lambda b: (b, 0)),
            pl.BlockSpec((2, cout), lambda b: (0, 0)),
        ],
        out_shape=(
            jax.ShapeDtypeStruct((batch * rows_out, cout), jnp.bfloat16),
            jax.ShapeDtypeStruct((2, cout), jnp.float32),
        ),
        scratch_shapes=[pltpu.VMEM((r_scr, cin), jnp.float32)],
        # "arbitrary": the fused BN-stats reduction runs sequentially over batch.
        compiler_params=pltpu.CompilerParams(dimension_semantics=("arbitrary",)),
    )(src2d, aff_in, gb_out, w, mask)


# ----------------------------------------------------------------------------
# Kernel 4: fused tail  [BN3 affine -> LeakyReLU -> 1x1 conv -> tanh]
#   1x1 conv weight is pre-padded to 128 output lanes (lane-dense stores).
# ----------------------------------------------------------------------------
def _tail_kernel(x_ref, aff_ref, w_ref, b_ref, o_ref, *, slope):
    x = x_ref[...].astype(jnp.float32)
    y = x * aff_ref[0:1, :] + aff_ref[1:2, :]
    y = jnp.where(y >= 0, y, slope * y)
    z = jnp.dot(y.astype(jnp.bfloat16), w_ref[...],
                preferred_element_type=jnp.float32) + b_ref[...]
    o_ref[...] = jnp.tanh(z)


def tail_op(x2d, aff, w_pad, b_pad, *, slope, batch):
    rows_total, cin = x2d.shape
    cpad = w_pad.shape[1]
    rows = rows_total // batch
    return pl.pallas_call(
        functools.partial(_tail_kernel, slope=slope),
        grid=(batch,),
        in_specs=[
            pl.BlockSpec((rows, cin), lambda b: (b, 0)),
            pl.BlockSpec((2, cin), lambda b: (0, 0)),
            pl.BlockSpec((cin, cpad), lambda b: (0, 0)),
            pl.BlockSpec((1, cpad), lambda b: (0, 0)),
        ],
        out_specs=pl.BlockSpec((rows, cpad), lambda b: (b, 0)),
        out_shape=jax.ShapeDtypeStruct((rows_total, cpad), jnp.float32),
        compiler_params=pltpu.CompilerParams(dimension_semantics=("parallel",)),
    )(x2d, aff, w_pad, b_pad)


# ----------------------------------------------------------------------------
# Parameters
# ----------------------------------------------------------------------------
def init_params(key, latent_sz, feature_map_sz, num_channels):
    """Parameters in PyTorch layout (Linear: (out,in); Conv2d: (Cout,Cin,kh,kw))."""
    s = feature_map_sz // 4
    n1 = 128 * s * s
    ks = jax.random.split(key, 8)
    return {
        "l1_w": jax.random.normal(ks[0], (n1, latent_sz), jnp.float32) * 0.05,
        "l1_b": jax.random.normal(ks[1], (n1,), jnp.float32) * 0.01,
        "bn1_g": jnp.ones((128,), jnp.float32), "bn1_b": jnp.zeros((128,), jnp.float32),
        "c1_w": jax.random.normal(ks[2], (128, 128, 3, 3), jnp.float32) * 0.05,
        "c1_b": jax.random.normal(ks[3], (128,), jnp.float32) * 0.01,   # cancels in BN2
        "bn2_g": jnp.ones((128,), jnp.float32), "bn2_b": jnp.zeros((128,), jnp.float32),
        "c2_w": jax.random.normal(ks[4], (64, 128, 3, 3), jnp.float32) * 0.05,
        "c2_b": jax.random.normal(ks[5], (64,), jnp.float32) * 0.01,    # cancels in BN3
        "bn3_g": jnp.ones((64,), jnp.float32), "bn3_b": jnp.zeros((64,), jnp.float32),
        "c3_w": jax.random.normal(ks[6], (num_channels, 64, 1, 1), jnp.float32) * 0.05,
        "c3_b": jax.random.normal(ks[7], (num_channels,), jnp.float32) * 0.01,
    }


def prepare_params(p, *, feature_map_sz, num_channels, cpad=128):
    """One-time layout prep (outside jit): NHWC column order + bf16 for the
    linear weight, (kh,kw,Cin,Cout) bf16 conv weights, lane-padded 1x1 conv,
    packed (gamma; beta) rows.  The 3x3 conv biases are dropped on purpose:
    a constant per-channel bias feeding a training-mode BatchNorm cancels
    exactly in (x - mean(x)) and leaves the variance unchanged."""
    s = feature_map_sz // 4
    l1_w = (p["l1_w"].T.reshape(-1, 128, s, s)          # (L, 128, s, s)
            .transpose(0, 2, 3, 1)                      # (L, s, s, 128) NHWC cols
            .reshape(-1, 128 * s * s))
    l1_b = p["l1_b"].reshape(128, s, s).transpose(1, 2, 0).reshape(1, -1)
    c3 = p["c3_w"][:, :, 0, 0].T                        # (64, num_channels)
    c3_pad = jnp.zeros((64, cpad), jnp.float32).at[:, :num_channels].set(c3)
    b3_pad = jnp.zeros((1, cpad), jnp.float32).at[0, :num_channels].set(p["c3_b"])
    return {
        "l1_w": l1_w.astype(jnp.bfloat16),
        "l1_b": l1_b,                                                  # f32
        "bn1_gb": jnp.stack([p["bn1_g"], p["bn1_b"]], axis=0),         # (2,128)
        "c1_w": p["c1_w"].transpose(2, 3, 1, 0).astype(jnp.bfloat16),  # (3,3,128,128)
        "bn2_gb": jnp.stack([p["bn2_g"], p["bn2_b"]], axis=0),
        "c2_w": p["c2_w"].transpose(2, 3, 1, 0).astype(jnp.bfloat16),  # (3,3,128,64)
        "bn3_gb": jnp.stack([p["bn3_g"], p["bn3_b"]], axis=0),         # (2,64)
        "c3_w": c3_pad.astype(jnp.bfloat16),
        "c3_b": b3_pad,                                                # f32
    }


# ----------------------------------------------------------------------------
# Full module forward
# ----------------------------------------------------------------------------
def conv_generator_upsample(z, params, *, feature_map_sz, num_channels):
    """z: (B, latent) -> image (B, num_channels, feature_map_sz, feature_map_sz)."""
    s0 = feature_map_sz // 4
    B = z.shape[0]
    C1 = 128
    H1, Wp1 = 2 * s0, 2 * s0 + 2
    H2, W2, Wp2 = 4 * s0, 4 * s0, 4 * s0 + 2
    cpad = params["c3_w"].shape[1]

    # 1) Linear (output already in NHWC column order) -> (B*s0*s0, 128) bf16.
    h = linear_op(z.astype(jnp.bfloat16), params["l1_w"], params["l1_b"])
    h2d = h.reshape(B * s0 * s0, C1)

    # 2) BN1 batch stats -> (scale, shift).
    aff1 = bn_stats_op(h2d, params["bn1_gb"], eps=1e-5, rows_per_step=s0 * s0)

    # 3) Fused [BN1 -> up x2 -> conv3x3 128->128]; emits BN2 (scale, shift).
    y1, aff2 = conv_up_op(h2d, aff1, params["bn2_gb"], params["c1_w"],
                          s=s0, src_stride=s0, eps=0.8, slope_in=None, batch=B)

    # 4) Fused [BN2 -> LeakyReLU -> up x2 -> conv3x3 128->64]; emits BN3 affine.
    y2, aff3 = conv_up_op(y1, aff2, params["bn3_gb"], params["c2_w"],
                          s=H1, src_stride=Wp1, eps=0.8, slope_in=0.2, batch=B)

    # 5) Fused [BN3 -> LeakyReLU -> 1x1 conv -> tanh], lane-dense 128 output.
    t = tail_op(y2, aff3, params["c3_w"], params["c3_b"], slope=0.2, batch=B)

    # Drop the 2 junk columns per wide row + padded lanes, go NHWC -> NCHW.
    img = t.reshape(B, H2, Wp2, cpad)[:, :, :W2, :num_channels]
    return jnp.transpose(img, (0, 3, 1, 2))


if __name__ == "__main__":
    LATENT = 32
    FEATURE_MAP_SZ = 16   # -> init_size = 4, output 16x16
    NUM_CHANNELS = 3
    BATCH = 2

    key = jax.random.PRNGKey(0)
    kz, kp = jax.random.split(key)
    z = jax.random.normal(kz, (BATCH, LATENT), jnp.float32)
    raw_params = init_params(kp, LATENT, FEATURE_MAP_SZ, NUM_CHANNELS)
    params = prepare_params(raw_params, feature_map_sz=FEATURE_MAP_SZ,
                            num_channels=NUM_CHANNELS)

    fwd = jax.jit(functools.partial(conv_generator_upsample,
                                    feature_map_sz=FEATURE_MAP_SZ,
                                    num_channels=NUM_CHANNELS))
    out = fwd(z, params)
    jax.block_until_ready(out)
    assert out.shape == (BATCH, NUM_CHANNELS, FEATURE_MAP_SZ, FEATURE_MAP_SZ)
    assert bool(jnp.all(jnp.isfinite(out)))
    print("KERNEL_OK")
</pallas_src>

<mosaic_0001>
module attributes {stable_mosaic.version = 11 : i64} {
  func.func @_bn_stats_kernel(%arg0: i32, %arg1: memref<16x128xbf16, #tpu.memory_space<vmem>>, %arg2: memref<2x128xf32, #tpu.memory_space<vmem>>, %arg3: memref<2x128xf32, #tpu.memory_space<vmem>>) attributes {dimension_semantics = [#tpu.dimension_semantics<arbitrary>], iteration_bounds = array<i64: 2>, scalar_prefetch = 0 : i64, scratch_operands = 0 : i64, tpu.core_type = #tpu.core_type<tc>, window_params = [{transform_indices = @transform_0, window_bounds = array<i64: 16, 128>}, {pipeline_mode = #tpu.pipeline_mode<synchronous>, transform_indices = @transform_1, window_bounds = array<i64: 2, 128>}, {pipeline_mode = #tpu.pipeline_mode<synchronous>, transform_indices = @transform_2, window_bounds = array<i64: 2, 128>}]} {
    %c0_i32 = arith.constant 0 : i32
    %0 = arith.cmpi eq, %arg0, %c0_i32 : i32
    %1 = arith.extui %0 : i1 to i32
    %c0_i32_0 = arith.constant 0 : i32
    %2 = arith.cmpi ne, %1, %c0_i32_0 : i32
    scf.if %2 {
      %cst_11 = arith.constant 0.000000e+00 : f32
      %19 = vector.broadcast %cst_11 : f32 to vector<2x128xf32>
      %c0_12 = arith.constant 0 : index
      %c0_13 = arith.constant 0 : index
      %20 = vector.load %arg3[%c0_12, %c0_13] : memref<2x128xf32, #tpu.memory_space<vmem>>, vector<2x128xf32>
      tpu.vector_store %arg3[%c0_12, %c0_13], %19 {strides = array<i32>} : memref<2x128xf32, #tpu.memory_space<vmem>>, vector<2x128xf32>,
    } else {
    }
    %c0 = arith.constant 0 : index
    %c0_1 = arith.constant 0 : index
    %3 = vector.load %arg1[%c0, %c0_1] : memref<16x128xbf16, #tpu.memory_space<vmem>>, vector<16x128xbf16>
    %4 = arith.extf %3 : vector<16x128xbf16> to vector<16x128xf32>
    %c0_2 = arith.constant 0 : index
    %c0_3 = arith.constant 0 : index
    %5 = vector.load %arg3[%c0_2, %c0_3] : memref<2x128xf32, #tpu.memory_space<vmem>>, vector<1x128xf32>
    %cst = arith.constant dense<0.000000e+00> : vector<128xf32>
    %6 = vector.multi_reduction <add>, %4, %cst [0] : vector<16x128xf32> to vector<128xf32>
    %7 = vector.shape_cast %6 : vector<128xf32> to vector<1x128xf32>
    %8 = arith.addf %5, %7 : vector<1x128xf32>
    %c0_4 = arith.constant 0 : index
    %c0_5 = arith.constant 0 : index
    %9 = vector.load %arg3[%c0_4, %c0_5] : memref<2x128xf32, #tpu.memory_space<vmem>>, vector<1x128xf32>
    tpu.vector_store %arg3[%c0_4, %c0_5], %8 {strides = array<i32>} : memref<2x128xf32, #tpu.memory_space<vmem>>, vector<1x128xf32>,
    %c1 = arith.constant 1 : index
    %c0_6 = arith.constant 0 : index
    %10 = vector.load %arg3[%c1, %c0_6] : memref<2x128xf32, #tpu.memory_space<vmem>>, vector<1x128xf32>
    %11 = arith.mulf %4, %4 : vector<16x128xf32>
    %cst_7 = arith.constant dense<0.000000e+00> : vector<128xf32>
    %12 = vector.multi_reduction <add>, %11, %cst_7 [0] : vector<16x128xf32> to vector<128xf32>
    %13 = vector.shape_cast %12 : vector<128xf32> to vector<1x128xf32>
    %14 = arith.addf %10, %13 : vector<1x128xf32>
    %c1_8 = arith.constant 1 : index
    %c0_9 = arith.constant 0 : index
    %15 = vector.load %arg3[%c1_8, %c0_9] : memref<2x128xf32, #tpu.memory_space<vmem>>, vector<1x128xf32>
    tpu.vector_store %arg3[%c1_8, %c0_9], %14 {strides = array<i32>} : memref<2x128xf32, #tpu.memory_space<vmem>>, vector<1x128xf32>,
    %c1_i32 = arith.constant 1 : i32
    %16 = arith.cmpi eq, %arg0, %c1_i32 : i32
    %17 = arith.extui %16 : i1 to i32
    %c0_i32_10 = arith.constant 0 : i32
    %18 = arith.cmpi ne, %17, %c0_i32_10 : i32
    scf.if %18 {
      %c0_11 = arith.constant 0 : index
      %c0_12 = arith.constant 0 : index
      %19 = vector.load %arg3[%c0_11, %c0_12] : memref<2x128xf32, #tpu.memory_space<vmem>>, vector<1x128xf32>
      %cst_13 = arith.constant 3.200000e+01 : f32
      %20 = vector.broadcast %cst_13 : f32 to vector<1x128xf32>
      %21 = arith.divf %19, %20 : vector<1x128xf32>
      %c1_14 = arith.constant 1 : index
      %c0_15 = arith.constant 0 : index
      %22 = vector.load %arg3[%c1_14, %c0_15] : memref<2x128xf32, #tpu.memory_space<vmem>>, vector<1x128xf32>
      %cst_16 = arith.constant 3.200000e+01 : f32
      %23 = vector.broadcast %cst_16 : f32 to vector<1x128xf32>
      %24 = arith.divf %22, %23 : vector<1x128xf32>
      %25 = arith.mulf %21, %21 : vector<1x128xf32>
      %26 = arith.subf %24, %25 : vector<1x128xf32>
      %cst_17 = arith.constant 9.99999974E-6 : f32
      %27 = vector.broadcast %cst_17 : f32 to vector<1x128xf32>
      %28 = arith.addf %26, %27 : vector<1x128xf32>
      %29 = math.rsqrt %28 : vector<1x128xf32>
      %c0_18 = arith.constant 0 : index
      %c0_19 = arith.constant 0 : index
      %30 = vector.load %arg2[%c0_18, %c0_19] : memref<2x128xf32, #tpu.memory_space<vmem>>, vector<1x128xf32>
      %31 = arith.mulf %30, %29 : vector<1x128xf32>
      %c0_20 = arith.constant 0 : index
      %c0_21 = arith.constant 0 : index
      %32 = vector.load %arg3[%c0_20, %c0_21] : memref<2x128xf32, #tpu.memory_space<vmem>>, vector<1x128xf32>
      tpu.vector_store %arg3[%c0_20, %c0_21], %31 {strides = array<i32>} : memref<2x128xf32, #tpu.memory_space<vmem>>, vector<1x128xf32>,
      %c1_22 = arith.constant 1 : index
      %c0_23 = arith.constant 0 : index
      %33 = vector.load %arg2[%c1_22, %c0_23] : memref<2x128xf32, #tpu.memory_space<vmem>>, vector<1x128xf32>
      %34 = arith.mulf %21, %31 : vector<1x128xf32>
      %35 = arith.subf %33, %34 : vector<1x128xf32>
      %c1_24 = arith.constant 1 : index
      %c0_25 = arith.constant 0 : index
      %36 = vector.load %arg3[%c1_24, %c0_25] : memref<2x128xf32, #tpu.memory_space<vmem>>, vector<1x128xf32>
      tpu.vector_store %arg3[%c1_24, %c0_25], %35 {strides = array<i32>} : memref<2x128xf32, #tpu.memory_space<vmem>>, vector<1x128xf32>,
    } else {
    }
    return
  }
  func.func @transform_0(%arg0: i32) -> (i32, i32) {
    %c0_i32 = arith.constant 0 : i32
    %c0_i32_0 = arith.constant 0 : i32
    return %arg0, %c0_i32 : i32, i32
  }
  func.func @transform_1(%arg0: i32) -> (i32, i32) {
    %c0_i32 = arith.constant 0 : i32
    %c0_i32_0 = arith.constant 0 : i32
    %c0_i32_1 = arith.constant 0 : i32
    return %c0_i32, %c0_i32_0 : i32, i32
  }
  func.func @transform_2(%arg0: i32) -> (i32, i32) {
    %c0_i32 = arith.constant 0 : i32
    %c0_i32_0 = arith.constant 0 : i32
    %c0_i32_1 = arith.constant 0 : i32
    return %c0_i32, %c0_i32_0 : i32, i32
  }
}

module attributes {stable_mosaic.version = 11 : i64} {
  func.func @_linear_kernel(%arg0: i32, %arg1: memref<2x32xbf16, #tpu.memory_space<vmem>>, %arg2: memref<32x512xbf16, #tpu.memory_space<vmem>>, %arg3: memref<1x512xf32, #tpu.memory_space<vmem>>, %arg4: memref<2x512xbf16, #tpu.memory_space<vmem>>) attributes {dimension_semantics = [#tpu.dimension_semantics<parallel>], iteration_bounds = array<i64: 4>, scalar_prefetch = 0 : i64, scratch_operands = 0 : i64, tpu.core_type = #tpu.core_type<tc>, window_params = [{pipeline_mode = #tpu.pipeline_mode<synchronous>, transform_indices = @transform_0, window_bounds = array<i64: 2, 32>}, {transform_indices = @transform_1, window_bounds = array<i64: 32, 512>}, {transform_indices = @transform_2, window_bounds = array<i64: 1, 512>}, {transform_indices = @transform_3, window_bounds = array<i64: 2, 512>}]} {
    %c0 = arith.constant 0 : index
    %c0_0 = arith.constant 0 : index
    %0 = vector.load %arg1[%c0, %c0_0] : memref<2x32xbf16, #tpu.memory_space<vmem>>, vector<2x32xbf16>
    %c0_1 = arith.constant 0 : index
    %c0_2 = arith.constant 0 : index
    %1 = vector.load %arg2[%c0_1, %c0_2] : memref<32x512xbf16, #tpu.memory_space<vmem>>, vector<32x512xbf16>
    %cst = arith.constant dense<0.000000e+00> : vector<2x512xf32>
    %2 = tpu.matmul %0, %1, %cst {dimension_numbers = #tpu.dot_dimension_numbers<[1], [0], [0], [1], [0, 0, 1, 1], [], []>} : vector<2x32xbf16>, vector<32x512xbf16>, vector<2x512xf32> -> vector<2x512xf32>
    %c0_3 = arith.constant 0 : index
    %c0_4 = arith.constant 0 : index
    %3 = vector.load %arg3[%c0_3, %c0_4] : memref<1x512xf32, #tpu.memory_space<vmem>>, vector<1x512xf32>
    %4 = vector.broadcast %3 : vector<1x512xf32> to vector<2x512xf32>
    %5 = arith.addf %2, %4 : vector<2x512xf32>
    %6 = arith.truncf %5 : vector<2x512xf32> to vector<2x512xbf16>
    %c0_5 = arith.constant 0 : index
    %c0_6 = arith.constant 0 : index
    %7 = vector.load %arg4[%c0_5, %c0_6] : memref<2x512xbf16, #tpu.memory_space<vmem>>, vector<2x512xbf16>
    tpu.vector_store %arg4[%c0_5, %c0_6], %6 {strides = array<i32>} : memref<2x512xbf16, #tpu.memory_space<vmem>>, vector<2x512xbf16>,
    return
  }
  func.func @transform_0(%arg0: i32) -> (i32, i32) {
    %c0_i32 = arith.constant 0 : i32
    %c0_i32_0 = arith.constant 0 : i32
    %c0_i32_1 = arith.constant 0 : i32
    return %c0_i32, %c0_i32_0 : i32, i32
  }
  func.func @transform_1(%arg0: i32) -> (i32, i32) {
    %c0_i32 = arith.constant 0 : i32
    %c0_i32_0 = arith.constant 0 : i32
    return %c0_i32, %arg0 : i32, i32
  }
  func.func @transform_2(%arg0: i32) -> (i32, i32) {
    %c0_i32 = arith.constant 0 : i32
    %c0_i32_0 = arith.constant 0 : i32
    return %c0_i32, %arg0 : i32, i32
  }
  func.func @transform_3(%arg0: i32) -> (i32, i32) {
    %c0_i32 = arith.constant 0 : i32
    %c0_i32_0 = arith.constant 0 : i32
    return %c0_i32, %arg0 : i32, i32
  }
}

module attributes {stable_mosaic.version = 11 : i64} {
  func.func @_conv_up_kernel(%arg0: i32, %arg1: memref<16x128xbf16, #tpu.memory_space<vmem>>, %arg2: memref<2x128xf32, #tpu.memory_space<vmem>>, %arg3: memref<2x128xf32, #tpu.memory_space<vmem>>, %arg4: memref<3x3x128x128xbf16, #tpu.memory_space<vmem>>, %arg5: memref<80x1xf32, #tpu.memory_space<vmem>>, %arg6: memref<80x128xbf16, #tpu.memory_space<vmem>>, %arg7: memref<2x128xf32, #tpu.memory_space<vmem>>, %arg8: memref<104x128xf32, #tpu.memory_space<vmem>>) attributes {dimension_semantics = [#tpu.dimension_semantics<arbitrary>], iteration_bounds = array<i64: 2>, scalar_prefetch = 0 : i64, scratch_operands = 1 : i64, tpu.core_type = #tpu.core_type<tc>, window_params = [{transform_indices = @transform_0, window_bounds = array<i64: 16, 128>}, {pipeline_mode = #tpu.pipeline_mode<synchronous>, transform_indices = @transform_1, window_bounds = array<i64: 2, 128>}, {pipeline_mode = #tpu.pipeline_mode<synchronous>, transform_indices = @transform_2, window_bounds = array<i64: 2, 128>}, {pipeline_mode = #tpu.pipeline_mode<synchronous>, transform_indices = @transform_3, window_bounds = array<i64: 3, 3, 128, 128>}, {pipeline_mode = #tpu.pipeline_mode<synchronous>, transform_indices = @transform_4, window_bounds = array<i64: 80, 1>}, {transform_indices = @transform_5, window_bounds = array<i64: 80, 128>}, {pipeline_mode = #tpu.pipeline_mode<synchronous>, transform_indices = @transform_6, window_bounds = array<i64: 2, 128>}]} {
    %c0_i32 = arith.constant 0 : i32
    %0 = arith.cmpi eq, %arg0, %c0_i32 : i32
    %1 = arith.extui %0 : i1 to i32
    %c0_i32_0 = arith.constant 0 : i32
    %2 = arith.cmpi ne, %1, %c0_i32_0 : i32
    scf.if %2 {
      %cst_90 = arith.constant 0.000000e+00 : f32
      %123 = vector.broadcast %cst_90 : f32 to vector<104x128xf32>
      %c0_91 = arith.constant 0 : index
      %c0_92 = arith.constant 0 : index
      %124 = vector.load %arg8[%c0_91, %c0_92] : memref<104x128xf32, #tpu.memory_space<vmem>>, vector<104x128xf32>
      tpu.vector_store %arg8[%c0_91, %c0_92], %123 {strides = array<i32>} : memref<104x128xf32, #tpu.memory_space<vmem>>, vector<104x128xf32>,
      %cst_93 = arith.constant 0.000000e+00 : f32
      %125 = vector.broadcast %cst_93 : f32 to vector<2x128xf32>
      %c0_94 = arith.constant 0 : index
      %c0_95 = arith.constant 0 : index
      %126 = vector.load %arg7[%c0_94, %c0_95] : memref<2x128xf32, #tpu.memory_space<vmem>>, vector<2x128xf32>
      tpu.vector_store %arg7[%c0_94, %c0_95], %125 {strides = array<i32>} : memref<2x128xf32, #tpu.memory_space<vmem>>, vector<2x128xf32>,
    } else {
    }
    %c0 = arith.constant 0 : index
    %c0_1 = arith.constant 0 : index
    %3 = vector.load %arg2[%c0, %c0_1] : memref<2x128xf32, #tpu.memory_space<vmem>>, vector<1x128xf32>
    %c1 = arith.constant 1 : index
    %c0_2 = arith.constant 0 : index
    %4 = vector.load %arg2[%c1, %c0_2] : memref<2x128xf32, #tpu.memory_space<vmem>>, vector<1x128xf32>
    %c0_3 = arith.constant 0 : index
    %c0_4 = arith.constant 0 : index
    %5 = vector.load %arg1[%c0_3, %c0_4] : memref<16x128xbf16, #tpu.memory_space<vmem>>, vector<4x128xbf16>
    %6 = arith.extf %5 : vector<4x128xbf16> to vector<4x128xf32>
    %7 = vector.broadcast %3 : vector<1x128xf32> to vector<4x128xf32>
    %8 = arith.mulf %6, %7 : vector<4x128xf32>
    %9 = vector.broadcast %4 : vector<1x128xf32> to vector<4x128xf32>
    %10 = arith.addf %8, %9 : vector<4x128xf32>
    %11 = vector.shape_cast %10 : vector<4x128xf32> to vector<4x1x128xf32>
    %12 = vector.broadcast %11 : vector<4x1x128xf32> to vector<4x2x128xf32>
    %13 = vector.shape_cast %12 : vector<4x2x128xf32> to vector<8x128xf32>
    %c11 = arith.constant 11 : index
    %c0_5 = arith.constant 0 : index
    %14 = vector.load %arg8[%c11, %c0_5] : memref<104x128xf32, #tpu.memory_space<vmem>>, vector<8x128xf32>
    tpu.vector_store %arg8[%c11, %c0_5], %13 {strides = array<i32>} : memref<104x128xf32, #tpu.memory_space<vmem>>, vector<8x128xf32>,
    %c21 = arith.constant 21 : index
    %c0_6 = arith.constant 0 : index
    %15 = vector.load %arg8[%c21, %c0_6] : memref<104x128xf32, #tpu.memory_space<vmem>>, vector<8x128xf32>
    tpu.vector_store %arg8[%c21, %c0_6], %13 {strides = array<i32>} : memref<104x128xf32, #tpu.memory_space<vmem>>, vector<8x128xf32>,
    %c4 = arith.constant 4 : index
    %c0_7 = arith.constant 0 : index
    %16 = vector.load %arg1[%c4, %c0_7] : memref<16x128xbf16, #tpu.memory_space<vmem>>, vector<4x128xbf16>
    %17 = arith.extf %16 : vector<4x128xbf16> to vector<4x128xf32>
    %18 = vector.broadcast %3 : vector<1x128xf32> to vector<4x128xf32>
    %19 = arith.mulf %17, %18 : vector<4x128xf32>
    %20 = vector.broadcast %4 : vector<1x128xf32> to vector<4x128xf32>
    %21 = arith.addf %19, %20 : vector<4x128xf32>
    %22 = vector.shape_cast %21 : vector<4x128xf32> to vector<4x1x128xf32>
    %23 = vector.broadcast %22 : vector<4x1x128xf32> to vector<4x2x128xf32>
    %24 = vector.shape_cast %23 : vector<4x2x128xf32> to vector<8x128xf32>
    %c31 = arith.constant 31 : index
    %c0_8 = arith.constant 0 : index
    %25 = vector.load %arg8[%c31, %c0_8] : memref<104x128xf32, #tpu.memory_space<vmem>>, vector<8x128xf32>
    tpu.vector_store %arg8[%c31, %c0_8], %24 {strides = array<i32>} : memref<104x128xf32, #tpu.memory_space<vmem>>, vector<8x128xf32>,
    %c41 = arith.constant 41 : index
    %c0_9 = arith.constant 0 : index
    %26 = vector.load %arg8[%c41, %c0_9] : memref<104x128xf32, #tpu.memory_space<vmem>>, vector<8x128xf32>
    tpu.vector_store %arg8[%c41, %c0_9], %24 {strides = array<i32>} : memref<104x128xf32, #tpu.memory_space<vmem>>, vector<8x128xf32>,
    %c8 = arith.constant 8 : index
    %c0_10 = arith.constant 0 : index
    %27 = vector.load %arg1[%c8, %c0_10] : memref<16x128xbf16, #tpu.memory_space<vmem>>, vector<4x128xbf16>
    %28 = arith.extf %27 : vector<4x128xbf16> to vector<4x128xf32>
    %29 = vector.broadcast %3 : vector<1x128xf32> to vector<4x128xf32>
    %30 = arith.mulf %28, %29 : vector<4x128xf32>
    %31 = vector.broadcast %4 : vector<1x128xf32> to vector<4x128xf32>
    %32 = arith.addf %30, %31 : vector<4x128xf32>
    %33 = vector.shape_cast %32 : vector<4x128xf32> to vector<4x1x128xf32>
    %34 = vector.broadcast %33 : vector<4x1x128xf32> to vector<4x2x128xf32>
    %35 = vector.shape_cast %34 : vector<4x2x128xf32> to vector<8x128xf32>
    %c51 = arith.constant 51 : index
    %c0_11 = arith.constant 0 : index
    %36 = vector.load %arg8[%c51, %c0_11] : memref<104x128xf32, #tpu.memory_space<vmem>>, vector<8x128xf32>
    tpu.vector_store %arg8[%c51, %c0_11], %35 {strides = array<i32>} : memref<104x128xf32, #tpu.memory_space<vmem>>, vector<8x128xf32>,
    %c61 = arith.constant 61 : index
    %c0_12 = arith.constant 0 : index
    %37 = vector.load %arg8[%c61, %c0_12] : memref<104x128xf32, #tpu.memory_space<vmem>>, vector<8x128xf32>
    tpu.vector_store %arg8[%c61, %c0_12], %35 {strides = array<i32>} : memref<104x128xf32, #tpu.memory_space<vmem>>, vector<8x128xf32>,
    %c12 = arith.constant 12 : index
    %c0_13 = arith.constant 0 : index
    %38 = vector.load %arg1[%c12, %c0_13] : memref<16x128xbf16, #tpu.memory_space<vmem>>, vector<4x128xbf16>
    %39 = arith.extf %38 : vector<4x128xbf16> to vector<4x128xf32>
    %40 = vector.broadcast %3 : vector<1x128xf32> to vector<4x128xf32>
    %41 = arith.mulf %39, %40 : vector<4x128xf32>
    %42 = vector.broadcast %4 : vector<1x128xf32> to vector<4x128xf32>
    %43 = arith.addf %41, %42 : vector<4x128xf32>
    %44 = vector.shape_cast %43 : vector<4x128xf32> to vector<4x1x128xf32>
    %45 = vector.broadcast %44 : vector<4x1x128xf32> to vector<4x2x128xf32>
    %46 = vector.shape_cast %45 : vector<4x2x128xf32> to vector<8x128xf32>
    %c71 = arith.constant 71 : index
    %c0_14 = arith.constant 0 : index
    %47 = vector.load %arg8[%c71, %c0_14] : memref<104x128xf32, #tpu.memory_space<vmem>>, vector<8x128xf32>
    tpu.vector_store %arg8[%c71, %c0_14], %46 {strides = array<i32>} : memref<104x128xf32, #tpu.memory_space<vmem>>, vector<8x128xf32>,
    %c81 = arith.constant 81 : index
    %c0_15 = arith.constant 0 : index
    %48 = vector.load %arg8[%c81, %c0_15] : memref<104x128xf32, #tpu.memory_space<vmem>>, vector<8x128xf32>
    tpu.vector_store %arg8[%c81, %c0_15], %46 {strides = array<i32>} : memref<104x128xf32, #tpu.memory_space<vmem>>, vector<8x128xf32>,
    %cst = arith.constant 0.000000e+00 : f32
    %49 = vector.broadcast %cst : f32 to vector<80x128xf32>
    %c0_16 = arith.constant 0 : index
    %c0_17 = arith.constant 0 : index
    %50 = vector.load %arg8[%c0_16, %c0_17] : memref<104x128xf32, #tpu.memory_space<vmem>>, vector<80x128xf32>
    %51 = arith.truncf %50 : vector<80x128xf32> to vector<80x128xbf16>
    %c0_18 = arith.constant 0 : index
    %c0_19 = arith.constant 0 : index
    %c0_20 = arith.constant 0 : index
    %c0_21 = arith.constant 0 : index
    %52 = vector.load %arg4[%c0_18, %c0_19, %c0_20, %c0_21] : memref<3x3x128x128xbf16, #tpu.memory_space<vmem>>, vector<1x1x128x128xbf16>
    %53 = vector.shape_cast %52 : vector<1x1x128x128xbf16> to vector<128x128xbf16>
    %cst_22 = arith.constant dense<0.000000e+00> : vector<80x128xf32>
    %54 = tpu.matmul %51, %53, %cst_22 {dimension_numbers = #tpu.dot_dimension_numbers<[1], [0], [0], [1], [0, 0, 1, 1], [], []>} : vector<80x128xbf16>, vector<128x128xbf16>, vector<80x128xf32> -> vector<80x128xf32>
    %55 = arith.addf %49, %54 : vector<80x128xf32>
    %c1_23 = arith.constant 1 : index
    %c0_24 = arith.constant 0 : index
    %56 = vector.load %arg8[%c1_23, %c0_24] : memref<104x128xf32, #tpu.memory_space<vmem>>, vector<80x128xf32>
    %57 = arith.truncf %56 : vector<80x128xf32> to vector<80x128xbf16>
    %c0_25 = arith.constant 0 : index
    %c1_26 = arith.constant 1 : index
    %c0_27 = arith.constant 0 : index
    %c0_28 = arith.constant 0 : index
    %58 = vector.load %arg4[%c0_25, %c1_26, %c0_27, %c0_28] : memref<3x3x128x128xbf16, #tpu.memory_space<vmem>>, vector<1x1x128x128xbf16>
    %59 = vector.shape_cast %58 : vector<1x1x128x128xbf16> to vector<128x128xbf16>
    %cst_29 = arith.constant dense<0.000000e+00> : vector<80x128xf32>
    %60 = tpu.matmul %57, %59, %cst_29 {dimension_numbers = #tpu.dot_dimension_numbers<[1], [0], [0], [1], [0, 0, 1, 1], [], []>} : vector<80x128xbf16>, vector<128x128xbf16>, vector<80x128xf32> -> vector<80x128xf32>
    %61 = arith.addf %55, %60 : vector<80x128xf32>
    %c2 = arith.constant 2 : index
    %c0_30 = arith.constant 0 : index
    %62 = vector.load %arg8[%c2, %c0_30] : memref<104x128xf32, #tpu.memory_space<vmem>>, vector<80x128xf32>
    %63 = arith.truncf %62 : vector<80x128xf32> to vector<80x128xbf16>
    %c0_31 = arith.constant 0 : index
    %c2_32 = arith.constant 2 : index
    %c0_33 = arith.constant 0 : index
    %c0_34 = arith.constant 0 : index
    %64 = vector.load %arg4[%c0_31, %c2_32, %c0_33, %c0_34] : memref<3x3x128x128xbf16, #tpu.memory_space<vmem>>, vector<1x1x128x128xbf16>
    %65 = vector.shape_cast %64 : vector<1x1x128x128xbf16> to vector<128x128xbf16>
    %cst_35 = arith.constant dense<0.000000e+00> : vector<80x128xf32>
    %66 = tpu.matmul %63, %65, %cst_35 {dimension_numbers = #tpu.dot_dimension_numbers<[1], [0], [0], [1], [0, 0, 1, 1], [], []>} : vector<80x128xbf16>, vector<128x128xbf16>, vector<80x128xf32> -> vector<80x128xf32>
    %67 = arith.addf %61, %66 : vector<80x128xf32>
    %c10 = arith.constant 10 : index
    %c0_36 = arith.constant 0 : index
    %68 = vector.load %arg8[%c10, %c0_36] : memref<104x128xf32, #tpu.memory_space<vmem>>, vector<80x128xf32>
    %69 = arith.truncf %68 : vector<80x128xf32> to vector<80x128xbf16>
    %c1_37 = arith.constant 1 : index
    %c0_38 = arith.constant 0 : index
    %c0_39 = arith.constant 0 : index
    %c0_40 = arith.constant 0 : index
    %70 = vector.load %arg4[%c1_37, %c0_38, %c0_39, %c0_40] : memref<3x3x128x128xbf16, #tpu.memory_space<vmem>>, vector<1x1x128x128xbf16>
    %71 = vector.shape_cast %70 : vector<1x1x128x128xbf16> to vector<128x128xbf16>
    %cst_41 = arith.constant dense<0.000000e+00> : vector<80x128xf32>
    %72 = tpu.matmul %69, %71, %cst_41 {dimension_numbers = #tpu.dot_dimension_numbers<[1], [0], [0], [1], [0, 0, 1, 1], [], []>} : vector<80x128xbf16>, vector<128x128xbf16>, vector<80x128xf32> -> vector<80x128xf32>
    %73 = arith.addf %67, %72 : vector<80x128xf32>
    %c11_42 = arith.constant 11 : index
    %c0_43 = arith.constant 0 : index
    %74 = vector.load %arg8[%c11_42, %c0_43] : memref<104x128xf32, #tpu.memory_space<vmem>>, vector<80x128xf32>
    %75 = arith.truncf %74 : vector<80x128xf32> to vector<80x128xbf16>
    %c1_44 = arith.constant 1 : index
    %c1_45 = arith.constant 1 : index
    %c0_46 = arith.constant 0 : index
    %c0_47 = arith.constant 0 : index
    %76 = vector.load %arg4[%c1_44, %c1_45, %c0_46, %c0_47] : memref<3x3x128x128xbf16, #tpu.memory_space<vmem>>, vector<1x1x128x128xbf16>
    %77 = vector.shape_cast %76 : vector<1x1x128x128xbf16> to vector<128x128xbf16>
    %cst_48 = arith.constant dense<0.000000e+00> : vector<80x128xf32>
    %78 = tpu.matmul %75, %77, %cst_48 {dimension_numbers = #tpu.dot_dimension_numbers<[1], [0], [0], [1], [0, 0, 1, 1], [], []>} : vector<80x128xbf16>, vector<128x128xbf16>, vector<80x128xf32> -> vector<80x128xf32>
    %79 = arith.addf %73, %78 : vector<80x128xf32>
    %c12_49 = arith.constant 12 : index
    %c0_50 = arith.constant 0 : index
    %80 = vector.load %arg8[%c12_49, %c0_50] : memref<104x128xf32, #tpu.memory_space<vmem>>, vector<80x128xf32>
    %81 = arith.truncf %80 : vector<80x128xf32> to vector<80x128xbf16>
    %c1_51 = arith.constant 1 : index
    %c2_52 = arith.constant 2 : index
    %c0_53 = arith.constant 0 : index
    %c0_54 = arith.constant 0 : index
    %82 = vector.load %arg4[%c1_51, %c2_52, %c0_53, %c0_54] : memref<3x3x128x128xbf16, #tpu.memory_space<vmem>>, vector<1x1x128x128xbf16>
    %83 = vector.shape_cast %82 : vector<1x1x128x128xbf16> to vector<128x128xbf16>
    %cst_55 = arith.constant dense<0.000000e+00> : vector<80x128xf32>
    %84 = tpu.matmul %81, %83, %cst_55 {dimension_numbers = #tpu.dot_dimension_numbers<[1], [0], [0], [1], [0, 0, 1, 1], [], []>} : vector<80x128xbf16>, vector<128x128xbf16>, vector<80x128xf32> -> vector<80x128xf32>
    %85 = arith.addf %79, %84 : vector<80x128xf32>
    %c20 = arith.constant 20 : index
    %c0_56 = arith.constant 0 : index
    %86 = vector.load %arg8[%c20, %c0_56] : memref<104x128xf32, #tpu.memory_space<vmem>>, vector<80x128xf32>
    %87 = arith.truncf %86 : vector<80x128xf32> to vector<80x128xbf16>
    %c2_57 = arith.constant 2 : index
    %c0_58 = arith.constant 0 : index
    %c0_59 = arith.constant 0 : index
    %c0_60 = arith.constant 0 : index
    %88 = vector.load %arg4[%c2_57, %c0_58, %c0_59, %c0_60] : memref<3x3x128x128xbf16, #tpu.memory_space<vmem>>, vector<1x1x128x128xbf16>
    %89 = vector.shape_cast %88 : vector<1x1x128x128xbf16> to vector<128x128xbf16>
    %cst_61 = arith.constant dense<0.000000e+00> : vector<80x128xf32>
    %90 = tpu.matmul %87, %89, %cst_61 {dimension_numbers = #tpu.dot_dimension_numbers<[1], [0], [0], [1], [0, 0, 1, 1], [], []>} : vector<80x128xbf16>, vector<128x128xbf16>, vector<80x128xf32> -> vector<80x128xf32>
    %91 = arith.addf %85, %90 : vector<80x128xf32>
    %c21_62 = arith.constant 21 : index
    %c0_63 = arith.constant 0 : index
    %92 = vector.load %arg8[%c21_62, %c0_63] : memref<104x128xf32, #tpu.memory_space<vmem>>, vector<80x128xf32>
    %93 = arith.truncf %92 : vector<80x128xf32> to vector<80x128xbf16>
    %c2_64 = arith.constant 2 : index
    %c1_65 = arith.constant 1 : index
    %c0_66 = arith.constant 0 : index
    %c0_67 = arith.constant 0 : index
    %94 = vector.load %arg4[%c2_64, %c1_65, %c0_66, %c0_67] : memref<3x3x128x128xbf16, #tpu.memory_space<vmem>>, vector<1x1x128x128xbf16>
    %95 = vector.shape_cast %94 : vector<1x1x128x128xbf16> to vector<128x128xbf16>
    %cst_68 = arith.constant dense<0.000000e+00> : vector<80x128xf32>
    %96 = tpu.matmul %93, %95, %cst_68 {dimension_numbers = #tpu.dot_dimension_numbers<[1], [0], [0], [1], [0, 0, 1, 1], [], []>} : vector<80x128xbf16>, vector<128x128xbf16>, vector<80x128xf32> -> vector<80x128xf32>
    %97 = arith.addf %91, %96 : vector<80x128xf32>
    %c22 = arith.constant 22 : index
    %c0_69 = arith.constant 0 : index
    %98 = vector.load %arg8[%c22, %c0_69] : memref<104x128xf32, #tpu.memory_space<vmem>>, vector<80x128xf32>
    %99 = arith.truncf %98 : vector<80x128xf32> to vector<80x128xbf16>
    %c2_70 = arith.constant 2 : index
    %c2_71 = arith.constant 2 : index
    %c0_72 = arith.constant 0 : index
    %c0_73 = arith.constant 0 : index
    %100 = vector.load %arg4[%c2_70, %c2_71, %c0_72, %c0_73] : memref<3x3x128x128xbf16, #tpu.memory_space<vmem>>, vector<1x1x128x128xbf16>
    %101 = vector.shape_cast %100 : vector<1x1x128x128xbf16> to vector<128x128xbf16>
    %cst_74 = arith.constant dense<0.000000e+00> : vector<80x128xf32>
    %102 = tpu.matmul %99, %101, %cst_74 {dimension_numbers = #tpu.dot_dimension_numbers<[1], [0], [0], [1], [0, 0, 1, 1], [], []>} : vector<80x128xbf16>, vector<128x128xbf16>, vector<80x128xf32> -> vector<80x128xf32>
    %103 = arith.addf %97, %102 : vector<80x128xf32>
    %104 = arith.truncf %103 : vector<80x128xf32> to vector<80x128xbf16>
    %c0_75 = arith.constant 0 : index
    %c0_76 = arith.constant 0 : index
    %105 = vector.load %arg6[%c0_75, %c0_76] : memref<80x128xbf16, #tpu.memory_space<vmem>>, vector<80x128xbf16>
    tpu.vector_store %arg6[%c0_75, %c0_76], %104 {strides = array<i32>} : memref<80x128xbf16, #tpu.memory_space<vmem>>, vector<80x128xbf16>,
    %c0_77 = arith.constant 0 : index
    %c0_78 = arith.constant 0 : index
    %106 = vector.load %arg5[%c0_77, %c0_78] : memref<80x1xf32, #tpu.memory_space<vmem>>, vector<80x1xf32>
    %107 = vector.broadcast %106 : vector<80x1xf32> to vector<80x128xf32>
    %108 = arith.mulf %103, %107 : vector<80x128xf32>
    %c0_79 = arith.constant 0 : index
    %c0_80 = arith.constant 0 : index
    %109 = vector.load %arg7[%c0_79, %c0_80] : memref<2x128xf32, #tpu.memory_space<vmem>>, vector<1x128xf32>
    %cst_81 = arith.constant dense<0.000000e+00> : vector<128xf32>
    %110 = vector.multi_reduction <add>, %108, %cst_81 [0] : vector<80x128xf32> to vector<128xf32>
    %111 = vector.shape_cast %110 : vector<128xf32> to vector<1x128xf32>
    %112 = arith.addf %109, %111 : vector<1x128xf32>
    %c0_82 = arith.constant 0 : index
    %c0_83 = arith.constant 0 : index
    %113 = vector.load %arg7[%c0_82, %c0_83] : memref<2x128xf32, #tpu.memory_space<vmem>>, vector<1x128xf32>
    tpu.vector_store %arg7[%c0_82, %c0_83], %112 {strides = array<i32>} : memref<2x128xf32, #tpu.memory_space<vmem>>, vector<1x128xf32>,
    %c1_84 = arith.constant 1 : index
    %c0_85 = arith.constant 0 : index
    %114 = vector.load %arg7[%c1_84, %c0_85] : memref<2x128xf32, #tpu.memory_space<vmem>>, vector<1x128xf32>
    %115 = arith.mulf %108, %103 : vector<80x128xf32>
    %cst_86 = arith.constant dense<0.000000e+00> : vector<128xf32>
    %116 = vector.multi_reduction <add>, %115, %cst_86 [0] : vector<80x128xf32> to vector<128xf32>
    %117 = vector.shape_cast %116 : vector<128xf32> to vector<1x128xf32>
    %118 = arith.addf %114, %117 : vector<1x128xf32>
    %c1_87 = arith.constant 1 : index
    %c0_88 = arith.constant 0 : index
    %119 = vector.load %arg7[%c1_87, %c0_88] : memref<2x128xf32, #tpu.memory_space<vmem>>, vector<1x128xf32>
    tpu.vector_store %arg7[%c1_87, %c0_88], %118 {strides = array<i32>} : memref<2x128xf32, #tpu.memory_space<vmem>>, vector<1x128xf32>,
    %c1_i32 = arith.constant 1 : i32
    %120 = arith.cmpi eq, %arg0, %c1_i32 : i32
    %121 = arith.extui %120 : i1 to i32
    %c0_i32_89 = arith.constant 0 : i32
    %122 = arith.cmpi ne, %121, %c0_i32_89 : i32
    scf.if %122 {
      %c0_90 = arith.constant 0 : index
      %c0_91 = arith.constant 0 : index
      %123 = vector.load %arg7[%c0_90, %c0_91] : memref<2x128xf32, #tpu.memory_space<vmem>>, vector<1x128xf32>
      %cst_92 = arith.constant 1.280000e+02 : f32
      %124 = vector.broadcast %cst_92 : f32 to vector<1x128xf32>
      %125 = arith.divf %123, %124 : vector<1x128xf32>
      %c1_93 = arith.constant 1 : index
      %c0_94 = arith.constant 0 : index
      %126 = vector.load %arg7[%c1_93, %c0_94] : memref<2x128xf32, #tpu.memory_space<vmem>>, vector<1x128xf32>
      %cst_95 = arith.constant 1.280000e+02 : f32
      %127 = vector.broadcast %cst_95 : f32 to vector<1x128xf32>
      %128 = arith.divf %126, %127 : vector<1x128xf32>
      %129 = arith.mulf %125, %125 : vector<1x128xf32>
      %130 = arith.subf %128, %129 : vector<1x128xf32>
      %cst_96 = arith.constant 8.000000e-01 : f32
      %131 = vector.broadcast %cst_96 : f32 to vector<1x128xf32>
      %132 = arith.addf %130, %131 : vector<1x128xf32>
      %133 = math.rsqrt %132 : vector<1x128xf32>
      %c0_97 = arith.constant 0 : index
      %c0_98 = arith.constant 0 : index
      %134 = vector.load %arg3[%c0_97, %c0_98] : memref<2x128xf32, #tpu.memory_space<vmem>>, vector<1x128xf32>
      %135 = arith.mulf %134, %133 : vector<1x128xf32>
      %c0_99 = arith.constant 0 : index
      %c0_100 = arith.constant 0 : index
      %136 = vector.load %arg7[%c0_99, %c0_100] : memref<2x128xf32, #tpu.memory_space<vmem>>, vector<1x128xf32>
      tpu.vector_store %arg7[%c0_99, %c0_100], %135 {strides = array<i32>} : memref<2x128xf32, #tpu.memory_space<vmem>>, vector<1x128xf32>,
      %c1_101 = arith.constant 1 : index
      %c0_102 = arith.constant 0 : index
      %137 = vector.load %arg3[%c1_101, %c0_102] : memref<2x128xf32, #tpu.memory_space<vmem>>, vector<1x128xf32>
      %138 = arith.mulf %125, %135 : vector<1x128xf32>
      %139 = arith.subf %137, %138 : vector<1x128xf32>
      %c1_103 = arith.constant 1 : index
      %c0_104 = arith.constant 0 : index
      %140 = vector.load %arg7[%c1_103, %c0_104] : memref<2x128xf32, #tpu.memory_space<vmem>>, vector<1x128xf32>
      tpu.vector_store %arg7[%c1_103, %c0_104], %139 {strides = array<i32>} : memref<2x128xf32, #tpu.memory_space<vmem>>, vector<1x128xf32>,
    } else {
    }
    return
  }
  func.func @transform_0(%arg0: i32) -> (i32, i32) {
    %c0_i32 = arith.constant 0 : i32
    %c0_i32_0 = arith.constant 0 : i32
    return %arg0, %c0_i32 : i32, i32
  }
  func.func @transform_1(%arg0: i32) -> (i32, i32) {
    %c0_i32 = arith.constant 0 : i32
    %c0_i32_0 = arith.constant 0 : i32
    %c0_i32_1 = arith.constant 0 : i32
    return %c0_i32, %c0_i32_0 : i32, i32
  }
  func.func @transform_2(%arg0: i32) -> (i32, i32) {
    %c0_i32 = arith.constant 0 : i32
    %c0_i32_0 = arith.constant 0 : i32
    %c0_i32_1 = arith.constant 0 : i32
    return %c0_i32, %c0_i32_0 : i32, i32
  }
  func.func @transform_3(%arg0: i32) -> (i32, i32, i32, i32) {
    %c0_i32 = arith.constant 0 : i32
    %c0_i32_0 = arith.constant 0 : i32
    %c0_i32_1 = arith.constant 0 : i32
    %c0_i32_2 = arith.constant 0 : i32
    %c0_i32_3 = arith.constant 0 : i32
    return %c0_i32, %c0_i32_0, %c0_i32_1, %c0_i32_2 : i32, i32, i32, i32
  }
  func.func @transform_4(%arg0: i32) -> (i32, i32) {
    %c0_i32 = arith.constant 0 : i32
    %c0_i32_0 = arith.constant 0 : i32
    %c0_i32_1 = arith.constant 0 : i32
    return %c0_i32, %c0_i32_0 : i32, i32
  }
  func.func @transform_5(%arg0: i32) -> (i32, i32) {
    %c0_i32 = arith.constant 0 : i32
    %c0_i32_0 = arith.constant 0 : i32
    return %arg0, %c0_i32 : i32, i32
  }
  func.func @transform_6(%arg0: i32) -> (i32, i32) {
    %c0_i32 = arith.constant 0 : i32
    %c0_i32_0 = arith.constant 0 : i32
    %c0_i32_1 = arith.constant 0 : i32
    return %c0_i32, %c0_i32_0 : i32, i32
  }
}

module attributes {stable_mosaic.version = 11 : i64} {
  func.func @_conv_up_kernel(%arg0: i32, %arg1: memref<80x128xbf16, #tpu.memory_space<vmem>>, %arg2: memref<2x128xf32, #tpu.memory_space<vmem>>, %arg3: memref<2x64xf32, #tpu.memory_space<vmem>>, %arg4: memref<3x3x128x64xbf16, #tpu.memory_space<vmem>>, %arg5: memref<288x1xf32, #tpu.memory_space<vmem>>, %arg6: memref<288x64xbf16, #tpu.memory_space<vmem>>, %arg7: memref<2x64xf32, #tpu.memory_space<vmem>>, %arg8: memref<328x128xf32, #tpu.memory_space<vmem>>) attributes {dimension_semantics = [#tpu.dimension_semantics<arbitrary>], iteration_bounds = array<i64: 2>, scalar_prefetch = 0 : i64, scratch_operands = 1 : i64, tpu.core_type = #tpu.core_type<tc>, window_params = [{transform_indices = @transform_0, window_bounds = array<i64: 80, 128>}, {pipeline_mode = #tpu.pipeline_mode<synchronous>, transform_indices = @transform_1, window_bounds = array<i64: 2, 128>}, {pipeline_mode = #tpu.pipeline_mode<synchronous>, transform_indices = @transform_2, window_bounds = array<i64: 2, 64>}, {pipeline_mode = #tpu.pipeline_mode<synchronous>, transform_indices = @transform_3, window_bounds = array<i64: 3, 3, 128, 64>}, {pipeline_mode = #tpu.pipeline_mode<synchronous>, transform_indices = @transform_4, window_bounds = array<i64: 288, 1>}, {transform_indices = @transform_5, window_bounds = array<i64: 288, 64>}, {pipeline_mode = #tpu.pipeline_mode<synchronous>, transform_indices = @transform_6, window_bounds = array<i64: 2, 64>}]} {
    %c0_i32 = arith.constant 0 : i32
    %0 = arith.cmpi eq, %arg0, %c0_i32 : i32
    %1 = arith.extui %0 : i1 to i32
    %c0_i32_0 = arith.constant 0 : i32
    %2 = arith.cmpi ne, %1, %c0_i32_0 : i32
    scf.if %2 {
      %cst_118 = arith.constant 0.000000e+00 : f32
      %207 = vector.broadcast %cst_118 : f32 to vector<328x128xf32>
      %c0_119 = arith.constant 0 : index
      %c0_120 = arith.constant 0 : index
      %208 = vector.load %arg8[%c0_119, %c0_120] : memref<328x128xf32, #tpu.memory_space<vmem>>, vector<328x128xf32>
      tpu.vector_store %arg8[%c0_119, %c0_120], %207 {strides = array<i32>} : memref<328x128xf32, #tpu.memory_space<vmem>>, vector<328x128xf32>,
      %cst_121 = arith.constant 0.000000e+00 : f32
      %209 = vector.broadcast %cst_121 : f32 to vector<2x64xf32>
      %c0_122 = arith.constant 0 : index
      %c0_123 = arith.constant 0 : index
      %210 = vector.load %arg7[%c0_122, %c0_123] : memref<2x64xf32, #tpu.memory_space<vmem>>, vector<2x64xf32>
      tpu.vector_store %arg7[%c0_122, %c0_123], %209 {strides = array<i32>} : memref<2x64xf32, #tpu.memory_space<vmem>>, vector<2x64xf32>,
    } else {
    }
    %c0 = arith.constant 0 : index
    %c0_1 = arith.constant 0 : index
    %3 = vector.load %arg2[%c0, %c0_1] : memref<2x128xf32, #tpu.memory_space<vmem>>, vector<1x128xf32>
    %c1 = arith.constant 1 : index
    %c0_2 = arith.constant 0 : index
    %4 = vector.load %arg2[%c1, %c0_2] : memref<2x128xf32, #tpu.memory_space<vmem>>, vector<1x128xf32>
    %c0_3 = arith.constant 0 : index
    %c0_4 = arith.constant 0 : index
    %5 = vector.load %arg1[%c0_3, %c0_4] : memref<80x128xbf16, #tpu.memory_space<vmem>>, vector<8x128xbf16>
    %6 = arith.extf %5 : vector<8x128xbf16> to vector<8x128xf32>
    %7 = vector.broadcast %3 : vector<1x128xf32> to vector<8x128xf32>
    %8 = arith.mulf %6, %7 : vector<8x128xf32>
    %9 = vector.broadcast %4 : vector<1x128xf32> to vector<8x128xf32>
    %10 = arith.addf %8, %9 : vector<8x128xf32>
    %cst = arith.constant 0.000000e+00 : f32
    %11 = vector.broadcast %cst : f32 to vector<8x128xf32>
    %12 = arith.cmpf oge, %10, %11 : vector<8x128xf32>
    %cst_5 = arith.constant 2.000000e-01 : f32
    %13 = vector.broadcast %cst_5 : f32 to vector<8x128xf32>
    %14 = arith.mulf %13, %10 : vector<8x128xf32>
    %15 = arith.select %12, %10, %14 : vector<8x128xi1>, vector<8x128xf32>
    %16 = vector.shape_cast %15 : vector<8x128xf32> to vector<8x1x128xf32>
    %17 = vector.broadcast %16 : vector<8x1x128xf32> to vector<8x2x128xf32>
    %18 = vector.shape_cast %17 : vector<8x2x128xf32> to vector<16x128xf32>
    %c19 = arith.constant 19 : index
    %c0_6 = arith.constant 0 : index
    %19 = vector.load %arg8[%c19, %c0_6] : memref<328x128xf32, #tpu.memory_space<vmem>>, vector<16x128xf32>
    tpu.vector_store %arg8[%c19, %c0_6], %18 {strides = array<i32>} : memref<328x128xf32, #tpu.memory_space<vmem>>, vector<16x128xf32>,
    %c37 = arith.constant 37 : index
    %c0_7 = arith.constant 0 : index
    %20 = vector.load %arg8[%c37, %c0_7] : memref<328x128xf32, #tpu.memory_space<vmem>>, vector<16x128xf32>
    tpu.vector_store %arg8[%c37, %c0_7], %18 {strides = array<i32>} : memref<328x128xf32, #tpu.memory_space<vmem>>, vector<16x128xf32>,
    %c10 = arith.constant 10 : index
    %c0_8 = arith.constant 0 : index
    %21 = vector.load %arg1[%c10, %c0_8] : memref<80x128xbf16, #tpu.memory_space<vmem>>, vector<8x128xbf16>
    %22 = arith.extf %21 : vector<8x128xbf16> to vector<8x128xf32>
    %23 = vector.broadcast %3 : vector<1x128xf32> to vector<8x128xf32>
    %24 = arith.mulf %22, %23 : vector<8x128xf32>
    %25 = vector.broadcast %4 : vector<1x128xf32> to vector<8x128xf32>
    %26 = arith.addf %24, %25 : vector<8x128xf32>
    %cst_9 = arith.constant 0.000000e+00 : f32
    %27 = vector.broadcast %cst_9 : f32 to vector<8x128xf32>
    %28 = arith.cmpf oge, %26, %27 : vector<8x128xf32>
    %cst_10 = arith.constant 2.000000e-01 : f32
    %29 = vector.broadcast %cst_10 : f32 to vector<8x128xf32>
    %30 = arith.mulf %29, %26 : vector<8x128xf32>
    %31 = arith.select %28, %26, %30 : vector<8x128xi1>, vector<8x128xf32>
    %32 = vector.shape_cast %31 : vector<8x128xf32> to vector<8x1x128xf32>
    %33 = vector.broadcast %32 : vector<8x1x128xf32> to vector<8x2x128xf32>
    %34 = vector.shape_cast %33 : vector<8x2x128xf32> to vector<16x128xf32>
    %c55 = arith.constant 55 : index
    %c0_11 = arith.constant 0 : index
    %35 = vector.load %arg8[%c55, %c0_11] : memref<328x128xf32, #tpu.memory_space<vmem>>, vector<16x128xf32>
    tpu.vector_store %arg8[%c55, %c0_11], %34 {strides = array<i32>} : memref<328x128xf32, #tpu.memory_space<vmem>>, vector<16x128xf32>,
    %c73 = arith.constant 73 : index
    %c0_12 = arith.constant 0 : index
    %36 = vector.load %arg8[%c73, %c0_12] : memref<328x128xf32, #tpu.memory_space<vmem>>, vector<16x128xf32>
    tpu.vector_store %arg8[%c73, %c0_12], %34 {strides = array<i32>} : memref<328x128xf32, #tpu.memory_space<vmem>>, vector<16x128xf32>,
    %c20 = arith.constant 20 : index
    %c0_13 = arith.constant 0 : index
    %37 = vector.load %arg1[%c20, %c0_13] : memref<80x128xbf16, #tpu.memory_space<vmem>>, vector<8x128xbf16>
    %38 = arith.extf %37 : vector<8x128xbf16> to vector<8x128xf32>
    %39 = vector.broadcast %3 : vector<1x128xf32> to vector<8x128xf32>
    %40 = arith.mulf %38, %39 : vector<8x128xf32>
    %41 = vector.broadcast %4 : vector<1x128xf32> to vector<8x128xf32>
    %42 = arith.addf %40, %41 : vector<8x128xf32>
    %cst_14 = arith.constant 0.000000e+00 : f32
    %43 = vector.broadcast %cst_14 : f32 to vector<8x128xf32>
    %44 = arith.cmpf oge, %42, %43 : vector<8x128xf32>
    %cst_15 = arith.constant 2.000000e-01 : f32
    %45 = vector.broadcast %cst_15 : f32 to vector<8x128xf32>
    %46 = arith.mulf %45, %42 : vector<8x128xf32>
    %47 = arith.select %44, %42, %46 : vector<8x128xi1>, vector<8x128xf32>
    %48 = vector.shape_cast %47 : vector<8x128xf32> to vector<8x1x128xf32>
    %49 = vector.broadcast %48 : vector<8x1x128xf32> to vector<8x2x128xf32>
    %50 = vector.shape_cast %49 : vector<8x2x128xf32> to vector<16x128xf32>
    %c91 = arith.constant 91 : index
    %c0_16 = arith.constant 0 : index
    %51 = vector.load %arg8[%c91, %c0_16] : memref<328x128xf32, #tpu.memory_space<vmem>>, vector<16x128xf32>
    tpu.vector_store %arg8[%c91, %c0_16], %50 {strides = array<i32>} : memref<328x128xf32, #tpu.memory_space<vmem>>, vector<16x128xf32>,
    %c109 = arith.constant 109 : index
    %c0_17 = arith.constant 0 : index
    %52 = vector.load %arg8[%c109, %c0_17] : memref<328x128xf32, #tpu.memory_space<vmem>>, vector<16x128xf32>
    tpu.vector_store %arg8[%c109, %c0_17], %50 {strides = array<i32>} : memref<328x128xf32, #tpu.memory_space<vmem>>, vector<16x128xf32>,
    %c30 = arith.constant 30 : index
    %c0_18 = arith.constant 0 : index
    %53 = vector.load %arg1[%c30, %c0_18] : memref<80x128xbf16, #tpu.memory_space<vmem>>, vector<8x128xbf16>
    %54 = arith.extf %53 : vector<8x128xbf16> to vector<8x128xf32>
    %55 = vector.broadcast %3 : vector<1x128xf32> to vector<8x128xf32>
    %56 = arith.mulf %54, %55 : vector<8x128xf32>
    %57 = vector.broadcast %4 : vector<1x128xf32> to vector<8x128xf32>
    %58 = arith.addf %56, %57 : vector<8x128xf32>
    %cst_19 = arith.constant 0.000000e+00 : f32
    %59 = vector.broadcast %cst_19 : f32 to vector<8x128xf32>
    %60 = arith.cmpf oge, %58, %59 : vector<8x128xf32>
    %cst_20 = arith.constant 2.000000e-01 : f32
    %61 = vector.broadcast %cst_20 : f32 to vector<8x128xf32>
    %62 = arith.mulf %61, %58 : vector<8x128xf32>
    %63 = arith.select %60, %58, %62 : vector<8x128xi1>, vector<8x128xf32>
    %64 = vector.shape_cast %63 : vector<8x128xf32> to vector<8x1x128xf32>
    %65 = vector.broadcast %64 : vector<8x1x128xf32> to vector<8x2x128xf32>
    %66 = vector.shape_cast %65 : vector<8x2x128xf32> to vector<16x128xf32>
    %c127 = arith.constant 127 : index
    %c0_21 = arith.constant 0 : index
    %67 = vector.load %arg8[%c127, %c0_21] : memref<328x128xf32, #tpu.memory_space<vmem>>, vector<16x128xf32>
    tpu.vector_store %arg8[%c127, %c0_21], %66 {strides = array<i32>} : memref<328x128xf32, #tpu.memory_space<vmem>>, vector<16x128xf32>,
    %c145 = arith.constant 145 : index
    %c0_22 = arith.constant 0 : index
    %68 = vector.load %arg8[%c145, %c0_22] : memref<328x128xf32, #tpu.memory_space<vmem>>, vector<16x128xf32>
    tpu.vector_store %arg8[%c145, %c0_22], %66 {strides = array<i32>} : memref<328x128xf32, #tpu.memory_space<vmem>>, vector<16x128xf32>,
    %c40 = arith.constant 40 : index
    %c0_23 = arith.constant 0 : index
    %69 = vector.load %arg1[%c40, %c0_23] : memref<80x128xbf16, #tpu.memory_space<vmem>>, vector<8x128xbf16>
    %70 = arith.extf %69 : vector<8x128xbf16> to vector<8x128xf32>
    %71 = vector.broadcast %3 : vector<1x128xf32> to vector<8x128xf32>
    %72 = arith.mulf %70, %71 : vector<8x128xf32>
    %73 = vector.broadcast %4 : vector<1x128xf32> to vector<8x128xf32>
    %74 = arith.addf %72, %73 : vector<8x128xf32>
    %cst_24 = arith.constant 0.000000e+00 : f32
    %75 = vector.broadcast %cst_24 : f32 to vector<8x128xf32>
    %76 = arith.cmpf oge, %74, %75 : vector<8x128xf32>
    %cst_25 = arith.constant 2.000000e-01 : f32
    %77 = vector.broadcast %cst_25 : f32 to vector<8x128xf32>
    %78 = arith.mulf %77, %74 : vector<8x128xf32>
    %79 = arith.select %76, %74, %78 : vector<8x128xi1>, vector<8x128xf32>
    %80 = vector.shape_cast %79 : vector<8x128xf32> to vector<8x1x128xf32>
    %81 = vector.broadcast %80 : vector<8x1x128xf32> to vector<8x2x128xf32>
    %82 = vector.shape_cast %81 : vector<8x2x128xf32> to vector<16x128xf32>
    %c163 = arith.constant 163 : index
    %c0_26 = arith.constant 0 : index
    %83 = vector.load %arg8[%c163, %c0_26] : memref<328x128xf32, #tpu.memory_space<vmem>>, vector<16x128xf32>
    tpu.vector_store %arg8[%c163, %c0_26], %82 {strides = array<i32>} : memref<328x128xf32, #tpu.memory_space<vmem>>, vector<16x128xf32>,
    %c181 = arith.constant 181 : index
    %c0_27 = arith.constant 0 : index
    %84 = vector.load %arg8[%c181, %c0_27] : memref<328x128xf32, #tpu.memory_space<vmem>>, vector<16x128xf32>
    tpu.vector_store %arg8[%c181, %c0_27], %82 {strides = array<i32>} : memref<328x128xf32, #tpu.memory_space<vmem>>, vector<16x128xf32>,
    %c50 = arith.constant 50 : index
    %c0_28 = arith.constant 0 : index
    %85 = vector.load %arg1[%c50, %c0_28] : memref<80x128xbf16, #tpu.memory_space<vmem>>, vector<8x128xbf16>
    %86 = arith.extf %85 : vector<8x128xbf16> to vector<8x128xf32>
    %87 = vector.broadcast %3 : vector<1x128xf32> to vector<8x128xf32>
    %88 = arith.mulf %86, %87 : vector<8x128xf32>
    %89 = vector.broadcast %4 : vector<1x128xf32> to vector<8x128xf32>
    %90 = arith.addf %88, %89 : vector<8x128xf32>
    %cst_29 = arith.constant 0.000000e+00 : f32
    %91 = vector.broadcast %cst_29 : f32 to vector<8x128xf32>
    %92 = arith.cmpf oge, %90, %91 : vector<8x128xf32>
    %cst_30 = arith.constant 2.000000e-01 : f32
    %93 = vector.broadcast %cst_30 : f32 to vector<8x128xf32>
    %94 = arith.mulf %93, %90 : vector<8x128xf32>
    %95 = arith.select %92, %90, %94 : vector<8x128xi1>, vector<8x128xf32>
    %96 = vector.shape_cast %95 : vector<8x128xf32> to vector<8x1x128xf32>
    %97 = vector.broadcast %96 : vector<8x1x128xf32> to vector<8x2x128xf32>
    %98 = vector.shape_cast %97 : vector<8x2x128xf32> to vector<16x128xf32>
    %c199 = arith.constant 199 : index
    %c0_31 = arith.constant 0 : index
    %99 = vector.load %arg8[%c199, %c0_31] : memref<328x128xf32, #tpu.memory_space<vmem>>, vector<16x128xf32>
    tpu.vector_store %arg8[%c199, %c0_31], %98 {strides = array<i32>} : memref<328x128xf32, #tpu.memory_space<vmem>>, vector<16x128xf32>,
    %c217 = arith.constant 217 : index
    %c0_32 = arith.constant 0 : index
    %100 = vector.load %arg8[%c217, %c0_32] : memref<328x128xf32, #tpu.memory_space<vmem>>, vector<16x128xf32>
    tpu.vector_store %arg8[%c217, %c0_32], %98 {strides = array<i32>} : memref<328x128xf32, #tpu.memory_space<vmem>>, vector<16x128xf32>,
    %c60 = arith.constant 60 : index
    %c0_33 = arith.constant 0 : index
    %101 = vector.load %arg1[%c60, %c0_33] : memref<80x128xbf16, #tpu.memory_space<vmem>>, vector<8x128xbf16>
    %102 = arith.extf %101 : vector<8x128xbf16> to vector<8x128xf32>
    %103 = vector.broadcast %3 : vector<1x128xf32> to vector<8x128xf32>
    %104 = arith.mulf %102, %103 : vector<8x128xf32>
    %105 = vector.broadcast %4 : vector<1x128xf32> to vector<8x128xf32>
    %106 = arith.addf %104, %105 : vector<8x128xf32>
    %cst_34 = arith.constant 0.000000e+00 : f32
    %107 = vector.broadcast %cst_34 : f32 to vector<8x128xf32>
    %108 = arith.cmpf oge, %106, %107 : vector<8x128xf32>
    %cst_35 = arith.constant 2.000000e-01 : f32
    %109 = vector.broadcast %cst_35 : f32 to vector<8x128xf32>
    %110 = arith.mulf %109, %106 : vector<8x128xf32>
    %111 = arith.select %108, %106, %110 : vector<8x128xi1>, vector<8x128xf32>
    %112 = vector.shape_cast %111 : vector<8x128xf32> to vector<8x1x128xf32>
    %113 = vector.broadcast %112 : vector<8x1x128xf32> to vector<8x2x128xf32>
    %114 = vector.shape_cast %113 : vector<8x2x128xf32> to vector<16x128xf32>
    %c235 = arith.constant 235 : index
    %c0_36 = arith.constant 0 : index
    %115 = vector.load %arg8[%c235, %c0_36] : memref<328x128xf32, #tpu.memory_space<vmem>>, vector<16x128xf32>
    tpu.vector_store %arg8[%c235, %c0_36], %114 {strides = array<i32>} : memref<328x128xf32, #tpu.memory_space<vmem>>, vector<16x128xf32>,
    %c253 = arith.constant 253 : index
    %c0_37 = arith.constant 0 : index
    %116 = vector.load %arg8[%c253, %c0_37] : memref<328x128xf32, #tpu.memory_space<vmem>>, vector<16x128xf32>
    tpu.vector_store %arg8[%c253, %c0_37], %114 {strides = array<i32>} : memref<328x128xf32, #tpu.memory_space<vmem>>, vector<16x128xf32>,
    %c70 = arith.constant 70 : index
    %c0_38 = arith.constant 0 : index
    %117 = vector.load %arg1[%c70, %c0_38] : memref<80x128xbf16, #tpu.memory_space<vmem>>, vector<8x128xbf16>
    %118 = arith.extf %117 : vector<8x128xbf16> to vector<8x128xf32>
    %119 = vector.broadcast %3 : vector<1x128xf32> to vector<8x128xf32>
    %120 = arith.mulf %118, %119 : vector<8x128xf32>
    %121 = vector.broadcast %4 : vector<1x128xf32> to vector<8x128xf32>
    %122 = arith.addf %120, %121 : vector<8x128xf32>
    %cst_39 = arith.constant 0.000000e+00 : f32
    %123 = vector.broadcast %cst_39 : f32 to vector<8x128xf32>
    %124 = arith.cmpf oge, %122, %123 : vector<8x128xf32>
    %cst_40 = arith.constant 2.000000e-01 : f32
    %125 = vector.broadcast %cst_40 : f32 to vector<8x128xf32>
    %126 = arith.mulf %125, %122 : vector<8x128xf32>
    %127 = arith.select %124, %122, %126 : vector<8x128xi1>, vector<8x128xf32>
    %128 = vector.shape_cast %127 : vector<8x128xf32> to vector<8x1x128xf32>
    %129 = vector.broadcast %128 : vector<8x1x128xf32> to vector<8x2x128xf32>
    %130 = vector.shape_cast %129 : vector<8x2x128xf32> to vector<16x128xf32>
    %c271 = arith.constant 271 : index
    %c0_41 = arith.constant 0 : index
    %131 = vector.load %arg8[%c271, %c0_41] : memref<328x128xf32, #tpu.memory_space<vmem>>, vector<16x128xf32>
    tpu.vector_store %arg8[%c271, %c0_41], %130 {strides = array<i32>} : memref<328x128xf32, #tpu.memory_space<vmem>>, vector<16x128xf32>,
    %c289 = arith.constant 289 : index
    %c0_42 = arith.constant 0 : index
    %132 = vector.load %arg8[%c289, %c0_42] : memref<328x128xf32, #tpu.memory_space<vmem>>, vector<16x128xf32>
    tpu.vector_store %arg8[%c289, %c0_42], %130 {strides = array<i32>} : memref<328x128xf32, #tpu.memory_space<vmem>>, vector<16x128xf32>,
    %cst_43 = arith.constant 0.000000e+00 : f32
    %133 = vector.broadcast %cst_43 : f32 to vector<288x64xf32>
    %c0_44 = arith.constant 0 : index
    %c0_45 = arith.constant 0 : index
    %134 = vector.load %arg8[%c0_44, %c0_45] : memref<328x128xf32, #tpu.memory_space<vmem>>, vector<288x128xf32>
    %135 = arith.truncf %134 : vector<288x128xf32> to vector<288x128xbf16>
    %c0_46 = arith.constant 0 : index
    %c0_47 = arith.constant 0 : index
    %c0_48 = arith.constant 0 : index
    %c0_49 = arith.constant 0 : index
    %136 = vector.load %arg4[%c0_46, %c0_47, %c0_48, %c0_49] : memref<3x3x128x64xbf16, #tpu.memory_space<vmem>>, vector<1x1x128x64xbf16>
    %137 = vector.shape_cast %136 : vector<1x1x128x64xbf16> to vector<128x64xbf16>
    %cst_50 = arith.constant dense<0.000000e+00> : vector<288x64xf32>
    %138 = tpu.matmul %135, %137, %cst_50 {dimension_numbers = #tpu.dot_dimension_numbers<[1], [0], [0], [1], [0, 0, 1, 1], [], []>} : vector<288x128xbf16>, vector<128x64xbf16>, vector<288x64xf32> -> vector<288x64xf32>
    %139 = arith.addf %133, %138 : vector<288x64xf32>
    %c1_51 = arith.constant 1 : index
    %c0_52 = arith.constant 0 : index
    %140 = vector.load %arg8[%c1_51, %c0_52] : memref<328x128xf32, #tpu.memory_space<vmem>>, vector<288x128xf32>
    %141 = arith.truncf %140 : vector<288x128xf32> to vector<288x128xbf16>
    %c0_53 = arith.constant 0 : index
    %c1_54 = arith.constant 1 : index
    %c0_55 = arith.constant 0 : index
    %c0_56 = arith.constant 0 : index
    %142 = vector.load %arg4[%c0_53, %c1_54, %c0_55, %c0_56] : memref<3x3x128x64xbf16, #tpu.memory_space<vmem>>, vector<1x1x128x64xbf16>
    %143 = vector.shape_cast %142 : vector<1x1x128x64xbf16> to vector<128x64xbf16>
    %cst_57 = arith.constant dense<0.000000e+00> : vector<288x64xf32>
    %144 = tpu.matmul %141, %143, %cst_57 {dimension_numbers = #tpu.dot_dimension_numbers<[1], [0], [0], [1], [0, 0, 1, 1], [], []>} : vector<288x128xbf16>, vector<128x64xbf16>, vector<288x64xf32> -> vector<288x64xf32>
    %145 = arith.addf %139, %144 : vector<288x64xf32>
    %c2 = arith.constant 2 : index
    %c0_58 = arith.constant 0 : index
    %146 = vector.load %arg8[%c2, %c0_58] : memref<328x128xf32, #tpu.memory_space<vmem>>, vector<288x128xf32>
    %147 = arith.truncf %146 : vector<288x128xf32> to vector<288x128xbf16>
    %c0_59 = arith.constant 0 : index
    %c2_60 = arith.constant 2 : index
    %c0_61 = arith.constant 0 : index
    %c0_62 = arith.constant 0 : index
    %148 = vector.load %arg4[%c0_59, %c2_60, %c0_61, %c0_62] : memref<3x3x128x64xbf16, #tpu.memory_space<vmem>>, vector<1x1x128x64xbf16>
    %149 = vector.shape_cast %148 : vector<1x1x128x64xbf16> to vector<128x64xbf16>
    %cst_63 = arith.constant dense<0.000000e+00> : vector<288x64xf32>
    %150 = tpu.matmul %147, %149, %cst_63 {dimension_numbers = #tpu.dot_dimension_numbers<[1], [0], [0], [1], [0, 0, 1, 1], [], []>} : vector<288x128xbf16>, vector<128x64xbf16>, vector<288x64xf32> -> vector<288x64xf32>
    %151 = arith.addf %145, %150 : vector<288x64xf32>
    %c18 = arith.constant 18 : index
    %c0_64 = arith.constant 0 : index
    %152 = vector.load %arg8[%c18, %c0_64] : memref<328x128xf32, #tpu.memory_space<vmem>>, vector<288x128xf32>
    %153 = arith.truncf %152 : vector<288x128xf32> to vector<288x128xbf16>
    %c1_65 = arith.constant 1 : index
    %c0_66 = arith.constant 0 : index
    %c0_67 = arith.constant 0 : index
    %c0_68 = arith.constant 0 : index
    %154 = vector.load %arg4[%c1_65, %c0_66, %c0_67, %c0_68] : memref<3x3x128x64xbf16, #tpu.memory_space<vmem>>, vector<1x1x128x64xbf16>
    %155 = vector.shape_cast %154 : vector<1x1x128x64xbf16> to vector<128x64xbf16>
    %cst_69 = arith.constant dense<0.000000e+00> : vector<288x64xf32>
    %156 = tpu.matmul %153, %155, %cst_69 {dimension_numbers = #tpu.dot_dimension_numbers<[1], [0], [0], [1], [0, 0, 1, 1], [], []>} : vector<288x128xbf16>, vector<128x64xbf16>, vector<288x64xf32> -> vector<288x64xf32>
    %157 = arith.addf %151, %156 : vector<288x64xf32>
    %c19_70 = arith.constant 19 : index
    %c0_71 = arith.constant 0 : index
    %158 = vector.load %arg8[%c19_70, %c0_71] : memref<328x128xf32, #tpu.memory_space<vmem>>, vector<288x128xf32>
    %159 = arith.truncf %158 : vector<288x128xf32> to vector<288x128xbf16>
    %c1_72 = arith.constant 1 : index
    %c1_73 = arith.constant 1 : index
    %c0_74 = arith.constant 0 : index
    %c0_75 = arith.constant 0 : index
    %160 = vector.load %arg4[%c1_72, %c1_73, %c0_74, %c0_75] : memref<3x3x128x64xbf16, #tpu.memory_space<vmem>>, vector<1x1x128x64xbf16>
    %161 = vector.shape_cast %160 : vector<1x1x128x64xbf16> to vector<128x64xbf16>
    %cst_76 = arith.constant dense<0.000000e+00> : vector<288x64xf32>
    %162 = tpu.matmul %159, %161, %cst_76 {dimension_numbers = #tpu.dot_dimension_numbers<[1], [0], [0], [1], [0, 0, 1, 1], [], []>} : vector<288x128xbf16>, vector<128x64xbf16>, vector<288x64xf32> -> vector<288x64xf32>
    %163 = arith.addf %157, %162 : vector<288x64xf32>
    %c20_77 = arith.constant 20 : index
    %c0_78 = arith.constant 0 : index
    %164 = vector.load %arg8[%c20_77, %c0_78] : memref<328x128xf32, #tpu.memory_space<vmem>>, vector<288x128xf32>
    %165 = arith.truncf %164 : vector<288x128xf32> to vector<288x128xbf16>
    %c1_79 = arith.constant 1 : index
    %c2_80 = arith.constant 2 : index
    %c0_81 = arith.constant 0 : index
    %c0_82 = arith.constant 0 : index
    %166 = vector.load %arg4[%c1_79, %c2_80, %c0_81, %c0_82] : memref<3x3x128x64xbf16, #tpu.memory_space<vmem>>, vector<1x1x128x64xbf16>
    %167 = vector.shape_cast %166 : vector<1x1x128x64xbf16> to vector<128x64xbf16>
    %cst_83 = arith.constant dense<0.000000e+00> : vector<288x64xf32>
    %168 = tpu.matmul %165, %167, %cst_83 {dimension_numbers = #tpu.dot_dimension_numbers<[1], [0], [0], [1], [0, 0, 1, 1], [], []>} : vector<288x128xbf16>, vector<128x64xbf16>, vector<288x64xf32> -> vector<288x64xf32>
    %169 = arith.addf %163, %168 : vector<288x64xf32>
    %c36 = arith.constant 36 : index
    %c0_84 = arith.constant 0 : index
    %170 = vector.load %arg8[%c36, %c0_84] : memref<328x128xf32, #tpu.memory_space<vmem>>, vector<288x128xf32>
    %171 = arith.truncf %170 : vector<288x128xf32> to vector<288x128xbf16>
    %c2_85 = arith.constant 2 : index
    %c0_86 = arith.constant 0 : index
    %c0_87 = arith.constant 0 : index
    %c0_88 = arith.constant 0 : index
    %172 = vector.load %arg4[%c2_85, %c0_86, %c0_87, %c0_88] : memref<3x3x128x64xbf16, #tpu.memory_space<vmem>>, vector<1x1x128x64xbf16>
    %173 = vector.shape_cast %172 : vector<1x1x128x64xbf16> to vector<128x64xbf16>
    %cst_89 = arith.constant dense<0.000000e+00> : vector<288x64xf32>
    %174 = tpu.matmul %171, %173, %cst_89 {dimension_numbers = #tpu.dot_dimension_numbers<[1], [0], [0], [1], [0, 0, 1, 1], [], []>} : vector<288x128xbf16>, vector<128x64xbf16>, vector<288x64xf32> -> vector<288x64xf32>
    %175 = arith.addf %169, %174 : vector<288x64xf32>
    %c37_90 = arith.constant 37 : index
    %c0_91 = arith.constant 0 : index
    %176 = vector.load %arg8[%c37_90, %c0_91] : memref<328x128xf32, #tpu.memory_space<vmem>>, vector<288x128xf32>
    %177 = arith.truncf %176 : vector<288x128xf32> to vector<288x128xbf16>
    %c2_92 = arith.constant 2 : index
    %c1_93 = arith.constant 1 : index
    %c0_94 = arith.constant 0 : index
    %c0_95 = arith.constant 0 : index
    %178 = vector.load %arg4[%c2_92, %c1_93, %c0_94, %c0_95] : memref<3x3x128x64xbf16, #tpu.memory_space<vmem>>, vector<1x1x128x64xbf16>
    %179 = vector.shape_cast %178 : vector<1x1x128x64xbf16> to vector<128x64xbf16>
    %cst_96 = arith.constant dense<0.000000e+00> : vector<288x64xf32>
    %180 = tpu.matmul %177, %179, %cst_96 {dimension_numbers = #tpu.dot_dimension_numbers<[1], [0], [0], [1], [0, 0, 1, 1], [], []>} : vector<288x128xbf16>, vector<128x64xbf16>, vector<288x64xf32> -> vector<288x64xf32>
    %181 = arith.addf %175, %180 : vector<288x64xf32>
    %c38 = arith.constant 38 : index
    %c0_97 = arith.constant 0 : index
    %182 = vector.load %arg8[%c38, %c0_97] : memref<328x128xf32, #tpu.memory_space<vmem>>, vector<288x128xf32>
    %183 = arith.truncf %182 : vector<288x128xf32> to vector<288x128xbf16>
    %c2_98 = arith.constant 2 : index
    %c2_99 = arith.constant 2 : index
    %c0_100 = arith.constant 0 : index
    %c0_101 = arith.constant 0 : index
    %184 = vector.load %arg4[%c2_98, %c2_99, %c0_100, %c0_101] : memref<3x3x128x64xbf16, #tpu.memory_space<vmem>>, vector<1x1x128x64xbf16>
    %185 = vector.shape_cast %184 : vector<1x1x128x64xbf16> to vector<128x64xbf16>
    %cst_102 = arith.constant dense<0.000000e+00> : vector<288x64xf32>
    %186 = tpu.matmul %183, %185, %cst_102 {dimension_numbers = #tpu.dot_dimension_numbers<[1], [0], [0], [1], [0, 0, 1, 1], [], []>} : vector<288x128xbf16>, vector<128x64xbf16>, vector<288x64xf32> -> vector<288x64xf32>
    %187 = arith.addf %181, %186 : vector<288x64xf32>
    %188 = arith.truncf %187 : vector<288x64xf32> to vector<288x64xbf16>
    %c0_103 = arith.constant 0 : index
    %c0_104 = arith.constant 0 : index
    %189 = vector.load %arg6[%c0_103, %c0_104] : memref<288x64xbf16, #tpu.memory_space<vmem>>, vector<288x64xbf16>
    tpu.vector_store %arg6[%c0_103, %c0_104], %188 {strides = array<i32>} : memref<288x64xbf16, #tpu.memory_space<vmem>>, vector<288x64xbf16>,
    %c0_105 = arith.constant 0 : index
    %c0_106 = arith.constant 0 : index
    %190 = vector.load %arg5[%c0_105, %c0_106] : memref<288x1xf32, #tpu.memory_space<vmem>>, vector<288x1xf32>
    %191 = vector.broadcast %190 : vector<288x1xf32> to vector<288x64xf32>
    %192 = arith.mulf %187, %191 : vector<288x64xf32>
    %c0_107 = arith.constant 0 : index
    %c0_108 = arith.constant 0 : index
    %193 = vector.load %arg7[%c0_107, %c0_108] : memref<2x64xf32, #tpu.memory_space<vmem>>, vector<1x64xf32>
    %cst_109 = arith.constant dense<0.000000e+00> : vector<64xf32>
    %194 = vector.multi_reduction <add>, %192, %cst_109 [0] : vector<288x64xf32> to vector<64xf32>
    %195 = vector.shape_cast %194 : vector<64xf32> to vector<1x64xf32>
    %196 = arith.addf %193, %195 : vector<1x64xf32>
    %c0_110 = arith.constant 0 : index
    %c0_111 = arith.constant 0 : index
    %197 = vector.load %arg7[%c0_110, %c0_111] : memref<2x64xf32, #tpu.memory_space<vmem>>, vector<1x64xf32>
    tpu.vector_store %arg7[%c0_110, %c0_111], %196 {strides = array<i32>} : memref<2x64xf32, #tpu.memory_space<vmem>>, vector<1x64xf32>,
    %c1_112 = arith.constant 1 : index
    %c0_113 = arith.constant 0 : index
    %198 = vector.load %arg7[%c1_112, %c0_113] : memref<2x64xf32, #tpu.memory_space<vmem>>, vector<1x64xf32>
    %199 = arith.mulf %192, %187 : vector<288x64xf32>
    %cst_114 = arith.constant dense<0.000000e+00> : vector<64xf32>
    %200 = vector.multi_reduction <add>, %199, %cst_114 [0] : vector<288x64xf32> to vector<64xf32>
    %201 = vector.shape_cast %200 : vector<64xf32> to vector<1x64xf32>
    %202 = arith.addf %198, %201 : vector<1x64xf32>
    %c1_115 = arith.constant 1 : index
    %c0_116 = arith.constant 0 : index
    %203 = vector.load %arg7[%c1_115, %c0_116] : memref<2x64xf32, #tpu.memory_space<vmem>>, vector<1x64xf32>
    tpu.vector_store %arg7[%c1_115, %c0_116], %202 {strides = array<i32>} : memref<2x64xf32, #tpu.memory_space<vmem>>, vector<1x64xf32>,
    %c1_i32 = arith.constant 1 : i32
    %204 = arith.cmpi eq, %arg0, %c1_i32 : i32
    %205 = arith.extui %204 : i1 to i32
    %c0_i32_117 = arith.constant 0 : i32
    %206 = arith.cmpi ne, %205, %c0_i32_117 : i32
    scf.if %206 {
      %c0_118 = arith.constant 0 : index
      %c0_119 = arith.constant 0 : index
      %207 = vector.load %arg7[%c0_118, %c0_119] : memref<2x64xf32, #tpu.memory_space<vmem>>, vector<1x64xf32>
      %cst_120 = arith.constant 5.120000e+02 : f32
      %208 = vector.broadcast %cst_120 : f32 to vector<1x64xf32>
      %209 = arith.divf %207, %208 : vector<1x64xf32>
      %c1_121 = arith.constant 1 : index
      %c0_122 = arith.constant 0 : index
      %210 = vector.load %arg7[%c1_121, %c0_122] : memref<2x64xf32, #tpu.memory_space<vmem>>, vector<1x64xf32>
      %cst_123 = arith.constant 5.120000e+02 : f32
      %211 = vector.broadcast %cst_123 : f32 to vector<1x64xf32>
      %212 = arith.divf %210, %211 : vector<1x64xf32>
      %213 = arith.mulf %209, %209 : vector<1x64xf32>
      %214 = arith.subf %212, %213 : vector<1x64xf32>
      %cst_124 = arith.constant 8.000000e-01 : f32
      %215 = vector.broadcast %cst_124 : f32 to vector<1x64xf32>
      %216 = arith.addf %214, %215 : vector<1x64xf32>
      %217 = math.rsqrt %216 : vector<1x64xf32>
      %c0_125 = arith.constant 0 : index
      %c0_126 = arith.constant 0 : index
      %218 = vector.load %arg3[%c0_125, %c0_126] : memref<2x64xf32, #tpu.memory_space<vmem>>, vector<1x64xf32>
      %219 = arith.mulf %218, %217 : vector<1x64xf32>
      %c0_127 = arith.constant 0 : index
      %c0_128 = arith.constant 0 : index
      %220 = vector.load %arg7[%c0_127, %c0_128] : memref<2x64xf32, #tpu.memory_space<vmem>>, vector<1x64xf32>
      tpu.vector_store %arg7[%c0_127, %c0_128], %219 {strides = array<i32>} : memref<2x64xf32, #tpu.memory_space<vmem>>, vector<1x64xf32>,
      %c1_129 = arith.constant 1 : index
      %c0_130 = arith.constant 0 : index
      %221 = vector.load %arg3[%c1_129, %c0_130] : memref<2x64xf32, #tpu.memory_space<vmem>>, vector<1x64xf32>
      %222 = arith.mulf %209, %219 : vector<1x64xf32>
      %223 = arith.subf %221, %222 : vector<1x64xf32>
      %c1_131 = arith.constant 1 : index
      %c0_132 = arith.constant 0 : index
      %224 = vector.load %arg7[%c1_131, %c0_132] : memref<2x64xf32, #tpu.memory_space<vmem>>, vector<1x64xf32>
      tpu.vector_store %arg7[%c1_131, %c0_132], %223 {strides = array<i32>} : memref<2x64xf32, #tpu.memory_space<vmem>>, vector<1x64xf32>,
    } else {
    }
    return
  }
  func.func @transform_0(%arg0: i32) -> (i32, i32) {
    %c0_i32 = arith.constant 0 : i32
    %c0_i32_0 = arith.constant 0 : i32
    return %arg0, %c0_i32 : i32, i32
  }
  func.func @transform_1(%arg0: i32) -> (i32, i32) {
    %c0_i32 = arith.constant 0 : i32
    %c0_i32_0 = arith.constant 0 : i32
    %c0_i32_1 = arith.constant 0 : i32
    return %c0_i32, %c0_i32_0 : i32, i32
  }
  func.func @transform_2(%arg0: i32) -> (i32, i32) {
    %c0_i32 = arith.constant 0 : i32
    %c0_i32_0 = arith.constant 0 : i32
    %c0_i32_1 = arith.constant 0 : i32
    return %c0_i32, %c0_i32_0 : i32, i32
  }
  func.func @transform_3(%arg0: i32) -> (i32, i32, i32, i32) {
    %c0_i32 = arith.constant 0 : i32
    %c0_i32_0 = arith.constant 0 : i32
    %c0_i32_1 = arith.constant 0 : i32
    %c0_i32_2 = arith.constant 0 : i32
    %c0_i32_3 = arith.constant 0 : i32
    return %c0_i32, %c0_i32_0, %c0_i32_1, %c0_i32_2 : i32, i32, i32, i32
  }
  func.func @transform_4(%arg0: i32) -> (i32, i32) {
    %c0_i32 = arith.constant 0 : i32
    %c0_i32_0 = arith.constant 0 : i32
    %c0_i32_1 = arith.constant 0 : i32
    return %c0_i32, %c0_i32_0 : i32, i32
  }
  func.func @transform_5(%arg0: i32) -> (i32, i32) {
    %c0_i32 = arith.constant 0 : i32
    %c0_i32_0 = arith.constant 0 : i32
    return %arg0, %c0_i32 : i32, i32
  }
  func.func @transform_6(%arg0: i32) -> (i32, i32) {
    %c0_i32 = arith.constant 0 : i32
    %c0_i32_0 = arith.constant 0 : i32
    %c0_i32_1 = arith.constant 0 : i32
    return %c0_i32, %c0_i32_0 : i32, i32
  }
}

module attributes {stable_mosaic.version = 11 : i64} {
  func.func @_tail_kernel(%arg0: i32, %arg1: memref<288x64xbf16, #tpu.memory_space<vmem>>, %arg2: memref<2x64xf32, #tpu.memory_space<vmem>>, %arg3: memref<64x128xbf16, #tpu.memory_space<vmem>>, %arg4: memref<1x128xf32, #tpu.memory_space<vmem>>, %arg5: memref<288x128xf32, #tpu.memory_space<vmem>>) attributes {dimension_semantics = [#tpu.dimension_semantics<parallel>], iteration_bounds = array<i64: 2>, scalar_prefetch = 0 : i64, scratch_operands = 0 : i64, tpu.core_type = #tpu.core_type<tc>, window_params = [{transform_indices = @transform_0, window_bounds = array<i64: 288, 64>}, {pipeline_mode = #tpu.pipeline_mode<synchronous>, transform_indices = @transform_1, window_bounds = array<i64: 2, 64>}, {pipeline_mode = #tpu.pipeline_mode<synchronous>, transform_indices = @transform_2, window_bounds = array<i64: 64, 128>}, {pipeline_mode = #tpu.pipeline_mode<synchronous>, transform_indices = @transform_3, window_bounds = array<i64: 1, 128>}, {transform_indices = @transform_4, window_bounds = array<i64: 288, 128>}]} {
    %c0 = arith.constant 0 : index
    %c0_0 = arith.constant 0 : index
    %0 = vector.load %arg1[%c0, %c0_0] : memref<288x64xbf16, #tpu.memory_space<vmem>>, vector<288x64xbf16>
    %1 = arith.extf %0 : vector<288x64xbf16> to vector<288x64xf32>
    %c0_1 = arith.constant 0 : index
    %c0_2 = arith.constant 0 : index
    %2 = vector.load %arg2[%c0_1, %c0_2] : memref<2x64xf32, #tpu.memory_space<vmem>>, vector<1x64xf32>
    %3 = vector.broadcast %2 : vector<1x64xf32> to vector<288x64xf32>
    %4 = arith.mulf %1, %3 : vector<288x64xf32>
    %c1 = arith.constant 1 : index
    %c0_3 = arith.constant 0 : index
    %5 = vector.load %arg2[%c1, %c0_3] : memref<2x64xf32, #tpu.memory_space<vmem>>, vector<1x64xf32>
    %6 = vector.broadcast %5 : vector<1x64xf32> to vector<288x64xf32>
    %7 = arith.addf %4, %6 : vector<288x64xf32>
    %cst = arith.constant 0.000000e+00 : f32
    %8 = vector.broadcast %cst : f32 to vector<288x64xf32>
    %9 = arith.cmpf oge, %7, %8 : vector<288x64xf32>
    %cst_4 = arith.constant 2.000000e-01 : f32
    %10 = vector.broadcast %cst_4 : f32 to vector<288x64xf32>
    %11 = arith.mulf %10, %7 : vector<288x64xf32>
    %12 = arith.select %9, %7, %11 : vector<288x64xi1>, vector<288x64xf32>
    %13 = arith.truncf %12 : vector<288x64xf32> to vector<288x64xbf16>
    %c0_5 = arith.constant 0 : index
    %c0_6 = arith.constant 0 : index
    %14 = vector.load %arg3[%c0_5, %c0_6] : memref<64x128xbf16, #tpu.memory_space<vmem>>, vector<64x128xbf16>
    %cst_7 = arith.constant dense<0.000000e+00> : vector<288x128xf32>
    %15 = tpu.matmul %13, %14, %cst_7 {dimension_numbers = #tpu.dot_dimension_numbers<[1], [0], [0], [1], [0, 0, 1, 1], [], []>} : vector<288x64xbf16>, vector<64x128xbf16>, vector<288x128xf32> -> vector<288x128xf32>
    %c0_8 = arith.constant 0 : index
    %c0_9 = arith.constant 0 : index
    %16 = vector.load %arg4[%c0_8, %c0_9] : memref<1x128xf32, #tpu.memory_space<vmem>>, vector<1x128xf32>
    %17 = vector.broadcast %16 : vector<1x128xf32> to vector<288x128xf32>
    %18 = arith.addf %15, %17 : vector<288x128xf32>
    %19 = math.tanh %18 : vector<288x128xf32>
    %c0_10 = arith.constant 0 : index
    %c0_11 = arith.constant 0 : index
    %20 = vector.load %arg5[%c0_10, %c0_11] : memref<288x128xf32, #tpu.memory_space<vmem>>, vector<288x128xf32>
    tpu.vector_store %arg5[%c0_10, %c0_11], %19 {strides = array<i32>} : memref<288x128xf32, #tpu.memory_space<vmem>>, vector<288x128xf32>,
    return
  }
  func.func @transform_0(%arg0: i32) -> (i32, i32) {
    %c0_i32 = arith.constant 0 : i32
    %c0_i32_0 = arith.constant 0 : i32
    return %arg0, %c0_i32 : i32, i32
  }
  func.func @transform_1(%arg0: i32) -> (i32, i32) {
    %c0_i32 = arith.constant 0 : i32
    %c0_i32_0 = arith.constant 0 : i32
    %c0_i32_1 = arith.constant 0 : i32
    return %c0_i32, %c0_i32_0 : i32, i32
  }
  func.func @transform_2(%arg0: i32) -> (i32, i32) {
    %c0_i32 = arith.constant 0 : i32
    %c0_i32_0 = arith.constant 0 : i32
    %c0_i32_1 = arith.constant 0 : i32
    return %c0_i32, %c0_i32_0 : i32, i32
  }
  func.func @transform_3(%arg0: i32) -> (i32, i32) {
    %c0_i32 = arith.constant 0 : i32
    %c0_i32_0 = arith.constant 0 : i32
    %c0_i32_1 = arith.constant 0 : i32
    return %c0_i32, %c0_i32_0 : i32, i32
  }
  func.func @transform_4(%arg0: i32) -> (i32, i32) {
    %c0_i32 = arith.constant 0 : i32
    %c0_i32_0 = arith.constant 0 : i32
    return %arg0, %c0_i32 : i32, i32
  }
}

</mosaic_0001>

<llo_original>
// kernel: conv_generator_upsample.6
$region0: #{conv_generator_upsample.6}
  #allocation0 [shape = 'u32[]', space=smem, size = 0x4, offset = 0x4, fixed_abs, tag = 'smem constant byte address 0x4 - core index']
  #allocation1 [shape = 'u32[144,128]{1,0:T(1,128)}', space=vmem, size = 0x12000, scoped, tag = 'internal scratch']
  %s0 = inlined_call_operand.vmem [shape: bf16[32,128], index: 0, kind: input, shape index: {}]
  %s1 = inlined_call_operand.vmem [shape: f32[2,128], index: 1, kind: input, shape index: {}]
  %s2 = inlined_call_operand.vmem [shape: f32[2,128], index: 2, kind: output, shape index: {}]
  %s3 = sld [smem:[#allocation0]]
  $region49: #{conv_generator_upsample.6} parent=0
    _
  %s5 = ssub.s32 1, %s3
  %s6 = scalar_select 0, %s5, %s3
  loop: start=0, step=1, limit=4
  $region2: #{conv_generator_upsample.6} parent=0 // loop_pre_header
    _
  $region3: #{conv_generator_upsample.6} parent=0 // loop_header
    %s8 = sphi 0, %s12
    %p9 = scmp.ge.s32.totalorder %s8, 4
    %s18 = sphi 0, %s20
    %s21 = sphi 0, %s18
    %s22 = sphi 0, %s21
    %s38 = sphi 0, %s22
    %s42 = sphi 0, %s42
    %s44 = sphi 0, %s42
    %s45 = sphi 0, %s44
    %s59 = sphi 0, %s45
    %s63 = sphi 0, %s63
    %s65 = sphi 0, %s63
    %s66 = sphi 0, %s65
    %s80 = sphi 0, %s66
  $region4: #{conv_generator_upsample.6} parent=0 // loop_header_branch
    %11 = sbr.rel (%p9) target = $region8
  $region5: #{conv_generator_upsample.6} parent=0 // loop_body
    %s13 = ssub.s32 %s8, 1
    %s14 = ssub.s32 %s8, 2
    %s15 = sadd.s32 %s8, 1
    %s16 = ssub.s32 %s8, %s15
    %p17 = scmp.eq.s32.totalorder %s16, 0
    %s19 = sadd.s32 %s18, 1
    %s20 = scalar_select %p17, %s18, %s19
    %p23 = pneg %p17
    %p24 = scmp.eq.s32.totalorder %s8, 1
    %p25 = por %p23, %p24
    %p26 = scmp.ne.s32.totalorder %s18, %s21
    %p27 = scmp.eq.s32.totalorder %s8, 0
    %p28 = por %p26, %p27
    %p29 = scmp.ne.s32.totalorder %s18, %s21
    %p30 = scmp.eq.s32.totalorder %s13, 1
    %p31 = por %p29, %p30
    %p32 = scmp.ne.s32.totalorder %s21, %s22
    %p33 = scmp.eq.s32.totalorder %s13, 0
    %p34 = por %p32, %p33
    %p35 = scmp.ne.s32.totalorder %s21, %s22
    %p36 = scmp.eq.s32.totalorder %s14, 1
    %p37 = por %p35, %p36
    %p39 = scmp.ne.s32.totalorder %s22, %s38
    %p40 = scmp.eq.s32.totalorder %s14, 0
    %p41 = por %p39, %p40
    %s43 = sadd.s32 %s42, 1
    %p46 = scmp.eq.s32.totalorder %s8, 1
    %p47 = scmp.ne.s32.totalorder %s42, %s44
    %p48 = scmp.eq.s32.totalorder %s8, 0
    %p49 = por %p47, %p48
    %p50 = scmp.ne.s32.totalorder %s42, %s44
    %p51 = scmp.eq.s32.totalorder %s13, 1
    %p52 = por %p50, %p51
    %p53 = scmp.ne.s32.totalorder %s44, %s45
    %p54 = scmp.eq.s32.totalorder %s13, 0
    %p55 = por %p53, %p54
    %p56 = scmp.ne.s32.totalorder %s44, %s45
    %p57 = scmp.eq.s32.totalorder %s14, 1
    %p58 = por %p56, %p57
    %p60 = scmp.ne.s32.totalorder %s45, %s59
    %p61 = scmp.eq.s32.totalorder %s14, 0
    %p62 = por %p60, %p61
    %s64 = sadd.s32 %s63, 1
    %p67 = scmp.eq.s32.totalorder %s8, 1
    %p68 = scmp.ne.s32.totalorder %s63, %s65
    %p69 = scmp.eq.s32.totalorder %s8, 0
    %p70 = por %p68, %p69
    %p71 = scmp.ne.s32.totalorder %s63, %s65
    %p72 = scmp.eq.s32.totalorder %s13, 1
    %p73 = por %p71, %p72
    %p74 = scmp.ne.s32.totalorder %s65, %s66
    %p75 = scmp.eq.s32.totalorder %s13, 0
    %p76 = por %p74, %p75
    %p77 = scmp.ne.s32.totalorder %s65, %s66
    %p78 = scmp.eq.s32.totalorder %s14, 1
    %p79 = por %p77, %p78
    %p81 = scmp.ne.s32.totalorder %s66, %s80
    %p82 = scmp.eq.s32.totalorder %s14, 0
    %p83 = por %p81, %p82
    %p84 = scmp.le.s32.totalorder 1, %s8
    %p85 = scmp.lt.s32.totalorder %s8, 3
    %p86 = pnand %p84, %p85
    %p87 = pneg %p86
    // Predicated region
    $region9: #{conv_generator_upsample.6} parent=5 // pred_check
      _
    $region10: #{conv_generator_upsample.6} parent=5 // pred_check_branch
      %89 = sbr.rel (%p86) target = $region12
    $region11: #{conv_generator_upsample.6} parent=5 // pred_region
      %s90 = ssub.s32 %s8, 1
      // Predicated region
      $region13: #{conv_generator_upsample.6} parent=11 // pred_check
        %p91 = pneg %p55
      $region14: #{conv_generator_upsample.6} parent=11 // pred_check_branch
        %93 = sbr.rel (%p91) target = $region16
      $region15: #{conv_generator_upsample.6} parent=11 // pred_region
        _
      $region16: #{conv_generator_upsample.6} parent=11 // pred_fallthru
        _
    $region12: #{conv_generator_upsample.6} parent=5 // pred_fallthru
      _
    %p94 = scmp.lt.s32.totalorder %s8, 2
    // Predicated region
    $region17: #{conv_generator_upsample.6} parent=5 // pred_check
      %p95 = pneg %p94
    $region18: #{conv_generator_upsample.6} parent=5 // pred_check_branch
      %97 = sbr.rel (%p95) target = $region20
    $region19: #{conv_generator_upsample.6} parent=5 // pred_region
      // Predicated region
      $region21: #{conv_generator_upsample.6} parent=19 // pred_check
        %p98 = pneg %p28
      $region22: #{conv_generator_upsample.6} parent=19 // pred_check_branch
        %100 = sbr.rel (%p98) target = $region24
      $region23: #{conv_generator_upsample.6} parent=19 // pred_region
        %s101 = smul.u32 2, %s8
        %p102 = scmp.lt.s32.totalorder %s101, 3
        %s103 = scalar_select %p102, %s101, 3
        %s104 = smul.addr %s103, 4
        %s105 = scalar_lea.vmem %s0, %s104
        %s106 = smul.u32 2, %s8
      $region24: #{conv_generator_upsample.6} parent=19 // pred_fallthru
        _
    $region20: #{conv_generator_upsample.6} parent=5 // pred_fallthru
      _
    %p107 = scmp.le.s32.totalorder 1, %s8
    %p108 = scmp.lt.s32.totalorder %s8, 3
    %p109 = pnand %p107, %p108
    %p110 = pneg %p109
    // Predicated region
    $region25: #{conv_generator_upsample.6} parent=5 // pred_check
      _
    $region26: #{conv_generator_upsample.6} parent=5 // pred_check_branch
      %112 = sbr.rel (%p109) target = $region28
    $region27: #{conv_generator_upsample.6} parent=5 // pred_region
      %s113 = ssub.s32 %s8, 1
      %s114 = smul.u32 2, %s13
      %p115 = scmp.lt.s32.totalorder %s114, 3
      %s116 = scalar_select %p115, %s114, 3
      %s117 = smul.addr %s116, 4
      %s118 = scalar_lea.vmem %s0, %s117
      %p119 = pneg %p34
      %p120 = pneg %p31
      %p121 = pneg %p55
      %p122 = pneg %p52
      %p123 = pneg %p76
      %p124 = pneg %p73
      %s125 = smul.u32 2, %s13
      %p126 = scmp.lt.s32.totalorder %s125, 3
      %s127 = scalar_select %p126, %s125, 3
      %s128 = smul.addr %s127, 4
      %s129 = scalar_lea.vmem %s0, %s128
      %s130 = smul.u32 2, %s13
      %p131 = scmp.eq.s32.totalorder %s13, 0
      // Predicated region
      $region29: #{conv_generator_upsample.6} parent=27 // pred_check
        %p132 = pneg %p131
      $region30: #{conv_generator_upsample.6} parent=27 // pred_check_branch
        %134 = sbr.rel (%p132) target = $region32
      $region31: #{conv_generator_upsample.6} parent=27 // pred_region
        %135 = vst [vmem:[%s2] sm:$0x3] 0.0
      $region32: #{conv_generator_upsample.6} parent=27 // pred_fallthru
        _
      %v136 = vld [vmem:[%s129] sm:$0xf]
      %v137 = vld [vmem:[%s129 + $0x4] sm:$0xf]
      %v138 = vunpack.c.l.bf16 %v136
      %v139 = vunpack.c.l.bf16 %v137
      %v140 = vld [vmem:[%s2] sm:$0x1]
      %v141 = vadd.f32 %v138, %v139
      %v142 = vrot.slane %v141, 4
      %v143 = vadd.f32 %v141, %v142
      %v144 = vrot.slane %v143, 2
      %v145 = vadd.f32 %v143, %v144
      %v146 = vrot.slane %v145, 1
      %v147 = vadd.f32 %v145, %v146
      %v148 = vadd.f32 %v140, %v147
      %149 = vst [vmem:[%s2] sm:$0x1] %v148
      %v150 = vld [vmem:[%s2 + $0x1] sm:$0x1]
      %v151 = vmul.f32 %v138, %v138
      %v152 = vmul.f32 %v139, %v139
      %v153 = vadd.f32 %v151, %v152
      %v154 = vrot.slane %v153, 4
      %v155 = vadd.f32 %v153, %v154
      %v156 = vrot.slane %v155, 2
      %v157 = vadd.f32 %v155, %v156
      %v158 = vrot.slane %v157, 1
      %v159 = vadd.f32 %v157, %v158
      %v160 = vadd.f32 %v150, %v159
      %161 = vst [vmem:[%s2 + $0x1] sm:$0x1] %v160
      %p162 = scmp.eq.s32.totalorder %s13, 1
      // Predicated region
      $region33: #{conv_generator_upsample.6} parent=27 // pred_check
        %p163 = pneg %p162
      $region34: #{conv_generator_upsample.6} parent=27 // pred_check_branch
        %165 = sbr.rel (%p163) target = $region36
      $region35: #{conv_generator_upsample.6} parent=27 // pred_region
        %v166 = vld [vmem:[%s2] sm:$0x1]
        %v167 = vrcp.pop 32.0
        %v168 = vmul.f32 %v166, %v167
        %v169 = vld [vmem:[%s2 + $0x1] sm:$0x1]
        %v170 = vmul.f32 %v169, %v167
        %v171 = vmul.f32 %v168, %v168
        %v172 = vsub.f32 %v170, %v171
        %v173 = vadd.f32 %v172, 1e-05
        %v174 = vrsqrt.pop %v173
        %v175 = vld [vmem:[%s1] sm:$0x1]
        %v176 = vmul.f32 %v175, %v174
        %177 = vst [vmem:[%s2] sm:$0x1] %v176
        %v178 = vld [vmem:[%s1 + $0x1] sm:$0x1]
        %v179 = vmul.f32 %v168, %v176
        %v180 = vsub.f32 %v178, %v179
        %181 = vst [vmem:[%s2 + $0x1] sm:$0x1] %v180
      $region36: #{conv_generator_upsample.6} parent=27 // pred_fallthru
        _
      // Predicated region
      $region37: #{conv_generator_upsample.6} parent=27 // pred_check
        %p182 = pneg %p73
      $region38: #{conv_generator_upsample.6} parent=27 // pred_check_branch
        %184 = sbr.rel (%p182) target = $region40
      $region39: #{conv_generator_upsample.6} parent=27 // pred_region
        _
      $region40: #{conv_generator_upsample.6} parent=27 // pred_fallthru
        _
      // Predicated region
      $region41: #{conv_generator_upsample.6} parent=27 // pred_check
        %p185 = pneg %p73
      $region42: #{conv_generator_upsample.6} parent=27 // pred_check_branch
        %187 = sbr.rel (%p185) target = $region44
      $region43: #{conv_generator_upsample.6} parent=27 // pred_region
        _
      $region44: #{conv_generator_upsample.6} parent=27 // pred_fallthru
        _
    $region28: #{conv_generator_upsample.6} parent=5 // pred_fallthru
      _
    %p188 = scmp.le.s32.totalorder 2, %s8
    // Predicated region
    $region45: #{conv_generator_upsample.6} parent=5 // pred_check
      %p189 = pneg %p188
    $region46: #{conv_generator_upsample.6} parent=5 // pred_check_branch
      %191 = sbr.rel (%p189) target = $region48
    $region47: #{conv_generator_upsample.6} parent=5 // pred_region
      %s192 = ssub.s32 %s8, 2
    $region48: #{conv_generator_upsample.6} parent=5 // pred_fallthru
      _
  $region6: #{conv_generator_upsample.6} parent=0 // loop_footer
    %s12 = sadd.s32 1, %s8
  $region7: #{conv_generator_upsample.6} parent=0 // loop_footer_branch
    %7 = sbr.rel target = $region3
  $region8: #{conv_generator_upsample.6} parent=0 // loop_exit
    _

// kernel: conv_generator_upsample.5
$region0: #{conv_generator_upsample.5}
  #allocation0 [shape = 'u32[]', space=smem, size = 0x4, offset = 0x4, fixed_abs, tag = 'smem constant byte address 0x4 - core index']
  #allocation1 [shape = 'u32[144,128]{1,0:T(1,128)}', space=vmem, size = 0x12000, scoped, tag = 'internal scratch']
  %s0 = inlined_call_operand.vmem [shape: bf16[2,32], index: 0, kind: input, shape index: {}]
  %s1 = inlined_call_operand.hbm [shape: bf16[32,2048], index: 1, kind: input, shape index: {}]
  %s2 = inlined_call_operand.vmem [shape: f32[1,2048], index: 2, kind: input, shape index: {}]
  %s3 = inlined_call_operand.vmem [shape: bf16[2,2048], index: 3, kind: output, shape index: {}]
  %s4 = sld [smem:[#allocation0]]
  $region49: #{conv_generator_upsample.5} parent=0
    _
  %s6 = ssub.s32 1, %s4
  %s7 = scalar_select 0, %s6, %s4
  $region1: #{conv_generator_upsample.5} parent=0
    #allocation2 [shape = 'u8[65536]{0}', space=vmem, size = 0x10000, scoped, tag = 'input window, operand 1']
    #allocation3 [shape = 's32[2]{0}', space=sflag, size = 0x8, scoped, tag = 'scoped memory for conv_generator_upsample.5']
    %8 = vsyncpa [#allocation3], 0
    %s9 = scalar_lea.sflag [#allocation3], 1
    %10 = vsyncpa %s9, 0
    loop: start=0, step=1, limit=6
    $region2: #{conv_generator_upsample.5} parent=1 // loop_pre_header
      _
    $region3: #{conv_generator_upsample.5} parent=1 // loop_header
      %s12 = sphi 0, %s16
      %p13 = scmp.ge.s32.totalorder %s12, 6
      %s20 = sphi 0, %s20
      %s22 = sphi 0, %s20
      %s23 = sphi 0, %s22
      %s37 = sphi 0, %s23
      %s43 = sphi 0, %s45
      %s46 = sphi 0, %s43
      %s47 = sphi 0, %s46
      %s63 = sphi 0, %s47
      %s69 = sphi 0, %s71
      %s72 = sphi 0, %s69
      %s73 = sphi 0, %s72
      %s89 = sphi 0, %s73
      %s95 = sphi 0, %s97
      %s98 = sphi 0, %s95
      %s99 = sphi 0, %s98
      %s115 = sphi 0, %s99
    $region4: #{conv_generator_upsample.5} parent=1 // loop_header_branch
      %15 = sbr.rel (%p13) target = $region8
    $region5: #{conv_generator_upsample.5} parent=1 // loop_body
      %s17 = ssub.s32 %s12, 1
      %s18 = ssub.s32 %s12, 2
      %s19 = sadd.s32 %s12, 1
      %s21 = sadd.s32 %s20, 1
      %p24 = scmp.eq.s32.totalorder %s12, 3
      %p25 = scmp.ne.s32.totalorder %s20, %s22
      %p26 = scmp.eq.s32.totalorder %s12, 0
      %p27 = por %p25, %p26
      %p28 = scmp.ne.s32.totalorder %s20, %s22
      %p29 = scmp.eq.s32.totalorder %s17, 3
      %p30 = por %p28, %p29
      %p31 = scmp.ne.s32.totalorder %s22, %s23
      %p32 = scmp.eq.s32.totalorder %s17, 0
      %p33 = por %p31, %p32
      %p34 = scmp.ne.s32.totalorder %s22, %s23
      %p35 = scmp.eq.s32.totalorder %s18, 3
      %p36 = por %p34, %p35
      %p38 = scmp.ne.s32.totalorder %s23, %s37
      %p39 = scmp.eq.s32.totalorder %s18, 0
      %p40 = por %p38, %p39
      %s41 = ssub.s32 %s12, %s19
      %p42 = scmp.eq.s32.totalorder %s41, 0
      %s44 = sadd.s32 %s43, 1
      %s45 = scalar_select %p42, %s43, %s44
      %p48 = pneg %p42
      %p49 = scmp.eq.s32.totalorder %s12, 3
      %p50 = por %p48, %p49
      %p51 = scmp.ne.s32.totalorder %s43, %s46
      %p52 = scmp.eq.s32.totalorder %s12, 0
      %p53 = por %p51, %p52
      %p54 = scmp.ne.s32.totalorder %s43, %s46
      %p55 = scmp.eq.s32.totalorder %s17, 3
      %p56 = por %p54, %p55
      %p57 = scmp.ne.s32.totalorder %s46, %s47
      %p58 = scmp.eq.s32.totalorder %s17, 0
      %p59 = por %p57, %p58
      %p60 = scmp.ne.s32.totalorder %s46, %s47
      %p61 = scmp.eq.s32.totalorder %s18, 3
      %p62 = por %p60, %p61
      %p64 = scmp.ne.s32.totalorder %s47, %s63
      %p65 = scmp.eq.s32.totalorder %s18, 0
      %p66 = por %p64, %p65
      %s67 = ssub.s32 %s12, %s19
      %p68 = scmp.eq.s32.totalorder %s67, 0
      %s70 = sadd.s32 %s69, 1
      %s71 = scalar_select %p68, %s69, %s70
      %p74 = pneg %p68
      %p75 = scmp.eq.s32.totalorder %s12, 3
      %p76 = por %p74, %p75
      %p77 = scmp.ne.s32.totalorder %s69, %s72
      %p78 = scmp.eq.s32.totalorder %s12, 0
      %p79 = por %p77, %p78
      %p80 = scmp.ne.s32.totalorder %s69, %s72
      %p81 = scmp.eq.s32.totalorder %s17, 3
      %p82 = por %p80, %p81
      %p83 = scmp.ne.s32.totalorder %s72, %s73
      %p84 = scmp.eq.s32.totalorder %s17, 0
      %p85 = por %p83, %p84
      %p86 = scmp.ne.s32.totalorder %s72, %s73
      %p87 = scmp.eq.s32.totalorder %s18, 3
      %p88 = por %p86, %p87
      %p90 = scmp.ne.s32.totalorder %s73, %s89
      %p91 = scmp.eq.s32.totalorder %s18, 0
      %p92 = por %p90, %p91
      %s93 = ssub.s32 %s12, %s19
      %p94 = scmp.eq.s32.totalorder %s93, 0
      %s96 = sadd.s32 %s95, 1
      %s97 = scalar_select %p94, %s95, %s96
      %p100 = pneg %p94
      %p101 = scmp.eq.s32.totalorder %s12, 3
      %p102 = por %p100, %p101
      %p103 = scmp.ne.s32.totalorder %s95, %s98
      %p104 = scmp.eq.s32.totalorder %s12, 0
      %p105 = por %p103, %p104
      %p106 = scmp.ne.s32.totalorder %s95, %s98
      %p107 = scmp.eq.s32.totalorder %s17, 3
      %p108 = por %p106, %p107
      %p109 = scmp.ne.s32.totalorder %s98, %s99
      %p110 = scmp.eq.s32.totalorder %s17, 0
      %p111 = por %p109, %p110
      %p112 = scmp.ne.s32.totalorder %s98, %s99
      %p113 = scmp.eq.s32.totalorder %s18, 3
      %p114 = por %p112, %p113
      %p116 = scmp.ne.s32.totalorder %s99, %s115
      %p117 = scmp.eq.s32.totalorder %s18, 0
      %p118 = por %p116, %p117
      %p119 = scmp.le.s32.totalorder 1, %s12
      %p120 = scmp.lt.s32.totalorder %s12, 5
      %p121 = pnand %p119, %p120
      %p122 = pneg %p121
      // Predicated region
      $region9: #{conv_generator_upsample.5} parent=5 // pred_check
        _
      $region10: #{conv_generator_upsample.5} parent=5 // pred_check_branch
        %124 = sbr.rel (%p121) target = $region12
      $region11: #{conv_generator_upsample.5} parent=5 // pred_region
        %s125 = ssub.s32 %s12, 1
        // Predicated region
        $region13: #{conv_generator_upsample.5} parent=11 // pred_check
          %p126 = pneg %p33
        $region14: #{conv_generator_upsample.5} parent=11 // pred_check_branch
          %128 = sbr.rel (%p126) target = $region16
        $region15: #{conv_generator_upsample.5} parent=11 // pred_region
          _
        $region16: #{conv_generator_upsample.5} parent=11 // pred_fallthru
          _
      $region12: #{conv_generator_upsample.5} parent=5 // pred_fallthru
        _
      %p129 = scmp.lt.s32.totalorder %s12, 4
      // Predicated region
      $region17: #{conv_generator_upsample.5} parent=5 // pred_check
        %p130 = pneg %p129
      $region18: #{conv_generator_upsample.5} parent=5 // pred_check_branch
        %132 = sbr.rel (%p130) target = $region20
      $region19: #{conv_generator_upsample.5} parent=5 // pred_region
        // Predicated region
        $region21: #{conv_generator_upsample.5} parent=19 // pred_check
          %p133 = pneg %p53
        $region22: #{conv_generator_upsample.5} parent=19 // pred_check_branch
          %135 = sbr.rel (%p133) target = $region24
        $region23: #{conv_generator_upsample.5} parent=19 // pred_region
          %s136 = sand.u32 %s43, 1
          %s137 = scalar_lea.sflag [#allocation3], %s136
          %s138 = sand.u32 %s43, 1
          %s139 = smul.addr %s138, 64
          %s140 = scalar_lea.vmem [#allocation2], %s139
          %s141 = smul.u32 4, %s12
          %s143 = ssub.s32 1024, 1024
          %144 = vsyncadd %s137, %s143
          %s145 = smul.addr %s141, 64
          %s146 = scalar_lea.hbm %s1, %s145
          %s147 = sshll.u32 %s140, 4
          %s148 = int_to_ptr.vmem [resolvable:$true] %s147
          %153 = dma.hbm_to_vmem [thread:$0]  %s146, 1024, %s148, %s137, 1024, 256, 16
        $region24: #{conv_generator_upsample.5} parent=19 // pred_fallthru
          _
        // Predicated region
        $region25: #{conv_generator_upsample.5} parent=19 // pred_check
          %p154 = pneg %p79
        $region26: #{conv_generator_upsample.5} parent=19 // pred_check_branch
          %156 = sbr.rel (%p154) target = $region28
        $region27: #{conv_generator_upsample.5} parent=19 // pred_region
          %s157 = smul.u32 4, %s12
          %p158 = scmp.lt.s32.totalorder %s157, 15
          %s159 = scalar_select %p158, %s157, 15
          %s160 = scalar_lea.vmem %s2, %s159
          %s161 = smul.u32 4, %s12
        $region28: #{conv_generator_upsample.5} parent=19 // pred_fallthru
          _
      $region20: #{conv_generator_upsample.5} parent=5 // pred_fallthru
        _
      %p162 = scmp.le.s32.totalorder 1, %s12
      %p163 = scmp.lt.s32.totalorder %s12, 5
      %p164 = pnand %p162, %p163
      %p165 = pneg %p164
      // Predicated region
      $region29: #{conv_generator_upsample.5} parent=5 // pred_check
        _
      $region30: #{conv_generator_upsample.5} parent=5 // pred_check_branch
        %167 = sbr.rel (%p164) target = $region32
      $region31: #{conv_generator_upsample.5} parent=5 // pred_region
        %s168 = ssub.s32 %s12, 1
        %s169 = sand.u32 %s46, 1
        %s170 = scalar_lea.sflag [#allocation3], %s169
        %s171 = sand.u32 %s46, 1
        %s172 = smul.addr %s171, 64
        %s173 = scalar_lea.vmem [#allocation2], %s172
        // Predicated region
        $region33: #{conv_generator_upsample.5} parent=31 // pred_check
          %p174 = pneg %p59
        $region34: #{conv_generator_upsample.5} parent=31 // pred_check_branch
          %176 = sbr.rel (%p174) target = $region36
        $region35: #{conv_generator_upsample.5} parent=31 // pred_region
          %177 = dma.done %s170, 1024
        $region36: #{conv_generator_upsample.5} parent=31 // pred_fallthru
          _
        %p178 = pneg %p33
        %p179 = pneg %p30
        %s180 = sand.u32 %s46, 1
        %s181 = scalar_lea.sflag [#allocation3], %s180
        %s182 = sand.u32 %s46, 1
        %s183 = smul.addr %s182, 64
        %s184 = scalar_lea.vmem [#allocation2], %s183
        %p185 = pneg %p59
        %p186 = pneg %p56
        %s187 = smul.u32 4, %s17
        %p188 = scmp.lt.s32.totalorder %s187, 15
        %s189 = scalar_select %p188, %s187, 15
        %s190 = scalar_lea.vmem %s2, %s189
        %p191 = pneg %p85
        %p192 = pneg %p82
        %p193 = pneg %p111
        %p194 = pneg %p108
        %s195 = smul.u32 4, %s17
        %p196 = scmp.lt.s32.totalorder %s195, 15
        %s197 = scalar_select %p196, %s195, 15
        %s198 = scalar_lea.vmem %s3, %s197
        %s199 = smul.u32 4, %s17
        %s200 = smul.u32 4, %s17
        %p201 = scmp.lt.s32.totalorder %s200, 15
        %s202 = scalar_select %p201, %s200, 15
        %s203 = scalar_lea.vmem %s2, %s202
        %s204 = smul.u32 4, %s17
        %s205 = smul.u32 4, %s17
        %p206 = scmp.lt.s32.totalorder %s205, 15
        %s207 = scalar_select %p206, %s205, 15
        %s208 = scalar_lea.vmem %s3, %s207
        %s209 = smul.u32 4, %s17
        %v211 = vld [vmem:[%s0] sm:$0x1]
        %v212 = vld [vmem:[%s173] sm:$0xff]
        %v213 = vld [vmem:[%s173 + $0x8] sm:$0xff]
        %v214 = vld [vmem:[%s173 + $0x10] sm:$0xff]
        %v215 = vld [vmem:[%s173 + $0x18] sm:$0xff]
        %v216 = vld [vmem:[%s173 + $0x20] sm:$0xff]
        %v217 = vld [vmem:[%s173 + $0x28] sm:$0xff]
        %v218 = vld [vmem:[%s173 + $0x30] sm:$0xff]
        %v219 = vld [vmem:[%s173 + $0x38] sm:$0xff]
        %v220 = vld [vmem:[%s203] sm:$0xf]
        %v222 = vlaneseq
        %v223 = vshrl.u32 %v222, 7
        %v224 = vsub.s32 0, %v223
        %v225 = vrot.slane %v220, %v224
        %v226 = vlaneseq
        %v227 = vshrl.u32 %v226, 7
        %v228 = vsub.s32 1, %v227
        %v229 = vrot.slane %v220, %v228
        %v230 = vlaneseq
        %v231 = vshrl.u32 %v230, 7
        %v232 = vsub.s32 2, %v231
        %v233 = vrot.slane %v220, %v232
        %v234 = vlaneseq
        %v235 = vshrl.u32 %v234, 7
        %v236 = vsub.s32 3, %v235
        %v237 = vrot.slane %v220, %v236
        %v250 = vunpack.c.l.b16 %v212
        %v251 = vunpack.c.h.b16 %v212
        %v252 = vunpack.c.l.b16 %v213
        %v253 = vunpack.c.h.b16 %v213
        %v254 = vunpack.c.l.b16 %v214
        %v255 = vunpack.c.h.b16 %v214
        %v256 = vunpack.c.l.b16 %v215
        %v257 = vunpack.c.h.b16 %v215
        %v258 = vunpack.c.l.b16 %v216
        %v259 = vunpack.c.h.b16 %v216
        %v260 = vunpack.c.l.b16 %v217
        %v261 = vunpack.c.h.b16 %v217
        %v262 = vunpack.c.l.b16 %v218
        %v263 = vunpack.c.h.b16 %v218
        %v264 = vunpack.c.l.b16 %v219
        %v265 = vunpack.c.h.b16 %v219
        %v266 = vpack.c.b16 %v254, %v250
        %v267 = vpack.c.b16 %v255, %v251
        %v268 = vpack.c.b16 %v256, %v252
        %v269 = vpack.c.b16 %v257, %v253
        %v270 = vpack.c.b16 %v262, %v258
        %v271 = vpack.c.b16 %v263, %v259
        %v272 = vpack.c.b16 %v264, %v260
        %v273 = vpack.c.b16 %v265, %v261
        %vm282 = vcmask 261120
        %v284 = vsel %vm282, %v211, 0
        %286 = vmatprep.subr.bf16.mxu0 %v267
        %287 = vmatpush1.bf16.msra.mxu0 %v266
        %288 = vmatprep.subr.bf16.mxu0 %v271
        %289 = vmatpush1.bf16.msra.mxu0 %v270
        %290 = vmatprep.subr.bf16.mxu0 0
        %291 = vmatpush1.bf16.msra.mxu0 0
        %292 = vmatprep.subr.bf16.mxu0 0
        %293 = vmatpush1.bf16.msra.mxu0 0
        %294 = vmatprep.subr.bf16.mxu0 0
        %295 = vmatpush1.bf16.msra.mxu0 0
        %296 = vmatprep.subr.bf16.mxu0 0
        %297 = vmatpush1.bf16.msra.mxu0 0
        %298 = vmatprep.subr.bf16.mxu0 0
        %299 = vmatpush1.bf16.msra.mxu0 0
        %300 = vmatprep.subr.bf16.mxu0 0
        %301 = vmatpush1.bf16.msra.mxu0 0
        %302 = vmatprep.subr.bf16.mxu0 0
        %303 = vmatpush1.bf16.msra.mxu0 0
        %304 = vmatprep.subr.bf16.mxu0 0
        %305 = vmatpush1.bf16.msra.mxu0 0
        %306 = vmatprep.subr.bf16.mxu0 0
        %307 = vmatpush1.bf16.msra.mxu0 0
        %308 = vmatprep.subr.bf16.mxu0 0
        %309 = vmatpush1.bf16.msra.mxu0 0
        %310 = vmatprep.subr.bf16.mxu0 0
        %311 = vmatpush1.bf16.msra.mxu0 0
        %312 = vmatprep.subr.bf16.mxu0 0
        %313 = vmatpush1.bf16.msra.mxu0 0
        %314 = vmatprep.subr.bf16.mxu0 0
        %315 = vmatpush1.bf16.msra.mxu0 0
        %316 = vmatprep.subr.bf16.mxu0 0
        %317 = vmatpush1.bf16.msra.mxu0 0
        %318 = vmatprep.mubr.bf16.mxu0 0
        %319 = vmatmul.mubr.bf16.gmra.mrb[0].mxu0 %v284
        %v320 = vpop.f32.mrb[0].mxu0
        %v321 = vadd.f32 %v225, %v320
        %v322 = vpop.f32.mrb[0].mxu0
        %v323 = vadd.f32 %v229, %v322
        %v324 = vpop.f32.mrb[0].mxu0
        %v325 = vpop.f32.mrb[0].mxu0
        %326 = vdwg.mxu0
        %327 = vmatprep.subr.bf16.mxu0 %v269
        %328 = vmatpush1.bf16.msra.mxu0 %v268
        %329 = vmatprep.subr.bf16.mxu0 %v273
        %330 = vmatpush1.bf16.msra.mxu0 %v272
        %331 = vmatprep.subr.bf16.mxu0 0
        %332 = vmatpush1.bf16.msra.mxu0 0
        %333 = vmatprep.subr.bf16.mxu0 0
        %334 = vmatpush1.bf16.msra.mxu0 0
        %335 = vmatprep.subr.bf16.mxu0 0
        %336 = vmatpush1.bf16.msra.mxu0 0
        %337 = vmatprep.subr.bf16.mxu0 0
        %338 = vmatpush1.bf16.msra.mxu0 0
        %339 = vmatprep.subr.bf16.mxu0 0
        %340 = vmatpush1.bf16.msra.mxu0 0
        %341 = vmatprep.subr.bf16.mxu0 0
        %342 = vmatpush1.bf16.msra.mxu0 0
        %343 = vmatprep.subr.bf16.mxu0 0
        %344 = vmatpush1.bf16.msra.mxu0 0
        %345 = vmatprep.subr.bf16.mxu0 0
        %346 = vmatpush1.bf16.msra.mxu0 0
        %347 = vmatprep.subr.bf16.mxu0 0
        %348 = vmatpush1.bf16.msra.mxu0 0
        %349 = vmatprep.subr.bf16.mxu0 0
        %350 = vmatpush1.bf16.msra.mxu0 0
        %351 = vmatprep.subr.bf16.mxu0 0
        %352 = vmatpush1.bf16.msra.mxu0 0
        %353 = vmatprep.subr.bf16.mxu0 0
        %354 = vmatpush1.bf16.msra.mxu0 0
        %355 = vmatprep.subr.bf16.mxu0 0
        %356 = vmatpush1.bf16.msra.mxu0 0
        %357 = vmatprep.subr.bf16.mxu0 0
        %358 = vmatpush1.bf16.msra.mxu0 0
        %359 = vmatprep.mubr.bf16.mxu0 0
        %360 = vmatmul.mubr.bf16.gmra.mrb[0].mxu0 %v284
        %v361 = vpop.f32.mrb[0].mxu0
        %v362 = vadd.f32 %v233, %v361
        %v363 = vpop.f32.mrb[0].mxu0
        %v364 = vadd.f32 %v237, %v363
        %v365 = vpop.f32.mrb[0].mxu0
        %v366 = vpop.f32.mrb[0].mxu0
        %367 = vdwg.mxu0
        %v368 = vpack.c.bf16 %v321, %v321
        %v369 = vpack.c.bf16 %v323, %v323
        %v370 = vpack.c.bf16 %v362, %v362
        %v371 = vpack.c.bf16 %v364, %v364
        %v376 = vcombine.low %v368, %v369
        %v377 = vcombine.low %v370, %v371
        %v379 = vunpack.c.l.s4 1966171168
        %v380 = vunpack.c.0.s8 %v379
        %v381 = vlaneseq
        %v382 = vshrl.u32 %v381, 7
        %v383 = vsub.s32 %v380, %v382
        %v384 = vrot.slane %v376, %v383
        %v386 = vunpack.c.l.s4 1966171168
        %v387 = vunpack.c.0.s8 %v386
        %v388 = vlaneseq
        %v389 = vshrl.u32 %v388, 7
        %v390 = vsub.s32 %v387, %v389
        %v391 = vrot.slane %v377, %v390
        %v392 = vcombine.low %v384, %v391
        %v394 = vunpack.c.l.s4 1966171168
        %v395 = vunpack.c.0.s8 %v394
        %v396 = vlaneseq
        %v397 = vshrl.u32 %v396, 7
        %v398 = vsub.s32 %v395, %v397
        %v399 = vrot.slane %v392, %v398
        %401 = vst [vmem:[%s208] sm:$0xf] %v399
        %s402 = smul.u32 4, %s17
        %p403 = scmp.lt.s32.totalorder %s402, 15
        %s404 = scalar_select %p403, %s402, 15
        %s405 = scalar_lea.vmem %s3, %s404
        // Predicated region
        $region37: #{conv_generator_upsample.5} parent=31 // pred_check
          %p406 = pneg %p108
        $region38: #{conv_generator_upsample.5} parent=31 // pred_check_branch
          %408 = sbr.rel (%p406) target = $region40
        $region39: #{conv_generator_upsample.5} parent=31 // pred_region
          %s409 = smul.u32 4, %s17
        $region40: #{conv_generator_upsample.5} parent=31 // pred_fallthru
          _
      $region32: #{conv_generator_upsample.5} parent=5 // pred_fallthru
        _
      %p410 = scmp.le.s32.totalorder 2, %s12
      // Predicated region
      $region41: #{conv_generator_upsample.5} parent=5 // pred_check
        %p411 = pneg %p410
      $region42: #{conv_generator_upsample.5} parent=5 // pred_check_branch
        %413 = sbr.rel (%p411) target = $region44
      $region43: #{conv_generator_upsample.5} parent=5 // pred_region
        %s414 = ssub.s32 %s12, 2
        // Predicated region
        $region45: #{conv_generator_upsample.5} parent=43 // pred_check
          %p415 = pneg %p114
        $region46: #{conv_generator_upsample.5} parent=43 // pred_check_branch
          %417 = sbr.rel (%p415) target = $region48
        $region47: #{conv_generator_upsample.5} parent=43 // pred_region
          %s418 = smul.u32 4, %s18
          %p419 = scmp.lt.s32.totalorder %s418, 15
          %s420 = scalar_select %p419, %s418, 15
          %s421 = scalar_lea.vmem %s3, %s420
        $region48: #{conv_generator_upsample.5} parent=43 // pred_fallthru
          _
      $region44: #{conv_generator_upsample.5} parent=5 // pred_fallthru
        _
    $region6: #{conv_generator_upsample.5} parent=1 // loop_footer
      %s16 = sadd.s32 1, %s12
    $region7: #{conv_generator_upsample.5} parent=1 // loop_footer_branch
      %11 = sbr.rel target = $region3
    $region8: #{conv_generator_upsample.5} parent=1 // loop_exit
      _
    %422 = vsyncpa [#allocation3], 1
    %s423 = scalar_lea.sflag [#allocation3], 1
    %424 = vsyncpa %s423, 1

// kernel: conv_generator_upsample.9
$region0: #{conv_generator_upsample.9}
  #allocation0 [shape = 'u32[]', space=smem, size = 0x4, offset = 0x4, fixed_abs, tag = 'smem constant byte address 0x4 - core index']
  #allocation1 [shape = 'u32[144,128]{1,0:T(1,128)}', space=vmem, size = 0x12000, scoped, tag = 'internal scratch']
  %s0 = inlined_call_operand.vmem [shape: bf16[576,64], index: 0, kind: input, shape index: {}]
  %s1 = inlined_call_operand.vmem [shape: f32[2,64], index: 1, kind: input, shape index: {}]
  %s2 = inlined_call_operand.vmem [shape: bf16[64,128], index: 2, kind: input, shape index: {}]
  %s3 = inlined_call_operand.vmem [shape: f32[1,128], index: 3, kind: input, shape index: {}]
  %s4 = inlined_call_operand.vmem [shape: f32[576,128], index: 4, kind: output, shape index: {}]
  %s5 = sld [smem:[#allocation0]]
  $region49: #{conv_generator_upsample.9} parent=0
    _
  %s7 = ssub.s32 1, %s5
  %s8 = scalar_select 0, %s7, %s5
  loop: start=0, step=1, limit=4
  $region2: #{conv_generator_upsample.9} parent=0 // loop_pre_header
    _
  $region3: #{conv_generator_upsample.9} parent=0 // loop_header
    %s10 = sphi 0, %s14
    %p11 = scmp.ge.s32.totalorder %s10, 4
    %s20 = sphi 0, %s22
    %s23 = sphi 0, %s20
    %s24 = sphi 0, %s23
    %s40 = sphi 0, %s24
    %s44 = sphi 0, %s44
    %s46 = sphi 0, %s44
    %s47 = sphi 0, %s46
    %s61 = sphi 0, %s47
    %s65 = sphi 0, %s65
    %s67 = sphi 0, %s65
    %s68 = sphi 0, %s67
    %s82 = sphi 0, %s68
    %s86 = sphi 0, %s86
    %s88 = sphi 0, %s86
    %s89 = sphi 0, %s88
    %s103 = sphi 0, %s89
    %s109 = sphi 0, %s111
    %s112 = sphi 0, %s109
    %s113 = sphi 0, %s112
    %s129 = sphi 0, %s113
  $region4: #{conv_generator_upsample.9} parent=0 // loop_header_branch
    %13 = sbr.rel (%p11) target = $region8
  $region5: #{conv_generator_upsample.9} parent=0 // loop_body
    %s15 = ssub.s32 %s10, 1
    %s16 = ssub.s32 %s10, 2
    %s17 = sadd.s32 %s10, 1
    %s18 = ssub.s32 %s10, %s17
    %p19 = scmp.eq.s32.totalorder %s18, 0
    %s21 = sadd.s32 %s20, 1
    %s22 = scalar_select %p19, %s20, %s21
    %p25 = pneg %p19
    %p26 = scmp.eq.s32.totalorder %s10, 1
    %p27 = por %p25, %p26
    %p28 = scmp.ne.s32.totalorder %s20, %s23
    %p29 = scmp.eq.s32.totalorder %s10, 0
    %p30 = por %p28, %p29
    %p31 = scmp.ne.s32.totalorder %s20, %s23
    %p32 = scmp.eq.s32.totalorder %s15, 1
    %p33 = por %p31, %p32
    %p34 = scmp.ne.s32.totalorder %s23, %s24
    %p35 = scmp.eq.s32.totalorder %s15, 0
    %p36 = por %p34, %p35
    %p37 = scmp.ne.s32.totalorder %s23, %s24
    %p38 = scmp.eq.s32.totalorder %s16, 1
    %p39 = por %p37, %p38
    %p41 = scmp.ne.s32.totalorder %s24, %s40
    %p42 = scmp.eq.s32.totalorder %s16, 0
    %p43 = por %p41, %p42
    %s45 = sadd.s32 %s44, 1
    %p48 = scmp.eq.s32.totalorder %s10, 1
    %p49 = scmp.ne.s32.totalorder %s44, %s46
    %p50 = scmp.eq.s32.totalorder %s10, 0
    %p51 = por %p49, %p50
    %p52 = scmp.ne.s32.totalorder %s44, %s46
    %p53 = scmp.eq.s32.totalorder %s15, 1
    %p54 = por %p52, %p53
    %p55 = scmp.ne.s32.totalorder %s46, %s47
    %p56 = scmp.eq.s32.totalorder %s15, 0
    %p57 = por %p55, %p56
    %p58 = scmp.ne.s32.totalorder %s46, %s47
    %p59 = scmp.eq.s32.totalorder %s16, 1
    %p60 = por %p58, %p59
    %p62 = scmp.ne.s32.totalorder %s47, %s61
    %p63 = scmp.eq.s32.totalorder %s16, 0
    %p64 = por %p62, %p63
    %s66 = sadd.s32 %s65, 1
    %p69 = scmp.eq.s32.totalorder %s10, 1
    %p70 = scmp.ne.s32.totalorder %s65, %s67
    %p71 = scmp.eq.s32.totalorder %s10, 0
    %p72 = por %p70, %p71
    %p73 = scmp.ne.s32.totalorder %s65, %s67
    %p74 = scmp.eq.s32.totalorder %s15, 1
    %p75 = por %p73, %p74
    %p76 = scmp.ne.s32.totalorder %s67, %s68
    %p77 = scmp.eq.s32.totalorder %s15, 0
    %p78 = por %p76, %p77
    %p79 = scmp.ne.s32.totalorder %s67, %s68
    %p80 = scmp.eq.s32.totalorder %s16, 1
    %p81 = por %p79, %p80
    %p83 = scmp.ne.s32.totalorder %s68, %s82
    %p84 = scmp.eq.s32.totalorder %s16, 0
    %p85 = por %p83, %p84
    %s87 = sadd.s32 %s86, 1
    %p90 = scmp.eq.s32.totalorder %s10, 1
    %p91 = scmp.ne.s32.totalorder %s86, %s88
    %p92 = scmp.eq.s32.totalorder %s10, 0
    %p93 = por %p91, %p92
    %p94 = scmp.ne.s32.totalorder %s86, %s88
    %p95 = scmp.eq.s32.totalorder %s15, 1
    %p96 = por %p94, %p95
    %p97 = scmp.ne.s32.totalorder %s88, %s89
    %p98 = scmp.eq.s32.totalorder %s15, 0
    %p99 = por %p97, %p98
    %p100 = scmp.ne.s32.totalorder %s88, %s89
    %p101 = scmp.eq.s32.totalorder %s16, 1
    %p102 = por %p100, %p101
    %p104 = scmp.ne.s32.totalorder %s89, %s103
    %p105 = scmp.eq.s32.totalorder %s16, 0
    %p106 = por %p104, %p105
    %s107 = ssub.s32 %s10, %s17
    %p108 = scmp.eq.s32.totalorder %s107, 0
    %s110 = sadd.s32 %s109, 1
    %s111 = scalar_select %p108, %s109, %s110
    %p114 = pneg %p108
    %p115 = scmp.eq.s32.totalorder %s10, 1
    %p116 = por %p114, %p115
    %p117 = scmp.ne.s32.totalorder %s109, %s112
    %p118 = scmp.eq.s32.totalorder %s10, 0
    %p119 = por %p117, %p118
    %p120 = scmp.ne.s32.totalorder %s109, %s112
    %p121 = scmp.eq.s32.totalorder %s15, 1
    %p122 = por %p120, %p121
    %p123 = scmp.ne.s32.totalorder %s112, %s113
    %p124 = scmp.eq.s32.totalorder %s15, 0
    %p125 = por %p123, %p124
    %p126 = scmp.ne.s32.totalorder %s112, %s113
    %p127 = scmp.eq.s32.totalorder %s16, 1
    %p128 = por %p126, %p127
    %p130 = scmp.ne.s32.totalorder %s113, %s129
    %p131 = scmp.eq.s32.totalorder %s16, 0
    %p132 = por %p130, %p131
    %p133 = scmp.le.s32.totalorder 1, %s10
    %p134 = scmp.lt.s32.totalorder %s10, 3
    %p135 = pnand %p133, %p134
    %p136 = pneg %p135
    // Predicated region
    $region9: #{conv_generator_upsample.9} parent=5 // pred_check
      _
    $region10: #{conv_generator_upsample.9} parent=5 // pred_check_branch
      %138 = sbr.rel (%p135) target = $region12
    $region11: #{conv_generator_upsample.9} parent=5 // pred_region
      %s139 = ssub.s32 %s10, 1
      // Predicated region
      $region13: #{conv_generator_upsample.9} parent=11 // pred_check
        %p140 = pneg %p57
      $region14: #{conv_generator_upsample.9} parent=11 // pred_check_branch
        %142 = sbr.rel (%p140) target = $region16
      $region15: #{conv_generator_upsample.9} parent=11 // pred_region
        _
      $region16: #{conv_generator_upsample.9} parent=11 // pred_fallthru
        _
      // Predicated region
      $region17: #{conv_generator_upsample.9} parent=11 // pred_check
        %p143 = pneg %p78
      $region18: #{conv_generator_upsample.9} parent=11 // pred_check_branch
        %145 = sbr.rel (%p143) target = $region20
      $region19: #{conv_generator_upsample.9} parent=11 // pred_region
        _
      $region20: #{conv_generator_upsample.9} parent=11 // pred_fallthru
        _
      // Predicated region
      $region21: #{conv_generator_upsample.9} parent=11 // pred_check
        %p146 = pneg %p99
      $region22: #{conv_generator_upsample.9} parent=11 // pred_check_branch
        %148 = sbr.rel (%p146) target = $region24
      $region23: #{conv_generator_upsample.9} parent=11 // pred_region
        _
      $region24: #{conv_generator_upsample.9} parent=11 // pred_fallthru
        _
    $region12: #{conv_generator_upsample.9} parent=5 // pred_fallthru
      _
    %p149 = scmp.lt.s32.totalorder %s10, 2
    // Predicated region
    $region25: #{conv_generator_upsample.9} parent=5 // pred_check
      %p150 = pneg %p149
    $region26: #{conv_generator_upsample.9} parent=5 // pred_check_branch
      %152 = sbr.rel (%p150) target = $region28
    $region27: #{conv_generator_upsample.9} parent=5 // pred_region
      // Predicated region
      $region29: #{conv_generator_upsample.9} parent=27 // pred_check
        %p153 = pneg %p30
      $region30: #{conv_generator_upsample.9} parent=27 // pred_check_branch
        %155 = sbr.rel (%p153) target = $region32
      $region31: #{conv_generator_upsample.9} parent=27 // pred_region
        %s156 = smul.u32 36, %s10
        %p157 = scmp.lt.s32.totalorder %s156, 71
        %s158 = scalar_select %p157, %s156, 71
        %s159 = smul.addr %s158, 4
        %s160 = scalar_lea.vmem %s0, %s159
        %s161 = smul.u32 36, %s10
      $region32: #{conv_generator_upsample.9} parent=27 // pred_fallthru
        _
    $region28: #{conv_generator_upsample.9} parent=5 // pred_fallthru
      _
    %p162 = scmp.le.s32.totalorder 1, %s10
    %p163 = scmp.lt.s32.totalorder %s10, 3
    %p164 = pnand %p162, %p163
    %p165 = pneg %p164
    // Predicated region
    $region33: #{conv_generator_upsample.9} parent=5 // pred_check
      _
    $region34: #{conv_generator_upsample.9} parent=5 // pred_check_branch
      %167 = sbr.rel (%p164) target = $region36
    $region35: #{conv_generator_upsample.9} parent=5 // pred_region
      %s168 = ssub.s32 %s10, 1
      %s169 = smul.u32 36, %s15
      %p170 = scmp.lt.s32.totalorder %s169, 71
      %s171 = scalar_select %p170, %s169, 71
      %s172 = smul.addr %s171, 4
      %s173 = scalar_lea.vmem %s0, %s172
      %p174 = pneg %p36
      %p175 = pneg %p33
      %p176 = pneg %p57
      %p177 = pneg %p54
      %p178 = pneg %p78
      %p179 = pneg %p75
      %p180 = pneg %p99
      %p181 = pneg %p96
      %p182 = pneg %p125
      %p183 = pneg %p122
      %s184 = smul.u32 36, %s15
      %p185 = scmp.lt.s32.totalorder %s184, 71
      %s186 = scalar_select %p185, %s184, 71
      %s187 = smul.addr %s186, 8
      %s188 = scalar_lea.vmem %s4, %s187
      %s189 = smul.u32 36, %s15
      %p190 = scmp.lt.s32.totalorder %s189, 71
      %s191 = scalar_select %p190, %s189, 71
      %s192 = smul.addr %s191, 4
      %s193 = scalar_lea.vmem %s0, %s192
      %s194 = smul.u32 36, %s15
      %s195 = smul.u32 36, %s15
      %p196 = scmp.lt.s32.totalorder %s195, 71
      %s197 = scalar_select %p196, %s195, 71
      %s198 = smul.addr %s197, 8
      %s199 = scalar_lea.vmem %s4, %s198
      %s200 = smul.u32 36, %s15
      %v202 = vld [vmem:[%s193] sm:$0xf]
      %v203 = vld [vmem:[%s193 + $0x4] sm:$0xf]
      %v204 = vld [vmem:[%s193 + $0x8] sm:$0xf]
      %v205 = vld [vmem:[%s193 + $0xc] sm:$0xf]
      %v206 = vld [vmem:[%s193 + $0x10] sm:$0xf]
      %v207 = vld [vmem:[%s193 + $0x14] sm:$0xf]
      %v208 = vld [vmem:[%s193 + $0x18] sm:$0xf]
      %v209 = vld [vmem:[%s193 + $0x1c] sm:$0xf]
      %v210 = vld [vmem:[%s193 + $0x20] sm:$0xf]
      %v211 = vld [vmem:[%s193 + $0x24] sm:$0xf]
      %v212 = vld [vmem:[%s193 + $0x28] sm:$0xf]
      %v213 = vld [vmem:[%s193 + $0x2c] sm:$0xf]
      %v214 = vld [vmem:[%s193 + $0x30] sm:$0xf]
      %v215 = vld [vmem:[%s193 + $0x34] sm:$0xf]
      %v216 = vld [vmem:[%s193 + $0x38] sm:$0xf]
      %v217 = vld [vmem:[%s193 + $0x3c] sm:$0xf]
      %v218 = vld [vmem:[%s193 + $0x40] sm:$0xf]
      %v219 = vld [vmem:[%s193 + $0x44] sm:$0xf]
      %v220 = vld [vmem:[%s193 + $0x48] sm:$0xf]
      %v221 = vld [vmem:[%s193 + $0x4c] sm:$0xf]
      %v222 = vld [vmem:[%s193 + $0x50] sm:$0xf]
      %v223 = vld [vmem:[%s193 + $0x54] sm:$0xf]
      %v224 = vld [vmem:[%s193 + $0x58] sm:$0xf]
      %v225 = vld [vmem:[%s193 + $0x5c] sm:$0xf]
      %v226 = vld [vmem:[%s193 + $0x60] sm:$0xf]
      %v227 = vld [vmem:[%s193 + $0x64] sm:$0xf]
      %v228 = vld [vmem:[%s193 + $0x68] sm:$0xf]
      %v229 = vld [vmem:[%s193 + $0x6c] sm:$0xf]
      %v230 = vld [vmem:[%s193 + $0x70] sm:$0xf]
      %v231 = vld [vmem:[%s193 + $0x74] sm:$0xf]
      %v232 = vld [vmem:[%s193 + $0x78] sm:$0xf]
      %v233 = vld [vmem:[%s193 + $0x7c] sm:$0xf]
      %v234 = vld [vmem:[%s193 + $0x80] sm:$0xf]
      %v235 = vld [vmem:[%s193 + $0x84] sm:$0xf]
      %v236 = vld [vmem:[%s193 + $0x88] sm:$0xf]
      %v237 = vld [vmem:[%s193 + $0x8c] sm:$0xf]
      %v238 = vunpack.c.l.bf16 %v202
      %v239 = vunpack.c.l.bf16 %v203
      %v240 = vunpack.c.l.bf16 %v204
      %v241 = vunpack.c.l.bf16 %v205
      %v242 = vunpack.c.l.bf16 %v206
      %v243 = vunpack.c.l.bf16 %v207
      %v244 = vunpack.c.l.bf16 %v208
      %v245 = vunpack.c.l.bf16 %v209
      %v246 = vunpack.c.l.bf16 %v210
      %v247 = vunpack.c.l.bf16 %v211
      %v248 = vunpack.c.l.bf16 %v212
      %v249 = vunpack.c.l.bf16 %v213
      %v250 = vunpack.c.l.bf16 %v214
      %v251 = vunpack.c.l.bf16 %v215
      %v252 = vunpack.c.l.bf16 %v216
      %v253 = vunpack.c.l.bf16 %v217
      %v254 = vunpack.c.l.bf16 %v218
      %v255 = vunpack.c.l.bf16 %v219
      %v256 = vunpack.c.l.bf16 %v220
      %v257 = vunpack.c.l.bf16 %v221
      %v258 = vunpack.c.l.bf16 %v222
      %v259 = vunpack.c.l.bf16 %v223
      %v260 = vunpack.c.l.bf16 %v224
      %v261 = vunpack.c.l.bf16 %v225
      %v262 = vunpack.c.l.bf16 %v226
      %v263 = vunpack.c.l.bf16 %v227
      %v264 = vunpack.c.l.bf16 %v228
      %v265 = vunpack.c.l.bf16 %v229
      %v266 = vunpack.c.l.bf16 %v230
      %v267 = vunpack.c.l.bf16 %v231
      %v268 = vunpack.c.l.bf16 %v232
      %v269 = vunpack.c.l.bf16 %v233
      %v270 = vunpack.c.l.bf16 %v234
      %v271 = vunpack.c.l.bf16 %v235
      %v272 = vunpack.c.l.bf16 %v236
      %v273 = vunpack.c.l.bf16 %v237
      %v274 = vld [vmem:[%s1] sm:$0x1]
      %v275 = vlaneseq
      %v276 = vshrl.u32 %v275, 7
      %v277 = vsub.s32 0, %v276
      %v278 = vrot.slane %v274, %v277
      %v279 = vmul.f32 %v238, %v278
      %v280 = vmul.f32 %v239, %v278
      %v281 = vmul.f32 %v240, %v278
      %v282 = vmul.f32 %v241, %v278
      %v283 = vmul.f32 %v242, %v278
      %v284 = vmul.f32 %v243, %v278
      %v285 = vmul.f32 %v244, %v278
      %v286 = vmul.f32 %v245, %v278
      %v287 = vmul.f32 %v246, %v278
      %v288 = vmul.f32 %v247, %v278
      %v289 = vmul.f32 %v248, %v278
      %v290 = vmul.f32 %v249, %v278
      %v291 = vmul.f32 %v250, %v278
      %v292 = vmul.f32 %v251, %v278
      %v293 = vmul.f32 %v252, %v278
      %v294 = vmul.f32 %v253, %v278
      %v295 = vmul.f32 %v254, %v278
      %v296 = vmul.f32 %v255, %v278
      %v297 = vmul.f32 %v256, %v278
      %v298 = vmul.f32 %v257, %v278
      %v299 = vmul.f32 %v258, %v278
      %v300 = vmul.f32 %v259, %v278
      %v301 = vmul.f32 %v260, %v278
      %v302 = vmul.f32 %v261, %v278
      %v303 = vmul.f32 %v262, %v278
      %v304 = vmul.f32 %v263, %v278
      %v305 = vmul.f32 %v264, %v278
      %v306 = vmul.f32 %v265, %v278
      %v307 = vmul.f32 %v266, %v278
      %v308 = vmul.f32 %v267, %v278
      %v309 = vmul.f32 %v268, %v278
      %v310 = vmul.f32 %v269, %v278
      %v311 = vmul.f32 %v270, %v278
      %v312 = vmul.f32 %v271, %v278
      %v313 = vmul.f32 %v272, %v278
      %v314 = vmul.f32 %v273, %v278
      %v315 = vld [vmem:[%s1 + $0x1] sm:$0x1]
      %v316 = vlaneseq
      %v317 = vshrl.u32 %v316, 7
      %v318 = vsub.s32 0, %v317
      %v319 = vrot.slane %v315, %v318
      %v320 = vadd.f32 %v279, %v319
      %v321 = vadd.f32 %v280, %v319
      %v322 = vadd.f32 %v281, %v319
      %v323 = vadd.f32 %v282, %v319
      %v324 = vadd.f32 %v283, %v319
      %v325 = vadd.f32 %v284, %v319
      %v326 = vadd.f32 %v285, %v319
      %v327 = vadd.f32 %v286, %v319
      %v328 = vadd.f32 %v287, %v319
      %v329 = vadd.f32 %v288, %v319
      %v330 = vadd.f32 %v289, %v319
      %v331 = vadd.f32 %v290, %v319
      %v332 = vadd.f32 %v291, %v319
      %v333 = vadd.f32 %v292, %v319
      %v334 = vadd.f32 %v293, %v319
      %v335 = vadd.f32 %v294, %v319
      %v336 = vadd.f32 %v295, %v319
      %v337 = vadd.f32 %v296, %v319
      %v338 = vadd.f32 %v297, %v319
      %v339 = vadd.f32 %v298, %v319
      %v340 = vadd.f32 %v299, %v319
      %v341 = vadd.f32 %v300, %v319
      %v342 = vadd.f32 %v301, %v319
      %v343 = vadd.f32 %v302, %v319
      %v344 = vadd.f32 %v303, %v319
      %v345 = vadd.f32 %v304, %v319
      %v346 = vadd.f32 %v305, %v319
      %v347 = vadd.f32 %v306, %v319
      %v348 = vadd.f32 %v307, %v319
      %v349 = vadd.f32 %v308, %v319
      %v350 = vadd.f32 %v309, %v319
      %v351 = vadd.f32 %v310, %v319
      %v352 = vadd.f32 %v311, %v319
      %v353 = vadd.f32 %v312, %v319
      %v354 = vadd.f32 %v313, %v319
      %v355 = vadd.f32 %v314, %v319
      %vm356 = vcmp.ge.f32.partialorder %v320, 0.0
      %vm357 = vcmp.ge.f32.partialorder %v321, 0.0
      %vm358 = vcmp.ge.f32.partialorder %v322, 0.0
      %vm359 = vcmp.ge.f32.partialorder %v323, 0.0
      %vm360 = vcmp.ge.f32.partialorder %v324, 0.0
      %vm361 = vcmp.ge.f32.partialorder %v325, 0.0
      %vm362 = vcmp.ge.f32.partialorder %v326, 0.0
      %vm363 = vcmp.ge.f32.partialorder %v327, 0.0
      %vm364 = vcmp.ge.f32.partialorder %v328, 0.0
      %vm365 = vcmp.ge.f32.partialorder %v329, 0.0
      %vm366 = vcmp.ge.f32.partialorder %v330, 0.0
      %vm367 = vcmp.ge.f32.partialorder %v331, 0.0
      %vm368 = vcmp.ge.f32.partialorder %v332, 0.0
      %vm369 = vcmp.ge.f32.partialorder %v333, 0.0
      %vm370 = vcmp.ge.f32.partialorder %v334, 0.0
      %vm371 = vcmp.ge.f32.partialorder %v335, 0.0
      %vm372 = vcmp.ge.f32.partialorder %v336, 0.0
      %vm373 = vcmp.ge.f32.partialorder %v337, 0.0
      %vm374 = vcmp.ge.f32.partialorder %v338, 0.0
      %vm375 = vcmp.ge.f32.partialorder %v339, 0.0
      %vm376 = vcmp.ge.f32.partialorder %v340, 0.0
      %vm377 = vcmp.ge.f32.partialorder %v341, 0.0
      %vm378 = vcmp.ge.f32.partialorder %v342, 0.0
      %vm379 = vcmp.ge.f32.partialorder %v343, 0.0
      %vm380 = vcmp.ge.f32.partialorder %v344, 0.0
      %vm381 = vcmp.ge.f32.partialorder %v345, 0.0
      %vm382 = vcmp.ge.f32.partialorder %v346, 0.0
      %vm383 = vcmp.ge.f32.partialorder %v347, 0.0
      %vm384 = vcmp.ge.f32.partialorder %v348, 0.0
      %vm385 = vcmp.ge.f32.partialorder %v349, 0.0
      %vm386 = vcmp.ge.f32.partialorder %v350, 0.0
      %vm387 = vcmp.ge.f32.partialorder %v351, 0.0
      %vm388 = vcmp.ge.f32.partialorder %v352, 0.0
      %vm389 = vcmp.ge.f32.partialorder %v353, 0.0
      %vm390 = vcmp.ge.f32.partialorder %v354, 0.0
      %vm391 = vcmp.ge.f32.partialorder %v355, 0.0
      %v392 = vmul.f32 %v320, 0.2
      %v393 = vmul.f32 %v321, 0.2
      %v394 = vmul.f32 %v322, 0.2
      %v395 = vmul.f32 %v323, 0.2
      %v396 = vmul.f32 %v324, 0.2
      %v397 = vmul.f32 %v325, 0.2
      %v398 = vmul.f32 %v326, 0.2
      %v399 = vmul.f32 %v327, 0.2
      %v400 = vmul.f32 %v328, 0.2
      %v401 = vmul.f32 %v329, 0.2
      %v402 = vmul.f32 %v330, 0.2
      %v403 = vmul.f32 %v331, 0.2
      %v404 = vmul.f32 %v332, 0.2
      %v405 = vmul.f32 %v333, 0.2
      %v406 = vmul.f32 %v334, 0.2
      %v407 = vmul.f32 %v335, 0.2
      %v408 = vmul.f32 %v336, 0.2
      %v409 = vmul.f32 %v337, 0.2
      %v410 = vmul.f32 %v338, 0.2
      %v411 = vmul.f32 %v339, 0.2
      %v412 = vmul.f32 %v340, 0.2
      %v413 = vmul.f32 %v341, 0.2
      %v414 = vmul.f32 %v342, 0.2
      %v415 = vmul.f32 %v343, 0.2
      %v416 = vmul.f32 %v344, 0.2
      %v417 = vmul.f32 %v345, 0.2
      %v418 = vmul.f32 %v346, 0.2
      %v419 = vmul.f32 %v347, 0.2
      %v420 = vmul.f32 %v348, 0.2
      %v421 = vmul.f32 %v349, 0.2
      %v422 = vmul.f32 %v350, 0.2
      %v423 = vmul.f32 %v351, 0.2
      %v424 = vmul.f32 %v352, 0.2
      %v425 = vmul.f32 %v353, 0.2
      %v426 = vmul.f32 %v354, 0.2
      %v427 = vmul.f32 %v355, 0.2
      %v428 = vsel %vm356, %v320, %v392
      %v429 = vsel %vm357, %v321, %v393
      %v430 = vsel %vm358, %v322, %v394
      %v431 = vsel %vm359, %v323, %v395
      %v432 = vsel %vm360, %v324, %v396
      %v433 = vsel %vm361, %v325, %v397
      %v434 = vsel %vm362, %v326, %v398
      %v435 = vsel %vm363, %v327, %v399
      %v436 = vsel %vm364, %v328, %v400
      %v437 = vsel %vm365, %v329, %v401
      %v438 = vsel %vm366, %v330, %v402
      %v439 = vsel %vm367, %v331, %v403
      %v440 = vsel %vm368, %v332, %v404
      %v441 = vsel %vm369, %v333, %v405
      %v442 = vsel %vm370, %v334, %v406
      %v443 = vsel %vm371, %v335, %v407
      %v444 = vsel %vm372, %v336, %v408
      %v445 = vsel %vm373, %v337, %v409
      %v446 = vsel %vm374, %v338, %v410
      %v447 = vsel %vm375, %v339, %v411
      %v448 = vsel %vm376, %v340, %v412
      %v449 = vsel %vm377, %v341, %v413
      %v450 = vsel %vm378, %v342, %v414
      %v451 = vsel %vm379, %v343, %v415
      %v452 = vsel %vm380, %v344, %v416
      %v453 = vsel %vm381, %v345, %v417
      %v454 = vsel %vm382, %v346, %v418
      %v455 = vsel %vm383, %v347, %v419
      %v456 = vsel %vm384, %v348, %v420
      %v457 = vsel %vm385, %v349, %v421
      %v458 = vsel %vm386, %v350, %v422
      %v459 = vsel %vm387, %v351, %v423
      %v460 = vsel %vm388, %v352, %v424
      %v461 = vsel %vm389, %v353, %v425
      %v462 = vsel %vm390, %v354, %v426
      %v463 = vsel %vm391, %v355, %v427
      %v464 = vpack.c.bf16 %v429, %v428
      %v465 = vpack.c.bf16 %v431, %v430
      %v466 = vpack.c.bf16 %v433, %v432
      %v467 = vpack.c.bf16 %v435, %v434
      %v468 = vpack.c.bf16 %v437, %v436
      %v469 = vpack.c.bf16 %v439, %v438
      %v470 = vpack.c.bf16 %v441, %v440
      %v471 = vpack.c.bf16 %v443, %v442
      %v472 = vpack.c.bf16 %v445, %v444
      %v473 = vpack.c.bf16 %v447, %v446
      %v474 = vpack.c.bf16 %v449, %v448
      %v475 = vpack.c.bf16 %v451, %v450
      %v476 = vpack.c.bf16 %v453, %v452
      %v477 = vpack.c.bf16 %v455, %v454
      %v478 = vpack.c.bf16 %v457, %v456
      %v479 = vpack.c.bf16 %v459, %v458
      %v480 = vpack.c.bf16 %v461, %v460
      %v481 = vpack.c.bf16 %v463, %v462
      %v482 = vld [vmem:[%s2] sm:$0xf]
      %v483 = vld [vmem:[%s2 + $0x4] sm:$0xf]
      %v484 = vld [vmem:[%s2 + $0x8] sm:$0xf]
      %v485 = vld [vmem:[%s2 + $0xc] sm:$0xf]
      %v486 = vld [vmem:[%s2 + $0x10] sm:$0xf]
      %v487 = vld [vmem:[%s2 + $0x14] sm:$0xf]
      %v488 = vld [vmem:[%s2 + $0x18] sm:$0xf]
      %v489 = vld [vmem:[%s2 + $0x1c] sm:$0xf]
      %v490 = vld [vmem:[%s3] sm:$0x1]
      %v492 = vlaneseq
      %v493 = vshrl.u32 %v492, 7
      %v494 = vsub.s32 0, %v493
      %v495 = vrot.slane %v490, %v494
      %v505 = vunpack.c.l.b16 %v482
      %v506 = vunpack.c.l.b16 %v483
      %v507 = vunpack.c.l.b16 %v484
      %v508 = vunpack.c.l.b16 %v485
      %v509 = vunpack.c.l.b16 %v486
      %v510 = vunpack.c.l.b16 %v487
      %v511 = vunpack.c.l.b16 %v488
      %v512 = vunpack.c.l.b16 %v489
      %v513 = vpack.c.b16 %v506, %v505
      %v514 = vpack.c.b16 %v508, %v507
      %v515 = vpack.c.b16 %v510, %v509
      %v516 = vpack.c.b16 %v512, %v511
      %vm521 = vcmask 523264
      %v523 = vsel %vm521, %v464, 0
      %v526 = vsel %vm521, %v465, 0
      %v529 = vsel %vm521, %v466, 0
      %v532 = vsel %vm521, %v467, 0
      %v535 = vsel %vm521, %v468, 0
      %v538 = vsel %vm521, %v469, 0
      %v541 = vsel %vm521, %v470, 0
      %v544 = vsel %vm521, %v471, 0
      %v547 = vsel %vm521, %v472, 0
      %v550 = vsel %vm521, %v473, 0
      %v553 = vsel %vm521, %v474, 0
      %v556 = vsel %vm521, %v475, 0
      %v559 = vsel %vm521, %v476, 0
      %v562 = vsel %vm521, %v477, 0
      %v565 = vsel %vm521, %v478, 0
      %v568 = vsel %vm521, %v479, 0
      %v571 = vsel %vm521, %v480, 0
      %v574 = vsel %vm521, %v481, 0
      %576 = vmatprep.subr.bf16.mxu0 0
      %577 = vmatpush1.bf16.msra.mxu0 %v513
      %578 = vmatprep.subr.bf16.mxu0 0
      %579 = vmatpush1.bf16.msra.mxu0 %v514
      %580 = vmatprep.subr.bf16.mxu0 0
      %581 = vmatpush1.bf16.msra.mxu0 %v515
      %582 = vmatprep.subr.bf16.mxu0 0
      %583 = vmatpush1.bf16.msra.mxu0 %v516
      %584 = vmatprep.subr.bf16.mxu0 0
      %585 = vmatpush1.bf16.msra.mxu0 0
      %586 = vmatprep.subr.bf16.mxu0 0
      %587 = vmatpush1.bf16.msra.mxu0 0
      %588 = vmatprep.subr.bf16.mxu0 0
      %589 = vmatpush1.bf16.msra.mxu0 0
      %590 = vmatprep.subr.bf16.mxu0 0
      %591 = vmatpush1.bf16.msra.mxu0 0
      %592 = vmatprep.subr.bf16.mxu0 0
      %593 = vmatpush1.bf16.msra.mxu0 0
      %594 = vmatprep.subr.bf16.mxu0 0
      %595 = vmatpush1.bf16.msra.mxu0 0
      %596 = vmatprep.subr.bf16.mxu0 0
      %597 = vmatpush1.bf16.msra.mxu0 0
      %598 = vmatprep.subr.bf16.mxu0 0
      %599 = vmatpush1.bf16.msra.mxu0 0
      %600 = vmatprep.subr.bf16.mxu0 0
      %601 = vmatpush1.bf16.msra.mxu0 0
      %602 = vmatprep.subr.bf16.mxu0 0
      %603 = vmatpush1.bf16.msra.mxu0 0
      %604 = vmatprep.subr.bf16.mxu0 0
      %605 = vmatpush1.bf16.msra.mxu0 0
      %606 = vmatprep.subr.bf16.mxu0 0
      %607 = vmatpush1.bf16.msra.mxu0 0
      %608 = vmatprep.mubr.bf16.mxu0 0
      %609 = vmatmul.mubr.bf16.gmra.mrb[0].mxu0 %v523
      %v610 = vpop.f32.mrb[0].mxu0
      %v611 = vadd.f32 %v495, %v610
      %v612 = vpop.f32.mrb[0].mxu0
      %v613 = vpop.f32.mrb[0].mxu0
      %v614 = vadd.f32 %v495, %v613
      %v615 = vpop.f32.mrb[0].mxu0
      %616 = vmatprep.mubr.bf16.mxu0 0
      %617 = vmatmul.mubr.bf16.gmra.mrb[0].mxu0 %v526
      %v618 = vpop.f32.mrb[0].mxu0
      %v619 = vadd.f32 %v495, %v618
      %v620 = vpop.f32.mrb[0].mxu0
      %v621 = vpop.f32.mrb[0].mxu0
      %v622 = vadd.f32 %v495, %v621
      %v623 = vpop.f32.mrb[0].mxu0
      %624 = vmatprep.mubr.bf16.mxu0 0
      %625 = vmatmul.mubr.bf16.gmra.mrb[0].mxu0 %v529
      %v626 = vpop.f32.mrb[0].mxu0
      %v627 = vadd.f32 %v495, %v626
      %v628 = vpop.f32.mrb[0].mxu0
      %v629 = vpop.f32.mrb[0].mxu0
      %v630 = vadd.f32 %v495, %v629
      %v631 = vpop.f32.mrb[0].mxu0
      %632 = vmatprep.mubr.bf16.mxu0 0
      %633 = vmatmul.mubr.bf16.gmra.mrb[0].mxu0 %v532
      %v634 = vpop.f32.mrb[0].mxu0
      %v635 = vadd.f32 %v495, %v634
      %v636 = vpop.f32.mrb[0].mxu0
      %v637 = vpop.f32.mrb[0].mxu0
      %v638 = vadd.f32 %v495, %v637
      %v639 = vpop.f32.mrb[0].mxu0
      %640 = vmatprep.mubr.bf16.mxu0 0
      %641 = vmatmul.mubr.bf16.gmra.mrb[0].mxu0 %v535
      %v642 = vpop.f32.mrb[0].mxu0
      %v643 = vadd.f32 %v495, %v642
      %v644 = vpop.f32.mrb[0].mxu0
      %v645 = vpop.f32.mrb[0].mxu0
      %v646 = vadd.f32 %v495, %v645
      %v647 = vpop.f32.mrb[0].mxu0
      %648 = vmatprep.mubr.bf16.mxu0 0
      %649 = vmatmul.mubr.bf16.gmra.mrb[0].mxu0 %v538
      %v650 = vpop.f32.mrb[0].mxu0
      %v651 = vadd.f32 %v495, %v650
      %v652 = vpop.f32.mrb[0].mxu0
      %v653 = vpop.f32.mrb[0].mxu0
      %v654 = vadd.f32 %v495, %v653
      %v655 = vpop.f32.mrb[0].mxu0
      %656 = vmatprep.mubr.bf16.mxu0 0
      %657 = vmatmul.mubr.bf16.gmra.mrb[0].mxu0 %v541
      %v658 = vpop.f32.mrb[0].mxu0
      %v659 = vadd.f32 %v495, %v658
      %v660 = vpop.f32.mrb[0].mxu0
      %v661 = vpop.f32.mrb[0].mxu0
      %v662 = vadd.f32 %v495, %v661
      %v663 = vpop.f32.mrb[0].mxu0
      %664 = vmatprep.mubr.bf16.mxu0 0
      %665 = vmatmul.mubr.bf16.gmra.mrb[0].mxu0 %v544
      %v666 = vpop.f32.mrb[0].mxu0
      %v667 = vadd.f32 %v495, %v666
      %v668 = vpop.f32.mrb[0].mxu0
      %v669 = vpop.f32.mrb[0].mxu0
      %v670 = vadd.f32 %v495, %v669
      %v671 = vpop.f32.mrb[0].mxu0
      %672 = vmatprep.mubr.bf16.mxu0 0
      %673 = vmatmul.mubr.bf16.gmra.mrb[0].mxu0 %v547
      %v674 = vpop.f32.mrb[0].mxu0
      %v675 = vadd.f32 %v495, %v674
      %v676 = vpop.f32.mrb[0].mxu0
      %v677 = vpop.f32.mrb[0].mxu0
      %v678 = vadd.f32 %v495, %v677
      %v679 = vpop.f32.mrb[0].mxu0
      %680 = vmatprep.mubr.bf16.mxu0 0
      %681 = vmatmul.mubr.bf16.gmra.mrb[0].mxu0 %v550
      %v682 = vpop.f32.mrb[0].mxu0
      %v683 = vadd.f32 %v495, %v682
      %v684 = vpop.f32.mrb[0].mxu0
      %v685 = vpop.f32.mrb[0].mxu0
      %v686 = vadd.f32 %v495, %v685
      %v687 = vpop.f32.mrb[0].mxu0
      %688 = vmatprep.mubr.bf16.mxu0 0
      %689 = vmatmul.mubr.bf16.gmra.mrb[0].mxu0 %v553
      %v690 = vpop.f32.mrb[0].mxu0
      %v691 = vadd.f32 %v495, %v690
      %v692 = vpop.f32.mrb[0].mxu0
      %v693 = vpop.f32.mrb[0].mxu0
      %v694 = vadd.f32 %v495, %v693
      %v695 = vpop.f32.mrb[0].mxu0
      %696 = vmatprep.mubr.bf16.mxu0 0
      %697 = vmatmul.mubr.bf16.gmra.mrb[0].mxu0 %v556
      %v698 = vpop.f32.mrb[0].mxu0
      %v699 = vadd.f32 %v495, %v698
      %v700 = vpop.f32.mrb[0].mxu0
      %v701 = vpop.f32.mrb[0].mxu0
      %v702 = vadd.f32 %v495, %v701
      %v703 = vpop.f32.mrb[0].mxu0
      %704 = vmatprep.mubr.bf16.mxu0 0
      %705 = vmatmul.mubr.bf16.gmra.mrb[0].mxu0 %v559
      %v706 = vpop.f32.mrb[0].mxu0
      %v707 = vadd.f32 %v495, %v706
      %v708 = vpop.f32.mrb[0].mxu0
      %v709 = vpop.f32.mrb[0].mxu0
      %v710 = vadd.f32 %v495, %v709
      %v711 = vpop.f32.mrb[0].mxu0
      %712 = vmatprep.mubr.bf16.mxu0 0
      %713 = vmatmul.mubr.bf16.gmra.mrb[0].mxu0 %v562
      %v714 = vpop.f32.mrb[0].mxu0
      %v715 = vadd.f32 %v495, %v714
      %v716 = vpop.f32.mrb[0].mxu0
      %v717 = vpop.f32.mrb[0].mxu0
      %v718 = vadd.f32 %v495, %v717
      %v719 = vpop.f32.mrb[0].mxu0
      %720 = vmatprep.mubr.bf16.mxu0 0
      %721 = vmatmul.mubr.bf16.gmra.mrb[0].mxu0 %v565
      %v722 = vpop.f32.mrb[0].mxu0
      %v723 = vadd.f32 %v495, %v722
      %v724 = vpop.f32.mrb[0].mxu0
      %v725 = vpop.f32.mrb[0].mxu0
      %v726 = vadd.f32 %v495, %v725
      %v727 = vpop.f32.mrb[0].mxu0
      %728 = vmatprep.mubr.bf16.mxu0 0
      %729 = vmatmul.mubr.bf16.gmra.mrb[0].mxu0 %v568
      %v730 = vpop.f32.mrb[0].mxu0
      %v731 = vadd.f32 %v495, %v730
      %v732 = vpop.f32.mrb[0].mxu0
      %v733 = vpop.f32.mrb[0].mxu0
      %v734 = vadd.f32 %v495, %v733
      %v735 = vpop.f32.mrb[0].mxu0
      %736 = vmatprep.mubr.bf16.mxu0 0
      %737 = vmatmul.mubr.bf16.gmra.mrb[0].mxu0 %v571
      %v738 = vpop.f32.mrb[0].mxu0
      %v739 = vadd.f32 %v495, %v738
      %v740 = vpop.f32.mrb[0].mxu0
      %v741 = vpop.f32.mrb[0].mxu0
      %v742 = vadd.f32 %v495, %v741
      %v743 = vpop.f32.mrb[0].mxu0
      %744 = vmatprep.mubr.bf16.mxu0 0
      %745 = vmatmul.mubr.bf16.gmra.mrb[0].mxu0 %v574
      %v746 = vpop.f32.mrb[0].mxu0
      %v747 = vadd.f32 %v495, %v746
      %v748 = vpop.f32.mrb[0].mxu0
      %v749 = vpop.f32.mrb[0].mxu0
      %v750 = vadd.f32 %v495, %v749
      %v751 = vpop.f32.mrb[0].mxu0
      %752 = vdwg.mxu0
      %v753 = vtanh.pop %v611
      %v754 = vtanh.pop %v614
      %v755 = vtanh.pop %v619
      %v756 = vtanh.pop %v622
      %v757 = vtanh.pop %v627
      %v758 = vtanh.pop %v630
      %v759 = vtanh.pop %v635
      %v760 = vtanh.pop %v638
      %v761 = vtanh.pop %v643
      %v762 = vtanh.pop %v646
      %v763 = vtanh.pop %v651
      %v764 = vtanh.pop %v654
      %v765 = vtanh.pop %v659
      %v766 = vtanh.pop %v662
      %v767 = vtanh.pop %v667
      %v768 = vtanh.pop %v670
      %v769 = vtanh.pop %v675
      %v770 = vtanh.pop %v678
      %v771 = vtanh.pop %v683
      %v772 = vtanh.pop %v686
      %v773 = vtanh.pop %v691
      %v774 = vtanh.pop %v694
      %v775 = vtanh.pop %v699
      %v776 = vtanh.pop %v702
      %v777 = vtanh.pop %v707
      %v778 = vtanh.pop %v710
      %v779 = vtanh.pop %v715
      %v780 = vtanh.pop %v718
      %v781 = vtanh.pop %v723
      %v782 = vtanh.pop %v726
      %v783 = vtanh.pop %v731
      %v784 = vtanh.pop %v734
      %v785 = vtanh.pop %v739
      %v786 = vtanh.pop %v742
      %v787 = vtanh.pop %v747
      %v788 = vtanh.pop %v750
      %789 = vst [vmem:[%s199] sm:$0xff] %v753
      %790 = vst [vmem:[%s199 + $0x8] sm:$0xff] %v754
      %791 = vst [vmem:[%s199 + $0x10] sm:$0xff] %v755
      %792 = vst [vmem:[%s199 + $0x18] sm:$0xff] %v756
      %793 = vst [vmem:[%s199 + $0x20] sm:$0xff] %v757
      %794 = vst [vmem:[%s199 + $0x28] sm:$0xff] %v758
      %795 = vst [vmem:[%s199 + $0x30] sm:$0xff] %v759
      %796 = vst [vmem:[%s199 + $0x38] sm:$0xff] %v760
      %797 = vst [vmem:[%s199 + $0x40] sm:$0xff] %v761
      %798 = vst [vmem:[%s199 + $0x48] sm:$0xff] %v762
      %799 = vst [vmem:[%s199 + $0x50] sm:$0xff] %v763
      %800 = vst [vmem:[%s199 + $0x58] sm:$0xff] %v764
      %801 = vst [vmem:[%s199 + $0x60] sm:$0xff] %v765
      %802 = vst [vmem:[%s199 + $0x68] sm:$0xff] %v766
      %803 = vst [vmem:[%s199 + $0x70] sm:$0xff] %v767
      %804 = vst [vmem:[%s199 + $0x78] sm:$0xff] %v768
      %805 = vst [vmem:[%s199 + $0x80] sm:$0xff] %v769
      %806 = vst [vmem:[%s199 + $0x88] sm:$0xff] %v770
      %807 = vst [vmem:[%s199 + $0x90] sm:$0xff] %v771
      %808 = vst [vmem:[%s199 + $0x98] sm:$0xff] %v772
      %809 = vst [vmem:[%s199 + $0xa0] sm:$0xff] %v773
      %810 = vst [vmem:[%s199 + $0xa8] sm:$0xff] %v774
      %811 = vst [vmem:[%s199 + $0xb0] sm:$0xff] %v775
      %812 = vst [vmem:[%s199 + $0xb8] sm:$0xff] %v776
      %813 = vst [vmem:[%s199 + $0xc0] sm:$0xff] %v777
      %814 = vst [vmem:[%s199 + $0xc8] sm:$0xff] %v778
      %815 = vst [vmem:[%s199 + $0xd0] sm:$0xff] %v779
      %816 = vst [vmem:[%s199 + $0xd8] sm:$0xff] %v780
      %817 = vst [vmem:[%s199 + $0xe0] sm:$0xff] %v781
      %818 = vst [vmem:[%s199 + $0xe8] sm:$0xff] %v782
      %819 = vst [vmem:[%s199 + $0xf0] sm:$0xff] %v783
      %820 = vst [vmem:[%s199 + $0xf8] sm:$0xff] %v784
      %821 = vst [vmem:[%s199 + $0x100] sm:$0xff] %v785
      %822 = vst [vmem:[%s199 + $0x108] sm:$0xff] %v786
      %823 = vst [vmem:[%s199 + $0x110] sm:$0xff] %v787
      %824 = vst [vmem:[%s199 + $0x118] sm:$0xff] %v788
      %s825 = smul.u32 36, %s15
      %p826 = scmp.lt.s32.totalorder %s825, 71
      %s827 = scalar_select %p826, %s825, 71
      %s828 = smul.addr %s827, 8
      %s829 = scalar_lea.vmem %s4, %s828
      // Predicated region
      $region37: #{conv_generator_upsample.9} parent=35 // pred_check
        %p830 = pneg %p122
      $region38: #{conv_generator_upsample.9} parent=35 // pred_check_branch
        %832 = sbr.rel (%p830) target = $region40
      $region39: #{conv_generator_upsample.9} parent=35 // pred_region
        %s833 = smul.u32 36, %s15
      $region40: #{conv_generator_upsample.9} parent=35 // pred_fallthru
        _
    $region36: #{conv_generator_upsample.9} parent=5 // pred_fallthru
      _
    %p834 = scmp.le.s32.totalorder 2, %s10
    // Predicated region
    $region41: #{conv_generator_upsample.9} parent=5 // pred_check
      %p835 = pneg %p834
    $region42: #{conv_generator_upsample.9} parent=5 // pred_check_branch
      %837 = sbr.rel (%p835) target = $region44
    $region43: #{conv_generator_upsample.9} parent=5 // pred_region
      %s838 = ssub.s32 %s10, 2
      // Predicated region
      $region45: #{conv_generator_upsample.9} parent=43 // pred_check
        %p839 = pneg %p128
      $region46: #{conv_generator_upsample.9} parent=43 // pred_check_branch
        %841 = sbr.rel (%p839) target = $region48
      $region47: #{conv_generator_upsample.9} parent=43 // pred_region
        %s842 = smul.u32 36, %s16
        %p843 = scmp.lt.s32.totalorder %s842, 71
        %s844 = scalar_select %p843, %s842, 71
        %s845 = smul.addr %s844, 8
        %s846 = scalar_lea.vmem %s4, %s845
      $region48: #{conv_generator_upsample.9} parent=43 // pred_fallthru
        _
    $region44: #{conv_generator_upsample.9} parent=5 // pred_fallthru
      _
  $region6: #{conv_generator_upsample.9} parent=0 // loop_footer
    %s14 = sadd.s32 1, %s10
  $region7: #{conv_generator_upsample.9} parent=0 // loop_footer_branch
    %9 = sbr.rel target = $region3
  $region8: #{conv_generator_upsample.9} parent=0 // loop_exit
    _

// kernel: conv_generator_upsample.7
$region0: #{conv_generator_upsample.7}
  #allocation0 [shape = 'u32[]', space=smem, size = 0x4, offset = 0x4, fixed_abs, tag = 'smem constant byte address 0x4 - core index']
  #allocation1 [shape = 'u32[144,128]{1,0:T(1,128)}', space=vmem, size = 0x12000, scoped, tag = 'internal scratch']
  #allocation2 [shape = 'f32[104,128]{1,0:T(8,128)}', space=vmem, size = 0xd000, scoped, tag = 'scratch operand']
  %s0 = inlined_call_operand.vmem [shape: bf16[32,128], index: 0, kind: input, shape index: {}]
  %s1 = inlined_call_operand.vmem [shape: f32[2,128], index: 1, kind: input, shape index: {}]
  %s2 = inlined_call_operand.vmem [shape: f32[2,128], index: 2, kind: input, shape index: {}]
  %s3 = inlined_call_operand.hbm [shape: bf16[3,3,128,128], index: 3, kind: input, shape index: {}]
  %s4 = inlined_call_operand.vmem [shape: f32[80,1], index: 4, kind: input, shape index: {}]
  %s5 = inlined_call_operand.vmem [shape: bf16[160,128], index: 5, kind: output, shape index: {0}]
  %s6 = inlined_call_operand.vmem [shape: f32[2,128], index: 6, kind: output, shape index: {1}]
  %7 = xla_tuple %s5, %s6
  %s8 = sld [smem:[#allocation0]]
  $region73: #{conv_generator_upsample.7} parent=0
    _
  %s10 = ssub.s32 1, %s8
  %s11 = scalar_select 0, %s10, %s8
  $region1: #{conv_generator_upsample.7} parent=0
    #allocation3 [shape = 'u8[294912]{0}', space=vmem, size = 0x48000, scoped, tag = 'input window, operand 3, single buffered']
    #allocation4 [shape = 's32[2]{0}', space=sflag, size = 0x8, scoped, tag = 'scoped memory for conv_generator_upsample.7']
    %12 = vsyncpa [#allocation4], 0
    loop: start=0, step=1, limit=4
    $region2: #{conv_generator_upsample.7} parent=1 // loop_pre_header
      _
    $region3: #{conv_generator_upsample.7} parent=1 // loop_header
      %s14 = sphi 0, %s18
      %p15 = scmp.ge.s32.totalorder %s14, 4
      %s24 = sphi 0, %s26
      %s27 = sphi 0, %s24
      %s28 = sphi 0, %s27
      %s44 = sphi 0, %s28
      %s48 = sphi 0, %s48
      %s50 = sphi 0, %s48
      %s51 = sphi 0, %s50
      %s65 = sphi 0, %s51
      %s69 = sphi 0, %s69
      %s71 = sphi 0, %s69
      %s72 = sphi 0, %s71
      %s86 = sphi 0, %s72
      %s90 = sphi 0, %s90
      %s92 = sphi 0, %s90
      %s93 = sphi 0, %s92
      %s107 = sphi 0, %s93
      %s111 = sphi 0, %s111
      %s113 = sphi 0, %s111
      %s114 = sphi 0, %s113
      %s128 = sphi 0, %s114
      %s134 = sphi 0, %s136
      %s137 = sphi 0, %s134
      %s138 = sphi 0, %s137
      %s154 = sphi 0, %s138
      %s158 = sphi 0, %s158
      %s160 = sphi 0, %s158
      %s161 = sphi 0, %s160
      %s175 = sphi 0, %s161
    $region4: #{conv_generator_upsample.7} parent=1 // loop_header_branch
      %17 = sbr.rel (%p15) target = $region8
    $region5: #{conv_generator_upsample.7} parent=1 // loop_body
      %s19 = ssub.s32 %s14, 1
      %s20 = ssub.s32 %s14, 2
      %s21 = sadd.s32 %s14, 1
      %s22 = ssub.s32 %s14, %s21
      %p23 = scmp.eq.s32.totalorder %s22, 0
      %s25 = sadd.s32 %s24, 1
      %s26 = scalar_select %p23, %s24, %s25
      %p29 = pneg %p23
      %p30 = scmp.eq.s32.totalorder %s14, 1
      %p31 = por %p29, %p30
      %p32 = scmp.ne.s32.totalorder %s24, %s27
      %p33 = scmp.eq.s32.totalorder %s14, 0
      %p34 = por %p32, %p33
      %p35 = scmp.ne.s32.totalorder %s24, %s27
      %p36 = scmp.eq.s32.totalorder %s19, 1
      %p37 = por %p35, %p36
      %p38 = scmp.ne.s32.totalorder %s27, %s28
      %p39 = scmp.eq.s32.totalorder %s19, 0
      %p40 = por %p38, %p39
      %p41 = scmp.ne.s32.totalorder %s27, %s28
      %p42 = scmp.eq.s32.totalorder %s20, 1
      %p43 = por %p41, %p42
      %p45 = scmp.ne.s32.totalorder %s28, %s44
      %p46 = scmp.eq.s32.totalorder %s20, 0
      %p47 = por %p45, %p46
      %s49 = sadd.s32 %s48, 1
      %p52 = scmp.eq.s32.totalorder %s14, 1
      %p53 = scmp.ne.s32.totalorder %s48, %s50
      %p54 = scmp.eq.s32.totalorder %s14, 0
      %p55 = por %p53, %p54
      %p56 = scmp.ne.s32.totalorder %s48, %s50
      %p57 = scmp.eq.s32.totalorder %s19, 1
      %p58 = por %p56, %p57
      %p59 = scmp.ne.s32.totalorder %s50, %s51
      %p60 = scmp.eq.s32.totalorder %s19, 0
      %p61 = por %p59, %p60
      %p62 = scmp.ne.s32.totalorder %s50, %s51
      %p63 = scmp.eq.s32.totalorder %s20, 1
      %p64 = por %p62, %p63
      %p66 = scmp.ne.s32.totalorder %s51, %s65
      %p67 = scmp.eq.s32.totalorder %s20, 0
      %p68 = por %p66, %p67
      %s70 = sadd.s32 %s69, 1
      %p73 = scmp.eq.s32.totalorder %s14, 1
      %p74 = scmp.ne.s32.totalorder %s69, %s71
      %p75 = scmp.eq.s32.totalorder %s14, 0
      %p76 = por %p74, %p75
      %p77 = scmp.ne.s32.totalorder %s69, %s71
      %p78 = scmp.eq.s32.totalorder %s19, 1
      %p79 = por %p77, %p78
      %p80 = scmp.ne.s32.totalorder %s71, %s72
      %p81 = scmp.eq.s32.totalorder %s19, 0
      %p82 = por %p80, %p81
      %p83 = scmp.ne.s32.totalorder %s71, %s72
      %p84 = scmp.eq.s32.totalorder %s20, 1
      %p85 = por %p83, %p84
      %p87 = scmp.ne.s32.totalorder %s72, %s86
      %p88 = scmp.eq.s32.totalorder %s20, 0
      %p89 = por %p87, %p88
      %s91 = sadd.s32 %s90, 1
      %p94 = scmp.eq.s32.totalorder %s14, 1
      %p95 = scmp.ne.s32.totalorder %s90, %s92
      %p96 = scmp.eq.s32.totalorder %s14, 0
      %p97 = por %p95, %p96
      %p98 = scmp.ne.s32.totalorder %s90, %s92
      %p99 = scmp.eq.s32.totalorder %s19, 1
      %p100 = por %p98, %p99
      %p101 = scmp.ne.s32.totalorder %s92, %s93
      %p102 = scmp.eq.s32.totalorder %s19, 0
      %p103 = por %p101, %p102
      %p104 = scmp.ne.s32.totalorder %s92, %s93
      %p105 = scmp.eq.s32.totalorder %s20, 1
      %p106 = por %p104, %p105
      %p108 = scmp.ne.s32.totalorder %s93, %s107
      %p109 = scmp.eq.s32.totalorder %s20, 0
      %p110 = por %p108, %p109
      %s112 = sadd.s32 %s111, 1
      %p115 = scmp.eq.s32.totalorder %s14, 1
      %p116 = scmp.ne.s32.totalorder %s111, %s113
      %p117 = scmp.eq.s32.totalorder %s14, 0
      %p118 = por %p116, %p117
      %p119 = scmp.ne.s32.totalorder %s111, %s113
      %p120 = scmp.eq.s32.totalorder %s19, 1
      %p121 = por %p119, %p120
      %p122 = scmp.ne.s32.totalorder %s113, %s114
      %p123 = scmp.eq.s32.totalorder %s19, 0
      %p124 = por %p122, %p123
      %p125 = scmp.ne.s32.totalorder %s113, %s114
      %p126 = scmp.eq.s32.totalorder %s20, 1
      %p127 = por %p125, %p126
      %p129 = scmp.ne.s32.totalorder %s114, %s128
      %p130 = scmp.eq.s32.totalorder %s20, 0
      %p131 = por %p129, %p130
      %s132 = ssub.s32 %s14, %s21
      %p133 = scmp.eq.s32.totalorder %s132, 0
      %s135 = sadd.s32 %s134, 1
      %s136 = scalar_select %p133, %s134, %s135
      %p139 = pneg %p133
      %p140 = scmp.eq.s32.totalorder %s14, 1
      %p141 = por %p139, %p140
      %p142 = scmp.ne.s32.totalorder %s134, %s137
      %p143 = scmp.eq.s32.totalorder %s14, 0
      %p144 = por %p142, %p143
      %p145 = scmp.ne.s32.totalorder %s134, %s137
      %p146 = scmp.eq.s32.totalorder %s19, 1
      %p147 = por %p145, %p146
      %p148 = scmp.ne.s32.totalorder %s137, %s138
      %p149 = scmp.eq.s32.totalorder %s19, 0
      %p150 = por %p148, %p149
      %p151 = scmp.ne.s32.totalorder %s137, %s138
      %p152 = scmp.eq.s32.totalorder %s20, 1
      %p153 = por %p151, %p152
      %p155 = scmp.ne.s32.totalorder %s138, %s154
      %p156 = scmp.eq.s32.totalorder %s20, 0
      %p157 = por %p155, %p156
      %s159 = sadd.s32 %s158, 1
      %p162 = scmp.eq.s32.totalorder %s14, 1
      %p163 = scmp.ne.s32.totalorder %s158, %s160
      %p164 = scmp.eq.s32.totalorder %s14, 0
      %p165 = por %p163, %p164
      %p166 = scmp.ne.s32.totalorder %s158, %s160
      %p167 = scmp.eq.s32.totalorder %s19, 1
      %p168 = por %p166, %p167
      %p169 = scmp.ne.s32.totalorder %s160, %s161
      %p170 = scmp.eq.s32.totalorder %s19, 0
      %p171 = por %p169, %p170
      %p172 = scmp.ne.s32.totalorder %s160, %s161
      %p173 = scmp.eq.s32.totalorder %s20, 1
      %p174 = por %p172, %p173
      %p176 = scmp.ne.s32.totalorder %s161, %s175
      %p177 = scmp.eq.s32.totalorder %s20, 0
      %p178 = por %p176, %p177
      %p179 = scmp.le.s32.totalorder 1, %s14
      %p180 = scmp.lt.s32.totalorder %s14, 3
      %p181 = pnand %p179, %p180
      %p182 = pneg %p181
      // Predicated region
      $region9: #{conv_generator_upsample.7} parent=5 // pred_check
        _
      $region10: #{conv_generator_upsample.7} parent=5 // pred_check_branch
        %184 = sbr.rel (%p181) target = $region12
      $region11: #{conv_generator_upsample.7} parent=5 // pred_region
        %s185 = ssub.s32 %s14, 1
        // Predicated region
        $region13: #{conv_generator_upsample.7} parent=11 // pred_check
          %p186 = pneg %p61
        $region14: #{conv_generator_upsample.7} parent=11 // pred_check_branch
          %188 = sbr.rel (%p186) target = $region16
        $region15: #{conv_generator_upsample.7} parent=11 // pred_region
          _
        $region16: #{conv_generator_upsample.7} parent=11 // pred_fallthru
          _
        // Predicated region
        $region17: #{conv_generator_upsample.7} parent=11 // pred_check
          %p189 = pneg %p82
        $region18: #{conv_generator_upsample.7} parent=11 // pred_check_branch
          %191 = sbr.rel (%p189) target = $region20
        $region19: #{conv_generator_upsample.7} parent=11 // pred_region
          _
        $region20: #{conv_generator_upsample.7} parent=11 // pred_fallthru
          _
        // Predicated region
        $region21: #{conv_generator_upsample.7} parent=11 // pred_check
          %p192 = pneg %p103
        $region22: #{conv_generator_upsample.7} parent=11 // pred_check_branch
          %194 = sbr.rel (%p192) target = $region24
        $region23: #{conv_generator_upsample.7} parent=11 // pred_region
          %s196 = ssub.s32 9216, 9216
          %197 = vsyncadd [#allocation4], %s196
          %s198 = sshll.u32 [#allocation3], 4
          %s199 = int_to_ptr.vmem [resolvable:$true] %s198
          %204 = dma.hbm_to_vmem [thread:$0]  %s3, 9216, %s199, [#allocation4], 64, 64, 4
        $region24: #{conv_generator_upsample.7} parent=11 // pred_fallthru
          _
        // Predicated region
        $region25: #{conv_generator_upsample.7} parent=11 // pred_check
          %p205 = pneg %p124
        $region26: #{conv_generator_upsample.7} parent=11 // pred_check_branch
          %207 = sbr.rel (%p205) target = $region28
        $region27: #{conv_generator_upsample.7} parent=11 // pred_region
          _
        $region28: #{conv_generator_upsample.7} parent=11 // pred_fallthru
          _
      $region12: #{conv_generator_upsample.7} parent=5 // pred_fallthru
        _
      %p208 = scmp.lt.s32.totalorder %s14, 2
      // Predicated region
      $region29: #{conv_generator_upsample.7} parent=5 // pred_check
        %p209 = pneg %p208
      $region30: #{conv_generator_upsample.7} parent=5 // pred_check_branch
        %211 = sbr.rel (%p209) target = $region32
      $region31: #{conv_generator_upsample.7} parent=5 // pred_region
        // Predicated region
        $region33: #{conv_generator_upsample.7} parent=31 // pred_check
          %p212 = pneg %p34
        $region34: #{conv_generator_upsample.7} parent=31 // pred_check_branch
          %214 = sbr.rel (%p212) target = $region36
        $region35: #{conv_generator_upsample.7} parent=31 // pred_region
          %s215 = smul.u32 2, %s14
          %p216 = scmp.lt.s32.totalorder %s215, 3
          %s217 = scalar_select %p216, %s215, 3
          %s218 = smul.addr %s217, 4
          %s219 = scalar_lea.vmem %s0, %s218
          %s220 = smul.u32 2, %s14
        $region36: #{conv_generator_upsample.7} parent=31 // pred_fallthru
          _
      $region32: #{conv_generator_upsample.7} parent=5 // pred_fallthru
        _
      %p221 = scmp.le.s32.totalorder 1, %s14
      %p222 = scmp.lt.s32.totalorder %s14, 3
      %p223 = pnand %p221, %p222
      %p224 = pneg %p223
      // Predicated region
      $region37: #{conv_generator_upsample.7} parent=5 // pred_check
        _
      $region38: #{conv_generator_upsample.7} parent=5 // pred_check_branch
        %226 = sbr.rel (%p223) target = $region40
      $region39: #{conv_generator_upsample.7} parent=5 // pred_region
        %s227 = ssub.s32 %s14, 1
        // Predicated region
        $region41: #{conv_generator_upsample.7} parent=39 // pred_check
          %p228 = pneg %p103
        $region42: #{conv_generator_upsample.7} parent=39 // pred_check_branch
          %230 = sbr.rel (%p228) target = $region44
        $region43: #{conv_generator_upsample.7} parent=39 // pred_region
          %231 = dma.done [#allocation4], 9216
        $region44: #{conv_generator_upsample.7} parent=39 // pred_fallthru
          _
        %s232 = smul.u32 2, %s19
        %p233 = scmp.lt.s32.totalorder %s232, 3
        %s234 = scalar_select %p233, %s232, 3
        %s235 = smul.addr %s234, 4
        %s236 = scalar_lea.vmem %s0, %s235
        %p237 = pneg %p40
        %p238 = pneg %p37
        %p239 = pneg %p61
        %p240 = pneg %p58
        %p241 = pneg %p82
        %p242 = pneg %p79
        %p243 = pneg %p103
        %p244 = pneg %p100
        %p245 = pneg %p124
        %p246 = pneg %p121
        %p247 = pneg %p150
        %p248 = pneg %p147
        %s249 = smul.u32 10, %s19
        %p250 = scmp.lt.s32.totalorder %s249, 19
        %s251 = scalar_select %p250, %s249, 19
        %s252 = smul.addr %s251, 4
        %s253 = scalar_lea.vmem %s5, %s252
        %p254 = pneg %p171
        %p255 = pneg %p168
        %s256 = smul.u32 2, %s19
        %p257 = scmp.lt.s32.totalorder %s256, 3
        %s258 = scalar_select %p257, %s256, 3
        %s259 = smul.addr %s258, 4
        %s260 = scalar_lea.vmem %s0, %s259
        %s261 = smul.u32 2, %s19
        %s262 = smul.u32 10, %s19
        %p263 = scmp.lt.s32.totalorder %s262, 19
        %s264 = scalar_select %p263, %s262, 19
        %s265 = smul.addr %s264, 4
        %s266 = scalar_lea.vmem %s5, %s265
        %s267 = smul.u32 10, %s19
        %p269 = scmp.eq.s32.totalorder %s19, 0
        // Predicated region
        $region45: #{conv_generator_upsample.7} parent=39 // pred_check
          %p270 = pneg %p269
        $region46: #{conv_generator_upsample.7} parent=39 // pred_check_branch
          %272 = sbr.rel (%p270) target = $region48
        $region47: #{conv_generator_upsample.7} parent=39 // pred_region
          %273 = vst [vmem:[#allocation2] sm:$0xff] 0.0
          %274 = vst [vmem:[#allocation2 + $0x8] sm:$0xff] 0.0
          %275 = vst [vmem:[#allocation2 + $0x10] sm:$0xff] 0.0
          %276 = vst [vmem:[#allocation2 + $0x18] sm:$0xff] 0.0
          %277 = vst [vmem:[#allocation2 + $0x20] sm:$0xff] 0.0
          %278 = vst [vmem:[#allocation2 + $0x28] sm:$0xff] 0.0
          %279 = vst [vmem:[#allocation2 + $0x30] sm:$0xff] 0.0
          %280 = vst [vmem:[#allocation2 + $0x38] sm:$0xff] 0.0
          %281 = vst [vmem:[#allocation2 + $0x40] sm:$0xff] 0.0
          %282 = vst [vmem:[#allocation2 + $0x48] sm:$0xff] 0.0
          %283 = vst [vmem:[#allocation2 + $0x50] sm:$0xff] 0.0
          %284 = vst [vmem:[#allocation2 + $0x58] sm:$0xff] 0.0
          %285 = vst [vmem:[#allocation2 + $0x60] sm:$0xff] 0.0
          %286 = vst [vmem:[%s6] sm:$0x3] 0.0
        $region48: #{conv_generator_upsample.7} parent=39 // pred_fallthru
          _
        %v287 = vld [vmem:[%s1] sm:$0x1]
        %v288 = vld [vmem:[%s1 + $0x1] sm:$0x1]
        %v289 = vld [vmem:[%s260] sm:$0x3]
        %v290 = vunpack.c.l.bf16 %v289
        %v291 = vlaneseq
        %v292 = vshrl.u32 %v291, 7
        %v293 = vsub.s32 0, %v292
        %v294 = vrot.slane %v287, %v293
        %v295 = vmul.f32 %v290, %v294
        %v296 = vlaneseq
        %v297 = vshrl.u32 %v296, 7
        %v298 = vsub.s32 0, %v297
        %v299 = vrot.slane %v288, %v298
        %v300 = vadd.f32 %v295, %v299
        %v303 = vunpack.c.l.s4 1966171168
        %v304 = vunpack.c.0.s8 %v303
        %v305 = vlaneseq
        %v306 = vshrl.u32 %v305, 7
        %v307 = vsub.s32 %v304, %v306
        %v308 = vrot.slane %v300, %v307
        %v309 = vcombine.high %v308, %v308
        %v311 = vunpack.c.l.s4 1966171168
        %v312 = vunpack.c.0.s8 %v311
        %v313 = vlaneseq
        %v314 = vshrl.u32 %v313, 7
        %v315 = vsub.s32 %v312, %v314
        %v316 = vrot.slane %v308, %v315
        %v318 = vunpack.c.l.s4 1966171168
        %v319 = vunpack.c.0.s8 %v318
        %v320 = vlaneseq
        %v321 = vshrl.u32 %v320, 7
        %v322 = vsub.s32 %v319, %v321
        %v323 = vrot.slane %v309, %v322
        %v324 = vcombine.high %v316, %v316
        %v325 = vcombine.high %v323, %v323
        %v326 = vlaneseq
        %v327 = vshrl.u32 %v326, 7
        %v328 = vsub.s32 0, %v327
        %v329 = vrot.slane %v316, %v328
        %v330 = vlaneseq
        %v331 = vshrl.u32 %v330, 7
        %v332 = vsub.s32 0, %v331
        %v333 = vrot.slane %v323, %v332
        %v334 = vlaneseq
        %v335 = vshrl.u32 %v334, 7
        %v336 = vsub.s32 0, %v335
        %v337 = vrot.slane %v324, %v336
        %v338 = vlaneseq
        %v339 = vshrl.u32 %v338, 7
        %v340 = vsub.s32 0, %v339
        %v341 = vrot.slane %v325, %v340
        %v342 = vcombine.low %v329, %v333
        %v343 = vcombine.low %v337, %v341
        %v345 = vunpack.c.l.s4 1983009808
        %v346 = vunpack.c.0.s8 %v345
        %v347 = vlaneseq
        %v348 = vshrl.u32 %v347, 7
        %v349 = vsub.s32 %v346, %v348
        %v350 = vrot.slane %v342, %v349
        %v352 = vunpack.c.l.s4 1983009808
        %v353 = vunpack.c.0.s8 %v352
        %v354 = vlaneseq
        %v355 = vshrl.u32 %v354, 7
        %v356 = vsub.s32 %v353, %v355
        %v357 = vrot.slane %v343, %v356
        %v358 = vcombine.low %v350, %v357
        %360 = vst [vmem:[#allocation2 + $0xb] sm:$0xff] %v358
        %361 = vst [vmem:[#allocation2 + $0x15] sm:$0xff] %v358
        %v362 = vld [vmem:[%s260] sm:$0xc]
        %v363 = vunpack.c.l.bf16 %v362
        %v364 = vmul.f32 %v363, %v294
        %v365 = vadd.f32 %v364, %v299
        %v367 = vcombine.high %v365, %v365
        %v369 = vunpack.c.l.s4 1966171168
        %v370 = vunpack.c.0.s8 %v369
        %v371 = vlaneseq
        %v372 = vshrl.u32 %v371, 7
        %v373 = vsub.s32 %v370, %v372
        %v374 = vrot.slane %v367, %v373
        %v375 = vcombine.high %v374, %v374
        %v377 = vunpack.c.l.s4 1966171168
        %v378 = vunpack.c.0.s8 %v377
        %v379 = vlaneseq
        %v380 = vshrl.u32 %v379, 7
        %v381 = vsub.s32 %v378, %v380
        %v382 = vrot.slane %v374, %v381
        %v384 = vunpack.c.l.s4 1966171168
        %v385 = vunpack.c.0.s8 %v384
        %v386 = vlaneseq
        %v387 = vshrl.u32 %v386, 7
        %v388 = vsub.s32 %v385, %v387
        %v389 = vrot.slane %v375, %v388
        %v390 = vcombine.high %v382, %v382
        %v391 = vcombine.high %v389, %v389
        %v392 = vlaneseq
        %v393 = vshrl.u32 %v392, 7
        %v394 = vsub.s32 0, %v393
        %v395 = vrot.slane %v382, %v394
        %v396 = vlaneseq
        %v397 = vshrl.u32 %v396, 7
        %v398 = vsub.s32 0, %v397
        %v399 = vrot.slane %v389, %v398
        %v400 = vlaneseq
        %v401 = vshrl.u32 %v400, 7
        %v402 = vsub.s32 0, %v401
        %v403 = vrot.slane %v390, %v402
        %v404 = vlaneseq
        %v405 = vshrl.u32 %v404, 7
        %v406 = vsub.s32 0, %v405
        %v407 = vrot.slane %v391, %v406
        %v408 = vcombine.low %v395, %v399
        %v409 = vcombine.low %v403, %v407
        %v411 = vunpack.c.l.s4 1983009808
        %v412 = vunpack.c.0.s8 %v411
        %v413 = vlaneseq
        %v414 = vshrl.u32 %v413, 7
        %v415 = vsub.s32 %v412, %v414
        %v416 = vrot.slane %v408, %v415
        %v418 = vunpack.c.l.s4 1983009808
        %v419 = vunpack.c.0.s8 %v418
        %v420 = vlaneseq
        %v421 = vshrl.u32 %v420, 7
        %v422 = vsub.s32 %v419, %v421
        %v423 = vrot.slane %v409, %v422
        %v424 = vcombine.low %v416, %v423
        %426 = vst [vmem:[#allocation2 + $0x1f] sm:$0xff] %v424
        %427 = vst [vmem:[#allocation2 + $0x29] sm:$0xff] %v424
        %v428 = vld [vmem:[%s260 + $0x4] sm:$0x3]
        %v429 = vunpack.c.l.bf16 %v428
        %v430 = vmul.f32 %v429, %v294
        %v431 = vadd.f32 %v430, %v299
        %v434 = vunpack.c.l.s4 1966171168
        %v435 = vunpack.c.0.s8 %v434
        %v436 = vlaneseq
        %v437 = vshrl.u32 %v436, 7
        %v438 = vsub.s32 %v435, %v437
        %v439 = vrot.slane %v431, %v438
        %v440 = vcombine.high %v439, %v439
        %v442 = vunpack.c.l.s4 1966171168
        %v443 = vunpack.c.0.s8 %v442
        %v444 = vlaneseq
        %v445 = vshrl.u32 %v444, 7
        %v446 = vsub.s32 %v443, %v445
        %v447 = vrot.slane %v439, %v446
        %v449 = vunpack.c.l.s4 1966171168
        %v450 = vunpack.c.0.s8 %v449
        %v451 = vlaneseq
        %v452 = vshrl.u32 %v451, 7
        %v453 = vsub.s32 %v450, %v452
        %v454 = vrot.slane %v440, %v453
        %v455 = vcombine.high %v447, %v447
        %v456 = vcombine.high %v454, %v454
        %v457 = vlaneseq
        %v458 = vshrl.u32 %v457, 7
        %v459 = vsub.s32 0, %v458
        %v460 = vrot.slane %v447, %v459
        %v461 = vlaneseq
        %v462 = vshrl.u32 %v461, 7
        %v463 = vsub.s32 0, %v462
        %v464 = vrot.slane %v454, %v463
        %v465 = vlaneseq
        %v466 = vshrl.u32 %v465, 7
        %v467 = vsub.s32 0, %v466
        %v468 = vrot.slane %v455, %v467
        %v469 = vlaneseq
        %v470 = vshrl.u32 %v469, 7
        %v471 = vsub.s32 0, %v470
        %v472 = vrot.slane %v456, %v471
        %v473 = vcombine.low %v460, %v464
        %v474 = vcombine.low %v468, %v472
        %v476 = vunpack.c.l.s4 1983009808
        %v477 = vunpack.c.0.s8 %v476
        %v478 = vlaneseq
        %v479 = vshrl.u32 %v478, 7
        %v480 = vsub.s32 %v477, %v479
        %v481 = vrot.slane %v473, %v480
        %v483 = vunpack.c.l.s4 1983009808
        %v484 = vunpack.c.0.s8 %v483
        %v485 = vlaneseq
        %v486 = vshrl.u32 %v485, 7
        %v487 = vsub.s32 %v484, %v486
        %v488 = vrot.slane %v474, %v487
        %v489 = vcombine.low %v481, %v488
        %491 = vst [vmem:[#allocation2 + $0x33] sm:$0xff] %v489
        %492 = vst [vmem:[#allocation2 + $0x3d] sm:$0xff] %v489
        %v493 = vld [vmem:[%s260 + $0x4] sm:$0xc]
        %v494 = vunpack.c.l.bf16 %v493
        %v495 = vmul.f32 %v494, %v294
        %v496 = vadd.f32 %v495, %v299
        %v498 = vcombine.high %v496, %v496
        %v500 = vunpack.c.l.s4 1966171168
        %v501 = vunpack.c.0.s8 %v500
        %v502 = vlaneseq
        %v503 = vshrl.u32 %v502, 7
        %v504 = vsub.s32 %v501, %v503
        %v505 = vrot.slane %v498, %v504
        %v506 = vcombine.high %v505, %v505
        %v508 = vunpack.c.l.s4 1966171168
        %v509 = vunpack.c.0.s8 %v508
        %v510 = vlaneseq
        %v511 = vshrl.u32 %v510, 7
        %v512 = vsub.s32 %v509, %v511
        %v513 = vrot.slane %v505, %v512
        %v515 = vunpack.c.l.s4 1966171168
        %v516 = vunpack.c.0.s8 %v515
        %v517 = vlaneseq
        %v518 = vshrl.u32 %v517, 7
        %v519 = vsub.s32 %v516, %v518
        %v520 = vrot.slane %v506, %v519
        %v521 = vcombine.high %v513, %v513
        %v522 = vcombine.high %v520, %v520
        %v523 = vlaneseq
        %v524 = vshrl.u32 %v523, 7
        %v525 = vsub.s32 0, %v524
        %v526 = vrot.slane %v513, %v525
        %v527 = vlaneseq
        %v528 = vshrl.u32 %v527, 7
        %v529 = vsub.s32 0, %v528
        %v530 = vrot.slane %v520, %v529
        %v531 = vlaneseq
        %v532 = vshrl.u32 %v531, 7
        %v533 = vsub.s32 0, %v532
        %v534 = vrot.slane %v521, %v533
        %v535 = vlaneseq
        %v536 = vshrl.u32 %v535, 7
        %v537 = vsub.s32 0, %v536
        %v538 = vrot.slane %v522, %v537
        %v539 = vcombine.low %v526, %v530
        %v540 = vcombine.low %v534, %v538
        %v542 = vunpack.c.l.s4 1983009808
        %v543 = vunpack.c.0.s8 %v542
        %v544 = vlaneseq
        %v545 = vshrl.u32 %v544, 7
        %v546 = vsub.s32 %v543, %v545
        %v547 = vrot.slane %v539, %v546
        %v549 = vunpack.c.l.s4 1983009808
        %v550 = vunpack.c.0.s8 %v549
        %v551 = vlaneseq
        %v552 = vshrl.u32 %v551, 7
        %v553 = vsub.s32 %v550, %v552
        %v554 = vrot.slane %v540, %v553
        %v555 = vcombine.low %v547, %v554
        %557 = vst [vmem:[#allocation2 + $0x47] sm:$0xff] %v555
        %558 = vst [vmem:[#allocation2 + $0x51] sm:$0xff] %v555
        %v559 = vld [vmem:[#allocation2] sm:$0xff]
        %v560 = vld [vmem:[#allocation2 + $0x8] sm:$0xff]
        %v561 = vld [vmem:[#allocation2 + $0x10] sm:$0xff]
        %v562 = vld [vmem:[#allocation2 + $0x18] sm:$0xff]
        %v563 = vld [vmem:[#allocation2 + $0x20] sm:$0xff]
        %v564 = vld [vmem:[#allocation2 + $0x28] sm:$0xff]
        %v565 = vld [vmem:[#allocation2 + $0x30] sm:$0xff]
        %v566 = vld [vmem:[#allocation2 + $0x38] sm:$0xff]
        %v567 = vld [vmem:[#allocation2 + $0x40] sm:$0xff]
        %v568 = vld [vmem:[#allocation2 + $0x48] sm:$0xff]
        %v569 = vpack.c.bf16 %v560, %v559
        %v570 = vpack.c.bf16 %v562, %v561
        %v571 = vpack.c.bf16 %v564, %v563
        %v572 = vpack.c.bf16 %v566, %v565
        %v573 = vpack.c.bf16 %v568, %v567
        %v574 = vld [vmem:[#allocation3] sm:$0xf]
        %v575 = vld [vmem:[#allocation3 + $0x4] sm:$0xf]
        %v576 = vld [vmem:[#allocation3 + $0x8] sm:$0xf]
        %v577 = vld [vmem:[#allocation3 + $0xc] sm:$0xf]
        %v578 = vld [vmem:[#allocation3 + $0x10] sm:$0xf]
        %v579 = vld [vmem:[#allocation3 + $0x14] sm:$0xf]
        %v580 = vld [vmem:[#allocation3 + $0x18] sm:$0xf]
        %v581 = vld [vmem:[#allocation3 + $0x1c] sm:$0xf]
        %v582 = vld [vmem:[#allocation3 + $0x20] sm:$0xf]
        %v583 = vld [vmem:[#allocation3 + $0x24] sm:$0xf]
        %v584 = vld [vmem:[#allocation3 + $0x28] sm:$0xf]
        %v585 = vld [vmem:[#allocation3 + $0x2c] sm:$0xf]
        %v586 = vld [vmem:[#allocation3 + $0x30] sm:$0xf]
        %v587 = vld [vmem:[#allocation3 + $0x34] sm:$0xf]
        %v588 = vld [vmem:[#allocation3 + $0x38] sm:$0xf]
        %v589 = vld [vmem:[#allocation3 + $0x3c] sm:$0xf]
        %v590 = vld [vmem:[#allocation2 + $0x1] sm:$0xff]
        %v591 = vld [vmem:[#allocation2 + $0x9] sm:$0xff]
        %v592 = vld [vmem:[#allocation2 + $0x11] sm:$0xff]
        %v593 = vld [vmem:[#allocation2 + $0x19] sm:$0xff]
        %v594 = vld [vmem:[#allocation2 + $0x21] sm:$0xff]
        %v595 = vld [vmem:[#allocation2 + $0x29] sm:$0xff]
        %v596 = vld [vmem:[#allocation2 + $0x31] sm:$0xff]
        %v597 = vld [vmem:[#allocation2 + $0x39] sm:$0xff]
        %v598 = vld [vmem:[#allocation2 + $0x41] sm:$0xff]
        %v599 = vld [vmem:[#allocation2 + $0x49] sm:$0xff]
        %v600 = vpack.c.bf16 %v591, %v590
        %v601 = vpack.c.bf16 %v593, %v592
        %v602 = vpack.c.bf16 %v595, %v594
        %v603 = vpack.c.bf16 %v597, %v596
        %v604 = vpack.c.bf16 %v599, %v598
        %s605 = scalar_lea.vmem [#allocation3], 64
        %v606 = vld [vmem:[%s605] sm:$0xf]
        %v607 = vld [vmem:[%s605 + $0x4] sm:$0xf]
        %v608 = vld [vmem:[%s605 + $0x8] sm:$0xf]
        %v609 = vld [vmem:[%s605 + $0xc] sm:$0xf]
        %v610 = vld [vmem:[%s605 + $0x10] sm:$0xf]
        %v611 = vld [vmem:[%s605 + $0x14] sm:$0xf]
        %v612 = vld [vmem:[%s605 + $0x18] sm:$0xf]
        %v613 = vld [vmem:[%s605 + $0x1c] sm:$0xf]
        %v614 = vld [vmem:[%s605 + $0x20] sm:$0xf]
        %v615 = vld [vmem:[%s605 + $0x24] sm:$0xf]
        %v616 = vld [vmem:[%s605 + $0x28] sm:$0xf]
        %v617 = vld [vmem:[%s605 + $0x2c] sm:$0xf]
        %v618 = vld [vmem:[%s605 + $0x30] sm:$0xf]
        %v619 = vld [vmem:[%s605 + $0x34] sm:$0xf]
        %v620 = vld [vmem:[%s605 + $0x38] sm:$0xf]
        %v621 = vld [vmem:[%s605 + $0x3c] sm:$0xf]
        %v638 = vunpack.c.l.b16 %v606
        %v639 = vunpack.c.l.b16 %v607
        %v640 = vunpack.c.l.b16 %v608
        %v641 = vunpack.c.l.b16 %v609
        %v642 = vunpack.c.l.b16 %v610
        %v643 = vunpack.c.l.b16 %v611
        %v644 = vunpack.c.l.b16 %v612
        %v645 = vunpack.c.l.b16 %v613
        %v646 = vunpack.c.l.b16 %v614
        %v647 = vunpack.c.l.b16 %v615
        %v648 = vunpack.c.l.b16 %v616
        %v649 = vunpack.c.l.b16 %v617
        %v650 = vunpack.c.l.b16 %v618
        %v651 = vunpack.c.l.b16 %v619
        %v652 = vunpack.c.l.b16 %v620
        %v653 = vunpack.c.l.b16 %v621
        %v654 = vpack.c.b16 %v639, %v638
        %v655 = vpack.c.b16 %v641, %v640
        %v656 = vpack.c.b16 %v643, %v642
        %v657 = vpack.c.b16 %v645, %v644
        %v658 = vpack.c.b16 %v647, %v646
        %v659 = vpack.c.b16 %v649, %v648
        %v660 = vpack.c.b16 %v651, %v650
        %v661 = vpack.c.b16 %v653, %v652
        %670 = vmatprep.subr.bf16.mxu0 0
        %671 = vmatpush1.bf16.msra.mxu0 %v654
        %672 = vmatprep.subr.bf16.mxu0 0
        %673 = vmatpush1.bf16.msra.mxu0 %v655
        %674 = vmatprep.subr.bf16.mxu0 0
        %675 = vmatpush1.bf16.msra.mxu0 %v656
        %676 = vmatprep.subr.bf16.mxu0 0
        %677 = vmatpush1.bf16.msra.mxu0 %v657
        %678 = vmatprep.subr.bf16.mxu0 0
        %679 = vmatpush1.bf16.msra.mxu0 %v658
        %680 = vmatprep.subr.bf16.mxu0 0
        %681 = vmatpush1.bf16.msra.mxu0 %v659
        %682 = vmatprep.subr.bf16.mxu0 0
        %683 = vmatpush1.bf16.msra.mxu0 %v660
        %684 = vmatprep.subr.bf16.mxu0 0
        %685 = vmatpush1.bf16.msra.mxu0 %v661
        %686 = vmatprep.subr.bf16.mxu0 0
        %687 = vmatpush1.bf16.msra.mxu0 0
        %688 = vmatprep.subr.bf16.mxu0 0
        %689 = vmatpush1.bf16.msra.mxu0 0
        %690 = vmatprep.subr.bf16.mxu0 0
        %691 = vmatpush1.bf16.msra.mxu0 0
        %692 = vmatprep.subr.bf16.mxu0 0
        %693 = vmatpush1.bf16.msra.mxu0 0
        %694 = vmatprep.subr.bf16.mxu0 0
        %695 = vmatpush1.bf16.msra.mxu0 0
        %696 = vmatprep.subr.bf16.mxu0 0
        %697 = vmatpush1.bf16.msra.mxu0 0
        %698 = vmatprep.subr.bf16.mxu0 0
        %699 = vmatpush1.bf16.msra.mxu0 0
        %700 = vmatprep.subr.bf16.mxu0 0
        %701 = vmatpush1.bf16.msra.mxu0 0
        %702 = vmatprep.mubr.bf16.mxu0 0
        %703 = vmatmul.mubr.bf16.gmra.mrb[0].mxu0 %v600
        %v704 = vpop.f32.mrb[0].mxu0
        %v705 = vadd.f32 0.0, %v704
        %v706 = vpop.f32.mrb[0].mxu0
        %v707 = vpop.f32.mrb[0].mxu0
        %v708 = vadd.f32 0.0, %v707
        %v709 = vpop.f32.mrb[0].mxu0
        %710 = vmatprep.mubr.bf16.mxu0 0
        %711 = vmatmul.mubr.bf16.gmra.mrb[0].mxu0 %v601
        %v712 = vpop.f32.mrb[0].mxu0
        %v713 = vadd.f32 0.0, %v712
        %v714 = vpop.f32.mrb[0].mxu0
        %v715 = vpop.f32.mrb[0].mxu0
        %v716 = vadd.f32 0.0, %v715
        %v717 = vpop.f32.mrb[0].mxu0
        %718 = vmatprep.mubr.bf16.mxu0 0
        %719 = vmatmul.mubr.bf16.gmra.mrb[0].mxu0 %v602
        %v720 = vpop.f32.mrb[0].mxu0
        %v721 = vadd.f32 0.0, %v720
        %v722 = vpop.f32.mrb[0].mxu0
        %v723 = vpop.f32.mrb[0].mxu0
        %v724 = vadd.f32 0.0, %v723
        %v725 = vpop.f32.mrb[0].mxu0
        %726 = vmatprep.mubr.bf16.mxu0 0
        %727 = vmatmul.mubr.bf16.gmra.mrb[0].mxu0 %v603
        %v728 = vpop.f32.mrb[0].mxu0
        %v729 = vadd.f32 0.0, %v728
        %v730 = vpop.f32.mrb[0].mxu0
        %v731 = vpop.f32.mrb[0].mxu0
        %v732 = vadd.f32 0.0, %v731
        %v733 = vpop.f32.mrb[0].mxu0
        %734 = vmatprep.mubr.bf16.mxu0 0
        %735 = vmatmul.mubr.bf16.gmra.mrb[0].mxu0 %v604
        %v736 = vpop.f32.mrb[0].mxu0
        %v737 = vadd.f32 0.0, %v736
        %v738 = vpop.f32.mrb[0].mxu0
        %v739 = vpop.f32.mrb[0].mxu0
        %v740 = vadd.f32 0.0, %v739
        %v741 = vpop.f32.mrb[0].mxu0
        %742 = vdwg.mxu0
        %v759 = vunpack.c.l.b16 %v574
        %v760 = vunpack.c.l.b16 %v575
        %v761 = vunpack.c.l.b16 %v576
        %v762 = vunpack.c.l.b16 %v577
        %v763 = vunpack.c.l.b16 %v578
        %v764 = vunpack.c.l.b16 %v579
        %v765 = vunpack.c.l.b16 %v580
        %v766 = vunpack.c.l.b16 %v581
        %v767 = vunpack.c.l.b16 %v582
        %v768 = vunpack.c.l.b16 %v583
        %v769 = vunpack.c.l.b16 %v584
        %v770 = vunpack.c.l.b16 %v585
        %v771 = vunpack.c.l.b16 %v586
        %v772 = vunpack.c.l.b16 %v587
        %v773 = vunpack.c.l.b16 %v588
        %v774 = vunpack.c.l.b16 %v589
        %v775 = vpack.c.b16 %v760, %v759
        %v776 = vpack.c.b16 %v762, %v761
        %v777 = vpack.c.b16 %v764, %v763
        %v778 = vpack.c.b16 %v766, %v765
        %v779 = vpack.c.b16 %v768, %v767
        %v780 = vpack.c.b16 %v770, %v769
        %v781 = vpack.c.b16 %v772, %v771
        %v782 = vpack.c.b16 %v774, %v773
        %791 = vmatprep.subr.bf16.mxu0 0
        %792 = vmatpush1.bf16.msra.mxu0 %v775
        %793 = vmatprep.subr.bf16.mxu0 0
        %794 = vmatpush1.bf16.msra.mxu0 %v776
        %795 = vmatprep.subr.bf16.mxu0 0
        %796 = vmatpush1.bf16.msra.mxu0 %v777
        %797 = vmatprep.subr.bf16.mxu0 0
        %798 = vmatpush1.bf16.msra.mxu0 %v778
        %799 = vmatprep.subr.bf16.mxu0 0
        %800 = vmatpush1.bf16.msra.mxu0 %v779
        %801 = vmatprep.subr.bf16.mxu0 0
        %802 = vmatpush1.bf16.msra.mxu0 %v780
        %803 = vmatprep.subr.bf16.mxu0 0
        %804 = vmatpush1.bf16.msra.mxu0 %v781
        %805 = vmatprep.subr.bf16.mxu0 0
        %806 = vmatpush1.bf16.msra.mxu0 %v782
        %807 = vmatprep.subr.bf16.mxu0 0
        %808 = vmatpush1.bf16.msra.mxu0 0
        %809 = vmatprep.subr.bf16.mxu0 0
        %810 = vmatpush1.bf16.msra.mxu0 0
        %811 = vmatprep.subr.bf16.mxu0 0
        %812 = vmatpush1.bf16.msra.mxu0 0
        %813 = vmatprep.subr.bf16.mxu0 0
        %814 = vmatpush1.bf16.msra.mxu0 0
        %815 = vmatprep.subr.bf16.mxu0 0
        %816 = vmatpush1.bf16.msra.mxu0 0
        %817 = vmatprep.subr.bf16.mxu0 0
        %818 = vmatpush1.bf16.msra.mxu0 0
        %819 = vmatprep.subr.bf16.mxu0 0
        %820 = vmatpush1.bf16.msra.mxu0 0
        %821 = vmatprep.subr.bf16.mxu0 0
        %822 = vmatpush1.bf16.msra.mxu0 0
        %823 = vmatprep.mubr.bf16.mxu0 0
        %824 = vmatmul.mubr.bf16.gmra.mrb[0].mxu0 %v569
        %v825 = vpop.f32.mrb[0].mxu0
        %v826 = vadd.f32 %v705, %v825
        %v827 = vpop.f32.mrb[0].mxu0
        %v828 = vpop.f32.mrb[0].mxu0
        %v829 = vadd.f32 %v708, %v828
        %v830 = vpop.f32.mrb[0].mxu0
        %831 = vmatprep.mubr.bf16.mxu0 0
        %832 = vmatmul.mubr.bf16.gmra.mrb[0].mxu0 %v570
        %v833 = vpop.f32.mrb[0].mxu0
        %v834 = vadd.f32 %v713, %v833
        %v835 = vpop.f32.mrb[0].mxu0
        %v836 = vpop.f32.mrb[0].mxu0
        %v837 = vadd.f32 %v716, %v836
        %v838 = vpop.f32.mrb[0].mxu0
        %839 = vmatprep.mubr.bf16.mxu0 0
        %840 = vmatmul.mubr.bf16.gmra.mrb[0].mxu0 %v571
        %v841 = vpop.f32.mrb[0].mxu0
        %v842 = vadd.f32 %v721, %v841
        %v843 = vpop.f32.mrb[0].mxu0
        %v844 = vpop.f32.mrb[0].mxu0
        %v845 = vadd.f32 %v724, %v844
        %v846 = vpop.f32.mrb[0].mxu0
        %847 = vmatprep.mubr.bf16.mxu0 0
        %848 = vmatmul.mubr.bf16.gmra.mrb[0].mxu0 %v572
        %v849 = vpop.f32.mrb[0].mxu0
        %v850 = vadd.f32 %v729, %v849
        %v851 = vpop.f32.mrb[0].mxu0
        %v852 = vpop.f32.mrb[0].mxu0
        %v853 = vadd.f32 %v732, %v852
        %v854 = vpop.f32.mrb[0].mxu0
        %855 = vmatprep.mubr.bf16.mxu0 0
        %856 = vmatmul.mubr.bf16.gmra.mrb[0].mxu0 %v573
        %v857 = vpop.f32.mrb[0].mxu0
        %v858 = vadd.f32 %v737, %v857
        %v859 = vpop.f32.mrb[0].mxu0
        %v860 = vpop.f32.mrb[0].mxu0
        %v861 = vadd.f32 %v740, %v860
        %v862 = vpop.f32.mrb[0].mxu0
        %863 = vdwg.mxu0
        %v864 = vld [vmem:[#allocation2 + $0x2] sm:$0xff]
        %v865 = vld [vmem:[#allocation2 + $0xa] sm:$0xff]
        %v866 = vld [vmem:[#allocation2 + $0x12] sm:$0xff]
        %v867 = vld [vmem:[#allocation2 + $0x1a] sm:$0xff]
        %v868 = vld [vmem:[#allocation2 + $0x22] sm:$0xff]
        %v869 = vld [vmem:[#allocation2 + $0x2a] sm:$0xff]
        %v870 = vld [vmem:[#allocation2 + $0x32] sm:$0xff]
        %v871 = vld [vmem:[#allocation2 + $0x3a] sm:$0xff]
        %v872 = vld [vmem:[#allocation2 + $0x42] sm:$0xff]
        %v873 = vld [vmem:[#allocation2 + $0x4a] sm:$0xff]
        %v874 = vpack.c.bf16 %v865, %v864
        %v875 = vpack.c.bf16 %v867, %v866
        %v876 = vpack.c.bf16 %v869, %v868
        %v877 = vpack.c.bf16 %v871, %v870
        %v878 = vpack.c.bf16 %v873, %v872
        %s879 = scalar_lea.vmem [#allocation3], 128
        %v880 = vld [vmem:[%s879] sm:$0xf]
        %v881 = vld [vmem:[%s879 + $0x4] sm:$0xf]
        %v882 = vld [vmem:[%s879 + $0x8] sm:$0xf]
        %v883 = vld [vmem:[%s879 + $0xc] sm:$0xf]
        %v884 = vld [vmem:[%s879 + $0x10] sm:$0xf]
        %v885 = vld [vmem:[%s879 + $0x14] sm:$0xf]
        %v886 = vld [vmem:[%s879 + $0x18] sm:$0xf]
        %v887 = vld [vmem:[%s879 + $0x1c] sm:$0xf]
        %v888 = vld [vmem:[%s879 + $0x20] sm:$0xf]
        %v889 = vld [vmem:[%s879 + $0x24] sm:$0xf]
        %v890 = vld [vmem:[%s879 + $0x28] sm:$0xf]
        %v891 = vld [vmem:[%s879 + $0x2c] sm:$0xf]
        %v892 = vld [vmem:[%s879 + $0x30] sm:$0xf]
        %v893 = vld [vmem:[%s879 + $0x34] sm:$0xf]
        %v894 = vld [vmem:[%s879 + $0x38] sm:$0xf]
        %v895 = vld [vmem:[%s879 + $0x3c] sm:$0xf]
        %v912 = vunpack.c.l.b16 %v880
        %v913 = vunpack.c.l.b16 %v881
        %v914 = vunpack.c.l.b16 %v882
        %v915 = vunpack.c.l.b16 %v883
        %v916 = vunpack.c.l.b16 %v884
        %v917 = vunpack.c.l.b16 %v885
        %v918 = vunpack.c.l.b16 %v886
        %v919 = vunpack.c.l.b16 %v887
        %v920 = vunpack.c.l.b16 %v888
        %v921 = vunpack.c.l.b16 %v889
        %v922 = vunpack.c.l.b16 %v890
        %v923 = vunpack.c.l.b16 %v891
        %v924 = vunpack.c.l.b16 %v892
        %v925 = vunpack.c.l.b16 %v893
        %v926 = vunpack.c.l.b16 %v894
        %v927 = vunpack.c.l.b16 %v895
        %v928 = vpack.c.b16 %v913, %v912
        %v929 = vpack.c.b16 %v915, %v914
        %v930 = vpack.c.b16 %v917, %v916
        %v931 = vpack.c.b16 %v919, %v918
        %v932 = vpack.c.b16 %v921, %v920
        %v933 = vpack.c.b16 %v923, %v922
        %v934 = vpack.c.b16 %v925, %v924
        %v935 = vpack.c.b16 %v927, %v926
        %944 = vmatprep.subr.bf16.mxu0 0
        %945 = vmatpush1.bf16.msra.mxu0 %v928
        %946 = vmatprep.subr.bf16.mxu0 0
        %947 = vmatpush1.bf16.msra.mxu0 %v929
        %948 = vmatprep.subr.bf16.mxu0 0
        %949 = vmatpush1.bf16.msra.mxu0 %v930
        %950 = vmatprep.subr.bf16.mxu0 0
        %951 = vmatpush1.bf16.msra.mxu0 %v931
        %952 = vmatprep.subr.bf16.mxu0 0
        %953 = vmatpush1.bf16.msra.mxu0 %v932
        %954 = vmatprep.subr.bf16.mxu0 0
        %955 = vmatpush1.bf16.msra.mxu0 %v933
        %956 = vmatprep.subr.bf16.mxu0 0
        %957 = vmatpush1.bf16.msra.mxu0 %v934
        %958 = vmatprep.subr.bf16.mxu0 0
        %959 = vmatpush1.bf16.msra.mxu0 %v935
        %960 = vmatprep.subr.bf16.mxu0 0
        %961 = vmatpush1.bf16.msra.mxu0 0
        %962 = vmatprep.subr.bf16.mxu0 0
        %963 = vmatpush1.bf16.msra.mxu0 0
        %964 = vmatprep.subr.bf16.mxu0 0
        %965 = vmatpush1.bf16.msra.mxu0 0
        %966 = vmatprep.subr.bf16.mxu0 0
        %967 = vmatpush1.bf16.msra.mxu0 0
        %968 = vmatprep.subr.bf16.mxu0 0
        %969 = vmatpush1.bf16.msra.mxu0 0
        %970 = vmatprep.subr.bf16.mxu0 0
        %971 = vmatpush1.bf16.msra.mxu0 0
        %972 = vmatprep.subr.bf16.mxu0 0
        %973 = vmatpush1.bf16.msra.mxu0 0
        %974 = vmatprep.subr.bf16.mxu0 0
        %975 = vmatpush1.bf16.msra.mxu0 0
        %976 = vmatprep.mubr.bf16.mxu0 0
        %977 = vmatmul.mubr.bf16.gmra.mrb[0].mxu0 %v874
        %v978 = vpop.f32.mrb[0].mxu0
        %v979 = vadd.f32 0.0, %v978
        %v980 = vpop.f32.mrb[0].mxu0
        %v981 = vpop.f32.mrb[0].mxu0
        %v982 = vadd.f32 0.0, %v981
        %v983 = vpop.f32.mrb[0].mxu0
        %984 = vmatprep.mubr.bf16.mxu0 0
        %985 = vmatmul.mubr.bf16.gmra.mrb[0].mxu0 %v875
        %v986 = vpop.f32.mrb[0].mxu0
        %v987 = vadd.f32 0.0, %v986
        %v988 = vpop.f32.mrb[0].mxu0
        %v989 = vpop.f32.mrb[0].mxu0
        %v990 = vadd.f32 0.0, %v989
        %v991 = vpop.f32.mrb[0].mxu0
        %992 = vmatprep.mubr.bf16.mxu0 0
        %993 = vmatmul.mubr.bf16.gmra.mrb[0].mxu0 %v876
        %v994 = vpop.f32.mrb[0].mxu0
        %v995 = vadd.f32 0.0, %v994
        %v996 = vpop.f32.mrb[0].mxu0
        %v997 = vpop.f32.mrb[0].mxu0
        %v998 = vadd.f32 0.0, %v997
        %v999 = vpop.f32.mrb[0].mxu0
        %1000 = vmatprep.mubr.bf16.mxu0 0
        %1001 = vmatmul.mubr.bf16.gmra.mrb[0].mxu0 %v877
        %v1002 = vpop.f32.mrb[0].mxu0
        %v1003 = vadd.f32 0.0, %v1002
        %v1004 = vpop.f32.mrb[0].mxu0
        %v1005 = vpop.f32.mrb[0].mxu0
        %v1006 = vadd.f32 0.0, %v1005
        %v1007 = vpop.f32.mrb[0].mxu0
        %1008 = vmatprep.mubr.bf16.mxu0 0
        %1009 = vmatmul.mubr.bf16.gmra.mrb[0].mxu0 %v878
        %v1010 = vpop.f32.mrb[0].mxu0
        %v1011 = vadd.f32 0.0, %v1010
        %v1012 = vpop.f32.mrb[0].mxu0
        %v1013 = vpop.f32.mrb[0].mxu0
        %v1014 = vadd.f32 0.0, %v1013
        %v1015 = vpop.f32.mrb[0].mxu0
        %1016 = vdwg.mxu0
        %v1017 = vadd.f32 %v826, %v979
        %v1018 = vadd.f32 %v829, %v982
        %v1019 = vadd.f32 %v834, %v987
        %v1020 = vadd.f32 %v837, %v990
        %v1021 = vadd.f32 %v842, %v995
        %v1022 = vadd.f32 %v845, %v998
        %v1023 = vadd.f32 %v850, %v1003
        %v1024 = vadd.f32 %v853, %v1006
        %v1025 = vadd.f32 %v858, %v1011
        %v1026 = vadd.f32 %v861, %v1014
        %v1027 = vld [vmem:[#allocation2 + $0xa] sm:$0xff]
        %v1028 = vld [vmem:[#allocation2 + $0x12] sm:$0xff]
        %v1029 = vld [vmem:[#allocation2 + $0x1a] sm:$0xff]
        %v1030 = vld [vmem:[#allocation2 + $0x22] sm:$0xff]
        %v1031 = vld [vmem:[#allocation2 + $0x2a] sm:$0xff]
        %v1032 = vld [vmem:[#allocation2 + $0x32] sm:$0xff]
        %v1033 = vld [vmem:[#allocation2 + $0x3a] sm:$0xff]
        %v1034 = vld [vmem:[#allocation2 + $0x42] sm:$0xff]
        %v1035 = vld [vmem:[#allocation2 + $0x4a] sm:$0xff]
        %v1036 = vld [vmem:[#allocation2 + $0x52] sm:$0xff]
        %v1037 = vpack.c.bf16 %v1028, %v1027
        %v1038 = vpack.c.bf16 %v1030, %v1029
        %v1039 = vpack.c.bf16 %v1032, %v1031
        %v1040 = vpack.c.bf16 %v1034, %v1033
        %v1041 = vpack.c.bf16 %v1036, %v1035
        %s1042 = scalar_lea.vmem [#allocation3], 192
        %v1043 = vld [vmem:[%s1042] sm:$0xf]
        %v1044 = vld [vmem:[%s1042 + $0x4] sm:$0xf]
        %v1045 = vld [vmem:[%s1042 + $0x8] sm:$0xf]
        %v1046 = vld [vmem:[%s1042 + $0xc] sm:$0xf]
        %v1047 = vld [vmem:[%s1042 + $0x10] sm:$0xf]
        %v1048 = vld [vmem:[%s1042 + $0x14] sm:$0xf]
        %v1049 = vld [vmem:[%s1042 + $0x18] sm:$0xf]
        %v1050 = vld [vmem:[%s1042 + $0x1c] sm:$0xf]
        %v1051 = vld [vmem:[%s1042 + $0x20] sm:$0xf]
        %v1052 = vld [vmem:[%s1042 + $0x24] sm:$0xf]
        %v1053 = vld [vmem:[%s1042 + $0x28] sm:$0xf]
        %v1054 = vld [vmem:[%s1042 + $0x2c] sm:$0xf]
        %v1055 = vld [vmem:[%s1042 + $0x30] sm:$0xf]
        %v1056 = vld [vmem:[%s1042 + $0x34] sm:$0xf]
        %v1057 = vld [vmem:[%s1042 + $0x38] sm:$0xf]
        %v1058 = vld [vmem:[%s1042 + $0x3c] sm:$0xf]
        %v1075 = vunpack.c.l.b16 %v1043
        %v1076 = vunpack.c.l.b16 %v1044
        %v1077 = vunpack.c.l.b16 %v1045
        %v1078 = vunpack.c.l.b16 %v1046
        %v1079 = vunpack.c.l.b16 %v1047
        %v1080 = vunpack.c.l.b16 %v1048
        %v1081 = vunpack.c.l.b16 %v1049
        %v1082 = vunpack.c.l.b16 %v1050
        %v1083 = vunpack.c.l.b16 %v1051
        %v1084 = vunpack.c.l.b16 %v1052
        %v1085 = vunpack.c.l.b16 %v1053
        %v1086 = vunpack.c.l.b16 %v1054
        %v1087 = vunpack.c.l.b16 %v1055
        %v1088 = vunpack.c.l.b16 %v1056
        %v1089 = vunpack.c.l.b16 %v1057
        %v1090 = vunpack.c.l.b16 %v1058
        %v1091 = vpack.c.b16 %v1076, %v1075
        %v1092 = vpack.c.b16 %v1078, %v1077
        %v1093 = vpack.c.b16 %v1080, %v1079
        %v1094 = vpack.c.b16 %v1082, %v1081
        %v1095 = vpack.c.b16 %v1084, %v1083
        %v1096 = vpack.c.b16 %v1086, %v1085
        %v1097 = vpack.c.b16 %v1088, %v1087
        %v1098 = vpack.c.b16 %v1090, %v1089
        %1107 = vmatprep.subr.bf16.mxu0 0
        %1108 = vmatpush1.bf16.msra.mxu0 %v1091
        %1109 = vmatprep.subr.bf16.mxu0 0
        %1110 = vmatpush1.bf16.msra.mxu0 %v1092
        %1111 = vmatprep.subr.bf16.mxu0 0
        %1112 = vmatpush1.bf16.msra.mxu0 %v1093
        %1113 = vmatprep.subr.bf16.mxu0 0
        %1114 = vmatpush1.bf16.msra.mxu0 %v1094
        %1115 = vmatprep.subr.bf16.mxu0 0
        %1116 = vmatpush1.bf16.msra.mxu0 %v1095
        %1117 = vmatprep.subr.bf16.mxu0 0
        %1118 = vmatpush1.bf16.msra.mxu0 %v1096
        %1119 = vmatprep.subr.bf16.mxu0 0
        %1120 = vmatpush1.bf16.msra.mxu0 %v1097
        %1121 = vmatprep.subr.bf16.mxu0 0
        %1122 = vmatpush1.bf16.msra.mxu0 %v1098
        %1123 = vmatprep.subr.bf16.mxu0 0
        %1124 = vmatpush1.bf16.msra.mxu0 0
        %1125 = vmatprep.subr.bf16.mxu0 0
        %1126 = vmatpush1.bf16.msra.mxu0 0
        %1127 = vmatprep.subr.bf16.mxu0 0
        %1128 = vmatpush1.bf16.msra.mxu0 0
        %1129 = vmatprep.subr.bf16.mxu0 0
        %1130 = vmatpush1.bf16.msra.mxu0 0
        %1131 = vmatprep.subr.bf16.mxu0 0
        %1132 = vmatpush1.bf16.msra.mxu0 0
        %1133 = vmatprep.subr.bf16.mxu0 0
        %1134 = vmatpush1.bf16.msra.mxu0 0
        %1135 = vmatprep.subr.bf16.mxu0 0
        %1136 = vmatpush1.bf16.msra.mxu0 0
        %1137 = vmatprep.subr.bf16.mxu0 0
        %1138 = vmatpush1.bf16.msra.mxu0 0
        %1139 = vmatprep.mubr.bf16.mxu0 0
        %1140 = vmatmul.mubr.bf16.gmra.mrb[0].mxu0 %v1037
        %v1141 = vpop.f32.mrb[0].mxu0
        %v1142 = vadd.f32 0.0, %v1141
        %v1143 = vpop.f32.mrb[0].mxu0
        %v1144 = vpop.f32.mrb[0].mxu0
        %v1145 = vadd.f32 0.0, %v1144
        %v1146 = vpop.f32.mrb[0].mxu0
        %1147 = vmatprep.mubr.bf16.mxu0 0
        %1148 = vmatmul.mubr.bf16.gmra.mrb[0].mxu0 %v1038
        %v1149 = vpop.f32.mrb[0].mxu0
        %v1150 = vadd.f32 0.0, %v1149
        %v1151 = vpop.f32.mrb[0].mxu0
        %v1152 = vpop.f32.mrb[0].mxu0
        %v1153 = vadd.f32 0.0, %v1152
        %v1154 = vpop.f32.mrb[0].mxu0
        %1155 = vmatprep.mubr.bf16.mxu0 0
        %1156 = vmatmul.mubr.bf16.gmra.mrb[0].mxu0 %v1039
        %v1157 = vpop.f32.mrb[0].mxu0
        %v1158 = vadd.f32 0.0, %v1157
        %v1159 = vpop.f32.mrb[0].mxu0
        %v1160 = vpop.f32.mrb[0].mxu0
        %v1161 = vadd.f32 0.0, %v1160
        %v1162 = vpop.f32.mrb[0].mxu0
        %1163 = vmatprep.mubr.bf16.mxu0 0
        %1164 = vmatmul.mubr.bf16.gmra.mrb[0].mxu0 %v1040
        %v1165 = vpop.f32.mrb[0].mxu0
        %v1166 = vadd.f32 0.0, %v1165
        %v1167 = vpop.f32.mrb[0].mxu0
        %v1168 = vpop.f32.mrb[0].mxu0
        %v1169 = vadd.f32 0.0, %v1168
        %v1170 = vpop.f32.mrb[0].mxu0
        %1171 = vmatprep.mubr.bf16.mxu0 0
        %1172 = vmatmul.mubr.bf16.gmra.mrb[0].mxu0 %v1041
        %v1173 = vpop.f32.mrb[0].mxu0
        %v1174 = vadd.f32 0.0, %v1173
        %v1175 = vpop.f32.mrb[0].mxu0
        %v1176 = vpop.f32.mrb[0].mxu0
        %v1177 = vadd.f32 0.0, %v1176
        %v1178 = vpop.f32.mrb[0].mxu0
        %1179 = vdwg.mxu0
        %v1180 = vadd.f32 %v1017, %v1142
        %v1181 = vadd.f32 %v1018, %v1145
        %v1182 = vadd.f32 %v1019, %v1150
        %v1183 = vadd.f32 %v1020, %v1153
        %v1184 = vadd.f32 %v1021, %v1158
        %v1185 = vadd.f32 %v1022, %v1161
        %v1186 = vadd.f32 %v1023, %v1166
        %v1187 = vadd.f32 %v1024, %v1169
        %v1188 = vadd.f32 %v1025, %v1174
        %v1189 = vadd.f32 %v1026, %v1177
        %v1190 = vld [vmem:[#allocation2 + $0xb] sm:$0xff]
        %v1191 = vld [vmem:[#allocation2 + $0x13] sm:$0xff]
        %v1192 = vld [vmem:[#allocation2 + $0x1b] sm:$0xff]
        %v1193 = vld [vmem:[#allocation2 + $0x23] sm:$0xff]
        %v1194 = vld [vmem:[#allocation2 + $0x2b] sm:$0xff]
        %v1195 = vld [vmem:[#allocation2 + $0x33] sm:$0xff]
        %v1196 = vld [vmem:[#allocation2 + $0x3b] sm:$0xff]
        %v1197 = vld [vmem:[#allocation2 + $0x43] sm:$0xff]
        %v1198 = vld [vmem:[#allocation2 + $0x4b] sm:$0xff]
        %v1199 = vld [vmem:[#allocation2 + $0x53] sm:$0xff]
        %v1200 = vpack.c.bf16 %v1191, %v1190
        %v1201 = vpack.c.bf16 %v1193, %v1192
        %v1202 = vpack.c.bf16 %v1195, %v1194
        %v1203 = vpack.c.bf16 %v1197, %v1196
        %v1204 = vpack.c.bf16 %v1199, %v1198
        %s1205 = scalar_lea.vmem [#allocation3], 256
        %v1206 = vld [vmem:[%s1205] sm:$0xf]
        %v1207 = vld [vmem:[%s1205 + $0x4] sm:$0xf]
        %v1208 = vld [vmem:[%s1205 + $0x8] sm:$0xf]
        %v1209 = vld [vmem:[%s1205 + $0xc] sm:$0xf]
        %v1210 = vld [vmem:[%s1205 + $0x10] sm:$0xf]
        %v1211 = vld [vmem:[%s1205 + $0x14] sm:$0xf]
        %v1212 = vld [vmem:[%s1205 + $0x18] sm:$0xf]
        %v1213 = vld [vmem:[%s1205 + $0x1c] sm:$0xf]
        %v1214 = vld [vmem:[%s1205 + $0x20] sm:$0xf]
        %v1215 = vld [vmem:[%s1205 + $0x24] sm:$0xf]
        %v1216 = vld [vmem:[%s1205 + $0x28] sm:$0xf]
        %v1217 = vld [vmem:[%s1205 + $0x2c] sm:$0xf]
        %v1218 = vld [vmem:[%s1205 + $0x30] sm:$0xf]
        %v1219 = vld [vmem:[%s1205 + $0x34] sm:$0xf]
        %v1220 = vld [vmem:[%s1205 + $0x38] sm:$0xf]
        %v1221 = vld [vmem:[%s1205 + $0x3c] sm:$0xf]
        %v1238 = vunpack.c.l.b16 %v1206
        %v1239 = vunpack.c.l.b16 %v1207
        %v1240 = vunpack.c.l.b16 %v1208
        %v1241 = vunpack.c.l.b16 %v1209
        %v1242 = vunpack.c.l.b16 %v1210
        %v1243 = vunpack.c.l.b16 %v1211
        %v1244 = vunpack.c.l.b16 %v1212
        %v1245 = vunpack.c.l.b16 %v1213
        %v1246 = vunpack.c.l.b16 %v1214
        %v1247 = vunpack.c.l.b16 %v1215
        %v1248 = vunpack.c.l.b16 %v1216
        %v1249 = vunpack.c.l.b16 %v1217
        %v1250 = vunpack.c.l.b16 %v1218
        %v1251 = vunpack.c.l.b16 %v1219
        %v1252 = vunpack.c.l.b16 %v1220
        %v1253 = vunpack.c.l.b16 %v1221
        %v1254 = vpack.c.b16 %v1239, %v1238
        %v1255 = vpack.c.b16 %v1241, %v1240
        %v1256 = vpack.c.b16 %v1243, %v1242
        %v1257 = vpack.c.b16 %v1245, %v1244
        %v1258 = vpack.c.b16 %v1247, %v1246
        %v1259 = vpack.c.b16 %v1249, %v1248
        %v1260 = vpack.c.b16 %v1251, %v1250
        %v1261 = vpack.c.b16 %v1253, %v1252
        %1270 = vmatprep.subr.bf16.mxu0 0
        %1271 = vmatpush1.bf16.msra.mxu0 %v1254
        %1272 = vmatprep.subr.bf16.mxu0 0
        %1273 = vmatpush1.bf16.msra.mxu0 %v1255
        %1274 = vmatprep.subr.bf16.mxu0 0
        %1275 = vmatpush1.bf16.msra.mxu0 %v1256
        %1276 = vmatprep.subr.bf16.mxu0 0
        %1277 = vmatpush1.bf16.msra.mxu0 %v1257
        %1278 = vmatprep.subr.bf16.mxu0 0
        %1279 = vmatpush1.bf16.msra.mxu0 %v1258
        %1280 = vmatprep.subr.bf16.mxu0 0
        %1281 = vmatpush1.bf16.msra.mxu0 %v1259
        %1282 = vmatprep.subr.bf16.mxu0 0
        %1283 = vmatpush1.bf16.msra.mxu0 %v1260
        %1284 = vmatprep.subr.bf16.mxu0 0
        %1285 = vmatpush1.bf16.msra.mxu0 %v1261
        %1286 = vmatprep.subr.bf16.mxu0 0
        %1287 = vmatpush1.bf16.msra.mxu0 0
        %1288 = vmatprep.subr.bf16.mxu0 0
        %1289 = vmatpush1.bf16.msra.mxu0 0
        %1290 = vmatprep.subr.bf16.mxu0 0
        %1291 = vmatpush1.bf16.msra.mxu0 0
        %1292 = vmatprep.subr.bf16.mxu0 0
        %1293 = vmatpush1.bf16.msra.mxu0 0
        %1294 = vmatprep.subr.bf16.mxu0 0
        %1295 = vmatpush1.bf16.msra.mxu0 0
        %1296 = vmatprep.subr.bf16.mxu0 0
        %1297 = vmatpush1.bf16.msra.mxu0 0
        %1298 = vmatprep.subr.bf16.mxu0 0
        %1299 = vmatpush1.bf16.msra.mxu0 0
        %1300 = vmatprep.subr.bf16.mxu0 0
        %1301 = vmatpush1.bf16.msra.mxu0 0
        %1302 = vmatprep.mubr.bf16.mxu0 0
        %1303 = vmatmul.mubr.bf16.gmra.mrb[0].mxu0 %v1200
        %v1304 = vpop.f32.mrb[0].mxu0
        %v1305 = vadd.f32 0.0, %v1304
        %v1306 = vpop.f32.mrb[0].mxu0
        %v1307 = vpop.f32.mrb[0].mxu0
        %v1308 = vadd.f32 0.0, %v1307
        %v1309 = vpop.f32.mrb[0].mxu0
        %1310 = vmatprep.mubr.bf16.mxu0 0
        %1311 = vmatmul.mubr.bf16.gmra.mrb[0].mxu0 %v1201
        %v1312 = vpop.f32.mrb[0].mxu0
        %v1313 = vadd.f32 0.0, %v1312
        %v1314 = vpop.f32.mrb[0].mxu0
        %v1315 = vpop.f32.mrb[0].mxu0
        %v1316 = vadd.f32 0.0, %v1315
        %v1317 = vpop.f32.mrb[0].mxu0
        %1318 = vmatprep.mubr.bf16.mxu0 0
        %1319 = vmatmul.mubr.bf16.gmra.mrb[0].mxu0 %v1202
        %v1320 = vpop.f32.mrb[0].mxu0
        %v1321 = vadd.f32 0.0, %v1320
        %v1322 = vpop.f32.mrb[0].mxu0
        %v1323 = vpop.f32.mrb[0].mxu0
        %v1324 = vadd.f32 0.0, %v1323
        %v1325 = vpop.f32.mrb[0].mxu0
        %1326 = vmatprep.mubr.bf16.mxu0 0
        %1327 = vmatmul.mubr.bf16.gmra.mrb[0].mxu0 %v1203
        %v1328 = vpop.f32.mrb[0].mxu0
        %v1329 = vadd.f32 0.0, %v1328
        %v1330 = vpop.f32.mrb[0].mxu0
        %v1331 = vpop.f32.mrb[0].mxu0
        %v1332 = vadd.f32 0.0, %v1331
        %v1333 = vpop.f32.mrb[0].mxu0
        %1334 = vmatprep.mubr.bf16.mxu0 0
        %1335 = vmatmul.mubr.bf16.gmra.mrb[0].mxu0 %v1204
        %v1336 = vpop.f32.mrb[0].mxu0
        %v1337 = vadd.f32 0.0, %v1336
        %v1338 = vpop.f32.mrb[0].mxu0
        %v1339 = vpop.f32.mrb[0].mxu0
        %v1340 = vadd.f32 0.0, %v1339
        %v1341 = vpop.f32.mrb[0].mxu0
        %1342 = vdwg.mxu0
        %v1343 = vadd.f32 %v1180, %v1305
        %v1344 = vadd.f32 %v1181, %v1308
        %v1345 = vadd.f32 %v1182, %v1313
        %v1346 = vadd.f32 %v1183, %v1316
        %v1347 = vadd.f32 %v1184, %v1321
        %v1348 = vadd.f32 %v1185, %v1324
        %v1349 = vadd.f32 %v1186, %v1329
        %v1350 = vadd.f32 %v1187, %v1332
        %v1351 = vadd.f32 %v1188, %v1337
        %v1352 = vadd.f32 %v1189, %v1340
        %v1353 = vld [vmem:[#allocation2 + $0xc] sm:$0xff]
        %v1354 = vld [vmem:[#allocation2 + $0x14] sm:$0xff]
        %v1355 = vld [vmem:[#allocation2 + $0x1c] sm:$0xff]
        %v1356 = vld [vmem:[#allocation2 + $0x24] sm:$0xff]
        %v1357 = vld [vmem:[#allocation2 + $0x2c] sm:$0xff]
        %v1358 = vld [vmem:[#allocation2 + $0x34] sm:$0xff]
        %v1359 = vld [vmem:[#allocation2 + $0x3c] sm:$0xff]
        %v1360 = vld [vmem:[#allocation2 + $0x44] sm:$0xff]
        %v1361 = vld [vmem:[#allocation2 + $0x4c] sm:$0xff]
        %v1362 = vld [vmem:[#allocation2 + $0x54] sm:$0xff]
        %v1363 = vpack.c.bf16 %v1354, %v1353
        %v1364 = vpack.c.bf16 %v1356, %v1355
        %v1365 = vpack.c.bf16 %v1358, %v1357
        %v1366 = vpack.c.bf16 %v1360, %v1359
        %v1367 = vpack.c.bf16 %v1362, %v1361
        %s1368 = scalar_lea.vmem [#allocation3], 320
        %v1369 = vld [vmem:[%s1368] sm:$0xf]
        %v1370 = vld [vmem:[%s1368 + $0x4] sm:$0xf]
        %v1371 = vld [vmem:[%s1368 + $0x8] sm:$0xf]
        %v1372 = vld [vmem:[%s1368 + $0xc] sm:$0xf]
        %v1373 = vld [vmem:[%s1368 + $0x10] sm:$0xf]
        %v1374 = vld [vmem:[%s1368 + $0x14] sm:$0xf]
        %v1375 = vld [vmem:[%s1368 + $0x18] sm:$0xf]
        %v1376 = vld [vmem:[%s1368 + $0x1c] sm:$0xf]
        %v1377 = vld [vmem:[%s1368 + $0x20] sm:$0xf]
        %v1378 = vld [vmem:[%s1368 + $0x24] sm:$0xf]
        %v1379 = vld [vmem:[%s1368 + $0x28] sm:$0xf]
        %v1380 = vld [vmem:[%s1368 + $0x2c] sm:$0xf]
        %v1381 = vld [vmem:[%s1368 + $0x30] sm:$0xf]
        %v1382 = vld [vmem:[%s1368 + $0x34] sm:$0xf]
        %v1383 = vld [vmem:[%s1368 + $0x38] sm:$0xf]
        %v1384 = vld [vmem:[%s1368 + $0x3c] sm:$0xf]
        %v1401 = vunpack.c.l.b16 %v1369
        %v1402 = vunpack.c.l.b16 %v1370
        %v1403 = vunpack.c.l.b16 %v1371
        %v1404 = vunpack.c.l.b16 %v1372
        %v1405 = vunpack.c.l.b16 %v1373
        %v1406 = vunpack.c.l.b16 %v1374
        %v1407 = vunpack.c.l.b16 %v1375
        %v1408 = vunpack.c.l.b16 %v1376
        %v1409 = vunpack.c.l.b16 %v1377
        %v1410 = vunpack.c.l.b16 %v1378
        %v1411 = vunpack.c.l.b16 %v1379
        %v1412 = vunpack.c.l.b16 %v1380
        %v1413 = vunpack.c.l.b16 %v1381
        %v1414 = vunpack.c.l.b16 %v1382
        %v1415 = vunpack.c.l.b16 %v1383
        %v1416 = vunpack.c.l.b16 %v1384
        %v1417 = vpack.c.b16 %v1402, %v1401
        %v1418 = vpack.c.b16 %v1404, %v1403
        %v1419 = vpack.c.b16 %v1406, %v1405
        %v1420 = vpack.c.b16 %v1408, %v1407
        %v1421 = vpack.c.b16 %v1410, %v1409
        %v1422 = vpack.c.b16 %v1412, %v1411
        %v1423 = vpack.c.b16 %v1414, %v1413
        %v1424 = vpack.c.b16 %v1416, %v1415
        %1433 = vmatprep.subr.bf16.mxu0 0
        %1434 = vmatpush1.bf16.msra.mxu0 %v1417
        %1435 = vmatprep.subr.bf16.mxu0 0
        %1436 = vmatpush1.bf16.msra.mxu0 %v1418
        %1437 = vmatprep.subr.bf16.mxu0 0
        %1438 = vmatpush1.bf16.msra.mxu0 %v1419
        %1439 = vmatprep.subr.bf16.mxu0 0
        %1440 = vmatpush1.bf16.msra.mxu0 %v1420
        %1441 = vmatprep.subr.bf16.mxu0 0
        %1442 = vmatpush1.bf16.msra.mxu0 %v1421
        %1443 = vmatprep.subr.bf16.mxu0 0
        %1444 = vmatpush1.bf16.msra.mxu0 %v1422
        %1445 = vmatprep.subr.bf16.mxu0 0
        %1446 = vmatpush1.bf16.msra.mxu0 %v1423
        %1447 = vmatprep.subr.bf16.mxu0 0
        %1448 = vmatpush1.bf16.msra.mxu0 %v1424
        %1449 = vmatprep.subr.bf16.mxu0 0
        %1450 = vmatpush1.bf16.msra.mxu0 0
        %1451 = vmatprep.subr.bf16.mxu0 0
        %1452 = vmatpush1.bf16.msra.mxu0 0
        %1453 = vmatprep.subr.bf16.mxu0 0
        %1454 = vmatpush1.bf16.msra.mxu0 0
        %1455 = vmatprep.subr.bf16.mxu0 0
        %1456 = vmatpush1.bf16.msra.mxu0 0
        %1457 = vmatprep.subr.bf16.mxu0 0
        %1458 = vmatpush1.bf16.msra.mxu0 0
        %1459 = vmatprep.subr.bf16.mxu0 0
        %1460 = vmatpush1.bf16.msra.mxu0 0
        %1461 = vmatprep.subr.bf16.mxu0 0
        %1462 = vmatpush1.bf16.msra.mxu0 0
        %1463 = vmatprep.subr.bf16.mxu0 0
        %1464 = vmatpush1.bf16.msra.mxu0 0
        %1465 = vmatprep.mubr.bf16.mxu0 0
        %1466 = vmatmul.mubr.bf16.gmra.mrb[0].mxu0 %v1363
        %v1467 = vpop.f32.mrb[0].mxu0
        %v1468 = vadd.f32 0.0, %v1467
        %v1469 = vpop.f32.mrb[0].mxu0
        %v1470 = vpop.f32.mrb[0].mxu0
        %v1471 = vadd.f32 0.0, %v1470
        %v1472 = vpop.f32.mrb[0].mxu0
        %1473 = vmatprep.mubr.bf16.mxu0 0
        %1474 = vmatmul.mubr.bf16.gmra.mrb[0].mxu0 %v1364
        %v1475 = vpop.f32.mrb[0].mxu0
        %v1476 = vadd.f32 0.0, %v1475
        %v1477 = vpop.f32.mrb[0].mxu0
        %v1478 = vpop.f32.mrb[0].mxu0
        %v1479 = vadd.f32 0.0, %v1478
        %v1480 = vpop.f32.mrb[0].mxu0
        %1481 = vmatprep.mubr.bf16.mxu0 0
        %1482 = vmatmul.mubr.bf16.gmra.mrb[0].mxu0 %v1365
        %v1483 = vpop.f32.mrb[0].mxu0
        %v1484 = vadd.f32 0.0, %v1483
        %v1485 = vpop.f32.mrb[0].mxu0
        %v1486 = vpop.f32.mrb[0].mxu0
        %v1487 = vadd.f32 0.0, %v1486
        %v1488 = vpop.f32.mrb[0].mxu0
        %1489 = vmatprep.mubr.bf16.mxu0 0
        %1490 = vmatmul.mubr.bf16.gmra.mrb[0].mxu0 %v1366
        %v1491 = vpop.f32.mrb[0].mxu0
        %v1492 = vadd.f32 0.0, %v1491
        %v1493 = vpop.f32.mrb[0].mxu0
        %v1494 = vpop.f32.mrb[0].mxu0
        %v1495 = vadd.f32 0.0, %v1494
        %v1496 = vpop.f32.mrb[0].mxu0
        %1497 = vmatprep.mubr.bf16.mxu0 0
        %1498 = vmatmul.mubr.bf16.gmra.mrb[0].mxu0 %v1367
        %v1499 = vpop.f32.mrb[0].mxu0
        %v1500 = vadd.f32 0.0, %v1499
        %v1501 = vpop.f32.mrb[0].mxu0
        %v1502 = vpop.f32.mrb[0].mxu0
        %v1503 = vadd.f32 0.0, %v1502
        %v1504 = vpop.f32.mrb[0].mxu0
        %1505 = vdwg.mxu0
        %v1506 = vadd.f32 %v1343, %v1468
        %v1507 = vadd.f32 %v1344, %v1471
        %v1508 = vadd.f32 %v1345, %v1476
        %v1509 = vadd.f32 %v1346, %v1479
        %v1510 = vadd.f32 %v1347, %v1484
        %v1511 = vadd.f32 %v1348, %v1487
        %v1512 = vadd.f32 %v1349, %v1492
        %v1513 = vadd.f32 %v1350, %v1495
        %v1514 = vadd.f32 %v1351, %v1500
        %v1515 = vadd.f32 %v1352, %v1503
        %v1516 = vld [vmem:[#allocation2 + $0x14] sm:$0xff]
        %v1517 = vld [vmem:[#allocation2 + $0x1c] sm:$0xff]
        %v1518 = vld [vmem:[#allocation2 + $0x24] sm:$0xff]
        %v1519 = vld [vmem:[#allocation2 + $0x2c] sm:$0xff]
        %v1520 = vld [vmem:[#allocation2 + $0x34] sm:$0xff]
        %v1521 = vld [vmem:[#allocation2 + $0x3c] sm:$0xff]
        %v1522 = vld [vmem:[#allocation2 + $0x44] sm:$0xff]
        %v1523 = vld [vmem:[#allocation2 + $0x4c] sm:$0xff]
        %v1524 = vld [vmem:[#allocation2 + $0x54] sm:$0xff]
        %v1525 = vld [vmem:[#allocation2 + $0x5c] sm:$0xff]
        %v1526 = vpack.c.bf16 %v1517, %v1516
        %v1527 = vpack.c.bf16 %v1519, %v1518
        %v1528 = vpack.c.bf16 %v1521, %v1520
        %v1529 = vpack.c.bf16 %v1523, %v1522
        %v1530 = vpack.c.bf16 %v1525, %v1524
        %s1531 = scalar_lea.vmem [#allocation3], 384
        %v1532 = vld [vmem:[%s1531] sm:$0xf]
        %v1533 = vld [vmem:[%s1531 + $0x4] sm:$0xf]
        %v1534 = vld [vmem:[%s1531 + $0x8] sm:$0xf]
        %v1535 = vld [vmem:[%s1531 + $0xc] sm:$0xf]
        %v1536 = vld [vmem:[%s1531 + $0x10] sm:$0xf]
        %v1537 = vld [vmem:[%s1531 + $0x14] sm:$0xf]
        %v1538 = vld [vmem:[%s1531 + $0x18] sm:$0xf]
        %v1539 = vld [vmem:[%s1531 + $0x1c] sm:$0xf]
        %v1540 = vld [vmem:[%s1531 + $0x20] sm:$0xf]
        %v1541 = vld [vmem:[%s1531 + $0x24] sm:$0xf]
        %v1542 = vld [vmem:[%s1531 + $0x28] sm:$0xf]
        %v1543 = vld [vmem:[%s1531 + $0x2c] sm:$0xf]
        %v1544 = vld [vmem:[%s1531 + $0x30] sm:$0xf]
        %v1545 = vld [vmem:[%s1531 + $0x34] sm:$0xf]
        %v1546 = vld [vmem:[%s1531 + $0x38] sm:$0xf]
        %v1547 = vld [vmem:[%s1531 + $0x3c] sm:$0xf]
        %v1564 = vunpack.c.l.b16 %v1532
        %v1565 = vunpack.c.l.b16 %v1533
        %v1566 = vunpack.c.l.b16 %v1534
        %v1567 = vunpack.c.l.b16 %v1535
        %v1568 = vunpack.c.l.b16 %v1536
        %v1569 = vunpack.c.l.b16 %v1537
        %v1570 = vunpack.c.l.b16 %v1538
        %v1571 = vunpack.c.l.b16 %v1539
        %v1572 = vunpack.c.l.b16 %v1540
        %v1573 = vunpack.c.l.b16 %v1541
        %v1574 = vunpack.c.l.b16 %v1542
        %v1575 = vunpack.c.l.b16 %v1543
        %v1576 = vunpack.c.l.b16 %v1544
        %v1577 = vunpack.c.l.b16 %v1545
        %v1578 = vunpack.c.l.b16 %v1546
        %v1579 = vunpack.c.l.b16 %v1547
        %v1580 = vpack.c.b16 %v1565, %v1564
        %v1581 = vpack.c.b16 %v1567, %v1566
        %v1582 = vpack.c.b16 %v1569, %v1568
        %v1583 = vpack.c.b16 %v1571, %v1570
        %v1584 = vpack.c.b16 %v1573, %v1572
        %v1585 = vpack.c.b16 %v1575, %v1574
        %v1586 = vpack.c.b16 %v1577, %v1576
        %v1587 = vpack.c.b16 %v1579, %v1578
        %1596 = vmatprep.subr.bf16.mxu0 0
        %1597 = vmatpush1.bf16.msra.mxu0 %v1580
        %1598 = vmatprep.subr.bf16.mxu0 0
        %1599 = vmatpush1.bf16.msra.mxu0 %v1581
        %1600 = vmatprep.subr.bf16.mxu0 0
        %1601 = vmatpush1.bf16.msra.mxu0 %v1582
        %1602 = vmatprep.subr.bf16.mxu0 0
        %1603 = vmatpush1.bf16.msra.mxu0 %v1583
        %1604 = vmatprep.subr.bf16.mxu0 0
        %1605 = vmatpush1.bf16.msra.mxu0 %v1584
        %1606 = vmatprep.subr.bf16.mxu0 0
        %1607 = vmatpush1.bf16.msra.mxu0 %v1585
        %1608 = vmatprep.subr.bf16.mxu0 0
        %1609 = vmatpush1.bf16.msra.mxu0 %v1586
        %1610 = vmatprep.subr.bf16.mxu0 0
        %1611 = vmatpush1.bf16.msra.mxu0 %v1587
        %1612 = vmatprep.subr.bf16.mxu0 0
        %1613 = vmatpush1.bf16.msra.mxu0 0
        %1614 = vmatprep.subr.bf16.mxu0 0
        %1615 = vmatpush1.bf16.msra.mxu0 0
        %1616 = vmatprep.subr.bf16.mxu0 0
        %1617 = vmatpush1.bf16.msra.mxu0 0
        %1618 = vmatprep.subr.bf16.mxu0 0
        %1619 = vmatpush1.bf16.msra.mxu0 0
        %1620 = vmatprep.subr.bf16.mxu0 0
        %1621 = vmatpush1.bf16.msra.mxu0 0
        %1622 = vmatprep.subr.bf16.mxu0 0
        %1623 = vmatpush1.bf16.msra.mxu0 0
        %1624 = vmatprep.subr.bf16.mxu0 0
        %1625 = vmatpush1.bf16.msra.mxu0 0
        %1626 = vmatprep.subr.bf16.mxu0 0
        %1627 = vmatpush1.bf16.msra.mxu0 0
        %1628 = vmatprep.mubr.bf16.mxu0 0
        %1629 = vmatmul.mubr.bf16.gmra.mrb[0].mxu0 %v1526
        %v1630 = vpop.f32.mrb[0].mxu0
        %v1631 = vadd.f32 0.0, %v1630
        %v1632 = vpop.f32.mrb[0].mxu0
        %v1633 = vpop.f32.mrb[0].mxu0
        %v1634 = vadd.f32 0.0, %v1633
        %v1635 = vpop.f32.mrb[0].mxu0
        %1636 = vmatprep.mubr.bf16.mxu0 0
        %1637 = vmatmul.mubr.bf16.gmra.mrb[0].mxu0 %v1527
        %v1638 = vpop.f32.mrb[0].mxu0
        %v1639 = vadd.f32 0.0, %v1638
        %v1640 = vpop.f32.mrb[0].mxu0
        %v1641 = vpop.f32.mrb[0].mxu0
        %v1642 = vadd.f32 0.0, %v1641
        %v1643 = vpop.f32.mrb[0].mxu0
        %1644 = vmatprep.mubr.bf16.mxu0 0
        %1645 = vmatmul.mubr.bf16.gmra.mrb[0].mxu0 %v1528
        %v1646 = vpop.f32.mrb[0].mxu0
        %v1647 = vadd.f32 0.0, %v1646
        %v1648 = vpop.f32.mrb[0].mxu0
        %v1649 = vpop.f32.mrb[0].mxu0
        %v1650 = vadd.f32 0.0, %v1649
        %v1651 = vpop.f32.mrb[0].mxu0
        %1652 = vmatprep.mubr.bf16.mxu0 0
        %1653 = vmatmul.mubr.bf16.gmra.mrb[0].mxu0 %v1529
        %v1654 = vpop.f32.mrb[0].mxu0
        %v1655 = vadd.f32 0.0, %v1654
        %v1656 = vpop.f32.mrb[0].mxu0
        %v1657 = vpop.f32.mrb[0].mxu0
        %v1658 = vadd.f32 0.0, %v1657
        %v1659 = vpop.f32.mrb[0].mxu0
        %1660 = vmatprep.mubr.bf16.mxu0 0
        %1661 = vmatmul.mubr.bf16.gmra.mrb[0].mxu0 %v1530
        %v1662 = vpop.f32.mrb[0].mxu0
        %v1663 = vadd.f32 0.0, %v1662
        %v1664 = vpop.f32.mrb[0].mxu0
        %v1665 = vpop.f32.mrb[0].mxu0
        %v1666 = vadd.f32 0.0, %v1665
        %v1667 = vpop.f32.mrb[0].mxu0
        %1668 = vdwg.mxu0
        %v1669 = vadd.f32 %v1506, %v1631
        %v1670 = vadd.f32 %v1507, %v1634
        %v1671 = vadd.f32 %v1508, %v1639
        %v1672 = vadd.f32 %v1509, %v1642
        %v1673 = vadd.f32 %v1510, %v1647
        %v1674 = vadd.f32 %v1511, %v1650
        %v1675 = vadd.f32 %v1512, %v1655
        %v1676 = vadd.f32 %v1513, %v1658
        %v1677 = vadd.f32 %v1514, %v1663
        %v1678 = vadd.f32 %v1515, %v1666
        %v1679 = vld [vmem:[#allocation2 + $0x15] sm:$0xff]
        %v1680 = vld [vmem:[#allocation2 + $0x1d] sm:$0xff]
        %v1681 = vld [vmem:[#allocation2 + $0x25] sm:$0xff]
        %v1682 = vld [vmem:[#allocation2 + $0x2d] sm:$0xff]
        %v1683 = vld [vmem:[#allocation2 + $0x35] sm:$0xff]
        %v1684 = vld [vmem:[#allocation2 + $0x3d] sm:$0xff]
        %v1685 = vld [vmem:[#allocation2 + $0x45] sm:$0xff]
        %v1686 = vld [vmem:[#allocation2 + $0x4d] sm:$0xff]
        %v1687 = vld [vmem:[#allocation2 + $0x55] sm:$0xff]
        %v1688 = vld [vmem:[#allocation2 + $0x5d] sm:$0xff]
        %v1689 = vpack.c.bf16 %v1680, %v1679
        %v1690 = vpack.c.bf16 %v1682, %v1681
        %v1691 = vpack.c.bf16 %v1684, %v1683
        %v1692 = vpack.c.bf16 %v1686, %v1685
        %v1693 = vpack.c.bf16 %v1688, %v1687
        %s1694 = scalar_lea.vmem [#allocation3], 448
        %v1695 = vld [vmem:[%s1694] sm:$0xf]
        %v1696 = vld [vmem:[%s1694 + $0x4] sm:$0xf]
        %v1697 = vld [vmem:[%s1694 + $0x8] sm:$0xf]
        %v1698 = vld [vmem:[%s1694 + $0xc] sm:$0xf]
        %v1699 = vld [vmem:[%s1694 + $0x10] sm:$0xf]
        %v1700 = vld [vmem:[%s1694 + $0x14] sm:$0xf]
        %v1701 = vld [vmem:[%s1694 + $0x18] sm:$0xf]
        %v1702 = vld [vmem:[%s1694 + $0x1c] sm:$0xf]
        %v1703 = vld [vmem:[%s1694 + $0x20] sm:$0xf]
        %v1704 = vld [vmem:[%s1694 + $0x24] sm:$0xf]
        %v1705 = vld [vmem:[%s1694 + $0x28] sm:$0xf]
        %v1706 = vld [vmem:[%s1694 + $0x2c] sm:$0xf]
        %v1707 = vld [vmem:[%s1694 + $0x30] sm:$0xf]
        %v1708 = vld [vmem:[%s1694 + $0x34] sm:$0xf]
        %v1709 = vld [vmem:[%s1694 + $0x38] sm:$0xf]
        %v1710 = vld [vmem:[%s1694 + $0x3c] sm:$0xf]
        %v1727 = vunpack.c.l.b16 %v1695
        %v1728 = vunpack.c.l.b16 %v1696
        %v1729 = vunpack.c.l.b16 %v1697
        %v1730 = vunpack.c.l.b16 %v1698
        %v1731 = vunpack.c.l.b16 %v1699
        %v1732 = vunpack.c.l.b16 %v1700
        %v1733 = vunpack.c.l.b16 %v1701
        %v1734 = vunpack.c.l.b16 %v1702
        %v1735 = vunpack.c.l.b16 %v1703
        %v1736 = vunpack.c.l.b16 %v1704
        %v1737 = vunpack.c.l.b16 %v1705
        %v1738 = vunpack.c.l.b16 %v1706
        %v1739 = vunpack.c.l.b16 %v1707
        %v1740 = vunpack.c.l.b16 %v1708
        %v1741 = vunpack.c.l.b16 %v1709
        %v1742 = vunpack.c.l.b16 %v1710
        %v1743 = vpack.c.b16 %v1728, %v1727
        %v1744 = vpack.c.b16 %v1730, %v1729
        %v1745 = vpack.c.b16 %v1732, %v1731
        %v1746 = vpack.c.b16 %v1734, %v1733
        %v1747 = vpack.c.b16 %v1736, %v1735
        %v1748 = vpack.c.b16 %v1738, %v1737
        %v1749 = vpack.c.b16 %v1740, %v1739
        %v1750 = vpack.c.b16 %v1742, %v1741
        %1759 = vmatprep.subr.bf16.mxu0 0
        %1760 = vmatpush1.bf16.msra.mxu0 %v1743
        %1761 = vmatprep.subr.bf16.mxu0 0
        %1762 = vmatpush1.bf16.msra.mxu0 %v1744
        %1763 = vmatprep.subr.bf16.mxu0 0
        %1764 = vmatpush1.bf16.msra.mxu0 %v1745
        %1765 = vmatprep.subr.bf16.mxu0 0
        %1766 = vmatpush1.bf16.msra.mxu0 %v1746
        %1767 = vmatprep.subr.bf16.mxu0 0
        %1768 = vmatpush1.bf16.msra.mxu0 %v1747
        %1769 = vmatprep.subr.bf16.mxu0 0
        %1770 = vmatpush1.bf16.msra.mxu0 %v1748
        %1771 = vmatprep.subr.bf16.mxu0 0
        %1772 = vmatpush1.bf16.msra.mxu0 %v1749
        %1773 = vmatprep.subr.bf16.mxu0 0
        %1774 = vmatpush1.bf16.msra.mxu0 %v1750
        %1775 = vmatprep.subr.bf16.mxu0 0
        %1776 = vmatpush1.bf16.msra.mxu0 0
        %1777 = vmatprep.subr.bf16.mxu0 0
        %1778 = vmatpush1.bf16.msra.mxu0 0
        %1779 = vmatprep.subr.bf16.mxu0 0
        %1780 = vmatpush1.bf16.msra.mxu0 0
        %1781 = vmatprep.subr.bf16.mxu0 0
        %1782 = vmatpush1.bf16.msra.mxu0 0
        %1783 = vmatprep.subr.bf16.mxu0 0
        %1784 = vmatpush1.bf16.msra.mxu0 0
        %1785 = vmatprep.subr.bf16.mxu0 0
        %1786 = vmatpush1.bf16.msra.mxu0 0
        %1787 = vmatprep.subr.bf16.mxu0 0
        %1788 = vmatpush1.bf16.msra.mxu0 0
        %1789 = vmatprep.subr.bf16.mxu0 0
        %1790 = vmatpush1.bf16.msra.mxu0 0
        %1791 = vmatprep.mubr.bf16.mxu0 0
        %1792 = vmatmul.mubr.bf16.gmra.mrb[0].mxu0 %v1689
        %v1793 = vpop.f32.mrb[0].mxu0
        %v1794 = vadd.f32 0.0, %v1793
        %v1795 = vpop.f32.mrb[0].mxu0
        %v1796 = vpop.f32.mrb[0].mxu0
        %v1797 = vadd.f32 0.0, %v1796
        %v1798 = vpop.f32.mrb[0].mxu0
        %1799 = vmatprep.mubr.bf16.mxu0 0
        %1800 = vmatmul.mubr.bf16.gmra.mrb[0].mxu0 %v1690
        %v1801 = vpop.f32.mrb[0].mxu0
        %v1802 = vadd.f32 0.0, %v1801
        %v1803 = vpop.f32.mrb[0].mxu0
        %v1804 = vpop.f32.mrb[0].mxu0
        %v1805 = vadd.f32 0.0, %v1804
        %v1806 = vpop.f32.mrb[0].mxu0
        %1807 = vmatprep.mubr.bf16.mxu0 0
        %1808 = vmatmul.mubr.bf16.gmra.mrb[0].mxu0 %v1691
        %v1809 = vpop.f32.mrb[0].mxu0
        %v1810 = vadd.f32 0.0, %v1809
        %v1811 = vpop.f32.mrb[0].mxu0
        %v1812 = vpop.f32.mrb[0].mxu0
        %v1813 = vadd.f32 0.0, %v1812
        %v1814 = vpop.f32.mrb[0].mxu0
        %1815 = vmatprep.mubr.bf16.mxu0 0
        %1816 = vmatmul.mubr.bf16.gmra.mrb[0].mxu0 %v1692
        %v1817 = vpop.f32.mrb[0].mxu0
        %v1818 = vadd.f32 0.0, %v1817
        %v1819 = vpop.f32.mrb[0].mxu0
        %v1820 = vpop.f32.mrb[0].mxu0
        %v1821 = vadd.f32 0.0, %v1820
        %v1822 = vpop.f32.mrb[0].mxu0
        %1823 = vmatprep.mubr.bf16.mxu0 0
        %1824 = vmatmul.mubr.bf16.gmra.mrb[0].mxu0 %v1693
        %v1825 = vpop.f32.mrb[0].mxu0
        %v1826 = vadd.f32 0.0, %v1825
        %v1827 = vpop.f32.mrb[0].mxu0
        %v1828 = vpop.f32.mrb[0].mxu0
        %v1829 = vadd.f32 0.0, %v1828
        %v1830 = vpop.f32.mrb[0].mxu0
        %1831 = vdwg.mxu0
        %v1832 = vadd.f32 %v1669, %v1794
        %v1833 = vadd.f32 %v1670, %v1797
        %v1834 = vadd.f32 %v1671, %v1802
        %v1835 = vadd.f32 %v1672, %v1805
        %v1836 = vadd.f32 %v1673, %v1810
        %v1837 = vadd.f32 %v1674, %v1813
        %v1838 = vadd.f32 %v1675, %v1818
        %v1839 = vadd.f32 %v1676, %v1821
        %v1840 = vadd.f32 %v1677, %v1826
        %v1841 = vadd.f32 %v1678, %v1829
        %v1842 = vld [vmem:[#allocation2 + $0x16] sm:$0xff]
        %v1843 = vld [vmem:[#allocation2 + $0x1e] sm:$0xff]
        %v1844 = vld [vmem:[#allocation2 + $0x26] sm:$0xff]
        %v1845 = vld [vmem:[#allocation2 + $0x2e] sm:$0xff]
        %v1846 = vld [vmem:[#allocation2 + $0x36] sm:$0xff]
        %v1847 = vld [vmem:[#allocation2 + $0x3e] sm:$0xff]
        %v1848 = vld [vmem:[#allocation2 + $0x46] sm:$0xff]
        %v1849 = vld [vmem:[#allocation2 + $0x4e] sm:$0xff]
        %v1850 = vld [vmem:[#allocation2 + $0x56] sm:$0xff]
        %v1851 = vld [vmem:[#allocation2 + $0x5e] sm:$0xff]
        %v1852 = vpack.c.bf16 %v1843, %v1842
        %v1853 = vpack.c.bf16 %v1845, %v1844
        %v1854 = vpack.c.bf16 %v1847, %v1846
        %v1855 = vpack.c.bf16 %v1849, %v1848
        %v1856 = vpack.c.bf16 %v1851, %v1850
        %s1857 = scalar_lea.vmem [#allocation3], 512
        %v1858 = vld [vmem:[%s1857] sm:$0xf]
        %v1859 = vld [vmem:[%s1857 + $0x4] sm:$0xf]
        %v1860 = vld [vmem:[%s1857 + $0x8] sm:$0xf]
        %v1861 = vld [vmem:[%s1857 + $0xc] sm:$0xf]
        %v1862 = vld [vmem:[%s1857 + $0x10] sm:$0xf]
        %v1863 = vld [vmem:[%s1857 + $0x14] sm:$0xf]
        %v1864 = vld [vmem:[%s1857 + $0x18] sm:$0xf]
        %v1865 = vld [vmem:[%s1857 + $0x1c] sm:$0xf]
        %v1866 = vld [vmem:[%s1857 + $0x20] sm:$0xf]
        %v1867 = vld [vmem:[%s1857 + $0x24] sm:$0xf]
        %v1868 = vld [vmem:[%s1857 + $0x28] sm:$0xf]
        %v1869 = vld [vmem:[%s1857 + $0x2c] sm:$0xf]
        %v1870 = vld [vmem:[%s1857 + $0x30] sm:$0xf]
        %v1871 = vld [vmem:[%s1857 + $0x34] sm:$0xf]
        %v1872 = vld [vmem:[%s1857 + $0x38] sm:$0xf]
        %v1873 = vld [vmem:[%s1857 + $0x3c] sm:$0xf]
        %v1890 = vunpack.c.l.b16 %v1858
        %v1891 = vunpack.c.l.b16 %v1859
        %v1892 = vunpack.c.l.b16 %v1860
        %v1893 = vunpack.c.l.b16 %v1861
        %v1894 = vunpack.c.l.b16 %v1862
        %v1895 = vunpack.c.l.b16 %v1863
        %v1896 = vunpack.c.l.b16 %v1864
        %v1897 = vunpack.c.l.b16 %v1865
        %v1898 = vunpack.c.l.b16 %v1866
        %v1899 = vunpack.c.l.b16 %v1867
        %v1900 = vunpack.c.l.b16 %v1868
        %v1901 = vunpack.c.l.b16 %v1869
        %v1902 = vunpack.c.l.b16 %v1870
        %v1903 = vunpack.c.l.b16 %v1871
        %v1904 = vunpack.c.l.b16 %v1872
        %v1905 = vunpack.c.l.b16 %v1873
        %v1906 = vpack.c.b16 %v1891, %v1890
        %v1907 = vpack.c.b16 %v1893, %v1892
        %v1908 = vpack.c.b16 %v1895, %v1894
        %v1909 = vpack.c.b16 %v1897, %v1896
        %v1910 = vpack.c.b16 %v1899, %v1898
        %v1911 = vpack.c.b16 %v1901, %v1900
        %v1912 = vpack.c.b16 %v1903, %v1902
        %v1913 = vpack.c.b16 %v1905, %v1904
        %1922 = vmatprep.subr.bf16.mxu0 0
        %1923 = vmatpush1.bf16.msra.mxu0 %v1906
        %1924 = vmatprep.subr.bf16.mxu0 0
        %1925 = vmatpush1.bf16.msra.mxu0 %v1907
        %1926 = vmatprep.subr.bf16.mxu0 0
        %1927 = vmatpush1.bf16.msra.mxu0 %v1908
        %1928 = vmatprep.subr.bf16.mxu0 0
        %1929 = vmatpush1.bf16.msra.mxu0 %v1909
        %1930 = vmatprep.subr.bf16.mxu0 0
        %1931 = vmatpush1.bf16.msra.mxu0 %v1910
        %1932 = vmatprep.subr.bf16.mxu0 0
        %1933 = vmatpush1.bf16.msra.mxu0 %v1911
        %1934 = vmatprep.subr.bf16.mxu0 0
        %1935 = vmatpush1.bf16.msra.mxu0 %v1912
        %1936 = vmatprep.subr.bf16.mxu0 0
        %1937 = vmatpush1.bf16.msra.mxu0 %v1913
        %1938 = vmatprep.subr.bf16.mxu0 0
        %1939 = vmatpush1.bf16.msra.mxu0 0
        %1940 = vmatprep.subr.bf16.mxu0 0
        %1941 = vmatpush1.bf16.msra.mxu0 0
        %1942 = vmatprep.subr.bf16.mxu0 0
        %1943 = vmatpush1.bf16.msra.mxu0 0
        %1944 = vmatprep.subr.bf16.mxu0 0
        %1945 = vmatpush1.bf16.msra.mxu0 0
        %1946 = vmatprep.subr.bf16.mxu0 0
        %1947 = vmatpush1.bf16.msra.mxu0 0
        %1948 = vmatprep.subr.bf16.mxu0 0
        %1949 = vmatpush1.bf16.msra.mxu0 0
        %1950 = vmatprep.subr.bf16.mxu0 0
        %1951 = vmatpush1.bf16.msra.mxu0 0
        %1952 = vmatprep.subr.bf16.mxu0 0
        %1953 = vmatpush1.bf16.msra.mxu0 0
        %1954 = vmatprep.mubr.bf16.mxu0 0
        %1955 = vmatmul.mubr.bf16.gmra.mrb[0].mxu0 %v1852
        %v1956 = vpop.f32.mrb[0].mxu0
        %v1957 = vadd.f32 0.0, %v1956
        %v1958 = vpop.f32.mrb[0].mxu0
        %v1959 = vpop.f32.mrb[0].mxu0
        %v1960 = vadd.f32 0.0, %v1959
        %v1961 = vpop.f32.mrb[0].mxu0
        %1962 = vmatprep.mubr.bf16.mxu0 0
        %1963 = vmatmul.mubr.bf16.gmra.mrb[0].mxu0 %v1853
        %v1964 = vpop.f32.mrb[0].mxu0
        %v1965 = vadd.f32 0.0, %v1964
        %v1966 = vpop.f32.mrb[0].mxu0
        %v1967 = vpop.f32.mrb[0].mxu0
        %v1968 = vadd.f32 0.0, %v1967
        %v1969 = vpop.f32.mrb[0].mxu0
        %1970 = vmatprep.mubr.bf16.mxu0 0
        %1971 = vmatmul.mubr.bf16.gmra.mrb[0].mxu0 %v1854
        %v1972 = vpop.f32.mrb[0].mxu0
        %v1973 = vadd.f32 0.0, %v1972
        %v1974 = vpop.f32.mrb[0].mxu0
        %v1975 = vpop.f32.mrb[0].mxu0
        %v1976 = vadd.f32 0.0, %v1975
        %v1977 = vpop.f32.mrb[0].mxu0
        %1978 = vmatprep.mubr.bf16.mxu0 0
        %1979 = vmatmul.mubr.bf16.gmra.mrb[0].mxu0 %v1855
        %v1980 = vpop.f32.mrb[0].mxu0
        %v1981 = vadd.f32 0.0, %v1980
        %v1982 = vpop.f32.mrb[0].mxu0
        %v1983 = vpop.f32.mrb[0].mxu0
        %v1984 = vadd.f32 0.0, %v1983
        %v1985 = vpop.f32.mrb[0].mxu0
        %1986 = vmatprep.mubr.bf16.mxu0 0
        %1987 = vmatmul.mubr.bf16.gmra.mrb[0].mxu0 %v1856
        %v1988 = vpop.f32.mrb[0].mxu0
        %v1989 = vadd.f32 0.0, %v1988
        %v1990 = vpop.f32.mrb[0].mxu0
        %v1991 = vpop.f32.mrb[0].mxu0
        %v1992 = vadd.f32 0.0, %v1991
        %v1993 = vpop.f32.mrb[0].mxu0
        %1994 = vdwg.mxu0
        %v1995 = vadd.f32 %v1832, %v1957
        %v1996 = vadd.f32 %v1833, %v1960
        %v1997 = vadd.f32 %v1834, %v1965
        %v1998 = vadd.f32 %v1835, %v1968
        %v1999 = vadd.f32 %v1836, %v1973
        %v2000 = vadd.f32 %v1837, %v1976
        %v2001 = vadd.f32 %v1838, %v1981
        %v2002 = vadd.f32 %v1839, %v1984
        %v2003 = vadd.f32 %v1840, %v1989
        %v2004 = vadd.f32 %v1841, %v1992
        %v2005 = vpack.c.bf16 %v1996, %v1995
        %v2006 = vpack.c.bf16 %v1998, %v1997
        %v2007 = vpack.c.bf16 %v2000, %v1999
        %v2008 = vpack.c.bf16 %v2002, %v2001
        %v2009 = vpack.c.bf16 %v2004, %v2003
        %v2015 = vunpack.c.l.b16 %v2005
        %v2016 = vunpack.c.h.b16 %v2005
        %v2017 = vunpack.c.l.b16 %v2006
        %v2018 = vunpack.c.h.b16 %v2006
        %v2019 = vunpack.c.l.b16 %v2007
        %v2020 = vunpack.c.h.b16 %v2007
        %v2021 = vunpack.c.l.b16 %v2008
        %v2022 = vunpack.c.h.b16 %v2008
        %v2023 = vunpack.c.l.b16 %v2009
        %v2024 = vunpack.c.h.b16 %v2009
        %v2025 = vpack.c.b16 %v2015, %v2015
        %v2026 = vpack.c.b16 %v2016, %v2016
        %v2027 = vpack.c.b16 %v2017, %v2017
        %v2028 = vpack.c.b16 %v2018, %v2018
        %v2029 = vpack.c.b16 %v2019, %v2019
        %v2030 = vpack.c.b16 %v2020, %v2020
        %v2031 = vpack.c.b16 %v2021, %v2021
        %v2032 = vpack.c.b16 %v2022, %v2022
        %v2033 = vpack.c.b16 %v2023, %v2023
        %v2034 = vpack.c.b16 %v2024, %v2024
        %2045 = vst [vmem:[%s266] sm:$0xf] %v2025
        %2046 = vst [vmem:[%s266 + $0x4] sm:$0xf] %v2026
        %2047 = vst [vmem:[%s266 + $0x8] sm:$0xf] %v2027
        %2048 = vst [vmem:[%s266 + $0xc] sm:$0xf] %v2028
        %2049 = vst [vmem:[%s266 + $0x10] sm:$0xf] %v2029
        %2050 = vst [vmem:[%s266 + $0x14] sm:$0xf] %v2030
        %2051 = vst [vmem:[%s266 + $0x18] sm:$0xf] %v2031
        %2052 = vst [vmem:[%s266 + $0x1c] sm:$0xf] %v2032
        %2053 = vst [vmem:[%s266 + $0x20] sm:$0xf] %v2033
        %2054 = vst [vmem:[%s266 + $0x24] sm:$0xf] %v2034
        %v2055 = vld [vmem:[%s4] sm:$0xff]
        %v2056 = vld [vmem:[%s4 + $0x8] sm:$0xff]
        %v2057 = vld [vmem:[%s4 + $0x10] sm:$0xff]
        %v2058 = vld [vmem:[%s4 + $0x18] sm:$0xff]
        %v2059 = vld [vmem:[%s4 + $0x20] sm:$0xff]
        %v2060 = vld [vmem:[%s4 + $0x28] sm:$0xff]
        %v2061 = vld [vmem:[%s4 + $0x30] sm:$0xff]
        %v2062 = vld [vmem:[%s4 + $0x38] sm:$0xff]
        %v2063 = vld [vmem:[%s4 + $0x40] sm:$0xff]
        %v2064 = vld [vmem:[%s4 + $0x48] sm:$0xff]
        %2066 = vset.pattern.permute.xlu0 0
        %2067 = vperm.xlu0 %2066, %v2055
        %v2068 = vpop.permute.xlu0 %2067
        %2071 = vset.pattern.permute.xlu0 0
        %2072 = vperm.xlu0 %2071, %v2056
        %v2073 = vpop.permute.xlu0 %2072
        %2076 = vset.pattern.permute.xlu0 0
        %2077 = vperm.xlu0 %2076, %v2057
        %v2078 = vpop.permute.xlu0 %2077
        %2081 = vset.pattern.permute.xlu0 0
        %2082 = vperm.xlu0 %2081, %v2058
        %v2083 = vpop.permute.xlu0 %2082
        %2086 = vset.pattern.permute.xlu0 0
        %2087 = vperm.xlu0 %2086, %v2059
        %v2088 = vpop.permute.xlu0 %2087
        %2091 = vset.pattern.permute.xlu0 0
        %2092 = vperm.xlu0 %2091, %v2060
        %v2093 = vpop.permute.xlu0 %2092
        %2096 = vset.pattern.permute.xlu0 0
        %2097 = vperm.xlu0 %2096, %v2061
        %v2098 = vpop.permute.xlu0 %2097
        %2101 = vset.pattern.permute.xlu0 0
        %2102 = vperm.xlu0 %2101, %v2062
        %v2103 = vpop.permute.xlu0 %2102
        %2106 = vset.pattern.permute.xlu0 0
        %2107 = vperm.xlu0 %2106, %v2063
        %v2108 = vpop.permute.xlu0 %2107
        %2111 = vset.pattern.permute.xlu0 0
        %2112 = vperm.xlu0 %2111, %v2064
        %v2113 = vpop.permute.xlu0 %2112
        %v2115 = vmul.f32 %v1995, %v2068
        %v2116 = vmul.f32 %v1996, %v2073
        %v2117 = vmul.f32 %v1997, %v2078
        %v2118 = vmul.f32 %v1998, %v2083
        %v2119 = vmul.f32 %v1999, %v2088
        %v2120 = vmul.f32 %v2000, %v2093
        %v2121 = vmul.f32 %v2001, %v2098
        %v2122 = vmul.f32 %v2002, %v2103
        %v2123 = vmul.f32 %v2003, %v2108
        %v2124 = vmul.f32 %v2004, %v2113
        %v2125 = vld [vmem:[%s6] sm:$0x1]
        %v2126 = vadd.f32 %v2115, %v2116
        %v2127 = vadd.f32 %v2126, %v2117
        %v2128 = vadd.f32 %v2127, %v2118
        %v2129 = vadd.f32 %v2128, %v2119
        %v2130 = vadd.f32 %v2129, %v2120
        %v2131 = vadd.f32 %v2130, %v2121
        %v2132 = vadd.f32 %v2131, %v2122
        %v2133 = vadd.f32 %v2132, %v2123
        %v2134 = vadd.f32 %v2133, %v2124
        %v2135 = vrot.slane %v2134, 4
        %v2136 = vadd.f32 %v2134, %v2135
        %v2137 = vrot.slane %v2136, 2
        %v2138 = vadd.f32 %v2136, %v2137
        %v2139 = vrot.slane %v2138, 1
        %v2140 = vadd.f32 %v2138, %v2139
        %v2141 = vadd.f32 %v2125, %v2140
        %2142 = vst [vmem:[%s6] sm:$0x1] %v2141
        %v2143 = vld [vmem:[%s6 + $0x1] sm:$0x1]
        %v2144 = vmul.f32 %v2115, %v1995
        %v2145 = vmul.f32 %v2116, %v1996
        %v2146 = vmul.f32 %v2117, %v1997
        %v2147 = vmul.f32 %v2118, %v1998
        %v2148 = vmul.f32 %v2119, %v1999
        %v2149 = vmul.f32 %v2120, %v2000
        %v2150 = vmul.f32 %v2121, %v2001
        %v2151 = vmul.f32 %v2122, %v2002
        %v2152 = vmul.f32 %v2123, %v2003
        %v2153 = vmul.f32 %v2124, %v2004
        %v2154 = vadd.f32 %v2144, %v2145
        %v2155 = vadd.f32 %v2154, %v2146
        %v2156 = vadd.f32 %v2155, %v2147
        %v2157 = vadd.f32 %v2156, %v2148
        %v2158 = vadd.f32 %v2157, %v2149
        %v2159 = vadd.f32 %v2158, %v2150
        %v2160 = vadd.f32 %v2159, %v2151
        %v2161 = vadd.f32 %v2160, %v2152
        %v2162 = vadd.f32 %v2161, %v2153
        %v2163 = vrot.slane %v2162, 4
        %v2164 = vadd.f32 %v2162, %v2163
        %v2165 = vrot.slane %v2164, 2
        %v2166 = vadd.f32 %v2164, %v2165
        %v2167 = vrot.slane %v2166, 1
        %v2168 = vadd.f32 %v2166, %v2167
        %v2169 = vadd.f32 %v2143, %v2168
        %2170 = vst [vmem:[%s6 + $0x1] sm:$0x1] %v2169
        %p2171 = scmp.eq.s32.totalorder %s19, 1
        // Predicated region
        $region49: #{conv_generator_upsample.7} parent=39 // pred_check
          %p2172 = pneg %p2171
        $region50: #{conv_generator_upsample.7} parent=39 // pred_check_branch
          %2174 = sbr.rel (%p2172) target = $region52
        $region51: #{conv_generator_upsample.7} parent=39 // pred_region
          %v2175 = vld [vmem:[%s6] sm:$0x1]
          %v2176 = vrcp.pop 128.0
          %v2177 = vmul.f32 %v2175, %v2176
          %v2178 = vld [vmem:[%s6 + $0x1] sm:$0x1]
          %v2179 = vmul.f32 %v2178, %v2176
          %v2180 = vmul.f32 %v2177, %v2177
          %v2181 = vsub.f32 %v2179, %v2180
          %v2182 = vadd.f32 %v2181, 0.8
          %v2183 = vrsqrt.pop %v2182
          %v2184 = vld [vmem:[%s2] sm:$0x1]
          %v2185 = vmul.f32 %v2184, %v2183
          %2186 = vst [vmem:[%s6] sm:$0x1] %v2185
          %v2187 = vld [vmem:[%s2 + $0x1] sm:$0x1]
          %v2188 = vmul.f32 %v2177, %v2185
          %v2189 = vsub.f32 %v2187, %v2188
          %2190 = vst [vmem:[%s6 + $0x1] sm:$0x1] %v2189
        $region52: #{conv_generator_upsample.7} parent=39 // pred_fallthru
          _
        %s2191 = smul.u32 10, %s19
        %p2192 = scmp.lt.s32.totalorder %s2191, 19
        %s2193 = scalar_select %p2192, %s2191, 19
        %s2194 = smul.addr %s2193, 4
        %s2195 = scalar_lea.vmem %s5, %s2194
        // Predicated region
        $region53: #{conv_generator_upsample.7} parent=39 // pred_check
          %p2196 = pneg %p147
        $region54: #{conv_generator_upsample.7} parent=39 // pred_check_branch
          %2198 = sbr.rel (%p2196) target = $region56
        $region55: #{conv_generator_upsample.7} parent=39 // pred_region
          %s2199 = smul.u32 10, %s19
        $region56: #{conv_generator_upsample.7} parent=39 // pred_fallthru
          _
        // Predicated region
        $region57: #{conv_generator_upsample.7} parent=39 // pred_check
          %p2200 = pneg %p168
        $region58: #{conv_generator_upsample.7} parent=39 // pred_check_branch
          %2202 = sbr.rel (%p2200) target = $region60
        $region59: #{conv_generator_upsample.7} parent=39 // pred_region
          _
        $region60: #{conv_generator_upsample.7} parent=39 // pred_fallthru
          _
        // Predicated region
        $region61: #{conv_generator_upsample.7} parent=39 // pred_check
          %p2203 = pneg %p168
        $region62: #{conv_generator_upsample.7} parent=39 // pred_check_branch
          %2205 = sbr.rel (%p2203) target = $region64
        $region63: #{conv_generator_upsample.7} parent=39 // pred_region
          _
        $region64: #{conv_generator_upsample.7} parent=39 // pred_fallthru
          _
      $region40: #{conv_generator_upsample.7} parent=5 // pred_fallthru
        _
      %p2206 = scmp.le.s32.totalorder 2, %s14
      // Predicated region
      $region65: #{conv_generator_upsample.7} parent=5 // pred_check
        %p2207 = pneg %p2206
      $region66: #{conv_generator_upsample.7} parent=5 // pred_check_branch
        %2209 = sbr.rel (%p2207) target = $region68
      $region67: #{conv_generator_upsample.7} parent=5 // pred_region
        %s2210 = ssub.s32 %s14, 2
        // Predicated region
        $region69: #{conv_generator_upsample.7} parent=67 // pred_check
          %p2211 = pneg %p153
        $region70: #{conv_generator_upsample.7} parent=67 // pred_check_branch
          %2213 = sbr.rel (%p2211) target = $region72
        $region71: #{conv_generator_upsample.7} parent=67 // pred_region
          %s2214 = smul.u32 10, %s20
          %p2215 = scmp.lt.s32.totalorder %s2214, 19
          %s2216 = scalar_select %p2215, %s2214, 19
          %s2217 = smul.addr %s2216, 4
          %s2218 = scalar_lea.vmem %s5, %s2217
        $region72: #{conv_generator_upsample.7} parent=67 // pred_fallthru
          _
      $region68: #{conv_generator_upsample.7} parent=5 // pred_fallthru
        _
    $region6: #{conv_generator_upsample.7} parent=1 // loop_footer
      %s18 = sadd.s32 1, %s14
    $region7: #{conv_generator_upsample.7} parent=1 // loop_footer_branch
      %13 = sbr.rel target = $region3
    $region8: #{conv_generator_upsample.7} parent=1 // loop_exit
      _
    %2219 = vsyncpa [#allocation4], 1
    %s2220 = scalar_lea.sflag [#allocation4], 1
    %2221 = vsyncpa %s2220, 1

// kernel: conv_generator_upsample.8
$region0: #{conv_generator_upsample.8}
  #allocation0 [shape = 'u32[]', space=smem, size = 0x4, offset = 0x4, fixed_abs, tag = 'smem constant byte address 0x4 - core index']
  #allocation1 [shape = 'u32[144,128]{1,0:T(1,128)}', space=vmem, size = 0x12000, scoped, tag = 'internal scratch']
  #allocation2 [shape = 'f32[328,128]{1,0:T(8,128)}', space=vmem, size = 0x29000, scoped, tag = 'scratch operand']
  %s0 = inlined_call_operand.vmem [shape: bf16[160,128], index: 0, kind: input, shape index: {}]
  %s1 = inlined_call_operand.vmem [shape: f32[2,128], index: 1, kind: input, shape index: {}]
  %s2 = inlined_call_operand.vmem [shape: f32[2,64], index: 2, kind: input, shape index: {}]
  %s3 = inlined_call_operand.vmem [shape: bf16[3,3,128,64], index: 3, kind: input, shape index: {}]
  %s4 = inlined_call_operand.vmem [shape: f32[288,1], index: 4, kind: input, shape index: {}]
  %s5 = inlined_call_operand.vmem [shape: bf16[576,64], index: 5, kind: output, shape index: {0}]
  %s6 = inlined_call_operand.vmem [shape: f32[2,64], index: 6, kind: output, shape index: {1}]
  %7 = xla_tuple %s5, %s6
  %s8 = sld [smem:[#allocation0]]
  $region69: #{conv_generator_upsample.8} parent=0
    _
  %s10 = ssub.s32 1, %s8
  %s11 = scalar_select 0, %s10, %s8
  loop: start=0, step=1, limit=4
  $region2: #{conv_generator_upsample.8} parent=0 // loop_pre_header
    _
  $region3: #{conv_generator_upsample.8} parent=0 // loop_header
    %s13 = sphi 0, %s17
    %p14 = scmp.ge.s32.totalorder %s13, 4
    %s23 = sphi 0, %s25
    %s26 = sphi 0, %s23
    %s27 = sphi 0, %s26
    %s43 = sphi 0, %s27
    %s47 = sphi 0, %s47
    %s49 = sphi 0, %s47
    %s50 = sphi 0, %s49
    %s64 = sphi 0, %s50
    %s68 = sphi 0, %s68
    %s70 = sphi 0, %s68
    %s71 = sphi 0, %s70
    %s85 = sphi 0, %s71
    %s89 = sphi 0, %s89
    %s91 = sphi 0, %s89
    %s92 = sphi 0, %s91
    %s106 = sphi 0, %s92
    %s110 = sphi 0, %s110
    %s112 = sphi 0, %s110
    %s113 = sphi 0, %s112
    %s127 = sphi 0, %s113
    %s133 = sphi 0, %s135
    %s136 = sphi 0, %s133
    %s137 = sphi 0, %s136
    %s153 = sphi 0, %s137
    %s157 = sphi 0, %s157
    %s159 = sphi 0, %s157
    %s160 = sphi 0, %s159
    %s174 = sphi 0, %s160
  $region4: #{conv_generator_upsample.8} parent=0 // loop_header_branch
    %16 = sbr.rel (%p14) target = $region8
  $region5: #{conv_generator_upsample.8} parent=0 // loop_body
    %s18 = ssub.s32 %s13, 1
    %s19 = ssub.s32 %s13, 2
    %s20 = sadd.s32 %s13, 1
    %s21 = ssub.s32 %s13, %s20
    %p22 = scmp.eq.s32.totalorder %s21, 0
    %s24 = sadd.s32 %s23, 1
    %s25 = scalar_select %p22, %s23, %s24
    %p28 = pneg %p22
    %p29 = scmp.eq.s32.totalorder %s13, 1
    %p30 = por %p28, %p29
    %p31 = scmp.ne.s32.totalorder %s23, %s26
    %p32 = scmp.eq.s32.totalorder %s13, 0
    %p33 = por %p31, %p32
    %p34 = scmp.ne.s32.totalorder %s23, %s26
    %p35 = scmp.eq.s32.totalorder %s18, 1
    %p36 = por %p34, %p35
    %p37 = scmp.ne.s32.totalorder %s26, %s27
    %p38 = scmp.eq.s32.totalorder %s18, 0
    %p39 = por %p37, %p38
    %p40 = scmp.ne.s32.totalorder %s26, %s27
    %p41 = scmp.eq.s32.totalorder %s19, 1
    %p42 = por %p40, %p41
    %p44 = scmp.ne.s32.totalorder %s27, %s43
    %p45 = scmp.eq.s32.totalorder %s19, 0
    %p46 = por %p44, %p45
    %s48 = sadd.s32 %s47, 1
    %p51 = scmp.eq.s32.totalorder %s13, 1
    %p52 = scmp.ne.s32.totalorder %s47, %s49
    %p53 = scmp.eq.s32.totalorder %s13, 0
    %p54 = por %p52, %p53
    %p55 = scmp.ne.s32.totalorder %s47, %s49
    %p56 = scmp.eq.s32.totalorder %s18, 1
    %p57 = por %p55, %p56
    %p58 = scmp.ne.s32.totalorder %s49, %s50
    %p59 = scmp.eq.s32.totalorder %s18, 0
    %p60 = por %p58, %p59
    %p61 = scmp.ne.s32.totalorder %s49, %s50
    %p62 = scmp.eq.s32.totalorder %s19, 1
    %p63 = por %p61, %p62
    %p65 = scmp.ne.s32.totalorder %s50, %s64
    %p66 = scmp.eq.s32.totalorder %s19, 0
    %p67 = por %p65, %p66
    %s69 = sadd.s32 %s68, 1
    %p72 = scmp.eq.s32.totalorder %s13, 1
    %p73 = scmp.ne.s32.totalorder %s68, %s70
    %p74 = scmp.eq.s32.totalorder %s13, 0
    %p75 = por %p73, %p74
    %p76 = scmp.ne.s32.totalorder %s68, %s70
    %p77 = scmp.eq.s32.totalorder %s18, 1
    %p78 = por %p76, %p77
    %p79 = scmp.ne.s32.totalorder %s70, %s71
    %p80 = scmp.eq.s32.totalorder %s18, 0
    %p81 = por %p79, %p80
    %p82 = scmp.ne.s32.totalorder %s70, %s71
    %p83 = scmp.eq.s32.totalorder %s19, 1
    %p84 = por %p82, %p83
    %p86 = scmp.ne.s32.totalorder %s71, %s85
    %p87 = scmp.eq.s32.totalorder %s19, 0
    %p88 = por %p86, %p87
    %s90 = sadd.s32 %s89, 1
    %p93 = scmp.eq.s32.totalorder %s13, 1
    %p94 = scmp.ne.s32.totalorder %s89, %s91
    %p95 = scmp.eq.s32.totalorder %s13, 0
    %p96 = por %p94, %p95
    %p97 = scmp.ne.s32.totalorder %s89, %s91
    %p98 = scmp.eq.s32.totalorder %s18, 1
    %p99 = por %p97, %p98
    %p100 = scmp.ne.s32.totalorder %s91, %s92
    %p101 = scmp.eq.s32.totalorder %s18, 0
    %p102 = por %p100, %p101
    %p103 = scmp.ne.s32.totalorder %s91, %s92
    %p104 = scmp.eq.s32.totalorder %s19, 1
    %p105 = por %p103, %p104
    %p107 = scmp.ne.s32.totalorder %s92, %s106
    %p108 = scmp.eq.s32.totalorder %s19, 0
    %p109 = por %p107, %p108
    %s111 = sadd.s32 %s110, 1
    %p114 = scmp.eq.s32.totalorder %s13, 1
    %p115 = scmp.ne.s32.totalorder %s110, %s112
    %p116 = scmp.eq.s32.totalorder %s13, 0
    %p117 = por %p115, %p116
    %p118 = scmp.ne.s32.totalorder %s110, %s112
    %p119 = scmp.eq.s32.totalorder %s18, 1
    %p120 = por %p118, %p119
    %p121 = scmp.ne.s32.totalorder %s112, %s113
    %p122 = scmp.eq.s32.totalorder %s18, 0
    %p123 = por %p121, %p122
    %p124 = scmp.ne.s32.totalorder %s112, %s113
    %p125 = scmp.eq.s32.totalorder %s19, 1
    %p126 = por %p124, %p125
    %p128 = scmp.ne.s32.totalorder %s113, %s127
    %p129 = scmp.eq.s32.totalorder %s19, 0
    %p130 = por %p128, %p129
    %s131 = ssub.s32 %s13, %s20
    %p132 = scmp.eq.s32.totalorder %s131, 0
    %s134 = sadd.s32 %s133, 1
    %s135 = scalar_select %p132, %s133, %s134
    %p138 = pneg %p132
    %p139 = scmp.eq.s32.totalorder %s13, 1
    %p140 = por %p138, %p139
    %p141 = scmp.ne.s32.totalorder %s133, %s136
    %p142 = scmp.eq.s32.totalorder %s13, 0
    %p143 = por %p141, %p142
    %p144 = scmp.ne.s32.totalorder %s133, %s136
    %p145 = scmp.eq.s32.totalorder %s18, 1
    %p146 = por %p144, %p145
    %p147 = scmp.ne.s32.totalorder %s136, %s137
    %p148 = scmp.eq.s32.totalorder %s18, 0
    %p149 = por %p147, %p148
    %p150 = scmp.ne.s32.totalorder %s136, %s137
    %p151 = scmp.eq.s32.totalorder %s19, 1
    %p152 = por %p150, %p151
    %p154 = scmp.ne.s32.totalorder %s137, %s153
    %p155 = scmp.eq.s32.totalorder %s19, 0
    %p156 = por %p154, %p155
    %s158 = sadd.s32 %s157, 1
    %p161 = scmp.eq.s32.totalorder %s13, 1
    %p162 = scmp.ne.s32.totalorder %s157, %s159
    %p163 = scmp.eq.s32.totalorder %s13, 0
    %p164 = por %p162, %p163
    %p165 = scmp.ne.s32.totalorder %s157, %s159
    %p166 = scmp.eq.s32.totalorder %s18, 1
    %p167 = por %p165, %p166
    %p168 = scmp.ne.s32.totalorder %s159, %s160
    %p169 = scmp.eq.s32.totalorder %s18, 0
    %p170 = por %p168, %p169
    %p171 = scmp.ne.s32.totalorder %s159, %s160
    %p172 = scmp.eq.s32.totalorder %s19, 1
    %p173 = por %p171, %p172
    %p175 = scmp.ne.s32.totalorder %s160, %s174
    %p176 = scmp.eq.s32.totalorder %s19, 0
    %p177 = por %p175, %p176
    %p178 = scmp.le.s32.totalorder 1, %s13
    %p179 = scmp.lt.s32.totalorder %s13, 3
    %p180 = pnand %p178, %p179
    %p181 = pneg %p180
    // Predicated region
    $region9: #{conv_generator_upsample.8} parent=5 // pred_check
      _
    $region10: #{conv_generator_upsample.8} parent=5 // pred_check_branch
      %183 = sbr.rel (%p180) target = $region12
    $region11: #{conv_generator_upsample.8} parent=5 // pred_region
      %s184 = ssub.s32 %s13, 1
      // Predicated region
      $region13: #{conv_generator_upsample.8} parent=11 // pred_check
        %p185 = pneg %p60
      $region14: #{conv_generator_upsample.8} parent=11 // pred_check_branch
        %187 = sbr.rel (%p185) target = $region16
      $region15: #{conv_generator_upsample.8} parent=11 // pred_region
        _
      $region16: #{conv_generator_upsample.8} parent=11 // pred_fallthru
        _
      // Predicated region
      $region17: #{conv_generator_upsample.8} parent=11 // pred_check
        %p188 = pneg %p81
      $region18: #{conv_generator_upsample.8} parent=11 // pred_check_branch
        %190 = sbr.rel (%p188) target = $region20
      $region19: #{conv_generator_upsample.8} parent=11 // pred_region
        _
      $region20: #{conv_generator_upsample.8} parent=11 // pred_fallthru
        _
      // Predicated region
      $region21: #{conv_generator_upsample.8} parent=11 // pred_check
        %p191 = pneg %p102
      $region22: #{conv_generator_upsample.8} parent=11 // pred_check_branch
        %193 = sbr.rel (%p191) target = $region24
      $region23: #{conv_generator_upsample.8} parent=11 // pred_region
        _
      $region24: #{conv_generator_upsample.8} parent=11 // pred_fallthru
        _
      // Predicated region
      $region25: #{conv_generator_upsample.8} parent=11 // pred_check
        %p194 = pneg %p123
      $region26: #{conv_generator_upsample.8} parent=11 // pred_check_branch
        %196 = sbr.rel (%p194) target = $region28
      $region27: #{conv_generator_upsample.8} parent=11 // pred_region
        _
      $region28: #{conv_generator_upsample.8} parent=11 // pred_fallthru
        _
    $region12: #{conv_generator_upsample.8} parent=5 // pred_fallthru
      _
    %p197 = scmp.lt.s32.totalorder %s13, 2
    // Predicated region
    $region29: #{conv_generator_upsample.8} parent=5 // pred_check
      %p198 = pneg %p197
    $region30: #{conv_generator_upsample.8} parent=5 // pred_check_branch
      %200 = sbr.rel (%p198) target = $region32
    $region31: #{conv_generator_upsample.8} parent=5 // pred_region
      // Predicated region
      $region33: #{conv_generator_upsample.8} parent=31 // pred_check
        %p201 = pneg %p33
      $region34: #{conv_generator_upsample.8} parent=31 // pred_check_branch
        %203 = sbr.rel (%p201) target = $region36
      $region35: #{conv_generator_upsample.8} parent=31 // pred_region
        %s204 = smul.u32 10, %s13
        %p205 = scmp.lt.s32.totalorder %s204, 19
        %s206 = scalar_select %p205, %s204, 19
        %s207 = smul.addr %s206, 4
        %s208 = scalar_lea.vmem %s0, %s207
        %s209 = smul.u32 10, %s13
      $region36: #{conv_generator_upsample.8} parent=31 // pred_fallthru
        _
    $region32: #{conv_generator_upsample.8} parent=5 // pred_fallthru
      _
    %p210 = scmp.le.s32.totalorder 1, %s13
    %p211 = scmp.lt.s32.totalorder %s13, 3
    %p212 = pnand %p210, %p211
    %p213 = pneg %p212
    // Predicated region
    $region37: #{conv_generator_upsample.8} parent=5 // pred_check
      _
    $region38: #{conv_generator_upsample.8} parent=5 // pred_check_branch
      %215 = sbr.rel (%p212) target = $region40
    $region39: #{conv_generator_upsample.8} parent=5 // pred_region
      %s216 = ssub.s32 %s13, 1
      %s217 = smul.u32 10, %s18
      %p218 = scmp.lt.s32.totalorder %s217, 19
      %s219 = scalar_select %p218, %s217, 19
      %s220 = smul.addr %s219, 4
      %s221 = scalar_lea.vmem %s0, %s220
      %p222 = pneg %p39
      %p223 = pneg %p36
      %p224 = pneg %p60
      %p225 = pneg %p57
      %p226 = pneg %p81
      %p227 = pneg %p78
      %p228 = pneg %p102
      %p229 = pneg %p99
      %p230 = pneg %p123
      %p231 = pneg %p120
      %p232 = pneg %p149
      %p233 = pneg %p146
      %s234 = smul.u32 36, %s18
      %p235 = scmp.lt.s32.totalorder %s234, 71
      %s236 = scalar_select %p235, %s234, 71
      %s237 = smul.addr %s236, 4
      %s238 = scalar_lea.vmem %s5, %s237
      %p239 = pneg %p170
      %p240 = pneg %p167
      %s241 = smul.u32 10, %s18
      %p242 = scmp.lt.s32.totalorder %s241, 19
      %s243 = scalar_select %p242, %s241, 19
      %s244 = smul.addr %s243, 4
      %s245 = scalar_lea.vmem %s0, %s244
      %s246 = smul.u32 10, %s18
      %s247 = smul.u32 36, %s18
      %p248 = scmp.lt.s32.totalorder %s247, 71
      %s249 = scalar_select %p248, %s247, 71
      %s250 = smul.addr %s249, 4
      %s251 = scalar_lea.vmem %s5, %s250
      %s252 = smul.u32 36, %s18
      %p254 = scmp.eq.s32.totalorder %s18, 0
      // Predicated region
      $region41: #{conv_generator_upsample.8} parent=39 // pred_check
        %p255 = pneg %p254
      $region42: #{conv_generator_upsample.8} parent=39 // pred_check_branch
        %257 = sbr.rel (%p255) target = $region44
      $region43: #{conv_generator_upsample.8} parent=39 // pred_region
        %258 = vst [vmem:[#allocation2] sm:$0xff] 0.0
        %259 = vst [vmem:[#allocation2 + $0x8] sm:$0xff] 0.0
        %260 = vst [vmem:[#allocation2 + $0x10] sm:$0xff] 0.0
        %261 = vst [vmem:[#allocation2 + $0x18] sm:$0xff] 0.0
        %262 = vst [vmem:[#allocation2 + $0x20] sm:$0xff] 0.0
        %263 = vst [vmem:[#allocation2 + $0x28] sm:$0xff] 0.0
        %264 = vst [vmem:[#allocation2 + $0x30] sm:$0xff] 0.0
        %265 = vst [vmem:[#allocation2 + $0x38] sm:$0xff] 0.0
        %266 = vst [vmem:[#allocation2 + $0x40] sm:$0xff] 0.0
        %267 = vst [vmem:[#allocation2 + $0x48] sm:$0xff] 0.0
        %268 = vst [vmem:[#allocation2 + $0x50] sm:$0xff] 0.0
        %269 = vst [vmem:[#allocation2 + $0x58] sm:$0xff] 0.0
        %270 = vst [vmem:[#allocation2 + $0x60] sm:$0xff] 0.0
        %271 = vst [vmem:[#allocation2 + $0x68] sm:$0xff] 0.0
        %272 = vst [vmem:[#allocation2 + $0x70] sm:$0xff] 0.0
        %273 = vst [vmem:[#allocation2 + $0x78] sm:$0xff] 0.0
        %274 = vst [vmem:[#allocation2 + $0x80] sm:$0xff] 0.0
        %275 = vst [vmem:[#allocation2 + $0x88] sm:$0xff] 0.0
        %276 = vst [vmem:[#allocation2 + $0x90] sm:$0xff] 0.0
        %277 = vst [vmem:[#allocation2 + $0x98] sm:$0xff] 0.0
        %278 = vst [vmem:[#allocation2 + $0xa0] sm:$0xff] 0.0
        %279 = vst [vmem:[#allocation2 + $0xa8] sm:$0xff] 0.0
        %280 = vst [vmem:[#allocation2 + $0xb0] sm:$0xff] 0.0
        %281 = vst [vmem:[#allocation2 + $0xb8] sm:$0xff] 0.0
        %282 = vst [vmem:[#allocation2 + $0xc0] sm:$0xff] 0.0
        %283 = vst [vmem:[#allocation2 + $0xc8] sm:$0xff] 0.0
        %284 = vst [vmem:[#allocation2 + $0xd0] sm:$0xff] 0.0
        %285 = vst [vmem:[#allocation2 + $0xd8] sm:$0xff] 0.0
        %286 = vst [vmem:[#allocation2 + $0xe0] sm:$0xff] 0.0
        %287 = vst [vmem:[#allocation2 + $0xe8] sm:$0xff] 0.0
        %288 = vst [vmem:[#allocation2 + $0xf0] sm:$0xff] 0.0
        %289 = vst [vmem:[#allocation2 + $0xf8] sm:$0xff] 0.0
        %290 = vst [vmem:[#allocation2 + $0x100] sm:$0xff] 0.0
        %291 = vst [vmem:[#allocation2 + $0x108] sm:$0xff] 0.0
        %292 = vst [vmem:[#allocation2 + $0x110] sm:$0xff] 0.0
        %293 = vst [vmem:[#allocation2 + $0x118] sm:$0xff] 0.0
        %294 = vst [vmem:[#allocation2 + $0x120] sm:$0xff] 0.0
        %295 = vst [vmem:[#allocation2 + $0x128] sm:$0xff] 0.0
        %296 = vst [vmem:[#allocation2 + $0x130] sm:$0xff] 0.0
        %297 = vst [vmem:[#allocation2 + $0x138] sm:$0xff] 0.0
        %298 = vst [vmem:[#allocation2 + $0x140] sm:$0xff] 0.0
        %vm299 = vcmask 517120
        %300 = vst.msk [vmem:[%s6] sm:$0x3] %vm299, 0.0
      $region44: #{conv_generator_upsample.8} parent=39 // pred_fallthru
        _
      %v301 = vld [vmem:[%s1] sm:$0x1]
      %v302 = vld [vmem:[%s1 + $0x1] sm:$0x1]
      %v303 = vld [vmem:[%s245] sm:$0xf]
      %v304 = vunpack.c.l.bf16 %v303
      %v305 = vlaneseq
      %v306 = vshrl.u32 %v305, 7
      %v307 = vsub.s32 0, %v306
      %v308 = vrot.slane %v301, %v307
      %v309 = vmul.f32 %v304, %v308
      %v310 = vlaneseq
      %v311 = vshrl.u32 %v310, 7
      %v312 = vsub.s32 0, %v311
      %v313 = vrot.slane %v302, %v312
      %v314 = vadd.f32 %v309, %v313
      %vm315 = vcmp.ge.f32.partialorder %v314, 0.0
      %v316 = vmul.f32 %v314, 0.2
      %v317 = vsel %vm315, %v314, %v316
      %v319 = vcombine.high %v317, %v317
      %v321 = vunpack.c.l.s4 1966171168
      %v322 = vunpack.c.0.s8 %v321
      %v323 = vlaneseq
      %v324 = vshrl.u32 %v323, 7
      %v325 = vsub.s32 %v322, %v324
      %v326 = vrot.slane %v317, %v325
      %v328 = vunpack.c.l.s4 1966171168
      %v329 = vunpack.c.0.s8 %v328
      %v330 = vlaneseq
      %v331 = vshrl.u32 %v330, 7
      %v332 = vsub.s32 %v329, %v331
      %v333 = vrot.slane %v319, %v332
      %v334 = vcombine.high %v326, %v326
      %v335 = vcombine.high %v333, %v333
      %v337 = vunpack.c.l.s4 1966171168
      %v338 = vunpack.c.0.s8 %v337
      %v339 = vlaneseq
      %v340 = vshrl.u32 %v339, 7
      %v341 = vsub.s32 %v338, %v340
      %v342 = vrot.slane %v326, %v341
      %v344 = vunpack.c.l.s4 1966171168
      %v345 = vunpack.c.0.s8 %v344
      %v346 = vlaneseq
      %v347 = vshrl.u32 %v346, 7
      %v348 = vsub.s32 %v345, %v347
      %v349 = vrot.slane %v333, %v348
      %v351 = vunpack.c.l.s4 1966171168
      %v352 = vunpack.c.0.s8 %v351
      %v353 = vlaneseq
      %v354 = vshrl.u32 %v353, 7
      %v355 = vsub.s32 %v352, %v354
      %v356 = vrot.slane %v334, %v355
      %v358 = vunpack.c.l.s4 1966171168
      %v359 = vunpack.c.0.s8 %v358
      %v360 = vlaneseq
      %v361 = vshrl.u32 %v360, 7
      %v362 = vsub.s32 %v359, %v361
      %v363 = vrot.slane %v335, %v362
      %v364 = vcombine.high %v342, %v342
      %v365 = vcombine.high %v349, %v349
      %v366 = vcombine.high %v356, %v356
      %v367 = vcombine.high %v363, %v363
      %v368 = vlaneseq
      %v369 = vshrl.u32 %v368, 7
      %v370 = vsub.s32 0, %v369
      %v371 = vrot.slane %v342, %v370
      %v372 = vlaneseq
      %v373 = vshrl.u32 %v372, 7
      %v374 = vsub.s32 0, %v373
      %v375 = vrot.slane %v356, %v374
      %v376 = vlaneseq
      %v377 = vshrl.u32 %v376, 7
      %v378 = vsub.s32 0, %v377
      %v379 = vrot.slane %v364, %v378
      %v380 = vlaneseq
      %v381 = vshrl.u32 %v380, 7
      %v382 = vsub.s32 0, %v381
      %v383 = vrot.slane %v366, %v382
      %v384 = vlaneseq
      %v385 = vshrl.u32 %v384, 7
      %v386 = vsub.s32 0, %v385
      %v387 = vrot.slane %v349, %v386
      %v388 = vlaneseq
      %v389 = vshrl.u32 %v388, 7
      %v390 = vsub.s32 0, %v389
      %v391 = vrot.slane %v363, %v390
      %v392 = vlaneseq
      %v393 = vshrl.u32 %v392, 7
      %v394 = vsub.s32 0, %v393
      %v395 = vrot.slane %v365, %v394
      %v396 = vlaneseq
      %v397 = vshrl.u32 %v396, 7
      %v398 = vsub.s32 0, %v397
      %v399 = vrot.slane %v367, %v398
      %v400 = vcombine.low %v371, %v375
      %v401 = vcombine.low %v379, %v383
      %v403 = vunpack.c.l.s4 1983009808
      %v404 = vunpack.c.0.s8 %v403
      %v405 = vlaneseq
      %v406 = vshrl.u32 %v405, 7
      %v407 = vsub.s32 %v404, %v406
      %v408 = vrot.slane %v400, %v407
      %v410 = vunpack.c.l.s4 1983009808
      %v411 = vunpack.c.0.s8 %v410
      %v412 = vlaneseq
      %v413 = vshrl.u32 %v412, 7
      %v414 = vsub.s32 %v411, %v413
      %v415 = vrot.slane %v401, %v414
      %v416 = vcombine.low %v408, %v415
      %v417 = vcombine.low %v387, %v391
      %v418 = vcombine.low %v395, %v399
      %v420 = vunpack.c.l.s4 1983009808
      %v421 = vunpack.c.0.s8 %v420
      %v422 = vlaneseq
      %v423 = vshrl.u32 %v422, 7
      %v424 = vsub.s32 %v421, %v423
      %v425 = vrot.slane %v417, %v424
      %v427 = vunpack.c.l.s4 1983009808
      %v428 = vunpack.c.0.s8 %v427
      %v429 = vlaneseq
      %v430 = vshrl.u32 %v429, 7
      %v431 = vsub.s32 %v428, %v430
      %v432 = vrot.slane %v418, %v431
      %v433 = vcombine.low %v425, %v432
      %436 = vst [vmem:[#allocation2 + $0x13] sm:$0xff] %v416
      %437 = vst [vmem:[#allocation2 + $0x1b] sm:$0xff] %v433
      %438 = vst [vmem:[#allocation2 + $0x25] sm:$0xff] %v416
      %439 = vst [vmem:[#allocation2 + $0x2d] sm:$0xff] %v433
      %v440 = vld [vmem:[%s245 + $0x4] sm:$0xe]
      %v441 = vld [vmem:[%s245 + $0x8] sm:$0x1]
      %v442 = vunpack.c.l.bf16 %v440
      %v443 = vunpack.c.l.bf16 %v441
      %v444 = vmul.f32 %v442, %v308
      %v445 = vmul.f32 %v443, %v308
      %v446 = vadd.f32 %v444, %v313
      %v447 = vadd.f32 %v445, %v313
      %vm448 = vcmp.ge.f32.partialorder %v446, 0.0
      %vm449 = vcmp.ge.f32.partialorder %v447, 0.0
      %v450 = vmul.f32 %v446, 0.2
      %v451 = vmul.f32 %v447, 0.2
      %v452 = vsel %vm448, %v446, %v450
      %v453 = vsel %vm449, %v447, %v451
      %v456 = vcombine.high %v452, %v452
      %v458 = vunpack.c.l.s4 1966171168
      %v459 = vunpack.c.0.s8 %v458
      %v460 = vlaneseq
      %v461 = vshrl.u32 %v460, 7
      %v462 = vsub.s32 %v459, %v461
      %v463 = vrot.slane %v452, %v462
      %v465 = vunpack.c.l.s4 1966171168
      %v466 = vunpack.c.0.s8 %v465
      %v467 = vlaneseq
      %v468 = vshrl.u32 %v467, 7
      %v469 = vsub.s32 %v466, %v468
      %v470 = vrot.slane %v456, %v469
      %v471 = vcombine.high %v463, %v463
      %v472 = vcombine.high %v470, %v470
      %v474 = vunpack.c.l.s4 1966171168
      %v475 = vunpack.c.0.s8 %v474
      %v476 = vlaneseq
      %v477 = vshrl.u32 %v476, 7
      %v478 = vsub.s32 %v475, %v477
      %v479 = vrot.slane %v463, %v478
      %v481 = vunpack.c.l.s4 1966171168
      %v482 = vunpack.c.0.s8 %v481
      %v483 = vlaneseq
      %v484 = vshrl.u32 %v483, 7
      %v485 = vsub.s32 %v482, %v484
      %v486 = vrot.slane %v470, %v485
      %v488 = vunpack.c.l.s4 1966171168
      %v489 = vunpack.c.0.s8 %v488
      %v490 = vlaneseq
      %v491 = vshrl.u32 %v490, 7
      %v492 = vsub.s32 %v489, %v491
      %v493 = vrot.slane %v471, %v492
      %v495 = vunpack.c.l.s4 1966171168
      %v496 = vunpack.c.0.s8 %v495
      %v497 = vlaneseq
      %v498 = vshrl.u32 %v497, 7
      %v499 = vsub.s32 %v496, %v498
      %v500 = vrot.slane %v472, %v499
      %v501 = vcombine.high %v479, %v479
      %v502 = vcombine.high %v486, %v486
      %v503 = vcombine.high %v493, %v493
      %v504 = vcombine.high %v500, %v500
      %v506 = vunpack.c.l.s4 1966171168
      %v507 = vunpack.c.0.s8 %v506
      %v508 = vlaneseq
      %v509 = vshrl.u32 %v508, 7
      %v510 = vsub.s32 %v507, %v509
      %v511 = vrot.slane %v453, %v510
      %v512 = vcombine.high %v511, %v511
      %v514 = vunpack.c.l.s4 1966171168
      %v515 = vunpack.c.0.s8 %v514
      %v516 = vlaneseq
      %v517 = vshrl.u32 %v516, 7
      %v518 = vsub.s32 %v515, %v517
      %v519 = vrot.slane %v511, %v518
      %v521 = vunpack.c.l.s4 1966171168
      %v522 = vunpack.c.0.s8 %v521
      %v523 = vlaneseq
      %v524 = vshrl.u32 %v523, 7
      %v525 = vsub.s32 %v522, %v524
      %v526 = vrot.slane %v512, %v525
      %v527 = vlaneseq
      %v528 = vshrl.u32 %v527, 7
      %v529 = vsub.s32 0, %v528
      %v530 = vrot.slane %v501, %v529
      %v531 = vlaneseq
      %v532 = vshrl.u32 %v531, 7
      %v533 = vsub.s32 0, %v532
      %v534 = vrot.slane %v503, %v533
      %v535 = vlaneseq
      %v536 = vshrl.u32 %v535, 7
      %v537 = vsub.s32 0, %v536
      %v538 = vrot.slane %v486, %v537
      %v539 = vlaneseq
      %v540 = vshrl.u32 %v539, 7
      %v541 = vsub.s32 0, %v540
      %v542 = vrot.slane %v500, %v541
      %v543 = vlaneseq
      %v544 = vshrl.u32 %v543, 7
      %v545 = vsub.s32 0, %v544
      %v546 = vrot.slane %v502, %v545
      %v547 = vlaneseq
      %v548 = vshrl.u32 %v547, 7
      %v549 = vsub.s32 0, %v548
      %v550 = vrot.slane %v504, %v549
      %v551 = vlaneseq
      %v552 = vshrl.u32 %v551, 7
      %v553 = vsub.s32 0, %v552
      %v554 = vrot.slane %v519, %v553
      %v555 = vlaneseq
      %v556 = vshrl.u32 %v555, 7
      %v557 = vsub.s32 0, %v556
      %v558 = vrot.slane %v526, %v557
      %v559 = vcombine.low %v530, %v534
      %v560 = vcombine.low %v538, %v542
      %v562 = vunpack.c.l.s4 1983009808
      %v563 = vunpack.c.0.s8 %v562
      %v564 = vlaneseq
      %v565 = vshrl.u32 %v564, 7
      %v566 = vsub.s32 %v563, %v565
      %v567 = vrot.slane %v559, %v566
      %v569 = vunpack.c.l.s4 1983009808
      %v570 = vunpack.c.0.s8 %v569
      %v571 = vlaneseq
      %v572 = vshrl.u32 %v571, 7
      %v573 = vsub.s32 %v570, %v572
      %v574 = vrot.slane %v560, %v573
      %v575 = vcombine.low %v567, %v574
      %v576 = vcombine.low %v546, %v550
      %v577 = vcombine.low %v554, %v558
      %v579 = vunpack.c.l.s4 1983009808
      %v580 = vunpack.c.0.s8 %v579
      %v581 = vlaneseq
      %v582 = vshrl.u32 %v581, 7
      %v583 = vsub.s32 %v580, %v582
      %v584 = vrot.slane %v576, %v583
      %v586 = vunpack.c.l.s4 1983009808
      %v587 = vunpack.c.0.s8 %v586
      %v588 = vlaneseq
      %v589 = vshrl.u32 %v588, 7
      %v590 = vsub.s32 %v587, %v589
      %v591 = vrot.slane %v577, %v590
      %v592 = vcombine.low %v584, %v591
      %595 = vst [vmem:[#allocation2 + $0x37] sm:$0xff] %v575
      %596 = vst [vmem:[#allocation2 + $0x3f] sm:$0xff] %v592
      %597 = vst [vmem:[#allocation2 + $0x49] sm:$0xff] %v575
      %598 = vst [vmem:[#allocation2 + $0x51] sm:$0xff] %v592
      %v599 = vld [vmem:[%s245 + $0x8] sm:$0xc]
      %v600 = vld [vmem:[%s245 + $0xc] sm:$0x3]
      %v601 = vunpack.c.l.bf16 %v599
      %v602 = vunpack.c.l.bf16 %v600
      %v603 = vmul.f32 %v601, %v308
      %v604 = vmul.f32 %v602, %v308
      %v605 = vadd.f32 %v603, %v313
      %v606 = vadd.f32 %v604, %v313
      %vm607 = vcmp.ge.f32.partialorder %v605, 0.0
      %vm608 = vcmp.ge.f32.partialorder %v606, 0.0
      %v609 = vmul.f32 %v605, 0.2
      %v610 = vmul.f32 %v606, 0.2
      %v611 = vsel %vm607, %v605, %v609
      %v612 = vsel %vm608, %v606, %v610
      %v615 = vcombine.high %v611, %v611
      %v617 = vunpack.c.l.s4 1966171168
      %v618 = vunpack.c.0.s8 %v617
      %v619 = vlaneseq
      %v620 = vshrl.u32 %v619, 7
      %v621 = vsub.s32 %v618, %v620
      %v622 = vrot.slane %v615, %v621
      %v623 = vcombine.high %v622, %v622
      %v625 = vunpack.c.l.s4 1966171168
      %v626 = vunpack.c.0.s8 %v625
      %v627 = vlaneseq
      %v628 = vshrl.u32 %v627, 7
      %v629 = vsub.s32 %v626, %v628
      %v630 = vrot.slane %v622, %v629
      %v632 = vunpack.c.l.s4 1966171168
      %v633 = vunpack.c.0.s8 %v632
      %v634 = vlaneseq
      %v635 = vshrl.u32 %v634, 7
      %v636 = vsub.s32 %v633, %v635
      %v637 = vrot.slane %v623, %v636
      %v638 = vcombine.high %v630, %v630
      %v639 = vcombine.high %v637, %v637
      %v641 = vunpack.c.l.s4 1966171168
      %v642 = vunpack.c.0.s8 %v641
      %v643 = vlaneseq
      %v644 = vshrl.u32 %v643, 7
      %v645 = vsub.s32 %v642, %v644
      %v646 = vrot.slane %v612, %v645
      %v647 = vcombine.high %v646, %v646
      %v649 = vunpack.c.l.s4 1966171168
      %v650 = vunpack.c.0.s8 %v649
      %v651 = vlaneseq
      %v652 = vshrl.u32 %v651, 7
      %v653 = vsub.s32 %v650, %v652
      %v654 = vrot.slane %v646, %v653
      %v656 = vunpack.c.l.s4 1966171168
      %v657 = vunpack.c.0.s8 %v656
      %v658 = vlaneseq
      %v659 = vshrl.u32 %v658, 7
      %v660 = vsub.s32 %v657, %v659
      %v661 = vrot.slane %v647, %v660
      %v662 = vcombine.high %v654, %v654
      %v663 = vcombine.high %v661, %v661
      %v664 = vlaneseq
      %v665 = vshrl.u32 %v664, 7
      %v666 = vsub.s32 0, %v665
      %v667 = vrot.slane %v630, %v666
      %v668 = vlaneseq
      %v669 = vshrl.u32 %v668, 7
      %v670 = vsub.s32 0, %v669
      %v671 = vrot.slane %v637, %v670
      %v672 = vlaneseq
      %v673 = vshrl.u32 %v672, 7
      %v674 = vsub.s32 0, %v673
      %v675 = vrot.slane %v638, %v674
      %v676 = vlaneseq
      %v677 = vshrl.u32 %v676, 7
      %v678 = vsub.s32 0, %v677
      %v679 = vrot.slane %v639, %v678
      %v680 = vlaneseq
      %v681 = vshrl.u32 %v680, 7
      %v682 = vsub.s32 0, %v681
      %v683 = vrot.slane %v654, %v682
      %v684 = vlaneseq
      %v685 = vshrl.u32 %v684, 7
      %v686 = vsub.s32 0, %v685
      %v687 = vrot.slane %v661, %v686
      %v688 = vlaneseq
      %v689 = vshrl.u32 %v688, 7
      %v690 = vsub.s32 0, %v689
      %v691 = vrot.slane %v662, %v690
      %v692 = vlaneseq
      %v693 = vshrl.u32 %v692, 7
      %v694 = vsub.s32 0, %v693
      %v695 = vrot.slane %v663, %v694
      %v696 = vcombine.low %v667, %v671
      %v697 = vcombine.low %v675, %v679
      %v699 = vunpack.c.l.s4 1983009808
      %v700 = vunpack.c.0.s8 %v699
      %v701 = vlaneseq
      %v702 = vshrl.u32 %v701, 7
      %v703 = vsub.s32 %v700, %v702
      %v704 = vrot.slane %v696, %v703
      %v706 = vunpack.c.l.s4 1983009808
      %v707 = vunpack.c.0.s8 %v706
      %v708 = vlaneseq
      %v709 = vshrl.u32 %v708, 7
      %v710 = vsub.s32 %v707, %v709
      %v711 = vrot.slane %v697, %v710
      %v712 = vcombine.low %v704, %v711
      %v713 = vcombine.low %v683, %v687
      %v714 = vcombine.low %v691, %v695
      %v716 = vunpack.c.l.s4 1983009808
      %v717 = vunpack.c.0.s8 %v716
      %v718 = vlaneseq
      %v719 = vshrl.u32 %v718, 7
      %v720 = vsub.s32 %v717, %v719
      %v721 = vrot.slane %v713, %v720
      %v723 = vunpack.c.l.s4 1983009808
      %v724 = vunpack.c.0.s8 %v723
      %v725 = vlaneseq
      %v726 = vshrl.u32 %v725, 7
      %v727 = vsub.s32 %v724, %v726
      %v728 = vrot.slane %v714, %v727
      %v729 = vcombine.low %v721, %v728
      %732 = vst [vmem:[#allocation2 + $0x5b] sm:$0xff] %v712
      %733 = vst [vmem:[#allocation2 + $0x63] sm:$0xff] %v729
      %734 = vst [vmem:[#allocation2 + $0x6d] sm:$0xff] %v712
      %735 = vst [vmem:[#allocation2 + $0x75] sm:$0xff] %v729
      %v736 = vld [vmem:[%s245 + $0xc] sm:$0x8]
      %v737 = vld [vmem:[%s245 + $0x10] sm:$0x7]
      %v738 = vunpack.c.l.bf16 %v736
      %v739 = vunpack.c.l.bf16 %v737
      %v740 = vmul.f32 %v738, %v308
      %v741 = vmul.f32 %v739, %v308
      %v742 = vadd.f32 %v740, %v313
      %v743 = vadd.f32 %v741, %v313
      %vm744 = vcmp.ge.f32.partialorder %v742, 0.0
      %vm745 = vcmp.ge.f32.partialorder %v743, 0.0
      %v746 = vmul.f32 %v742, 0.2
      %v747 = vmul.f32 %v743, 0.2
      %v748 = vsel %vm744, %v742, %v746
      %v749 = vsel %vm745, %v743, %v747
      %v752 = vcombine.high %v748, %v748
      %v754 = vunpack.c.l.s4 1966171168
      %v755 = vunpack.c.0.s8 %v754
      %v756 = vlaneseq
      %v757 = vshrl.u32 %v756, 7
      %v758 = vsub.s32 %v755, %v757
      %v759 = vrot.slane %v752, %v758
      %v760 = vcombine.high %v759, %v759
      %v762 = vunpack.c.l.s4 1966171168
      %v763 = vunpack.c.0.s8 %v762
      %v764 = vlaneseq
      %v765 = vshrl.u32 %v764, 7
      %v766 = vsub.s32 %v763, %v765
      %v767 = vrot.slane %v759, %v766
      %v769 = vunpack.c.l.s4 1966171168
      %v770 = vunpack.c.0.s8 %v769
      %v771 = vlaneseq
      %v772 = vshrl.u32 %v771, 7
      %v773 = vsub.s32 %v770, %v772
      %v774 = vrot.slane %v760, %v773
      %v775 = vcombine.high %v767, %v767
      %v776 = vcombine.high %v774, %v774
      %v777 = vcombine.high %v749, %v749
      %v779 = vunpack.c.l.s4 1966171168
      %v780 = vunpack.c.0.s8 %v779
      %v781 = vlaneseq
      %v782 = vshrl.u32 %v781, 7
      %v783 = vsub.s32 %v780, %v782
      %v784 = vrot.slane %v749, %v783
      %v786 = vunpack.c.l.s4 1966171168
      %v787 = vunpack.c.0.s8 %v786
      %v788 = vlaneseq
      %v789 = vshrl.u32 %v788, 7
      %v790 = vsub.s32 %v787, %v789
      %v791 = vrot.slane %v777, %v790
      %v792 = vcombine.high %v784, %v784
      %v793 = vcombine.high %v791, %v791
      %v795 = vunpack.c.l.s4 1966171168
      %v796 = vunpack.c.0.s8 %v795
      %v797 = vlaneseq
      %v798 = vshrl.u32 %v797, 7
      %v799 = vsub.s32 %v796, %v798
      %v800 = vrot.slane %v784, %v799
      %v802 = vunpack.c.l.s4 1966171168
      %v803 = vunpack.c.0.s8 %v802
      %v804 = vlaneseq
      %v805 = vshrl.u32 %v804, 7
      %v806 = vsub.s32 %v803, %v805
      %v807 = vrot.slane %v791, %v806
      %v809 = vunpack.c.l.s4 1966171168
      %v810 = vunpack.c.0.s8 %v809
      %v811 = vlaneseq
      %v812 = vshrl.u32 %v811, 7
      %v813 = vsub.s32 %v810, %v812
      %v814 = vrot.slane %v792, %v813
      %v816 = vunpack.c.l.s4 1966171168
      %v817 = vunpack.c.0.s8 %v816
      %v818 = vlaneseq
      %v819 = vshrl.u32 %v818, 7
      %v820 = vsub.s32 %v817, %v819
      %v821 = vrot.slane %v793, %v820
      %v822 = vcombine.high %v800, %v800
      %v823 = vcombine.high %v814, %v814
      %v824 = vlaneseq
      %v825 = vshrl.u32 %v824, 7
      %v826 = vsub.s32 0, %v825
      %v827 = vrot.slane %v775, %v826
      %v828 = vlaneseq
      %v829 = vshrl.u32 %v828, 7
      %v830 = vsub.s32 0, %v829
      %v831 = vrot.slane %v776, %v830
      %v832 = vlaneseq
      %v833 = vshrl.u32 %v832, 7
      %v834 = vsub.s32 0, %v833
      %v835 = vrot.slane %v800, %v834
      %v836 = vlaneseq
      %v837 = vshrl.u32 %v836, 7
      %v838 = vsub.s32 0, %v837
      %v839 = vrot.slane %v814, %v838
      %v840 = vlaneseq
      %v841 = vshrl.u32 %v840, 7
      %v842 = vsub.s32 0, %v841
      %v843 = vrot.slane %v822, %v842
      %v844 = vlaneseq
      %v845 = vshrl.u32 %v844, 7
      %v846 = vsub.s32 0, %v845
      %v847 = vrot.slane %v823, %v846
      %v848 = vlaneseq
      %v849 = vshrl.u32 %v848, 7
      %v850 = vsub.s32 0, %v849
      %v851 = vrot.slane %v807, %v850
      %v852 = vlaneseq
      %v853 = vshrl.u32 %v852, 7
      %v854 = vsub.s32 0, %v853
      %v855 = vrot.slane %v821, %v854
      %v856 = vcombine.low %v827, %v831
      %v857 = vcombine.low %v835, %v839
      %v859 = vunpack.c.l.s4 1983009808
      %v860 = vunpack.c.0.s8 %v859
      %v861 = vlaneseq
      %v862 = vshrl.u32 %v861, 7
      %v863 = vsub.s32 %v860, %v862
      %v864 = vrot.slane %v856, %v863
      %v866 = vunpack.c.l.s4 1983009808
      %v867 = vunpack.c.0.s8 %v866
      %v868 = vlaneseq
      %v869 = vshrl.u32 %v868, 7
      %v870 = vsub.s32 %v867, %v869
      %v871 = vrot.slane %v857, %v870
      %v872 = vcombine.low %v864, %v871
      %v873 = vcombine.low %v843, %v847
      %v874 = vcombine.low %v851, %v855
      %v876 = vunpack.c.l.s4 1983009808
      %v877 = vunpack.c.0.s8 %v876
      %v878 = vlaneseq
      %v879 = vshrl.u32 %v878, 7
      %v880 = vsub.s32 %v877, %v879
      %v881 = vrot.slane %v873, %v880
      %v883 = vunpack.c.l.s4 1983009808
      %v884 = vunpack.c.0.s8 %v883
      %v885 = vlaneseq
      %v886 = vshrl.u32 %v885, 7
      %v887 = vsub.s32 %v884, %v886
      %v888 = vrot.slane %v874, %v887
      %v889 = vcombine.low %v881, %v888
      %892 = vst [vmem:[#allocation2 + $0x7f] sm:$0xff] %v872
      %893 = vst [vmem:[#allocation2 + $0x87] sm:$0xff] %v889
      %894 = vst [vmem:[#allocation2 + $0x91] sm:$0xff] %v872
      %895 = vst [vmem:[#allocation2 + $0x99] sm:$0xff] %v889
      %v896 = vld [vmem:[%s245 + $0x14] sm:$0xf]
      %v897 = vunpack.c.l.bf16 %v896
      %v898 = vmul.f32 %v897, %v308
      %v899 = vadd.f32 %v898, %v313
      %vm900 = vcmp.ge.f32.partialorder %v899, 0.0
      %v901 = vmul.f32 %v899, 0.2
      %v902 = vsel %vm900, %v899, %v901
      %v904 = vcombine.high %v902, %v902
      %v906 = vunpack.c.l.s4 1966171168
      %v907 = vunpack.c.0.s8 %v906
      %v908 = vlaneseq
      %v909 = vshrl.u32 %v908, 7
      %v910 = vsub.s32 %v907, %v909
      %v911 = vrot.slane %v902, %v910
      %v913 = vunpack.c.l.s4 1966171168
      %v914 = vunpack.c.0.s8 %v913
      %v915 = vlaneseq
      %v916 = vshrl.u32 %v915, 7
      %v917 = vsub.s32 %v914, %v916
      %v918 = vrot.slane %v904, %v917
      %v919 = vcombine.high %v911, %v911
      %v920 = vcombine.high %v918, %v918
      %v922 = vunpack.c.l.s4 1966171168
      %v923 = vunpack.c.0.s8 %v922
      %v924 = vlaneseq
      %v925 = vshrl.u32 %v924, 7
      %v926 = vsub.s32 %v923, %v925
      %v927 = vrot.slane %v911, %v926
      %v929 = vunpack.c.l.s4 1966171168
      %v930 = vunpack.c.0.s8 %v929
      %v931 = vlaneseq
      %v932 = vshrl.u32 %v931, 7
      %v933 = vsub.s32 %v930, %v932
      %v934 = vrot.slane %v918, %v933
      %v936 = vunpack.c.l.s4 1966171168
      %v937 = vunpack.c.0.s8 %v936
      %v938 = vlaneseq
      %v939 = vshrl.u32 %v938, 7
      %v940 = vsub.s32 %v937, %v939
      %v941 = vrot.slane %v919, %v940
      %v943 = vunpack.c.l.s4 1966171168
      %v944 = vunpack.c.0.s8 %v943
      %v945 = vlaneseq
      %v946 = vshrl.u32 %v945, 7
      %v947 = vsub.s32 %v944, %v946
      %v948 = vrot.slane %v920, %v947
      %v949 = vcombine.high %v927, %v927
      %v950 = vcombine.high %v934, %v934
      %v951 = vcombine.high %v941, %v941
      %v952 = vcombine.high %v948, %v948
      %v953 = vlaneseq
      %v954 = vshrl.u32 %v953, 7
      %v955 = vsub.s32 0, %v954
      %v956 = vrot.slane %v927, %v955
      %v957 = vlaneseq
      %v958 = vshrl.u32 %v957, 7
      %v959 = vsub.s32 0, %v958
      %v960 = vrot.slane %v941, %v959
      %v961 = vlaneseq
      %v962 = vshrl.u32 %v961, 7
      %v963 = vsub.s32 0, %v962
      %v964 = vrot.slane %v949, %v963
      %v965 = vlaneseq
      %v966 = vshrl.u32 %v965, 7
      %v967 = vsub.s32 0, %v966
      %v968 = vrot.slane %v951, %v967
      %v969 = vlaneseq
      %v970 = vshrl.u32 %v969, 7
      %v971 = vsub.s32 0, %v970
      %v972 = vrot.slane %v934, %v971
      %v973 = vlaneseq
      %v974 = vshrl.u32 %v973, 7
      %v975 = vsub.s32 0, %v974
      %v976 = vrot.slane %v948, %v975
      %v977 = vlaneseq
      %v978 = vshrl.u32 %v977, 7
      %v979 = vsub.s32 0, %v978
      %v980 = vrot.slane %v950, %v979
      %v981 = vlaneseq
      %v982 = vshrl.u32 %v981, 7
      %v983 = vsub.s32 0, %v982
      %v984 = vrot.slane %v952, %v983
      %v985 = vcombine.low %v956, %v960
      %v986 = vcombine.low %v964, %v968
      %v988 = vunpack.c.l.s4 1983009808
      %v989 = vunpack.c.0.s8 %v988
      %v990 = vlaneseq
      %v991 = vshrl.u32 %v990, 7
      %v992 = vsub.s32 %v989, %v991
      %v993 = vrot.slane %v985, %v992
      %v995 = vunpack.c.l.s4 1983009808
      %v996 = vunpack.c.0.s8 %v995
      %v997 = vlaneseq
      %v998 = vshrl.u32 %v997, 7
      %v999 = vsub.s32 %v996, %v998
      %v1000 = vrot.slane %v986, %v999
      %v1001 = vcombine.low %v993, %v1000
      %v1002 = vcombine.low %v972, %v976
      %v1003 = vcombine.low %v980, %v984
      %v1005 = vunpack.c.l.s4 1983009808
      %v1006 = vunpack.c.0.s8 %v1005
      %v1007 = vlaneseq
      %v1008 = vshrl.u32 %v1007, 7
      %v1009 = vsub.s32 %v1006, %v1008
      %v1010 = vrot.slane %v1002, %v1009
      %v1012 = vunpack.c.l.s4 1983009808
      %v1013 = vunpack.c.0.s8 %v1012
      %v1014 = vlaneseq
      %v1015 = vshrl.u32 %v1014, 7
      %v1016 = vsub.s32 %v1013, %v1015
      %v1017 = vrot.slane %v1003, %v1016
      %v1018 = vcombine.low %v1010, %v1017
      %1021 = vst [vmem:[#allocation2 + $0xa3] sm:$0xff] %v1001
      %1022 = vst [vmem:[#allocation2 + $0xab] sm:$0xff] %v1018
      %1023 = vst [vmem:[#allocation2 + $0xb5] sm:$0xff] %v1001
      %1024 = vst [vmem:[#allocation2 + $0xbd] sm:$0xff] %v1018
      %v1025 = vld [vmem:[%s245 + $0x18] sm:$0xe]
      %v1026 = vld [vmem:[%s245 + $0x1c] sm:$0x1]
      %v1027 = vunpack.c.l.bf16 %v1025
      %v1028 = vunpack.c.l.bf16 %v1026
      %v1029 = vmul.f32 %v1027, %v308
      %v1030 = vmul.f32 %v1028, %v308
      %v1031 = vadd.f32 %v1029, %v313
      %v1032 = vadd.f32 %v1030, %v313
      %vm1033 = vcmp.ge.f32.partialorder %v1031, 0.0
      %vm1034 = vcmp.ge.f32.partialorder %v1032, 0.0
      %v1035 = vmul.f32 %v1031, 0.2
      %v1036 = vmul.f32 %v1032, 0.2
      %v1037 = vsel %vm1033, %v1031, %v1035
      %v1038 = vsel %vm1034, %v1032, %v1036
      %v1041 = vcombine.high %v1037, %v1037
      %v1043 = vunpack.c.l.s4 1966171168
      %v1044 = vunpack.c.0.s8 %v1043
      %v1045 = vlaneseq
      %v1046 = vshrl.u32 %v1045, 7
      %v1047 = vsub.s32 %v1044, %v1046
      %v1048 = vrot.slane %v1037, %v1047
      %v1050 = vunpack.c.l.s4 1966171168
      %v1051 = vunpack.c.0.s8 %v1050
      %v1052 = vlaneseq
      %v1053 = vshrl.u32 %v1052, 7
      %v1054 = vsub.s32 %v1051, %v1053
      %v1055 = vrot.slane %v1041, %v1054
      %v1056 = vcombine.high %v1048, %v1048
      %v1057 = vcombine.high %v1055, %v1055
      %v1059 = vunpack.c.l.s4 1966171168
      %v1060 = vunpack.c.0.s8 %v1059
      %v1061 = vlaneseq
      %v1062 = vshrl.u32 %v1061, 7
      %v1063 = vsub.s32 %v1060, %v1062
      %v1064 = vrot.slane %v1048, %v1063
      %v1066 = vunpack.c.l.s4 1966171168
      %v1067 = vunpack.c.0.s8 %v1066
      %v1068 = vlaneseq
      %v1069 = vshrl.u32 %v1068, 7
      %v1070 = vsub.s32 %v1067, %v1069
      %v1071 = vrot.slane %v1055, %v1070
      %v1073 = vunpack.c.l.s4 1966171168
      %v1074 = vunpack.c.0.s8 %v1073
      %v1075 = vlaneseq
      %v1076 = vshrl.u32 %v1075, 7
      %v1077 = vsub.s32 %v1074, %v1076
      %v1078 = vrot.slane %v1056, %v1077
      %v1080 = vunpack.c.l.s4 1966171168
      %v1081 = vunpack.c.0.s8 %v1080
      %v1082 = vlaneseq
      %v1083 = vshrl.u32 %v1082, 7
      %v1084 = vsub.s32 %v1081, %v1083
      %v1085 = vrot.slane %v1057, %v1084
      %v1086 = vcombine.high %v1064, %v1064
      %v1087 = vcombine.high %v1071, %v1071
      %v1088 = vcombine.high %v1078, %v1078
      %v1089 = vcombine.high %v1085, %v1085
      %v1091 = vunpack.c.l.s4 1966171168
      %v1092 = vunpack.c.0.s8 %v1091
      %v1093 = vlaneseq
      %v1094 = vshrl.u32 %v1093, 7
      %v1095 = vsub.s32 %v1092, %v1094
      %v1096 = vrot.slane %v1038, %v1095
      %v1097 = vcombine.high %v1096, %v1096
      %v1099 = vunpack.c.l.s4 1966171168
      %v1100 = vunpack.c.0.s8 %v1099
      %v1101 = vlaneseq
      %v1102 = vshrl.u32 %v1101, 7
      %v1103 = vsub.s32 %v1100, %v1102
      %v1104 = vrot.slane %v1096, %v1103
      %v1106 = vunpack.c.l.s4 1966171168
      %v1107 = vunpack.c.0.s8 %v1106
      %v1108 = vlaneseq
      %v1109 = vshrl.u32 %v1108, 7
      %v1110 = vsub.s32 %v1107, %v1109
      %v1111 = vrot.slane %v1097, %v1110
      %v1112 = vlaneseq
      %v1113 = vshrl.u32 %v1112, 7
      %v1114 = vsub.s32 0, %v1113
      %v1115 = vrot.slane %v1086, %v1114
      %v1116 = vlaneseq
      %v1117 = vshrl.u32 %v1116, 7
      %v1118 = vsub.s32 0, %v1117
      %v1119 = vrot.slane %v1088, %v1118
      %v1120 = vlaneseq
      %v1121 = vshrl.u32 %v1120, 7
      %v1122 = vsub.s32 0, %v1121
      %v1123 = vrot.slane %v1071, %v1122
      %v1124 = vlaneseq
      %v1125 = vshrl.u32 %v1124, 7
      %v1126 = vsub.s32 0, %v1125
      %v1127 = vrot.slane %v1085, %v1126
      %v1128 = vlaneseq
      %v1129 = vshrl.u32 %v1128, 7
      %v1130 = vsub.s32 0, %v1129
      %v1131 = vrot.slane %v1087, %v1130
      %v1132 = vlaneseq
      %v1133 = vshrl.u32 %v1132, 7
      %v1134 = vsub.s32 0, %v1133
      %v1135 = vrot.slane %v1089, %v1134
      %v1136 = vlaneseq
      %v1137 = vshrl.u32 %v1136, 7
      %v1138 = vsub.s32 0, %v1137
      %v1139 = vrot.slane %v1104, %v1138
      %v1140 = vlaneseq
      %v1141 = vshrl.u32 %v1140, 7
      %v1142 = vsub.s32 0, %v1141
      %v1143 = vrot.slane %v1111, %v1142
      %v1144 = vcombine.low %v1115, %v1119
      %v1145 = vcombine.low %v1123, %v1127
      %v1147 = vunpack.c.l.s4 1983009808
      %v1148 = vunpack.c.0.s8 %v1147
      %v1149 = vlaneseq
      %v1150 = vshrl.u32 %v1149, 7
      %v1151 = vsub.s32 %v1148, %v1150
      %v1152 = vrot.slane %v1144, %v1151
      %v1154 = vunpack.c.l.s4 1983009808
      %v1155 = vunpack.c.0.s8 %v1154
      %v1156 = vlaneseq
      %v1157 = vshrl.u32 %v1156, 7
      %v1158 = vsub.s32 %v1155, %v1157
      %v1159 = vrot.slane %v1145, %v1158
      %v1160 = vcombine.low %v1152, %v1159
      %v1161 = vcombine.low %v1131, %v1135
      %v1162 = vcombine.low %v1139, %v1143
      %v1164 = vunpack.c.l.s4 1983009808
      %v1165 = vunpack.c.0.s8 %v1164
      %v1166 = vlaneseq
      %v1167 = vshrl.u32 %v1166, 7
      %v1168 = vsub.s32 %v1165, %v1167
      %v1169 = vrot.slane %v1161, %v1168
      %v1171 = vunpack.c.l.s4 1983009808
      %v1172 = vunpack.c.0.s8 %v1171
      %v1173 = vlaneseq
      %v1174 = vshrl.u32 %v1173, 7
      %v1175 = vsub.s32 %v1172, %v1174
      %v1176 = vrot.slane %v1162, %v1175
      %v1177 = vcombine.low %v1169, %v1176
      %1180 = vst [vmem:[#allocation2 + $0xc7] sm:$0xff] %v1160
      %1181 = vst [vmem:[#allocation2 + $0xcf] sm:$0xff] %v1177
      %1182 = vst [vmem:[#allocation2 + $0xd9] sm:$0xff] %v1160
      %1183 = vst [vmem:[#allocation2 + $0xe1] sm:$0xff] %v1177
      %v1184 = vld [vmem:[%s245 + $0x1c] sm:$0xc]
      %v1185 = vld [vmem:[%s245 + $0x20] sm:$0x3]
      %v1186 = vunpack.c.l.bf16 %v1184
      %v1187 = vunpack.c.l.bf16 %v1185
      %v1188 = vmul.f32 %v1186, %v308
      %v1189 = vmul.f32 %v1187, %v308
      %v1190 = vadd.f32 %v1188, %v313
      %v1191 = vadd.f32 %v1189, %v313
      %vm1192 = vcmp.ge.f32.partialorder %v1190, 0.0
      %vm1193 = vcmp.ge.f32.partialorder %v1191, 0.0
      %v1194 = vmul.f32 %v1190, 0.2
      %v1195 = vmul.f32 %v1191, 0.2
      %v1196 = vsel %vm1192, %v1190, %v1194
      %v1197 = vsel %vm1193, %v1191, %v1195
      %v1200 = vcombine.high %v1196, %v1196
      %v1202 = vunpack.c.l.s4 1966171168
      %v1203 = vunpack.c.0.s8 %v1202
      %v1204 = vlaneseq
      %v1205 = vshrl.u32 %v1204, 7
      %v1206 = vsub.s32 %v1203, %v1205
      %v1207 = vrot.slane %v1200, %v1206
      %v1208 = vcombine.high %v1207, %v1207
      %v1210 = vunpack.c.l.s4 1966171168
      %v1211 = vunpack.c.0.s8 %v1210
      %v1212 = vlaneseq
      %v1213 = vshrl.u32 %v1212, 7
      %v1214 = vsub.s32 %v1211, %v1213
      %v1215 = vrot.slane %v1207, %v1214
      %v1217 = vunpack.c.l.s4 1966171168
      %v1218 = vunpack.c.0.s8 %v1217
      %v1219 = vlaneseq
      %v1220 = vshrl.u32 %v1219, 7
      %v1221 = vsub.s32 %v1218, %v1220
      %v1222 = vrot.slane %v1208, %v1221
      %v1223 = vcombine.high %v1215, %v1215
      %v1224 = vcombine.high %v1222, %v1222
      %v1226 = vunpack.c.l.s4 1966171168
      %v1227 = vunpack.c.0.s8 %v1226
      %v1228 = vlaneseq
      %v1229 = vshrl.u32 %v1228, 7
      %v1230 = vsub.s32 %v1227, %v1229
      %v1231 = vrot.slane %v1197, %v1230
      %v1232 = vcombine.high %v1231, %v1231
      %v1234 = vunpack.c.l.s4 1966171168
      %v1235 = vunpack.c.0.s8 %v1234
      %v1236 = vlaneseq
      %v1237 = vshrl.u32 %v1236, 7
      %v1238 = vsub.s32 %v1235, %v1237
      %v1239 = vrot.slane %v1231, %v1238
      %v1241 = vunpack.c.l.s4 1966171168
      %v1242 = vunpack.c.0.s8 %v1241
      %v1243 = vlaneseq
      %v1244 = vshrl.u32 %v1243, 7
      %v1245 = vsub.s32 %v1242, %v1244
      %v1246 = vrot.slane %v1232, %v1245
      %v1247 = vcombine.high %v1239, %v1239
      %v1248 = vcombine.high %v1246, %v1246
      %v1249 = vlaneseq
      %v1250 = vshrl.u32 %v1249, 7
      %v1251 = vsub.s32 0, %v1250
      %v1252 = vrot.slane %v1215, %v1251
      %v1253 = vlaneseq
      %v1254 = vshrl.u32 %v1253, 7
      %v1255 = vsub.s32 0, %v1254
      %v1256 = vrot.slane %v1222, %v1255
      %v1257 = vlaneseq
      %v1258 = vshrl.u32 %v1257, 7
      %v1259 = vsub.s32 0, %v1258
      %v1260 = vrot.slane %v1223, %v1259
      %v1261 = vlaneseq
      %v1262 = vshrl.u32 %v1261, 7
      %v1263 = vsub.s32 0, %v1262
      %v1264 = vrot.slane %v1224, %v1263
      %v1265 = vlaneseq
      %v1266 = vshrl.u32 %v1265, 7
      %v1267 = vsub.s32 0, %v1266
      %v1268 = vrot.slane %v1239, %v1267
      %v1269 = vlaneseq
      %v1270 = vshrl.u32 %v1269, 7
      %v1271 = vsub.s32 0, %v1270
      %v1272 = vrot.slane %v1246, %v1271
      %v1273 = vlaneseq
      %v1274 = vshrl.u32 %v1273, 7
      %v1275 = vsub.s32 0, %v1274
      %v1276 = vrot.slane %v1247, %v1275
      %v1277 = vlaneseq
      %v1278 = vshrl.u32 %v1277, 7
      %v1279 = vsub.s32 0, %v1278
      %v1280 = vrot.slane %v1248, %v1279
      %v1281 = vcombine.low %v1252, %v1256
      %v1282 = vcombine.low %v1260, %v1264
      %v1284 = vunpack.c.l.s4 1983009808
      %v1285 = vunpack.c.0.s8 %v1284
      %v1286 = vlaneseq
      %v1287 = vshrl.u32 %v1286, 7
      %v1288 = vsub.s32 %v1285, %v1287
      %v1289 = vrot.slane %v1281, %v1288
      %v1291 = vunpack.c.l.s4 1983009808
      %v1292 = vunpack.c.0.s8 %v1291
      %v1293 = vlaneseq
      %v1294 = vshrl.u32 %v1293, 7
      %v1295 = vsub.s32 %v1292, %v1294
      %v1296 = vrot.slane %v1282, %v1295
      %v1297 = vcombine.low %v1289, %v1296
      %v1298 = vcombine.low %v1268, %v1272
      %v1299 = vcombine.low %v1276, %v1280
      %v1301 = vunpack.c.l.s4 1983009808
      %v1302 = vunpack.c.0.s8 %v1301
      %v1303 = vlaneseq
      %v1304 = vshrl.u32 %v1303, 7
      %v1305 = vsub.s32 %v1302, %v1304
      %v1306 = vrot.slane %v1298, %v1305
      %v1308 = vunpack.c.l.s4 1983009808
      %v1309 = vunpack.c.0.s8 %v1308
      %v1310 = vlaneseq
      %v1311 = vshrl.u32 %v1310, 7
      %v1312 = vsub.s32 %v1309, %v1311
      %v1313 = vrot.slane %v1299, %v1312
      %v1314 = vcombine.low %v1306, %v1313
      %1317 = vst [vmem:[#allocation2 + $0xeb] sm:$0xff] %v1297
      %1318 = vst [vmem:[#allocation2 + $0xf3] sm:$0xff] %v1314
      %1319 = vst [vmem:[#allocation2 + $0xfd] sm:$0xff] %v1297
      %1320 = vst [vmem:[#allocation2 + $0x105] sm:$0xff] %v1314
      %v1321 = vld [vmem:[%s245 + $0x20] sm:$0x8]
      %v1322 = vld [vmem:[%s245 + $0x24] sm:$0x7]
      %v1323 = vunpack.c.l.bf16 %v1321
      %v1324 = vunpack.c.l.bf16 %v1322
      %v1325 = vmul.f32 %v1323, %v308
      %v1326 = vmul.f32 %v1324, %v308
      %v1327 = vadd.f32 %v1325, %v313
      %v1328 = vadd.f32 %v1326, %v313
      %vm1329 = vcmp.ge.f32.partialorder %v1327, 0.0
      %vm1330 = vcmp.ge.f32.partialorder %v1328, 0.0
      %v1331 = vmul.f32 %v1327, 0.2
      %v1332 = vmul.f32 %v1328, 0.2
      %v1333 = vsel %vm1329, %v1327, %v1331
      %v1334 = vsel %vm1330, %v1328, %v1332
      %v1337 = vcombine.high %v1333, %v1333
      %v1339 = vunpack.c.l.s4 1966171168
      %v1340 = vunpack.c.0.s8 %v1339
      %v1341 = vlaneseq
      %v1342 = vshrl.u32 %v1341, 7
      %v1343 = vsub.s32 %v1340, %v1342
      %v1344 = vrot.slane %v1337, %v1343
      %v1345 = vcombine.high %v1344, %v1344
      %v1347 = vunpack.c.l.s4 1966171168
      %v1348 = vunpack.c.0.s8 %v1347
      %v1349 = vlaneseq
      %v1350 = vshrl.u32 %v1349, 7
      %v1351 = vsub.s32 %v1348, %v1350
      %v1352 = vrot.slane %v1344, %v1351
      %v1354 = vunpack.c.l.s4 1966171168
      %v1355 = vunpack.c.0.s8 %v1354
      %v1356 = vlaneseq
      %v1357 = vshrl.u32 %v1356, 7
      %v1358 = vsub.s32 %v1355, %v1357
      %v1359 = vrot.slane %v1345, %v1358
      %v1360 = vcombine.high %v1352, %v1352
      %v1361 = vcombine.high %v1359, %v1359
      %v1362 = vcombine.high %v1334, %v1334
      %v1364 = vunpack.c.l.s4 1966171168
      %v1365 = vunpack.c.0.s8 %v1364
      %v1366 = vlaneseq
      %v1367 = vshrl.u32 %v1366, 7
      %v1368 = vsub.s32 %v1365, %v1367
      %v1369 = vrot.slane %v1334, %v1368
      %v1371 = vunpack.c.l.s4 1966171168
      %v1372 = vunpack.c.0.s8 %v1371
      %v1373 = vlaneseq
      %v1374 = vshrl.u32 %v1373, 7
      %v1375 = vsub.s32 %v1372, %v1374
      %v1376 = vrot.slane %v1362, %v1375
      %v1377 = vcombine.high %v1369, %v1369
      %v1378 = vcombine.high %v1376, %v1376
      %v1380 = vunpack.c.l.s4 1966171168
      %v1381 = vunpack.c.0.s8 %v1380
      %v1382 = vlaneseq
      %v1383 = vshrl.u32 %v1382, 7
      %v1384 = vsub.s32 %v1381, %v1383
      %v1385 = vrot.slane %v1369, %v1384
      %v1387 = vunpack.c.l.s4 1966171168
      %v1388 = vunpack.c.0.s8 %v1387
      %v1389 = vlaneseq
      %v1390 = vshrl.u32 %v1389, 7
      %v1391 = vsub.s32 %v1388, %v1390
      %v1392 = vrot.slane %v1376, %v1391
      %v1394 = vunpack.c.l.s4 1966171168
      %v1395 = vunpack.c.0.s8 %v1394
      %v1396 = vlaneseq
      %v1397 = vshrl.u32 %v1396, 7
      %v1398 = vsub.s32 %v1395, %v1397
      %v1399 = vrot.slane %v1377, %v1398
      %v1401 = vunpack.c.l.s4 1966171168
      %v1402 = vunpack.c.0.s8 %v1401
      %v1403 = vlaneseq
      %v1404 = vshrl.u32 %v1403, 7
      %v1405 = vsub.s32 %v1402, %v1404
      %v1406 = vrot.slane %v1378, %v1405
      %v1407 = vcombine.high %v1385, %v1385
      %v1408 = vcombine.high %v1399, %v1399
      %v1409 = vlaneseq
      %v1410 = vshrl.u32 %v1409, 7
      %v1411 = vsub.s32 0, %v1410
      %v1412 = vrot.slane %v1360, %v1411
      %v1413 = vlaneseq
      %v1414 = vshrl.u32 %v1413, 7
      %v1415 = vsub.s32 0, %v1414
      %v1416 = vrot.slane %v1361, %v1415
      %v1417 = vlaneseq
      %v1418 = vshrl.u32 %v1417, 7
      %v1419 = vsub.s32 0, %v1418
      %v1420 = vrot.slane %v1385, %v1419
      %v1421 = vlaneseq
      %v1422 = vshrl.u32 %v1421, 7
      %v1423 = vsub.s32 0, %v1422
      %v1424 = vrot.slane %v1399, %v1423
      %v1425 = vlaneseq
      %v1426 = vshrl.u32 %v1425, 7
      %v1427 = vsub.s32 0, %v1426
      %v1428 = vrot.slane %v1407, %v1427
      %v1429 = vlaneseq
      %v1430 = vshrl.u32 %v1429, 7
      %v1431 = vsub.s32 0, %v1430
      %v1432 = vrot.slane %v1408, %v1431
      %v1433 = vlaneseq
      %v1434 = vshrl.u32 %v1433, 7
      %v1435 = vsub.s32 0, %v1434
      %v1436 = vrot.slane %v1392, %v1435
      %v1437 = vlaneseq
      %v1438 = vshrl.u32 %v1437, 7
      %v1439 = vsub.s32 0, %v1438
      %v1440 = vrot.slane %v1406, %v1439
      %v1441 = vcombine.low %v1412, %v1416
      %v1442 = vcombine.low %v1420, %v1424
      %v1444 = vunpack.c.l.s4 1983009808
      %v1445 = vunpack.c.0.s8 %v1444
      %v1446 = vlaneseq
      %v1447 = vshrl.u32 %v1446, 7
      %v1448 = vsub.s32 %v1445, %v1447
      %v1449 = vrot.slane %v1441, %v1448
      %v1451 = vunpack.c.l.s4 1983009808
      %v1452 = vunpack.c.0.s8 %v1451
      %v1453 = vlaneseq
      %v1454 = vshrl.u32 %v1453, 7
      %v1455 = vsub.s32 %v1452, %v1454
      %v1456 = vrot.slane %v1442, %v1455
      %v1457 = vcombine.low %v1449, %v1456
      %v1458 = vcombine.low %v1428, %v1432
      %v1459 = vcombine.low %v1436, %v1440
      %v1461 = vunpack.c.l.s4 1983009808
      %v1462 = vunpack.c.0.s8 %v1461
      %v1463 = vlaneseq
      %v1464 = vshrl.u32 %v1463, 7
      %v1465 = vsub.s32 %v1462, %v1464
      %v1466 = vrot.slane %v1458, %v1465
      %v1468 = vunpack.c.l.s4 1983009808
      %v1469 = vunpack.c.0.s8 %v1468
      %v1470 = vlaneseq
      %v1471 = vshrl.u32 %v1470, 7
      %v1472 = vsub.s32 %v1469, %v1471
      %v1473 = vrot.slane %v1459, %v1472
      %v1474 = vcombine.low %v1466, %v1473
      %1477 = vst [vmem:[#allocation2 + $0x10f] sm:$0xff] %v1457
      %1478 = vst [vmem:[#allocation2 + $0x117] sm:$0xff] %v1474
      %1479 = vst [vmem:[#allocation2 + $0x121] sm:$0xff] %v1457
      %1480 = vst [vmem:[#allocation2 + $0x129] sm:$0xff] %v1474
      %v1481 = vld [vmem:[#allocation2] sm:$0xff]
      %v1482 = vld [vmem:[#allocation2 + $0x8] sm:$0xff]
      %v1483 = vld [vmem:[#allocation2 + $0x10] sm:$0xff]
      %v1484 = vld [vmem:[#allocation2 + $0x18] sm:$0xff]
      %v1485 = vld [vmem:[#allocation2 + $0x20] sm:$0xff]
      %v1486 = vld [vmem:[#allocation2 + $0x28] sm:$0xff]
      %v1487 = vld [vmem:[#allocation2 + $0x30] sm:$0xff]
      %v1488 = vld [vmem:[#allocation2 + $0x38] sm:$0xff]
      %v1489 = vld [vmem:[#allocation2 + $0x40] sm:$0xff]
      %v1490 = vld [vmem:[#allocation2 + $0x48] sm:$0xff]
      %v1491 = vld [vmem:[#allocation2 + $0x50] sm:$0xff]
      %v1492 = vld [vmem:[#allocation2 + $0x58] sm:$0xff]
      %v1493 = vld [vmem:[#allocation2 + $0x60] sm:$0xff]
      %v1494 = vld [vmem:[#allocation2 + $0x68] sm:$0xff]
      %v1495 = vld [vmem:[#allocation2 + $0x70] sm:$0xff]
      %v1496 = vld [vmem:[#allocation2 + $0x78] sm:$0xff]
      %v1497 = vld [vmem:[#allocation2 + $0x80] sm:$0xff]
      %v1498 = vld [vmem:[#allocation2 + $0x88] sm:$0xff]
      %v1499 = vld [vmem:[#allocation2 + $0x90] sm:$0xff]
      %v1500 = vld [vmem:[#allocation2 + $0x98] sm:$0xff]
      %v1501 = vld [vmem:[#allocation2 + $0xa0] sm:$0xff]
      %v1502 = vld [vmem:[#allocation2 + $0xa8] sm:$0xff]
      %v1503 = vld [vmem:[#allocation2 + $0xb0] sm:$0xff]
      %v1504 = vld [vmem:[#allocation2 + $0xb8] sm:$0xff]
      %v1505 = vld [vmem:[#allocation2 + $0xc0] sm:$0xff]
      %v1506 = vld [vmem:[#allocation2 + $0xc8] sm:$0xff]
      %v1507 = vld [vmem:[#allocation2 + $0xd0] sm:$0xff]
      %v1508 = vld [vmem:[#allocation2 + $0xd8] sm:$0xff]
      %v1509 = vld [vmem:[#allocation2 + $0xe0] sm:$0xff]
      %v1510 = vld [vmem:[#allocation2 + $0xe8] sm:$0xff]
      %v1511 = vld [vmem:[#allocation2 + $0xf0] sm:$0xff]
      %v1512 = vld [vmem:[#allocation2 + $0xf8] sm:$0xff]
      %v1513 = vld [vmem:[#allocation2 + $0x100] sm:$0xff]
      %v1514 = vld [vmem:[#allocation2 + $0x108] sm:$0xff]
      %v1515 = vld [vmem:[#allocation2 + $0x110] sm:$0xff]
      %v1516 = vld [vmem:[#allocation2 + $0x118] sm:$0xff]
      %v1517 = vpack.c.bf16 %v1482, %v1481
      %v1518 = vpack.c.bf16 %v1484, %v1483
      %v1519 = vpack.c.bf16 %v1486, %v1485
      %v1520 = vpack.c.bf16 %v1488, %v1487
      %v1521 = vpack.c.bf16 %v1490, %v1489
      %v1522 = vpack.c.bf16 %v1492, %v1491
      %v1523 = vpack.c.bf16 %v1494, %v1493
      %v1524 = vpack.c.bf16 %v1496, %v1495
      %v1525 = vpack.c.bf16 %v1498, %v1497
      %v1526 = vpack.c.bf16 %v1500, %v1499
      %v1527 = vpack.c.bf16 %v1502, %v1501
      %v1528 = vpack.c.bf16 %v1504, %v1503
      %v1529 = vpack.c.bf16 %v1506, %v1505
      %v1530 = vpack.c.bf16 %v1508, %v1507
      %v1531 = vpack.c.bf16 %v1510, %v1509
      %v1532 = vpack.c.bf16 %v1512, %v1511
      %v1533 = vpack.c.bf16 %v1514, %v1513
      %v1534 = vpack.c.bf16 %v1516, %v1515
      %v1535 = vld [vmem:[%s3] sm:$0xf]
      %v1536 = vld [vmem:[%s3 + $0x4] sm:$0xf]
      %v1537 = vld [vmem:[%s3 + $0x8] sm:$0xf]
      %v1538 = vld [vmem:[%s3 + $0xc] sm:$0xf]
      %v1539 = vld [vmem:[%s3 + $0x10] sm:$0xf]
      %v1540 = vld [vmem:[%s3 + $0x14] sm:$0xf]
      %v1541 = vld [vmem:[%s3 + $0x18] sm:$0xf]
      %v1542 = vld [vmem:[%s3 + $0x1c] sm:$0xf]
      %v1543 = vld [vmem:[%s3 + $0x20] sm:$0xf]
      %v1544 = vld [vmem:[%s3 + $0x24] sm:$0xf]
      %v1545 = vld [vmem:[%s3 + $0x28] sm:$0xf]
      %v1546 = vld [vmem:[%s3 + $0x2c] sm:$0xf]
      %v1547 = vld [vmem:[%s3 + $0x30] sm:$0xf]
      %v1548 = vld [vmem:[%s3 + $0x34] sm:$0xf]
      %v1549 = vld [vmem:[%s3 + $0x38] sm:$0xf]
      %v1550 = vld [vmem:[%s3 + $0x3c] sm:$0xf]
      %v1551 = vld [vmem:[#allocation2 + $0x1] sm:$0xff]
      %v1552 = vld [vmem:[#allocation2 + $0x9] sm:$0xff]
      %v1553 = vld [vmem:[#allocation2 + $0x11] sm:$0xff]
      %v1554 = vld [vmem:[#allocation2 + $0x19] sm:$0xff]
      %v1555 = vld [vmem:[#allocation2 + $0x21] sm:$0xff]
      %v1556 = vld [vmem:[#allocation2 + $0x29] sm:$0xff]
      %v1557 = vld [vmem:[#allocation2 + $0x31] sm:$0xff]
      %v1558 = vld [vmem:[#allocation2 + $0x39] sm:$0xff]
      %v1559 = vld [vmem:[#allocation2 + $0x41] sm:$0xff]
      %v1560 = vld [vmem:[#allocation2 + $0x49] sm:$0xff]
      %v1561 = vld [vmem:[#allocation2 + $0x51] sm:$0xff]
      %v1562 = vld [vmem:[#allocation2 + $0x59] sm:$0xff]
      %v1563 = vld [vmem:[#allocation2 + $0x61] sm:$0xff]
      %v1564 = vld [vmem:[#allocation2 + $0x69] sm:$0xff]
      %v1565 = vld [vmem:[#allocation2 + $0x71] sm:$0xff]
      %v1566 = vld [vmem:[#allocation2 + $0x79] sm:$0xff]
      %v1567 = vld [vmem:[#allocation2 + $0x81] sm:$0xff]
      %v1568 = vld [vmem:[#allocation2 + $0x89] sm:$0xff]
      %v1569 = vld [vmem:[#allocation2 + $0x91] sm:$0xff]
      %v1570 = vld [vmem:[#allocation2 + $0x99] sm:$0xff]
      %v1571 = vld [vmem:[#allocation2 + $0xa1] sm:$0xff]
      %v1572 = vld [vmem:[#allocation2 + $0xa9] sm:$0xff]
      %v1573 = vld [vmem:[#allocation2 + $0xb1] sm:$0xff]
      %v1574 = vld [vmem:[#allocation2 + $0xb9] sm:$0xff]
      %v1575 = vld [vmem:[#allocation2 + $0xc1] sm:$0xff]
      %v1576 = vld [vmem:[#allocation2 + $0xc9] sm:$0xff]
      %v1577 = vld [vmem:[#allocation2 + $0xd1] sm:$0xff]
      %v1578 = vld [vmem:[#allocation2 + $0xd9] sm:$0xff]
      %v1579 = vld [vmem:[#allocation2 + $0xe1] sm:$0xff]
      %v1580 = vld [vmem:[#allocation2 + $0xe9] sm:$0xff]
      %v1581 = vld [vmem:[#allocation2 + $0xf1] sm:$0xff]
      %v1582 = vld [vmem:[#allocation2 + $0xf9] sm:$0xff]
      %v1583 = vld [vmem:[#allocation2 + $0x101] sm:$0xff]
      %v1584 = vld [vmem:[#allocation2 + $0x109] sm:$0xff]
      %v1585 = vld [vmem:[#allocation2 + $0x111] sm:$0xff]
      %v1586 = vld [vmem:[#allocation2 + $0x119] sm:$0xff]
      %v1587 = vpack.c.bf16 %v1552, %v1551
      %v1588 = vpack.c.bf16 %v1554, %v1553
      %v1589 = vpack.c.bf16 %v1556, %v1555
      %v1590 = vpack.c.bf16 %v1558, %v1557
      %v1591 = vpack.c.bf16 %v1560, %v1559
      %v1592 = vpack.c.bf16 %v1562, %v1561
      %v1593 = vpack.c.bf16 %v1564, %v1563
      %v1594 = vpack.c.bf16 %v1566, %v1565
      %v1595 = vpack.c.bf16 %v1568, %v1567
      %v1596 = vpack.c.bf16 %v1570, %v1569
      %v1597 = vpack.c.bf16 %v1572, %v1571
      %v1598 = vpack.c.bf16 %v1574, %v1573
      %v1599 = vpack.c.bf16 %v1576, %v1575
      %v1600 = vpack.c.bf16 %v1578, %v1577
      %v1601 = vpack.c.bf16 %v1580, %v1579
      %v1602 = vpack.c.bf16 %v1582, %v1581
      %v1603 = vpack.c.bf16 %v1584, %v1583
      %v1604 = vpack.c.bf16 %v1586, %v1585
      %s1605 = scalar_lea.vmem %s3, 64
      %v1606 = vld [vmem:[%s1605] sm:$0xf]
      %v1607 = vld [vmem:[%s1605 + $0x4] sm:$0xf]
      %v1608 = vld [vmem:[%s1605 + $0x8] sm:$0xf]
      %v1609 = vld [vmem:[%s1605 + $0xc] sm:$0xf]
      %v1610 = vld [vmem:[%s1605 + $0x10] sm:$0xf]
      %v1611 = vld [vmem:[%s1605 + $0x14] sm:$0xf]
      %v1612 = vld [vmem:[%s1605 + $0x18] sm:$0xf]
      %v1613 = vld [vmem:[%s1605 + $0x1c] sm:$0xf]
      %v1614 = vld [vmem:[%s1605 + $0x20] sm:$0xf]
      %v1615 = vld [vmem:[%s1605 + $0x24] sm:$0xf]
      %v1616 = vld [vmem:[%s1605 + $0x28] sm:$0xf]
      %v1617 = vld [vmem:[%s1605 + $0x2c] sm:$0xf]
      %v1618 = vld [vmem:[%s1605 + $0x30] sm:$0xf]
      %v1619 = vld [vmem:[%s1605 + $0x34] sm:$0xf]
      %v1620 = vld [vmem:[%s1605 + $0x38] sm:$0xf]
      %v1621 = vld [vmem:[%s1605 + $0x3c] sm:$0xf]
      %v1638 = vunpack.c.l.b16 %v1606
      %v1639 = vunpack.c.l.b16 %v1607
      %v1640 = vunpack.c.l.b16 %v1608
      %v1641 = vunpack.c.l.b16 %v1609
      %v1642 = vunpack.c.l.b16 %v1610
      %v1643 = vunpack.c.l.b16 %v1611
      %v1644 = vunpack.c.l.b16 %v1612
      %v1645 = vunpack.c.l.b16 %v1613
      %v1646 = vunpack.c.l.b16 %v1614
      %v1647 = vunpack.c.l.b16 %v1615
      %v1648 = vunpack.c.l.b16 %v1616
      %v1649 = vunpack.c.l.b16 %v1617
      %v1650 = vunpack.c.l.b16 %v1618
      %v1651 = vunpack.c.l.b16 %v1619
      %v1652 = vunpack.c.l.b16 %v1620
      %v1653 = vunpack.c.l.b16 %v1621
      %v1654 = vpack.c.b16 %v1639, %v1638
      %v1655 = vpack.c.b16 %v1641, %v1640
      %v1656 = vpack.c.b16 %v1643, %v1642
      %v1657 = vpack.c.b16 %v1645, %v1644
      %v1658 = vpack.c.b16 %v1647, %v1646
      %v1659 = vpack.c.b16 %v1649, %v1648
      %v1660 = vpack.c.b16 %v1651, %v1650
      %v1661 = vpack.c.b16 %v1653, %v1652
      %1670 = vmatprep.subr.bf16.mxu0 0
      %1671 = vmatpush1.bf16.msra.mxu0 %v1654
      %1672 = vmatprep.subr.bf16.mxu0 0
      %1673 = vmatpush1.bf16.msra.mxu0 %v1655
      %1674 = vmatprep.subr.bf16.mxu0 0
      %1675 = vmatpush1.bf16.msra.mxu0 %v1656
      %1676 = vmatprep.subr.bf16.mxu0 0
      %1677 = vmatpush1.bf16.msra.mxu0 %v1657
      %1678 = vmatprep.subr.bf16.mxu0 0
      %1679 = vmatpush1.bf16.msra.mxu0 %v1658
      %1680 = vmatprep.subr.bf16.mxu0 0
      %1681 = vmatpush1.bf16.msra.mxu0 %v1659
      %1682 = vmatprep.subr.bf16.mxu0 0
      %1683 = vmatpush1.bf16.msra.mxu0 %v1660
      %1684 = vmatprep.subr.bf16.mxu0 0
      %1685 = vmatpush1.bf16.msra.mxu0 %v1661
      %1686 = vmatprep.subr.bf16.mxu0 0
      %1687 = vmatpush1.bf16.msra.mxu0 0
      %1688 = vmatprep.subr.bf16.mxu0 0
      %1689 = vmatpush1.bf16.msra.mxu0 0
      %1690 = vmatprep.subr.bf16.mxu0 0
      %1691 = vmatpush1.bf16.msra.mxu0 0
      %1692 = vmatprep.subr.bf16.mxu0 0
      %1693 = vmatpush1.bf16.msra.mxu0 0
      %1694 = vmatprep.subr.bf16.mxu0 0
      %1695 = vmatpush1.bf16.msra.mxu0 0
      %1696 = vmatprep.subr.bf16.mxu0 0
      %1697 = vmatpush1.bf16.msra.mxu0 0
      %1698 = vmatprep.subr.bf16.mxu0 0
      %1699 = vmatpush1.bf16.msra.mxu0 0
      %1700 = vmatprep.subr.bf16.mxu0 0
      %1701 = vmatpush1.bf16.msra.mxu0 0
      %1702 = vmatprep.mubr.bf16.mxu0 0
      %1703 = vmatmul.mubr.bf16.gmra.mrb[0].mxu0 %v1587
      %v1704 = vpop.f32.mrb[0].mxu0
      %v1705 = vadd.f32 0.0, %v1704
      %v1706 = vpop.f32.mrb[0].mxu0
      %v1707 = vpop.f32.mrb[0].mxu0
      %v1708 = vadd.f32 0.0, %v1707
      %v1709 = vpop.f32.mrb[0].mxu0
      %1710 = vmatprep.mubr.bf16.mxu0 0
      %1711 = vmatmul.mubr.bf16.gmra.mrb[0].mxu0 %v1588
      %v1712 = vpop.f32.mrb[0].mxu0
      %v1713 = vadd.f32 0.0, %v1712
      %v1714 = vpop.f32.mrb[0].mxu0
      %v1715 = vpop.f32.mrb[0].mxu0
      %v1716 = vadd.f32 0.0, %v1715
      %v1717 = vpop.f32.mrb[0].mxu0
      %1718 = vmatprep.mubr.bf16.mxu0 0
      %1719 = vmatmul.mubr.bf16.gmra.mrb[0].mxu0 %v1589
      %v1720 = vpop.f32.mrb[0].mxu0
      %v1721 = vadd.f32 0.0, %v1720
      %v1722 = vpop.f32.mrb[0].mxu0
      %v1723 = vpop.f32.mrb[0].mxu0
      %v1724 = vadd.f32 0.0, %v1723
      %v1725 = vpop.f32.mrb[0].mxu0
      %1726 = vmatprep.mubr.bf16.mxu0 0
      %1727 = vmatmul.mubr.bf16.gmra.mrb[0].mxu0 %v1590
      %v1728 = vpop.f32.mrb[0].mxu0
      %v1729 = vadd.f32 0.0, %v1728
      %v1730 = vpop.f32.mrb[0].mxu0
      %v1731 = vpop.f32.mrb[0].mxu0
      %v1732 = vadd.f32 0.0, %v1731
      %v1733 = vpop.f32.mrb[0].mxu0
      %1734 = vmatprep.mubr.bf16.mxu0 0
      %1735 = vmatmul.mubr.bf16.gmra.mrb[0].mxu0 %v1591
      %v1736 = vpop.f32.mrb[0].mxu0
      %v1737 = vadd.f32 0.0, %v1736
      %v1738 = vpop.f32.mrb[0].mxu0
      %v1739 = vpop.f32.mrb[0].mxu0
      %v1740 = vadd.f32 0.0, %v1739
      %v1741 = vpop.f32.mrb[0].mxu0
      %1742 = vmatprep.mubr.bf16.mxu0 0
      %1743 = vmatmul.mubr.bf16.gmra.mrb[0].mxu0 %v1592
      %v1744 = vpop.f32.mrb[0].mxu0
      %v1745 = vadd.f32 0.0, %v1744
      %v1746 = vpop.f32.mrb[0].mxu0
      %v1747 = vpop.f32.mrb[0].mxu0
      %v1748 = vadd.f32 0.0, %v1747
      %v1749 = vpop.f32.mrb[0].mxu0
      %1750 = vmatprep.mubr.bf16.mxu0 0
      %1751 = vmatmul.mubr.bf16.gmra.mrb[0].mxu0 %v1593
      %v1752 = vpop.f32.mrb[0].mxu0
      %v1753 = vadd.f32 0.0, %v1752
      %v1754 = vpop.f32.mrb[0].mxu0
      %v1755 = vpop.f32.mrb[0].mxu0
      %v1756 = vadd.f32 0.0, %v1755
      %v1757 = vpop.f32.mrb[0].mxu0
      %1758 = vmatprep.mubr.bf16.mxu0 0
      %1759 = vmatmul.mubr.bf16.gmra.mrb[0].mxu0 %v1594
      %v1760 = vpop.f32.mrb[0].mxu0
      %v1761 = vadd.f32 0.0, %v1760
      %v1762 = vpop.f32.mrb[0].mxu0
      %v1763 = vpop.f32.mrb[0].mxu0
      %v1764 = vadd.f32 0.0, %v1763
      %v1765 = vpop.f32.mrb[0].mxu0
      %1766 = vmatprep.mubr.bf16.mxu0 0
      %1767 = vmatmul.mubr.bf16.gmra.mrb[0].mxu0 %v1595
      %v1768 = vpop.f32.mrb[0].mxu0
      %v1769 = vadd.f32 0.0, %v1768
      %v1770 = vpop.f32.mrb[0].mxu0
      %v1771 = vpop.f32.mrb[0].mxu0
      %v1772 = vadd.f32 0.0, %v1771
      %v1773 = vpop.f32.mrb[0].mxu0
      %1774 = vmatprep.mubr.bf16.mxu0 0
      %1775 = vmatmul.mubr.bf16.gmra.mrb[0].mxu0 %v1596
      %v1776 = vpop.f32.mrb[0].mxu0
      %v1777 = vadd.f32 0.0, %v1776
      %v1778 = vpop.f32.mrb[0].mxu0
      %v1779 = vpop.f32.mrb[0].mxu0
      %v1780 = vadd.f32 0.0, %v1779
      %v1781 = vpop.f32.mrb[0].mxu0
      %1782 = vmatprep.mubr.bf16.mxu0 0
      %1783 = vmatmul.mubr.bf16.gmra.mrb[0].mxu0 %v1597
      %v1784 = vpop.f32.mrb[0].mxu0
      %v1785 = vadd.f32 0.0, %v1784
      %v1786 = vpop.f32.mrb[0].mxu0
      %v1787 = vpop.f32.mrb[0].mxu0
      %v1788 = vadd.f32 0.0, %v1787
      %v1789 = vpop.f32.mrb[0].mxu0
      %1790 = vmatprep.mubr.bf16.mxu0 0
      %1791 = vmatmul.mubr.bf16.gmra.mrb[0].mxu0 %v1598
      %v1792 = vpop.f32.mrb[0].mxu0
      %v1793 = vadd.f32 0.0, %v1792
      %v1794 = vpop.f32.mrb[0].mxu0
      %v1795 = vpop.f32.mrb[0].mxu0
      %v1796 = vadd.f32 0.0, %v1795
      %v1797 = vpop.f32.mrb[0].mxu0
      %1798 = vmatprep.mubr.bf16.mxu0 0
      %1799 = vmatmul.mubr.bf16.gmra.mrb[0].mxu0 %v1599
      %v1800 = vpop.f32.mrb[0].mxu0
      %v1801 = vadd.f32 0.0, %v1800
      %v1802 = vpop.f32.mrb[0].mxu0
      %v1803 = vpop.f32.mrb[0].mxu0
      %v1804 = vadd.f32 0.0, %v1803
      %v1805 = vpop.f32.mrb[0].mxu0
      %1806 = vmatprep.mubr.bf16.mxu0 0
      %1807 = vmatmul.mubr.bf16.gmra.mrb[0].mxu0 %v1600
      %v1808 = vpop.f32.mrb[0].mxu0
      %v1809 = vadd.f32 0.0, %v1808
      %v1810 = vpop.f32.mrb[0].mxu0
      %v1811 = vpop.f32.mrb[0].mxu0
      %v1812 = vadd.f32 0.0, %v1811
      %v1813 = vpop.f32.mrb[0].mxu0
      %1814 = vmatprep.mubr.bf16.mxu0 0
      %1815 = vmatmul.mubr.bf16.gmra.mrb[0].mxu0 %v1601
      %v1816 = vpop.f32.mrb[0].mxu0
      %v1817 = vadd.f32 0.0, %v1816
      %v1818 = vpop.f32.mrb[0].mxu0
      %v1819 = vpop.f32.mrb[0].mxu0
      %v1820 = vadd.f32 0.0, %v1819
      %v1821 = vpop.f32.mrb[0].mxu0
      %1822 = vmatprep.mubr.bf16.mxu0 0
      %1823 = vmatmul.mubr.bf16.gmra.mrb[0].mxu0 %v1602
      %v1824 = vpop.f32.mrb[0].mxu0
      %v1825 = vadd.f32 0.0, %v1824
      %v1826 = vpop.f32.mrb[0].mxu0
      %v1827 = vpop.f32.mrb[0].mxu0
      %v1828 = vadd.f32 0.0, %v1827
      %v1829 = vpop.f32.mrb[0].mxu0
      %1830 = vmatprep.mubr.bf16.mxu0 0
      %1831 = vmatmul.mubr.bf16.gmra.mrb[0].mxu0 %v1603
      %v1832 = vpop.f32.mrb[0].mxu0
      %v1833 = vadd.f32 0.0, %v1832
      %v1834 = vpop.f32.mrb[0].mxu0
      %v1835 = vpop.f32.mrb[0].mxu0
      %v1836 = vadd.f32 0.0, %v1835
      %v1837 = vpop.f32.mrb[0].mxu0
      %1838 = vmatprep.mubr.bf16.mxu0 0
      %1839 = vmatmul.mubr.bf16.gmra.mrb[0].mxu0 %v1604
      %v1840 = vpop.f32.mrb[0].mxu0
      %v1841 = vadd.f32 0.0, %v1840
      %v1842 = vpop.f32.mrb[0].mxu0
      %v1843 = vpop.f32.mrb[0].mxu0
      %v1844 = vadd.f32 0.0, %v1843
      %v1845 = vpop.f32.mrb[0].mxu0
      %1846 = vdwg.mxu0
      %v1863 = vunpack.c.l.b16 %v1535
      %v1864 = vunpack.c.l.b16 %v1536
      %v1865 = vunpack.c.l.b16 %v1537
      %v1866 = vunpack.c.l.b16 %v1538
      %v1867 = vunpack.c.l.b16 %v1539
      %v1868 = vunpack.c.l.b16 %v1540
      %v1869 = vunpack.c.l.b16 %v1541
      %v1870 = vunpack.c.l.b16 %v1542
      %v1871 = vunpack.c.l.b16 %v1543
      %v1872 = vunpack.c.l.b16 %v1544
      %v1873 = vunpack.c.l.b16 %v1545
      %v1874 = vunpack.c.l.b16 %v1546
      %v1875 = vunpack.c.l.b16 %v1547
      %v1876 = vunpack.c.l.b16 %v1548
      %v1877 = vunpack.c.l.b16 %v1549
      %v1878 = vunpack.c.l.b16 %v1550
      %v1879 = vpack.c.b16 %v1864, %v1863
      %v1880 = vpack.c.b16 %v1866, %v1865
      %v1881 = vpack.c.b16 %v1868, %v1867
      %v1882 = vpack.c.b16 %v1870, %v1869
      %v1883 = vpack.c.b16 %v1872, %v1871
      %v1884 = vpack.c.b16 %v1874, %v1873
      %v1885 = vpack.c.b16 %v1876, %v1875
      %v1886 = vpack.c.b16 %v1878, %v1877
      %1895 = vmatprep.subr.bf16.mxu0 0
      %1896 = vmatpush1.bf16.msra.mxu0 %v1879
      %1897 = vmatprep.subr.bf16.mxu0 0
      %1898 = vmatpush1.bf16.msra.mxu0 %v1880
      %1899 = vmatprep.subr.bf16.mxu0 0
      %1900 = vmatpush1.bf16.msra.mxu0 %v1881
      %1901 = vmatprep.subr.bf16.mxu0 0
      %1902 = vmatpush1.bf16.msra.mxu0 %v1882
      %1903 = vmatprep.subr.bf16.mxu0 0
      %1904 = vmatpush1.bf16.msra.mxu0 %v1883
      %1905 = vmatprep.subr.bf16.mxu0 0
      %1906 = vmatpush1.bf16.msra.mxu0 %v1884
      %1907 = vmatprep.subr.bf16.mxu0 0
      %1908 = vmatpush1.bf16.msra.mxu0 %v1885
      %1909 = vmatprep.subr.bf16.mxu0 0
      %1910 = vmatpush1.bf16.msra.mxu0 %v1886
      %1911 = vmatprep.subr.bf16.mxu0 0
      %1912 = vmatpush1.bf16.msra.mxu0 0
      %1913 = vmatprep.subr.bf16.mxu0 0
      %1914 = vmatpush1.bf16.msra.mxu0 0
      %1915 = vmatprep.subr.bf16.mxu0 0
      %1916 = vmatpush1.bf16.msra.mxu0 0
      %1917 = vmatprep.subr.bf16.mxu0 0
      %1918 = vmatpush1.bf16.msra.mxu0 0
      %1919 = vmatprep.subr.bf16.mxu0 0
      %1920 = vmatpush1.bf16.msra.mxu0 0
      %1921 = vmatprep.subr.bf16.mxu0 0
      %1922 = vmatpush1.bf16.msra.mxu0 0
      %1923 = vmatprep.subr.bf16.mxu0 0
      %1924 = vmatpush1.bf16.msra.mxu0 0
      %1925 = vmatprep.subr.bf16.mxu0 0
      %1926 = vmatpush1.bf16.msra.mxu0 0
      %1927 = vmatprep.mubr.bf16.mxu0 0
      %1928 = vmatmul.mubr.bf16.gmra.mrb[0].mxu0 %v1517
      %v1929 = vpop.f32.mrb[0].mxu0
      %v1930 = vadd.f32 %v1705, %v1929
      %v1931 = vpop.f32.mrb[0].mxu0
      %v1932 = vpop.f32.mrb[0].mxu0
      %v1933 = vadd.f32 %v1708, %v1932
      %v1934 = vpop.f32.mrb[0].mxu0
      %1935 = vmatprep.mubr.bf16.mxu0 0
      %1936 = vmatmul.mubr.bf16.gmra.mrb[0].mxu0 %v1518
      %v1937 = vpop.f32.mrb[0].mxu0
      %v1938 = vadd.f32 %v1713, %v1937
      %v1939 = vpop.f32.mrb[0].mxu0
      %v1940 = vpop.f32.mrb[0].mxu0
      %v1941 = vadd.f32 %v1716, %v1940
      %v1942 = vpop.f32.mrb[0].mxu0
      %1943 = vmatprep.mubr.bf16.mxu0 0
      %1944 = vmatmul.mubr.bf16.gmra.mrb[0].mxu0 %v1519
      %v1945 = vpop.f32.mrb[0].mxu0
      %v1946 = vadd.f32 %v1721, %v1945
      %v1947 = vpop.f32.mrb[0].mxu0
      %v1948 = vpop.f32.mrb[0].mxu0
      %v1949 = vadd.f32 %v1724, %v1948
      %v1950 = vpop.f32.mrb[0].mxu0
      %1951 = vmatprep.mubr.bf16.mxu0 0
      %1952 = vmatmul.mubr.bf16.gmra.mrb[0].mxu0 %v1520
      %v1953 = vpop.f32.mrb[0].mxu0
      %v1954 = vadd.f32 %v1729, %v1953
      %v1955 = vpop.f32.mrb[0].mxu0
      %v1956 = vpop.f32.mrb[0].mxu0
      %v1957 = vadd.f32 %v1732, %v1956
      %v1958 = vpop.f32.mrb[0].mxu0
      %1959 = vmatprep.mubr.bf16.mxu0 0
      %1960 = vmatmul.mubr.bf16.gmra.mrb[0].mxu0 %v1521
      %v1961 = vpop.f32.mrb[0].mxu0
      %v1962 = vadd.f32 %v1737, %v1961
      %v1963 = vpop.f32.mrb[0].mxu0
      %v1964 = vpop.f32.mrb[0].mxu0
      %v1965 = vadd.f32 %v1740, %v1964
      %v1966 = vpop.f32.mrb[0].mxu0
      %1967 = vmatprep.mubr.bf16.mxu0 0
      %1968 = vmatmul.mubr.bf16.gmra.mrb[0].mxu0 %v1522
      %v1969 = vpop.f32.mrb[0].mxu0
      %v1970 = vadd.f32 %v1745, %v1969
      %v1971 = vpop.f32.mrb[0].mxu0
      %v1972 = vpop.f32.mrb[0].mxu0
      %v1973 = vadd.f32 %v1748, %v1972
      %v1974 = vpop.f32.mrb[0].mxu0
      %1975 = vmatprep.mubr.bf16.mxu0 0
      %1976 = vmatmul.mubr.bf16.gmra.mrb[0].mxu0 %v1523
      %v1977 = vpop.f32.mrb[0].mxu0
      %v1978 = vadd.f32 %v1753, %v1977
      %v1979 = vpop.f32.mrb[0].mxu0
      %v1980 = vpop.f32.mrb[0].mxu0
      %v1981 = vadd.f32 %v1756, %v1980
      %v1982 = vpop.f32.mrb[0].mxu0
      %1983 = vmatprep.mubr.bf16.mxu0 0
      %1984 = vmatmul.mubr.bf16.gmra.mrb[0].mxu0 %v1524
      %v1985 = vpop.f32.mrb[0].mxu0
      %v1986 = vadd.f32 %v1761, %v1985
      %v1987 = vpop.f32.mrb[0].mxu0
      %v1988 = vpop.f32.mrb[0].mxu0
      %v1989 = vadd.f32 %v1764, %v1988
      %v1990 = vpop.f32.mrb[0].mxu0
      %1991 = vmatprep.mubr.bf16.mxu0 0
      %1992 = vmatmul.mubr.bf16.gmra.mrb[0].mxu0 %v1525
      %v1993 = vpop.f32.mrb[0].mxu0
      %v1994 = vadd.f32 %v1769, %v1993
      %v1995 = vpop.f32.mrb[0].mxu0
      %v1996 = vpop.f32.mrb[0].mxu0
      %v1997 = vadd.f32 %v1772, %v1996
      %v1998 = vpop.f32.mrb[0].mxu0
      %1999 = vmatprep.mubr.bf16.mxu0 0
      %2000 = vmatmul.mubr.bf16.gmra.mrb[0].mxu0 %v1526
      %v2001 = vpop.f32.mrb[0].mxu0
      %v2002 = vadd.f32 %v1777, %v2001
      %v2003 = vpop.f32.mrb[0].mxu0
      %v2004 = vpop.f32.mrb[0].mxu0
      %v2005 = vadd.f32 %v1780, %v2004
      %v2006 = vpop.f32.mrb[0].mxu0
      %2007 = vmatprep.mubr.bf16.mxu0 0
      %2008 = vmatmul.mubr.bf16.gmra.mrb[0].mxu0 %v1527
      %v2009 = vpop.f32.mrb[0].mxu0
      %v2010 = vadd.f32 %v1785, %v2009
      %v2011 = vpop.f32.mrb[0].mxu0
      %v2012 = vpop.f32.mrb[0].mxu0
      %v2013 = vadd.f32 %v1788, %v2012
      %v2014 = vpop.f32.mrb[0].mxu0
      %2015 = vmatprep.mubr.bf16.mxu0 0
      %2016 = vmatmul.mubr.bf16.gmra.mrb[0].mxu0 %v1528
      %v2017 = vpop.f32.mrb[0].mxu0
      %v2018 = vadd.f32 %v1793, %v2017
      %v2019 = vpop.f32.mrb[0].mxu0
      %v2020 = vpop.f32.mrb[0].mxu0
      %v2021 = vadd.f32 %v1796, %v2020
      %v2022 = vpop.f32.mrb[0].mxu0
      %2023 = vmatprep.mubr.bf16.mxu0 0
      %2024 = vmatmul.mubr.bf16.gmra.mrb[0].mxu0 %v1529
      %v2025 = vpop.f32.mrb[0].mxu0
      %v2026 = vadd.f32 %v1801, %v2025
      %v2027 = vpop.f32.mrb[0].mxu0
      %v2028 = vpop.f32.mrb[0].mxu0
      %v2029 = vadd.f32 %v1804, %v2028
      %v2030 = vpop.f32.mrb[0].mxu0
      %2031 = vmatprep.mubr.bf16.mxu0 0
      %2032 = vmatmul.mubr.bf16.gmra.mrb[0].mxu0 %v1530
      %v2033 = vpop.f32.mrb[0].mxu0
      %v2034 = vadd.f32 %v1809, %v2033
      %v2035 = vpop.f32.mrb[0].mxu0
      %v2036 = vpop.f32.mrb[0].mxu0
      %v2037 = vadd.f32 %v1812, %v2036
      %v2038 = vpop.f32.mrb[0].mxu0
      %2039 = vmatprep.mubr.bf16.mxu0 0
      %2040 = vmatmul.mubr.bf16.gmra.mrb[0].mxu0 %v1531
      %v2041 = vpop.f32.mrb[0].mxu0
      %v2042 = vadd.f32 %v1817, %v2041
      %v2043 = vpop.f32.mrb[0].mxu0
      %v2044 = vpop.f32.mrb[0].mxu0
      %v2045 = vadd.f32 %v1820, %v2044
      %v2046 = vpop.f32.mrb[0].mxu0
      %2047 = vmatprep.mubr.bf16.mxu0 0
      %2048 = vmatmul.mubr.bf16.gmra.mrb[0].mxu0 %v1532
      %v2049 = vpop.f32.mrb[0].mxu0
      %v2050 = vadd.f32 %v1825, %v2049
      %v2051 = vpop.f32.mrb[0].mxu0
      %v2052 = vpop.f32.mrb[0].mxu0
      %v2053 = vadd.f32 %v1828, %v2052
      %v2054 = vpop.f32.mrb[0].mxu0
      %2055 = vmatprep.mubr.bf16.mxu0 0
      %2056 = vmatmul.mubr.bf16.gmra.mrb[0].mxu0 %v1533
      %v2057 = vpop.f32.mrb[0].mxu0
      %v2058 = vadd.f32 %v1833, %v2057
      %v2059 = vpop.f32.mrb[0].mxu0
      %v2060 = vpop.f32.mrb[0].mxu0
      %v2061 = vadd.f32 %v1836, %v2060
      %v2062 = vpop.f32.mrb[0].mxu0
      %2063 = vmatprep.mubr.bf16.mxu0 0
      %2064 = vmatmul.mubr.bf16.gmra.mrb[0].mxu0 %v1534
      %v2065 = vpop.f32.mrb[0].mxu0
      %v2066 = vadd.f32 %v1841, %v2065
      %v2067 = vpop.f32.mrb[0].mxu0
      %v2068 = vpop.f32.mrb[0].mxu0
      %v2069 = vadd.f32 %v1844, %v2068
      %v2070 = vpop.f32.mrb[0].mxu0
      %2071 = vdwg.mxu0
      %v2072 = vld [vmem:[#allocation2 + $0x2] sm:$0xff]
      %v2073 = vld [vmem:[#allocation2 + $0xa] sm:$0xff]
      %v2074 = vld [vmem:[#allocation2 + $0x12] sm:$0xff]
      %v2075 = vld [vmem:[#allocation2 + $0x1a] sm:$0xff]
      %v2076 = vld [vmem:[#allocation2 + $0x22] sm:$0xff]
      %v2077 = vld [vmem:[#allocation2 + $0x2a] sm:$0xff]
      %v2078 = vld [vmem:[#allocation2 + $0x32] sm:$0xff]
      %v2079 = vld [vmem:[#allocation2 + $0x3a] sm:$0xff]
      %v2080 = vld [vmem:[#allocation2 + $0x42] sm:$0xff]
      %v2081 = vld [vmem:[#allocation2 + $0x4a] sm:$0xff]
      %v2082 = vld [vmem:[#allocation2 + $0x52] sm:$0xff]
      %v2083 = vld [vmem:[#allocation2 + $0x5a] sm:$0xff]
      %v2084 = vld [vmem:[#allocation2 + $0x62] sm:$0xff]
      %v2085 = vld [vmem:[#allocation2 + $0x6a] sm:$0xff]
      %v2086 = vld [vmem:[#allocation2 + $0x72] sm:$0xff]
      %v2087 = vld [vmem:[#allocation2 + $0x7a] sm:$0xff]
      %v2088 = vld [vmem:[#allocation2 + $0x82] sm:$0xff]
      %v2089 = vld [vmem:[#allocation2 + $0x8a] sm:$0xff]
      %v2090 = vld [vmem:[#allocation2 + $0x92] sm:$0xff]
      %v2091 = vld [vmem:[#allocation2 + $0x9a] sm:$0xff]
      %v2092 = vld [vmem:[#allocation2 + $0xa2] sm:$0xff]
      %v2093 = vld [vmem:[#allocation2 + $0xaa] sm:$0xff]
      %v2094 = vld [vmem:[#allocation2 + $0xb2] sm:$0xff]
      %v2095 = vld [vmem:[#allocation2 + $0xba] sm:$0xff]
      %v2096 = vld [vmem:[#allocation2 + $0xc2] sm:$0xff]
      %v2097 = vld [vmem:[#allocation2 + $0xca] sm:$0xff]
      %v2098 = vld [vmem:[#allocation2 + $0xd2] sm:$0xff]
      %v2099 = vld [vmem:[#allocation2 + $0xda] sm:$0xff]
      %v2100 = vld [vmem:[#allocation2 + $0xe2] sm:$0xff]
      %v2101 = vld [vmem:[#allocation2 + $0xea] sm:$0xff]
      %v2102 = vld [vmem:[#allocation2 + $0xf2] sm:$0xff]
      %v2103 = vld [vmem:[#allocation2 + $0xfa] sm:$0xff]
      %v2104 = vld [vmem:[#allocation2 + $0x102] sm:$0xff]
      %v2105 = vld [vmem:[#allocation2 + $0x10a] sm:$0xff]
      %v2106 = vld [vmem:[#allocation2 + $0x112] sm:$0xff]
      %v2107 = vld [vmem:[#allocation2 + $0x11a] sm:$0xff]
      %v2108 = vpack.c.bf16 %v2073, %v2072
      %v2109 = vpack.c.bf16 %v2075, %v2074
      %v2110 = vpack.c.bf16 %v2077, %v2076
      %v2111 = vpack.c.bf16 %v2079, %v2078
      %v2112 = vpack.c.bf16 %v2081, %v2080
      %v2113 = vpack.c.bf16 %v2083, %v2082
      %v2114 = vpack.c.bf16 %v2085, %v2084
      %v2115 = vpack.c.bf16 %v2087, %v2086
      %v2116 = vpack.c.bf16 %v2089, %v2088
      %v2117 = vpack.c.bf16 %v2091, %v2090
      %v2118 = vpack.c.bf16 %v2093, %v2092
      %v2119 = vpack.c.bf16 %v2095, %v2094
      %v2120 = vpack.c.bf16 %v2097, %v2096
      %v2121 = vpack.c.bf16 %v2099, %v2098
      %v2122 = vpack.c.bf16 %v2101, %v2100
      %v2123 = vpack.c.bf16 %v2103, %v2102
      %v2124 = vpack.c.bf16 %v2105, %v2104
      %v2125 = vpack.c.bf16 %v2107, %v2106
      %s2126 = scalar_lea.vmem %s3, 128
      %v2127 = vld [vmem:[%s2126] sm:$0xf]
      %v2128 = vld [vmem:[%s2126 + $0x4] sm:$0xf]
      %v2129 = vld [vmem:[%s2126 + $0x8] sm:$0xf]
      %v2130 = vld [vmem:[%s2126 + $0xc] sm:$0xf]
      %v2131 = vld [vmem:[%s2126 + $0x10] sm:$0xf]
      %v2132 = vld [vmem:[%s2126 + $0x14] sm:$0xf]
      %v2133 = vld [vmem:[%s2126 + $0x18] sm:$0xf]
      %v2134 = vld [vmem:[%s2126 + $0x1c] sm:$0xf]
      %v2135 = vld [vmem:[%s2126 + $0x20] sm:$0xf]
      %v2136 = vld [vmem:[%s2126 + $0x24] sm:$0xf]
      %v2137 = vld [vmem:[%s2126 + $0x28] sm:$0xf]
      %v2138 = vld [vmem:[%s2126 + $0x2c] sm:$0xf]
      %v2139 = vld [vmem:[%s2126 + $0x30] sm:$0xf]
      %v2140 = vld [vmem:[%s2126 + $0x34] sm:$0xf]
      %v2141 = vld [vmem:[%s2126 + $0x38] sm:$0xf]
      %v2142 = vld [vmem:[%s2126 + $0x3c] sm:$0xf]
      %v2159 = vunpack.c.l.b16 %v2127
      %v2160 = vunpack.c.l.b16 %v2128
      %v2161 = vunpack.c.l.b16 %v2129
      %v2162 = vunpack.c.l.b16 %v2130
      %v2163 = vunpack.c.l.b16 %v2131
      %v2164 = vunpack.c.l.b16 %v2132
      %v2165 = vunpack.c.l.b16 %v2133
      %v2166 = vunpack.c.l.b16 %v2134
      %v2167 = vunpack.c.l.b16 %v2135
      %v2168 = vunpack.c.l.b16 %v2136
      %v2169 = vunpack.c.l.b16 %v2137
      %v2170 = vunpack.c.l.b16 %v2138
      %v2171 = vunpack.c.l.b16 %v2139
      %v2172 = vunpack.c.l.b16 %v2140
      %v2173 = vunpack.c.l.b16 %v2141
      %v2174 = vunpack.c.l.b16 %v2142
      %v2175 = vpack.c.b16 %v2160, %v2159
      %v2176 = vpack.c.b16 %v2162, %v2161
      %v2177 = vpack.c.b16 %v2164, %v2163
      %v2178 = vpack.c.b16 %v2166, %v2165
      %v2179 = vpack.c.b16 %v2168, %v2167
      %v2180 = vpack.c.b16 %v2170, %v2169
      %v2181 = vpack.c.b16 %v2172, %v2171
      %v2182 = vpack.c.b16 %v2174, %v2173
      %2191 = vmatprep.subr.bf16.mxu0 0
      %2192 = vmatpush1.bf16.msra.mxu0 %v2175
      %2193 = vmatprep.subr.bf16.mxu0 0
      %2194 = vmatpush1.bf16.msra.mxu0 %v2176
      %2195 = vmatprep.subr.bf16.mxu0 0
      %2196 = vmatpush1.bf16.msra.mxu0 %v2177
      %2197 = vmatprep.subr.bf16.mxu0 0
      %2198 = vmatpush1.bf16.msra.mxu0 %v2178
      %2199 = vmatprep.subr.bf16.mxu0 0
      %2200 = vmatpush1.bf16.msra.mxu0 %v2179
      %2201 = vmatprep.subr.bf16.mxu0 0
      %2202 = vmatpush1.bf16.msra.mxu0 %v2180
      %2203 = vmatprep.subr.bf16.mxu0 0
      %2204 = vmatpush1.bf16.msra.mxu0 %v2181
      %2205 = vmatprep.subr.bf16.mxu0 0
      %2206 = vmatpush1.bf16.msra.mxu0 %v2182
      %2207 = vmatprep.subr.bf16.mxu0 0
      %2208 = vmatpush1.bf16.msra.mxu0 0
      %2209 = vmatprep.subr.bf16.mxu0 0
      %2210 = vmatpush1.bf16.msra.mxu0 0
      %2211 = vmatprep.subr.bf16.mxu0 0
      %2212 = vmatpush1.bf16.msra.mxu0 0
      %2213 = vmatprep.subr.bf16.mxu0 0
      %2214 = vmatpush1.bf16.msra.mxu0 0
      %2215 = vmatprep.subr.bf16.mxu0 0
      %2216 = vmatpush1.bf16.msra.mxu0 0
      %2217 = vmatprep.subr.bf16.mxu0 0
      %2218 = vmatpush1.bf16.msra.mxu0 0
      %2219 = vmatprep.subr.bf16.mxu0 0
      %2220 = vmatpush1.bf16.msra.mxu0 0
      %2221 = vmatprep.subr.bf16.mxu0 0
      %2222 = vmatpush1.bf16.msra.mxu0 0
      %2223 = vmatprep.mubr.bf16.mxu0 0
      %2224 = vmatmul.mubr.bf16.gmra.mrb[0].mxu0 %v2108
      %v2225 = vpop.f32.mrb[0].mxu0
      %v2226 = vadd.f32 0.0, %v2225
      %v2227 = vpop.f32.mrb[0].mxu0
      %v2228 = vpop.f32.mrb[0].mxu0
      %v2229 = vadd.f32 0.0, %v2228
      %v2230 = vpop.f32.mrb[0].mxu0
      %2231 = vmatprep.mubr.bf16.mxu0 0
      %2232 = vmatmul.mubr.bf16.gmra.mrb[0].mxu0 %v2109
      %v2233 = vpop.f32.mrb[0].mxu0
      %v2234 = vadd.f32 0.0, %v2233
      %v2235 = vpop.f32.mrb[0].mxu0
      %v2236 = vpop.f32.mrb[0].mxu0
      %v2237 = vadd.f32 0.0, %v2236
      %v2238 = vpop.f32.mrb[0].mxu0
      %2239 = vmatprep.mubr.bf16.mxu0 0
      %2240 = vmatmul.mubr.bf16.gmra.mrb[0].mxu0 %v2110
      %v2241 = vpop.f32.mrb[0].mxu0
      %v2242 = vadd.f32 0.0, %v2241
      %v2243 = vpop.f32.mrb[0].mxu0
      %v2244 = vpop.f32.mrb[0].mxu0
      %v2245 = vadd.f32 0.0, %v2244
      %v2246 = vpop.f32.mrb[0].mxu0
      %2247 = vmatprep.mubr.bf16.mxu0 0
      %2248 = vmatmul.mubr.bf16.gmra.mrb[0].mxu0 %v2111
      %v2249 = vpop.f32.mrb[0].mxu0
      %v2250 = vadd.f32 0.0, %v2249
      %v2251 = vpop.f32.mrb[0].mxu0
      %v2252 = vpop.f32.mrb[0].mxu0
      %v2253 = vadd.f32 0.0, %v2252
      %v2254 = vpop.f32.mrb[0].mxu0
      %2255 = vmatprep.mubr.bf16.mxu0 0
      %2256 = vmatmul.mubr.bf16.gmra.mrb[0].mxu0 %v2112
      %v2257 = vpop.f32.mrb[0].mxu0
      %v2258 = vadd.f32 0.0, %v2257
      %v2259 = vpop.f32.mrb[0].mxu0
      %v2260 = vpop.f32.mrb[0].mxu0
      %v2261 = vadd.f32 0.0, %v2260
      %v2262 = vpop.f32.mrb[0].mxu0
      %2263 = vmatprep.mubr.bf16.mxu0 0
      %2264 = vmatmul.mubr.bf16.gmra.mrb[0].mxu0 %v2113
      %v2265 = vpop.f32.mrb[0].mxu0
      %v2266 = vadd.f32 0.0, %v2265
      %v2267 = vpop.f32.mrb[0].mxu0
      %v2268 = vpop.f32.mrb[0].mxu0
      %v2269 = vadd.f32 0.0, %v2268
      %v2270 = vpop.f32.mrb[0].mxu0
      %2271 = vmatprep.mubr.bf16.mxu0 0
      %2272 = vmatmul.mubr.bf16.gmra.mrb[0].mxu0 %v2114
      %v2273 = vpop.f32.mrb[0].mxu0
      %v2274 = vadd.f32 0.0, %v2273
      %v2275 = vpop.f32.mrb[0].mxu0
      %v2276 = vpop.f32.mrb[0].mxu0
      %v2277 = vadd.f32 0.0, %v2276
      %v2278 = vpop.f32.mrb[0].mxu0
      %2279 = vmatprep.mubr.bf16.mxu0 0
      %2280 = vmatmul.mubr.bf16.gmra.mrb[0].mxu0 %v2115
      %v2281 = vpop.f32.mrb[0].mxu0
      %v2282 = vadd.f32 0.0, %v2281
      %v2283 = vpop.f32.mrb[0].mxu0
      %v2284 = vpop.f32.mrb[0].mxu0
      %v2285 = vadd.f32 0.0, %v2284
      %v2286 = vpop.f32.mrb[0].mxu0
      %2287 = vmatprep.mubr.bf16.mxu0 0
      %2288 = vmatmul.mubr.bf16.gmra.mrb[0].mxu0 %v2116
      %v2289 = vpop.f32.mrb[0].mxu0
      %v2290 = vadd.f32 0.0, %v2289
      %v2291 = vpop.f32.mrb[0].mxu0
      %v2292 = vpop.f32.mrb[0].mxu0
      %v2293 = vadd.f32 0.0, %v2292
      %v2294 = vpop.f32.mrb[0].mxu0
      %2295 = vmatprep.mubr.bf16.mxu0 0
      %2296 = vmatmul.mubr.bf16.gmra.mrb[0].mxu0 %v2117
      %v2297 = vpop.f32.mrb[0].mxu0
      %v2298 = vadd.f32 0.0, %v2297
      %v2299 = vpop.f32.mrb[0].mxu0
      %v2300 = vpop.f32.mrb[0].mxu0
      %v2301 = vadd.f32 0.0, %v2300
      %v2302 = vpop.f32.mrb[0].mxu0
      %2303 = vmatprep.mubr.bf16.mxu0 0
      %2304 = vmatmul.mubr.bf16.gmra.mrb[0].mxu0 %v2118
      %v2305 = vpop.f32.mrb[0].mxu0
      %v2306 = vadd.f32 0.0, %v2305
      %v2307 = vpop.f32.mrb[0].mxu0
      %v2308 = vpop.f32.mrb[0].mxu0
      %v2309 = vadd.f32 0.0, %v2308
      %v2310 = vpop.f32.mrb[0].mxu0
      %2311 = vmatprep.mubr.bf16.mxu0 0
      %2312 = vmatmul.mubr.bf16.gmra.mrb[0].mxu0 %v2119
      %v2313 = vpop.f32.mrb[0].mxu0
      %v2314 = vadd.f32 0.0, %v2313
      %v2315 = vpop.f32.mrb[0].mxu0
      %v2316 = vpop.f32.mrb[0].mxu0
      %v2317 = vadd.f32 0.0, %v2316
      %v2318 = vpop.f32.mrb[0].mxu0
      %2319 = vmatprep.mubr.bf16.mxu0 0
      %2320 = vmatmul.mubr.bf16.gmra.mrb[0].mxu0 %v2120
      %v2321 = vpop.f32.mrb[0].mxu0
      %v2322 = vadd.f32 0.0, %v2321
      %v2323 = vpop.f32.mrb[0].mxu0
      %v2324 = vpop.f32.mrb[0].mxu0
      %v2325 = vadd.f32 0.0, %v2324
      %v2326 = vpop.f32.mrb[0].mxu0
      %2327 = vmatprep.mubr.bf16.mxu0 0
      %2328 = vmatmul.mubr.bf16.gmra.mrb[0].mxu0 %v2121
      %v2329 = vpop.f32.mrb[0].mxu0
      %v2330 = vadd.f32 0.0, %v2329
      %v2331 = vpop.f32.mrb[0].mxu0
      %v2332 = vpop.f32.mrb[0].mxu0
      %v2333 = vadd.f32 0.0, %v2332
      %v2334 = vpop.f32.mrb[0].mxu0
      %2335 = vmatprep.mubr.bf16.mxu0 0
      %2336 = vmatmul.mubr.bf16.gmra.mrb[0].mxu0 %v2122
      %v2337 = vpop.f32.mrb[0].mxu0
      %v2338 = vadd.f32 0.0, %v2337
      %v2339 = vpop.f32.mrb[0].mxu0
      %v2340 = vpop.f32.mrb[0].mxu0
      %v2341 = vadd.f32 0.0, %v2340
      %v2342 = vpop.f32.mrb[0].mxu0
      %2343 = vmatprep.mubr.bf16.mxu0 0
      %2344 = vmatmul.mubr.bf16.gmra.mrb[0].mxu0 %v2123
      %v2345 = vpop.f32.mrb[0].mxu0
      %v2346 = vadd.f32 0.0, %v2345
      %v2347 = vpop.f32.mrb[0].mxu0
      %v2348 = vpop.f32.mrb[0].mxu0
      %v2349 = vadd.f32 0.0, %v2348
      %v2350 = vpop.f32.mrb[0].mxu0
      %2351 = vmatprep.mubr.bf16.mxu0 0
      %2352 = vmatmul.mubr.bf16.gmra.mrb[0].mxu0 %v2124
      %v2353 = vpop.f32.mrb[0].mxu0
      %v2354 = vadd.f32 0.0, %v2353
      %v2355 = vpop.f32.mrb[0].mxu0
      %v2356 = vpop.f32.mrb[0].mxu0
      %v2357 = vadd.f32 0.0, %v2356
      %v2358 = vpop.f32.mrb[0].mxu0
      %2359 = vmatprep.mubr.bf16.mxu0 0
      %2360 = vmatmul.mubr.bf16.gmra.mrb[0].mxu0 %v2125
      %v2361 = vpop.f32.mrb[0].mxu0
      %v2362 = vadd.f32 0.0, %v2361
      %v2363 = vpop.f32.mrb[0].mxu0
      %v2364 = vpop.f32.mrb[0].mxu0
      %v2365 = vadd.f32 0.0, %v2364
      %v2366 = vpop.f32.mrb[0].mxu0
      %2367 = vdwg.mxu0
      %v2368 = vadd.f32 %v1930, %v2226
      %v2369 = vadd.f32 %v1933, %v2229
      %v2370 = vadd.f32 %v1938, %v2234
      %v2371 = vadd.f32 %v1941, %v2237
      %v2372 = vadd.f32 %v1946, %v2242
      %v2373 = vadd.f32 %v1949, %v2245
      %v2374 = vadd.f32 %v1954, %v2250
      %v2375 = vadd.f32 %v1957, %v2253
      %v2376 = vadd.f32 %v1962, %v2258
      %v2377 = vadd.f32 %v1965, %v2261
      %v2378 = vadd.f32 %v1970, %v2266
      %v2379 = vadd.f32 %v1973, %v2269
      %v2380 = vadd.f32 %v1978, %v2274
      %v2381 = vadd.f32 %v1981, %v2277
      %v2382 = vadd.f32 %v1986, %v2282
      %v2383 = vadd.f32 %v1989, %v2285
      %v2384 = vadd.f32 %v1994, %v2290
      %v2385 = vadd.f32 %v1997, %v2293
      %v2386 = vadd.f32 %v2002, %v2298
      %v2387 = vadd.f32 %v2005, %v2301
      %v2388 = vadd.f32 %v2010, %v2306
      %v2389 = vadd.f32 %v2013, %v2309
      %v2390 = vadd.f32 %v2018, %v2314
      %v2391 = vadd.f32 %v2021, %v2317
      %v2392 = vadd.f32 %v2026, %v2322
      %v2393 = vadd.f32 %v2029, %v2325
      %v2394 = vadd.f32 %v2034, %v2330
      %v2395 = vadd.f32 %v2037, %v2333
      %v2396 = vadd.f32 %v2042, %v2338
      %v2397 = vadd.f32 %v2045, %v2341
      %v2398 = vadd.f32 %v2050, %v2346
      %v2399 = vadd.f32 %v2053, %v2349
      %v2400 = vadd.f32 %v2058, %v2354
      %v2401 = vadd.f32 %v2061, %v2357
      %v2402 = vadd.f32 %v2066, %v2362
      %v2403 = vadd.f32 %v2069, %v2365
      %v2404 = vld [vmem:[#allocation2 + $0x12] sm:$0xff]
      %v2405 = vld [vmem:[#allocation2 + $0x1a] sm:$0xff]
      %v2406 = vld [vmem:[#allocation2 + $0x22] sm:$0xff]
      %v2407 = vld [vmem:[#allocation2 + $0x2a] sm:$0xff]
      %v2408 = vld [vmem:[#allocation2 + $0x32] sm:$0xff]
      %v2409 = vld [vmem:[#allocation2 + $0x3a] sm:$0xff]
      %v2410 = vld [vmem:[#allocation2 + $0x42] sm:$0xff]
      %v2411 = vld [vmem:[#allocation2 + $0x4a] sm:$0xff]
      %v2412 = vld [vmem:[#allocation2 + $0x52] sm:$0xff]
      %v2413 = vld [vmem:[#allocation2 + $0x5a] sm:$0xff]
      %v2414 = vld [vmem:[#allocation2 + $0x62] sm:$0xff]
      %v2415 = vld [vmem:[#allocation2 + $0x6a] sm:$0xff]
      %v2416 = vld [vmem:[#allocation2 + $0x72] sm:$0xff]
      %v2417 = vld [vmem:[#allocation2 + $0x7a] sm:$0xff]
      %v2418 = vld [vmem:[#allocation2 + $0x82] sm:$0xff]
      %v2419 = vld [vmem:[#allocation2 + $0x8a] sm:$0xff]
      %v2420 = vld [vmem:[#allocation2 + $0x92] sm:$0xff]
      %v2421 = vld [vmem:[#allocation2 + $0x9a] sm:$0xff]
      %v2422 = vld [vmem:[#allocation2 + $0xa2] sm:$0xff]
      %v2423 = vld [vmem:[#allocation2 + $0xaa] sm:$0xff]
      %v2424 = vld [vmem:[#allocation2 + $0xb2] sm:$0xff]
      %v2425 = vld [vmem:[#allocation2 + $0xba] sm:$0xff]
      %v2426 = vld [vmem:[#allocation2 + $0xc2] sm:$0xff]
      %v2427 = vld [vmem:[#allocation2 + $0xca] sm:$0xff]
      %v2428 = vld [vmem:[#allocation2 + $0xd2] sm:$0xff]
      %v2429 = vld [vmem:[#allocation2 + $0xda] sm:$0xff]
      %v2430 = vld [vmem:[#allocation2 + $0xe2] sm:$0xff]
      %v2431 = vld [vmem:[#allocation2 + $0xea] sm:$0xff]
      %v2432 = vld [vmem:[#allocation2 + $0xf2] sm:$0xff]
      %v2433 = vld [vmem:[#allocation2 + $0xfa] sm:$0xff]
      %v2434 = vld [vmem:[#allocation2 + $0x102] sm:$0xff]
      %v2435 = vld [vmem:[#allocation2 + $0x10a] sm:$0xff]
      %v2436 = vld [vmem:[#allocation2 + $0x112] sm:$0xff]
      %v2437 = vld [vmem:[#allocation2 + $0x11a] sm:$0xff]
      %v2438 = vld [vmem:[#allocation2 + $0x122] sm:$0xff]
      %v2439 = vld [vmem:[#allocation2 + $0x12a] sm:$0xff]
      %v2440 = vpack.c.bf16 %v2405, %v2404
      %v2441 = vpack.c.bf16 %v2407, %v2406
      %v2442 = vpack.c.bf16 %v2409, %v2408
      %v2443 = vpack.c.bf16 %v2411, %v2410
      %v2444 = vpack.c.bf16 %v2413, %v2412
      %v2445 = vpack.c.bf16 %v2415, %v2414
      %v2446 = vpack.c.bf16 %v2417, %v2416
      %v2447 = vpack.c.bf16 %v2419, %v2418
      %v2448 = vpack.c.bf16 %v2421, %v2420
      %v2449 = vpack.c.bf16 %v2423, %v2422
      %v2450 = vpack.c.bf16 %v2425, %v2424
      %v2451 = vpack.c.bf16 %v2427, %v2426
      %v2452 = vpack.c.bf16 %v2429, %v2428
      %v2453 = vpack.c.bf16 %v2431, %v2430
      %v2454 = vpack.c.bf16 %v2433, %v2432
      %v2455 = vpack.c.bf16 %v2435, %v2434
      %v2456 = vpack.c.bf16 %v2437, %v2436
      %v2457 = vpack.c.bf16 %v2439, %v2438
      %s2458 = scalar_lea.vmem %s3, 192
      %v2459 = vld [vmem:[%s2458] sm:$0xf]
      %v2460 = vld [vmem:[%s2458 + $0x4] sm:$0xf]
      %v2461 = vld [vmem:[%s2458 + $0x8] sm:$0xf]
      %v2462 = vld [vmem:[%s2458 + $0xc] sm:$0xf]
      %v2463 = vld [vmem:[%s2458 + $0x10] sm:$0xf]
      %v2464 = vld [vmem:[%s2458 + $0x14] sm:$0xf]
      %v2465 = vld [vmem:[%s2458 + $0x18] sm:$0xf]
      %v2466 = vld [vmem:[%s2458 + $0x1c] sm:$0xf]
      %v2467 = vld [vmem:[%s2458 + $0x20] sm:$0xf]
      %v2468 = vld [vmem:[%s2458 + $0x24] sm:$0xf]
      %v2469 = vld [vmem:[%s2458 + $0x28] sm:$0xf]
      %v2470 = vld [vmem:[%s2458 + $0x2c] sm:$0xf]
      %v2471 = vld [vmem:[%s2458 + $0x30] sm:$0xf]
      %v2472 = vld [vmem:[%s2458 + $0x34] sm:$0xf]
      %v2473 = vld [vmem:[%s2458 + $0x38] sm:$0xf]
      %v2474 = vld [vmem:[%s2458 + $0x3c] sm:$0xf]
      %v2491 = vunpack.c.l.b16 %v2459
      %v2492 = vunpack.c.l.b16 %v2460
      %v2493 = vunpack.c.l.b16 %v2461
      %v2494 = vunpack.c.l.b16 %v2462
      %v2495 = vunpack.c.l.b16 %v2463
      %v2496 = vunpack.c.l.b16 %v2464
      %v2497 = vunpack.c.l.b16 %v2465
      %v2498 = vunpack.c.l.b16 %v2466
      %v2499 = vunpack.c.l.b16 %v2467
      %v2500 = vunpack.c.l.b16 %v2468
      %v2501 = vunpack.c.l.b16 %v2469
      %v2502 = vunpack.c.l.b16 %v2470
      %v2503 = vunpack.c.l.b16 %v2471
      %v2504 = vunpack.c.l.b16 %v2472
      %v2505 = vunpack.c.l.b16 %v2473
      %v2506 = vunpack.c.l.b16 %v2474
      %v2507 = vpack.c.b16 %v2492, %v2491
      %v2508 = vpack.c.b16 %v2494, %v2493
      %v2509 = vpack.c.b16 %v2496, %v2495
      %v2510 = vpack.c.b16 %v2498, %v2497
      %v2511 = vpack.c.b16 %v2500, %v2499
      %v2512 = vpack.c.b16 %v2502, %v2501
      %v2513 = vpack.c.b16 %v2504, %v2503
      %v2514 = vpack.c.b16 %v2506, %v2505
      %2523 = vmatprep.subr.bf16.mxu0 0
      %2524 = vmatpush1.bf16.msra.mxu0 %v2507
      %2525 = vmatprep.subr.bf16.mxu0 0
      %2526 = vmatpush1.bf16.msra.mxu0 %v2508
      %2527 = vmatprep.subr.bf16.mxu0 0
      %2528 = vmatpush1.bf16.msra.mxu0 %v2509
      %2529 = vmatprep.subr.bf16.mxu0 0
      %2530 = vmatpush1.bf16.msra.mxu0 %v2510
      %2531 = vmatprep.subr.bf16.mxu0 0
      %2532 = vmatpush1.bf16.msra.mxu0 %v2511
      %2533 = vmatprep.subr.bf16.mxu0 0
      %2534 = vmatpush1.bf16.msra.mxu0 %v2512
      %2535 = vmatprep.subr.bf16.mxu0 0
      %2536 = vmatpush1.bf16.msra.mxu0 %v2513
      %2537 = vmatprep.subr.bf16.mxu0 0
      %2538 = vmatpush1.bf16.msra.mxu0 %v2514
      %2539 = vmatprep.subr.bf16.mxu0 0
      %2540 = vmatpush1.bf16.msra.mxu0 0
      %2541 = vmatprep.subr.bf16.mxu0 0
      %2542 = vmatpush1.bf16.msra.mxu0 0
      %2543 = vmatprep.subr.bf16.mxu0 0
      %2544 = vmatpush1.bf16.msra.mxu0 0
      %2545 = vmatprep.subr.bf16.mxu0 0
      %2546 = vmatpush1.bf16.msra.mxu0 0
      %2547 = vmatprep.subr.bf16.mxu0 0
      %2548 = vmatpush1.bf16.msra.mxu0 0
      %2549 = vmatprep.subr.bf16.mxu0 0
      %2550 = vmatpush1.bf16.msra.mxu0 0
      %2551 = vmatprep.subr.bf16.mxu0 0
      %2552 = vmatpush1.bf16.msra.mxu0 0
      %2553 = vmatprep.subr.bf16.mxu0 0
      %2554 = vmatpush1.bf16.msra.mxu0 0
      %2555 = vmatprep.mubr.bf16.mxu0 0
      %2556 = vmatmul.mubr.bf16.gmra.mrb[0].mxu0 %v2440
      %v2557 = vpop.f32.mrb[0].mxu0
      %v2558 = vadd.f32 0.0, %v2557
      %v2559 = vpop.f32.mrb[0].mxu0
      %v2560 = vpop.f32.mrb[0].mxu0
      %v2561 = vadd.f32 0.0, %v2560
      %v2562 = vpop.f32.mrb[0].mxu0
      %2563 = vmatprep.mubr.bf16.mxu0 0
      %2564 = vmatmul.mubr.bf16.gmra.mrb[0].mxu0 %v2441
      %v2565 = vpop.f32.mrb[0].mxu0
      %v2566 = vadd.f32 0.0, %v2565
      %v2567 = vpop.f32.mrb[0].mxu0
      %v2568 = vpop.f32.mrb[0].mxu0
      %v2569 = vadd.f32 0.0, %v2568
      %v2570 = vpop.f32.mrb[0].mxu0
      %2571 = vmatprep.mubr.bf16.mxu0 0
      %2572 = vmatmul.mubr.bf16.gmra.mrb[0].mxu0 %v2442
      %v2573 = vpop.f32.mrb[0].mxu0
      %v2574 = vadd.f32 0.0, %v2573
      %v2575 = vpop.f32.mrb[0].mxu0
      %v2576 = vpop.f32.mrb[0].mxu0
      %v2577 = vadd.f32 0.0, %v2576
      %v2578 = vpop.f32.mrb[0].mxu0
      %2579 = vmatprep.mubr.bf16.mxu0 0
      %2580 = vmatmul.mubr.bf16.gmra.mrb[0].mxu0 %v2443
      %v2581 = vpop.f32.mrb[0].mxu0
      %v2582 = vadd.f32 0.0, %v2581
      %v2583 = vpop.f32.mrb[0].mxu0
      %v2584 = vpop.f32.mrb[0].mxu0
      %v2585 = vadd.f32 0.0, %v2584
      %v2586 = vpop.f32.mrb[0].mxu0
      %2587 = vmatprep.mubr.bf16.mxu0 0
      %2588 = vmatmul.mubr.bf16.gmra.mrb[0].mxu0 %v2444
      %v2589 = vpop.f32.mrb[0].mxu0
      %v2590 = vadd.f32 0.0, %v2589
      %v2591 = vpop.f32.mrb[0].mxu0
      %v2592 = vpop.f32.mrb[0].mxu0
      %v2593 = vadd.f32 0.0, %v2592
      %v2594 = vpop.f32.mrb[0].mxu0
      %2595 = vmatprep.mubr.bf16.mxu0 0
      %2596 = vmatmul.mubr.bf16.gmra.mrb[0].mxu0 %v2445
      %v2597 = vpop.f32.mrb[0].mxu0
      %v2598 = vadd.f32 0.0, %v2597
      %v2599 = vpop.f32.mrb[0].mxu0
      %v2600 = vpop.f32.mrb[0].mxu0
      %v2601 = vadd.f32 0.0, %v2600
      %v2602 = vpop.f32.mrb[0].mxu0
      %2603 = vmatprep.mubr.bf16.mxu0 0
      %2604 = vmatmul.mubr.bf16.gmra.mrb[0].mxu0 %v2446
      %v2605 = vpop.f32.mrb[0].mxu0
      %v2606 = vadd.f32 0.0, %v2605
      %v2607 = vpop.f32.mrb[0].mxu0
      %v2608 = vpop.f32.mrb[0].mxu0
      %v2609 = vadd.f32 0.0, %v2608
      %v2610 = vpop.f32.mrb[0].mxu0
      %2611 = vmatprep.mubr.bf16.mxu0 0
      %2612 = vmatmul.mubr.bf16.gmra.mrb[0].mxu0 %v2447
      %v2613 = vpop.f32.mrb[0].mxu0
      %v2614 = vadd.f32 0.0, %v2613
      %v2615 = vpop.f32.mrb[0].mxu0
      %v2616 = vpop.f32.mrb[0].mxu0
      %v2617 = vadd.f32 0.0, %v2616
      %v2618 = vpop.f32.mrb[0].mxu0
      %2619 = vmatprep.mubr.bf16.mxu0 0
      %2620 = vmatmul.mubr.bf16.gmra.mrb[0].mxu0 %v2448
      %v2621 = vpop.f32.mrb[0].mxu0
      %v2622 = vadd.f32 0.0, %v2621
      %v2623 = vpop.f32.mrb[0].mxu0
      %v2624 = vpop.f32.mrb[0].mxu0
      %v2625 = vadd.f32 0.0, %v2624
      %v2626 = vpop.f32.mrb[0].mxu0
      %2627 = vmatprep.mubr.bf16.mxu0 0
      %2628 = vmatmul.mubr.bf16.gmra.mrb[0].mxu0 %v2449
      %v2629 = vpop.f32.mrb[0].mxu0
      %v2630 = vadd.f32 0.0, %v2629
      %v2631 = vpop.f32.mrb[0].mxu0
      %v2632 = vpop.f32.mrb[0].mxu0
      %v2633 = vadd.f32 0.0, %v2632
      %v2634 = vpop.f32.mrb[0].mxu0
      %2635 = vmatprep.mubr.bf16.mxu0 0
      %2636 = vmatmul.mubr.bf16.gmra.mrb[0].mxu0 %v2450
      %v2637 = vpop.f32.mrb[0].mxu0
      %v2638 = vadd.f32 0.0, %v2637
      %v2639 = vpop.f32.mrb[0].mxu0
      %v2640 = vpop.f32.mrb[0].mxu0
      %v2641 = vadd.f32 0.0, %v2640
      %v2642 = vpop.f32.mrb[0].mxu0
      %2643 = vmatprep.mubr.bf16.mxu0 0
      %2644 = vmatmul.mubr.bf16.gmra.mrb[0].mxu0 %v2451
      %v2645 = vpop.f32.mrb[0].mxu0
      %v2646 = vadd.f32 0.0, %v2645
      %v2647 = vpop.f32.mrb[0].mxu0
      %v2648 = vpop.f32.mrb[0].mxu0
      %v2649 = vadd.f32 0.0, %v2648
      %v2650 = vpop.f32.mrb[0].mxu0
      %2651 = vmatprep.mubr.bf16.mxu0 0
      %2652 = vmatmul.mubr.bf16.gmra.mrb[0].mxu0 %v2452
      %v2653 = vpop.f32.mrb[0].mxu0
      %v2654 = vadd.f32 0.0, %v2653
      %v2655 = vpop.f32.mrb[0].mxu0
      %v2656 = vpop.f32.mrb[0].mxu0
      %v2657 = vadd.f32 0.0, %v2656
      %v2658 = vpop.f32.mrb[0].mxu0
      %2659 = vmatprep.mubr.bf16.mxu0 0
      %2660 = vmatmul.mubr.bf16.gmra.mrb[0].mxu0 %v2453
      %v2661 = vpop.f32.mrb[0].mxu0
      %v2662 = vadd.f32 0.0, %v2661
      %v2663 = vpop.f32.mrb[0].mxu0
      %v2664 = vpop.f32.mrb[0].mxu0
      %v2665 = vadd.f32 0.0, %v2664
      %v2666 = vpop.f32.mrb[0].mxu0
      %2667 = vmatprep.mubr.bf16.mxu0 0
      %2668 = vmatmul.mubr.bf16.gmra.mrb[0].mxu0 %v2454
      %v2669 = vpop.f32.mrb[0].mxu0
      %v2670 = vadd.f32 0.0, %v2669
      %v2671 = vpop.f32.mrb[0].mxu0
      %v2672 = vpop.f32.mrb[0].mxu0
      %v2673 = vadd.f32 0.0, %v2672
      %v2674 = vpop.f32.mrb[0].mxu0
      %2675 = vmatprep.mubr.bf16.mxu0 0
      %2676 = vmatmul.mubr.bf16.gmra.mrb[0].mxu0 %v2455
      %v2677 = vpop.f32.mrb[0].mxu0
      %v2678 = vadd.f32 0.0, %v2677
      %v2679 = vpop.f32.mrb[0].mxu0
      %v2680 = vpop.f32.mrb[0].mxu0
      %v2681 = vadd.f32 0.0, %v2680
      %v2682 = vpop.f32.mrb[0].mxu0
      %2683 = vmatprep.mubr.bf16.mxu0 0
      %2684 = vmatmul.mubr.bf16.gmra.mrb[0].mxu0 %v2456
      %v2685 = vpop.f32.mrb[0].mxu0
      %v2686 = vadd.f32 0.0, %v2685
      %v2687 = vpop.f32.mrb[0].mxu0
      %v2688 = vpop.f32.mrb[0].mxu0
      %v2689 = vadd.f32 0.0, %v2688
      %v2690 = vpop.f32.mrb[0].mxu0
      %2691 = vmatprep.mubr.bf16.mxu0 0
      %2692 = vmatmul.mubr.bf16.gmra.mrb[0].mxu0 %v2457
      %v2693 = vpop.f32.mrb[0].mxu0
      %v2694 = vadd.f32 0.0, %v2693
      %v2695 = vpop.f32.mrb[0].mxu0
      %v2696 = vpop.f32.mrb[0].mxu0
      %v2697 = vadd.f32 0.0, %v2696
      %v2698 = vpop.f32.mrb[0].mxu0
      %2699 = vdwg.mxu0
      %v2700 = vadd.f32 %v2368, %v2558
      %v2701 = vadd.f32 %v2369, %v2561
      %v2702 = vadd.f32 %v2370, %v2566
      %v2703 = vadd.f32 %v2371, %v2569
      %v2704 = vadd.f32 %v2372, %v2574
      %v2705 = vadd.f32 %v2373, %v2577
      %v2706 = vadd.f32 %v2374, %v2582
      %v2707 = vadd.f32 %v2375, %v2585
      %v2708 = vadd.f32 %v2376, %v2590
      %v2709 = vadd.f32 %v2377, %v2593
      %v2710 = vadd.f32 %v2378, %v2598
      %v2711 = vadd.f32 %v2379, %v2601
      %v2712 = vadd.f32 %v2380, %v2606
      %v2713 = vadd.f32 %v2381, %v2609
      %v2714 = vadd.f32 %v2382, %v2614
      %v2715 = vadd.f32 %v2383, %v2617
      %v2716 = vadd.f32 %v2384, %v2622
      %v2717 = vadd.f32 %v2385, %v2625
      %v2718 = vadd.f32 %v2386, %v2630
      %v2719 = vadd.f32 %v2387, %v2633
      %v2720 = vadd.f32 %v2388, %v2638
      %v2721 = vadd.f32 %v2389, %v2641
      %v2722 = vadd.f32 %v2390, %v2646
      %v2723 = vadd.f32 %v2391, %v2649
      %v2724 = vadd.f32 %v2392, %v2654
      %v2725 = vadd.f32 %v2393, %v2657
      %v2726 = vadd.f32 %v2394, %v2662
      %v2727 = vadd.f32 %v2395, %v2665
      %v2728 = vadd.f32 %v2396, %v2670
      %v2729 = vadd.f32 %v2397, %v2673
      %v2730 = vadd.f32 %v2398, %v2678
      %v2731 = vadd.f32 %v2399, %v2681
      %v2732 = vadd.f32 %v2400, %v2686
      %v2733 = vadd.f32 %v2401, %v2689
      %v2734 = vadd.f32 %v2402, %v2694
      %v2735 = vadd.f32 %v2403, %v2697
      %v2736 = vld [vmem:[#allocation2 + $0x13] sm:$0xff]
      %v2737 = vld [vmem:[#allocation2 + $0x1b] sm:$0xff]
      %v2738 = vld [vmem:[#allocation2 + $0x23] sm:$0xff]
      %v2739 = vld [vmem:[#allocation2 + $0x2b] sm:$0xff]
      %v2740 = vld [vmem:[#allocation2 + $0x33] sm:$0xff]
      %v2741 = vld [vmem:[#allocation2 + $0x3b] sm:$0xff]
      %v2742 = vld [vmem:[#allocation2 + $0x43] sm:$0xff]
      %v2743 = vld [vmem:[#allocation2 + $0x4b] sm:$0xff]
      %v2744 = vld [vmem:[#allocation2 + $0x53] sm:$0xff]
      %v2745 = vld [vmem:[#allocation2 + $0x5b] sm:$0xff]
      %v2746 = vld [vmem:[#allocation2 + $0x63] sm:$0xff]
      %v2747 = vld [vmem:[#allocation2 + $0x6b] sm:$0xff]
      %v2748 = vld [vmem:[#allocation2 + $0x73] sm:$0xff]
      %v2749 = vld [vmem:[#allocation2 + $0x7b] sm:$0xff]
      %v2750 = vld [vmem:[#allocation2 + $0x83] sm:$0xff]
      %v2751 = vld [vmem:[#allocation2 + $0x8b] sm:$0xff]
      %v2752 = vld [vmem:[#allocation2 + $0x93] sm:$0xff]
      %v2753 = vld [vmem:[#allocation2 + $0x9b] sm:$0xff]
      %v2754 = vld [vmem:[#allocation2 + $0xa3] sm:$0xff]
      %v2755 = vld [vmem:[#allocation2 + $0xab] sm:$0xff]
      %v2756 = vld [vmem:[#allocation2 + $0xb3] sm:$0xff]
      %v2757 = vld [vmem:[#allocation2 + $0xbb] sm:$0xff]
      %v2758 = vld [vmem:[#allocation2 + $0xc3] sm:$0xff]
      %v2759 = vld [vmem:[#allocation2 + $0xcb] sm:$0xff]
      %v2760 = vld [vmem:[#allocation2 + $0xd3] sm:$0xff]
      %v2761 = vld [vmem:[#allocation2 + $0xdb] sm:$0xff]
      %v2762 = vld [vmem:[#allocation2 + $0xe3] sm:$0xff]
      %v2763 = vld [vmem:[#allocation2 + $0xeb] sm:$0xff]
      %v2764 = vld [vmem:[#allocation2 + $0xf3] sm:$0xff]
      %v2765 = vld [vmem:[#allocation2 + $0xfb] sm:$0xff]
      %v2766 = vld [vmem:[#allocation2 + $0x103] sm:$0xff]
      %v2767 = vld [vmem:[#allocation2 + $0x10b] sm:$0xff]
      %v2768 = vld [vmem:[#allocation2 + $0x113] sm:$0xff]
      %v2769 = vld [vmem:[#allocation2 + $0x11b] sm:$0xff]
      %v2770 = vld [vmem:[#allocation2 + $0x123] sm:$0xff]
      %v2771 = vld [vmem:[#allocation2 + $0x12b] sm:$0xff]
      %v2772 = vpack.c.bf16 %v2737, %v2736
      %v2773 = vpack.c.bf16 %v2739, %v2738
      %v2774 = vpack.c.bf16 %v2741, %v2740
      %v2775 = vpack.c.bf16 %v2743, %v2742
      %v2776 = vpack.c.bf16 %v2745, %v2744
      %v2777 = vpack.c.bf16 %v2747, %v2746
      %v2778 = vpack.c.bf16 %v2749, %v2748
      %v2779 = vpack.c.bf16 %v2751, %v2750
      %v2780 = vpack.c.bf16 %v2753, %v2752
      %v2781 = vpack.c.bf16 %v2755, %v2754
      %v2782 = vpack.c.bf16 %v2757, %v2756
      %v2783 = vpack.c.bf16 %v2759, %v2758
      %v2784 = vpack.c.bf16 %v2761, %v2760
      %v2785 = vpack.c.bf16 %v2763, %v2762
      %v2786 = vpack.c.bf16 %v2765, %v2764
      %v2787 = vpack.c.bf16 %v2767, %v2766
      %v2788 = vpack.c.bf16 %v2769, %v2768
      %v2789 = vpack.c.bf16 %v2771, %v2770
      %s2790 = scalar_lea.vmem %s3, 256
      %v2791 = vld [vmem:[%s2790] sm:$0xf]
      %v2792 = vld [vmem:[%s2790 + $0x4] sm:$0xf]
      %v2793 = vld [vmem:[%s2790 + $0x8] sm:$0xf]
      %v2794 = vld [vmem:[%s2790 + $0xc] sm:$0xf]
      %v2795 = vld [vmem:[%s2790 + $0x10] sm:$0xf]
      %v2796 = vld [vmem:[%s2790 + $0x14] sm:$0xf]
      %v2797 = vld [vmem:[%s2790 + $0x18] sm:$0xf]
      %v2798 = vld [vmem:[%s2790 + $0x1c] sm:$0xf]
      %v2799 = vld [vmem:[%s2790 + $0x20] sm:$0xf]
      %v2800 = vld [vmem:[%s2790 + $0x24] sm:$0xf]
      %v2801 = vld [vmem:[%s2790 + $0x28] sm:$0xf]
      %v2802 = vld [vmem:[%s2790 + $0x2c] sm:$0xf]
      %v2803 = vld [vmem:[%s2790 + $0x30] sm:$0xf]
      %v2804 = vld [vmem:[%s2790 + $0x34] sm:$0xf]
      %v2805 = vld [vmem:[%s2790 + $0x38] sm:$0xf]
      %v2806 = vld [vmem:[%s2790 + $0x3c] sm:$0xf]
      %v2823 = vunpack.c.l.b16 %v2791
      %v2824 = vunpack.c.l.b16 %v2792
      %v2825 = vunpack.c.l.b16 %v2793
      %v2826 = vunpack.c.l.b16 %v2794
      %v2827 = vunpack.c.l.b16 %v2795
      %v2828 = vunpack.c.l.b16 %v2796
      %v2829 = vunpack.c.l.b16 %v2797
      %v2830 = vunpack.c.l.b16 %v2798
      %v2831 = vunpack.c.l.b16 %v2799
      %v2832 = vunpack.c.l.b16 %v2800
      %v2833 = vunpack.c.l.b16 %v2801
      %v2834 = vunpack.c.l.b16 %v2802
      %v2835 = vunpack.c.l.b16 %v2803
      %v2836 = vunpack.c.l.b16 %v2804
      %v2837 = vunpack.c.l.b16 %v2805
      %v2838 = vunpack.c.l.b16 %v2806
      %v2839 = vpack.c.b16 %v2824, %v2823
      %v2840 = vpack.c.b16 %v2826, %v2825
      %v2841 = vpack.c.b16 %v2828, %v2827
      %v2842 = vpack.c.b16 %v2830, %v2829
      %v2843 = vpack.c.b16 %v2832, %v2831
      %v2844 = vpack.c.b16 %v2834, %v2833
      %v2845 = vpack.c.b16 %v2836, %v2835
      %v2846 = vpack.c.b16 %v2838, %v2837
      %2855 = vmatprep.subr.bf16.mxu0 0
      %2856 = vmatpush1.bf16.msra.mxu0 %v2839
      %2857 = vmatprep.subr.bf16.mxu0 0
      %2858 = vmatpush1.bf16.msra.mxu0 %v2840
      %2859 = vmatprep.subr.bf16.mxu0 0
      %2860 = vmatpush1.bf16.msra.mxu0 %v2841
      %2861 = vmatprep.subr.bf16.mxu0 0
      %2862 = vmatpush1.bf16.msra.mxu0 %v2842
      %2863 = vmatprep.subr.bf16.mxu0 0
      %2864 = vmatpush1.bf16.msra.mxu0 %v2843
      %2865 = vmatprep.subr.bf16.mxu0 0
      %2866 = vmatpush1.bf16.msra.mxu0 %v2844
      %2867 = vmatprep.subr.bf16.mxu0 0
      %2868 = vmatpush1.bf16.msra.mxu0 %v2845
      %2869 = vmatprep.subr.bf16.mxu0 0
      %2870 = vmatpush1.bf16.msra.mxu0 %v2846
      %2871 = vmatprep.subr.bf16.mxu0 0
      %2872 = vmatpush1.bf16.msra.mxu0 0
      %2873 = vmatprep.subr.bf16.mxu0 0
      %2874 = vmatpush1.bf16.msra.mxu0 0
      %2875 = vmatprep.subr.bf16.mxu0 0
      %2876 = vmatpush1.bf16.msra.mxu0 0
      %2877 = vmatprep.subr.bf16.mxu0 0
      %2878 = vmatpush1.bf16.msra.mxu0 0
      %2879 = vmatprep.subr.bf16.mxu0 0
      %2880 = vmatpush1.bf16.msra.mxu0 0
      %2881 = vmatprep.subr.bf16.mxu0 0
      %2882 = vmatpush1.bf16.msra.mxu0 0
      %2883 = vmatprep.subr.bf16.mxu0 0
      %2884 = vmatpush1.bf16.msra.mxu0 0
      %2885 = vmatprep.subr.bf16.mxu0 0
      %2886 = vmatpush1.bf16.msra.mxu0 0
      %2887 = vmatprep.mubr.bf16.mxu0 0
      %2888 = vmatmul.mubr.bf16.gmra.mrb[0].mxu0 %v2772
      %v2889 = vpop.f32.mrb[0].mxu0
      %v2890 = vadd.f32 0.0, %v2889
      %v2891 = vpop.f32.mrb[0].mxu0
      %v2892 = vpop.f32.mrb[0].mxu0
      %v2893 = vadd.f32 0.0, %v2892
      %v2894 = vpop.f32.mrb[0].mxu0
      %2895 = vmatprep.mubr.bf16.mxu0 0
      %2896 = vmatmul.mubr.bf16.gmra.mrb[0].mxu0 %v2773
      %v2897 = vpop.f32.mrb[0].mxu0
      %v2898 = vadd.f32 0.0, %v2897
      %v2899 = vpop.f32.mrb[0].mxu0
      %v2900 = vpop.f32.mrb[0].mxu0
      %v2901 = vadd.f32 0.0, %v2900
      %v2902 = vpop.f32.mrb[0].mxu0
      %2903 = vmatprep.mubr.bf16.mxu0 0
      %2904 = vmatmul.mubr.bf16.gmra.mrb[0].mxu0 %v2774
      %v2905 = vpop.f32.mrb[0].mxu0
      %v2906 = vadd.f32 0.0, %v2905
      %v2907 = vpop.f32.mrb[0].mxu0
      %v2908 = vpop.f32.mrb[0].mxu0
      %v2909 = vadd.f32 0.0, %v2908
      %v2910 = vpop.f32.mrb[0].mxu0
      %2911 = vmatprep.mubr.bf16.mxu0 0
      %2912 = vmatmul.mubr.bf16.gmra.mrb[0].mxu0 %v2775
      %v2913 = vpop.f32.mrb[0].mxu0
      %v2914 = vadd.f32 0.0, %v2913
      %v2915 = vpop.f32.mrb[0].mxu0
      %v2916 = vpop.f32.mrb[0].mxu0
      %v2917 = vadd.f32 0.0, %v2916
      %v2918 = vpop.f32.mrb[0].mxu0
      %2919 = vmatprep.mubr.bf16.mxu0 0
      %2920 = vmatmul.mubr.bf16.gmra.mrb[0].mxu0 %v2776
      %v2921 = vpop.f32.mrb[0].mxu0
      %v2922 = vadd.f32 0.0, %v2921
      %v2923 = vpop.f32.mrb[0].mxu0
      %v2924 = vpop.f32.mrb[0].mxu0
      %v2925 = vadd.f32 0.0, %v2924
      %v2926 = vpop.f32.mrb[0].mxu0
      %2927 = vmatprep.mubr.bf16.mxu0 0
      %2928 = vmatmul.mubr.bf16.gmra.mrb[0].mxu0 %v2777
      %v2929 = vpop.f32.mrb[0].mxu0
      %v2930 = vadd.f32 0.0, %v2929
      %v2931 = vpop.f32.mrb[0].mxu0
      %v2932 = vpop.f32.mrb[0].mxu0
      %v2933 = vadd.f32 0.0, %v2932
      %v2934 = vpop.f32.mrb[0].mxu0
      %2935 = vmatprep.mubr.bf16.mxu0 0
      %2936 = vmatmul.mubr.bf16.gmra.mrb[0].mxu0 %v2778
      %v2937 = vpop.f32.mrb[0].mxu0
      %v2938 = vadd.f32 0.0, %v2937
      %v2939 = vpop.f32.mrb[0].mxu0
      %v2940 = vpop.f32.mrb[0].mxu0
      %v2941 = vadd.f32 0.0, %v2940
      %v2942 = vpop.f32.mrb[0].mxu0
      %2943 = vmatprep.mubr.bf16.mxu0 0
      %2944 = vmatmul.mubr.bf16.gmra.mrb[0].mxu0 %v2779
      %v2945 = vpop.f32.mrb[0].mxu0
      %v2946 = vadd.f32 0.0, %v2945
      %v2947 = vpop.f32.mrb[0].mxu0
      %v2948 = vpop.f32.mrb[0].mxu0
      %v2949 = vadd.f32 0.0, %v2948
      %v2950 = vpop.f32.mrb[0].mxu0
      %2951 = vmatprep.mubr.bf16.mxu0 0
      %2952 = vmatmul.mubr.bf16.gmra.mrb[0].mxu0 %v2780
      %v2953 = vpop.f32.mrb[0].mxu0
      %v2954 = vadd.f32 0.0, %v2953
      %v2955 = vpop.f32.mrb[0].mxu0
      %v2956 = vpop.f32.mrb[0].mxu0
      %v2957 = vadd.f32 0.0, %v2956
      %v2958 = vpop.f32.mrb[0].mxu0
      %2959 = vmatprep.mubr.bf16.mxu0 0
      %2960 = vmatmul.mubr.bf16.gmra.mrb[0].mxu0 %v2781
      %v2961 = vpop.f32.mrb[0].mxu0
      %v2962 = vadd.f32 0.0, %v2961
      %v2963 = vpop.f32.mrb[0].mxu0
      %v2964 = vpop.f32.mrb[0].mxu0
      %v2965 = vadd.f32 0.0, %v2964
      %v2966 = vpop.f32.mrb[0].mxu0
      %2967 = vmatprep.mubr.bf16.mxu0 0
      %2968 = vmatmul.mubr.bf16.gmra.mrb[0].mxu0 %v2782
      %v2969 = vpop.f32.mrb[0].mxu0
      %v2970 = vadd.f32 0.0, %v2969
      %v2971 = vpop.f32.mrb[0].mxu0
      %v2972 = vpop.f32.mrb[0].mxu0
      %v2973 = vadd.f32 0.0, %v2972
      %v2974 = vpop.f32.mrb[0].mxu0
      %2975 = vmatprep.mubr.bf16.mxu0 0
      %2976 = vmatmul.mubr.bf16.gmra.mrb[0].mxu0 %v2783
      %v2977 = vpop.f32.mrb[0].mxu0
      %v2978 = vadd.f32 0.0, %v2977
      %v2979 = vpop.f32.mrb[0].mxu0
      %v2980 = vpop.f32.mrb[0].mxu0
      %v2981 = vadd.f32 0.0, %v2980
      %v2982 = vpop.f32.mrb[0].mxu0
      %2983 = vmatprep.mubr.bf16.mxu0 0
      %2984 = vmatmul.mubr.bf16.gmra.mrb[0].mxu0 %v2784
      %v2985 = vpop.f32.mrb[0].mxu0
      %v2986 = vadd.f32 0.0, %v2985
      %v2987 = vpop.f32.mrb[0].mxu0
      %v2988 = vpop.f32.mrb[0].mxu0
      %v2989 = vadd.f32 0.0, %v2988
      %v2990 = vpop.f32.mrb[0].mxu0
      %2991 = vmatprep.mubr.bf16.mxu0 0
      %2992 = vmatmul.mubr.bf16.gmra.mrb[0].mxu0 %v2785
      %v2993 = vpop.f32.mrb[0].mxu0
      %v2994 = vadd.f32 0.0, %v2993
      %v2995 = vpop.f32.mrb[0].mxu0
      %v2996 = vpop.f32.mrb[0].mxu0
      %v2997 = vadd.f32 0.0, %v2996
      %v2998 = vpop.f32.mrb[0].mxu0
      %2999 = vmatprep.mubr.bf16.mxu0 0
      %3000 = vmatmul.mubr.bf16.gmra.mrb[0].mxu0 %v2786
      %v3001 = vpop.f32.mrb[0].mxu0
      %v3002 = vadd.f32 0.0, %v3001
      %v3003 = vpop.f32.mrb[0].mxu0
      %v3004 = vpop.f32.mrb[0].mxu0
      %v3005 = vadd.f32 0.0, %v3004
      %v3006 = vpop.f32.mrb[0].mxu0
      %3007 = vmatprep.mubr.bf16.mxu0 0
      %3008 = vmatmul.mubr.bf16.gmra.mrb[0].mxu0 %v2787
      %v3009 = vpop.f32.mrb[0].mxu0
      %v3010 = vadd.f32 0.0, %v3009
      %v3011 = vpop.f32.mrb[0].mxu0
      %v3012 = vpop.f32.mrb[0].mxu0
      %v3013 = vadd.f32 0.0, %v3012
      %v3014 = vpop.f32.mrb[0].mxu0
      %3015 = vmatprep.mubr.bf16.mxu0 0
      %3016 = vmatmul.mubr.bf16.gmra.mrb[0].mxu0 %v2788
      %v3017 = vpop.f32.mrb[0].mxu0
      %v3018 = vadd.f32 0.0, %v3017
      %v3019 = vpop.f32.mrb[0].mxu0
      %v3020 = vpop.f32.mrb[0].mxu0
      %v3021 = vadd.f32 0.0, %v3020
      %v3022 = vpop.f32.mrb[0].mxu0
      %3023 = vmatprep.mubr.bf16.mxu0 0
      %3024 = vmatmul.mubr.bf16.gmra.mrb[0].mxu0 %v2789
      %v3025 = vpop.f32.mrb[0].mxu0
      %v3026 = vadd.f32 0.0, %v3025
      %v3027 = vpop.f32.mrb[0].mxu0
      %v3028 = vpop.f32.mrb[0].mxu0
      %v3029 = vadd.f32 0.0, %v3028
      %v3030 = vpop.f32.mrb[0].mxu0
      %3031 = vdwg.mxu0
      %v3032 = vadd.f32 %v2700, %v2890
      %v3033 = vadd.f32 %v2701, %v2893
      %v3034 = vadd.f32 %v2702, %v2898
      %v3035 = vadd.f32 %v2703, %v2901
      %v3036 = vadd.f32 %v2704, %v2906
      %v3037 = vadd.f32 %v2705, %v2909
      %v3038 = vadd.f32 %v2706, %v2914
      %v3039 = vadd.f32 %v2707, %v2917
      %v3040 = vadd.f32 %v2708, %v2922
      %v3041 = vadd.f32 %v2709, %v2925
      %v3042 = vadd.f32 %v2710, %v2930
      %v3043 = vadd.f32 %v2711, %v2933
      %v3044 = vadd.f32 %v2712, %v2938
      %v3045 = vadd.f32 %v2713, %v2941
      %v3046 = vadd.f32 %v2714, %v2946
      %v3047 = vadd.f32 %v2715, %v2949
      %v3048 = vadd.f32 %v2716, %v2954
      %v3049 = vadd.f32 %v2717, %v2957
      %v3050 = vadd.f32 %v2718, %v2962
      %v3051 = vadd.f32 %v2719, %v2965
      %v3052 = vadd.f32 %v2720, %v2970
      %v3053 = vadd.f32 %v2721, %v2973
      %v3054 = vadd.f32 %v2722, %v2978
      %v3055 = vadd.f32 %v2723, %v2981
      %v3056 = vadd.f32 %v2724, %v2986
      %v3057 = vadd.f32 %v2725, %v2989
      %v3058 = vadd.f32 %v2726, %v2994
      %v3059 = vadd.f32 %v2727, %v2997
      %v3060 = vadd.f32 %v2728, %v3002
      %v3061 = vadd.f32 %v2729, %v3005
      %v3062 = vadd.f32 %v2730, %v3010
      %v3063 = vadd.f32 %v2731, %v3013
      %v3064 = vadd.f32 %v2732, %v3018
      %v3065 = vadd.f32 %v2733, %v3021
      %v3066 = vadd.f32 %v2734, %v3026
      %v3067 = vadd.f32 %v2735, %v3029
      %v3068 = vld [vmem:[#allocation2 + $0x14] sm:$0xff]
      %v3069 = vld [vmem:[#allocation2 + $0x1c] sm:$0xff]
      %v3070 = vld [vmem:[#allocation2 + $0x24] sm:$0xff]
      %v3071 = vld [vmem:[#allocation2 + $0x2c] sm:$0xff]
      %v3072 = vld [vmem:[#allocation2 + $0x34] sm:$0xff]
      %v3073 = vld [vmem:[#allocation2 + $0x3c] sm:$0xff]
      %v3074 = vld [vmem:[#allocation2 + $0x44] sm:$0xff]
      %v3075 = vld [vmem:[#allocation2 + $0x4c] sm:$0xff]
      %v3076 = vld [vmem:[#allocation2 + $0x54] sm:$0xff]
      %v3077 = vld [vmem:[#allocation2 + $0x5c] sm:$0xff]
      %v3078 = vld [vmem:[#allocation2 + $0x64] sm:$0xff]
      %v3079 = vld [vmem:[#allocation2 + $0x6c] sm:$0xff]
      %v3080 = vld [vmem:[#allocation2 + $0x74] sm:$0xff]
      %v3081 = vld [vmem:[#allocation2 + $0x7c] sm:$0xff]
      %v3082 = vld [vmem:[#allocation2 + $0x84] sm:$0xff]
      %v3083 = vld [vmem:[#allocation2 + $0x8c] sm:$0xff]
      %v3084 = vld [vmem:[#allocation2 + $0x94] sm:$0xff]
      %v3085 = vld [vmem:[#allocation2 + $0x9c] sm:$0xff]
      %v3086 = vld [vmem:[#allocation2 + $0xa4] sm:$0xff]
      %v3087 = vld [vmem:[#allocation2 + $0xac] sm:$0xff]
      %v3088 = vld [vmem:[#allocation2 + $0xb4] sm:$0xff]
      %v3089 = vld [vmem:[#allocation2 + $0xbc] sm:$0xff]
      %v3090 = vld [vmem:[#allocation2 + $0xc4] sm:$0xff]
      %v3091 = vld [vmem:[#allocation2 + $0xcc] sm:$0xff]
      %v3092 = vld [vmem:[#allocation2 + $0xd4] sm:$0xff]
      %v3093 = vld [vmem:[#allocation2 + $0xdc] sm:$0xff]
      %v3094 = vld [vmem:[#allocation2 + $0xe4] sm:$0xff]
      %v3095 = vld [vmem:[#allocation2 + $0xec] sm:$0xff]
      %v3096 = vld [vmem:[#allocation2 + $0xf4] sm:$0xff]
      %v3097 = vld [vmem:[#allocation2 + $0xfc] sm:$0xff]
      %v3098 = vld [vmem:[#allocation2 + $0x104] sm:$0xff]
      %v3099 = vld [vmem:[#allocation2 + $0x10c] sm:$0xff]
      %v3100 = vld [vmem:[#allocation2 + $0x114] sm:$0xff]
      %v3101 = vld [vmem:[#allocation2 + $0x11c] sm:$0xff]
      %v3102 = vld [vmem:[#allocation2 + $0x124] sm:$0xff]
      %v3103 = vld [vmem:[#allocation2 + $0x12c] sm:$0xff]
      %v3104 = vpack.c.bf16 %v3069, %v3068
      %v3105 = vpack.c.bf16 %v3071, %v3070
      %v3106 = vpack.c.bf16 %v3073, %v3072
      %v3107 = vpack.c.bf16 %v3075, %v3074
      %v3108 = vpack.c.bf16 %v3077, %v3076
      %v3109 = vpack.c.bf16 %v3079, %v3078
      %v3110 = vpack.c.bf16 %v3081, %v3080
      %v3111 = vpack.c.bf16 %v3083, %v3082
      %v3112 = vpack.c.bf16 %v3085, %v3084
      %v3113 = vpack.c.bf16 %v3087, %v3086
      %v3114 = vpack.c.bf16 %v3089, %v3088
      %v3115 = vpack.c.bf16 %v3091, %v3090
      %v3116 = vpack.c.bf16 %v3093, %v3092
      %v3117 = vpack.c.bf16 %v3095, %v3094
      %v3118 = vpack.c.bf16 %v3097, %v3096
      %v3119 = vpack.c.bf16 %v3099, %v3098
      %v3120 = vpack.c.bf16 %v3101, %v3100
      %v3121 = vpack.c.bf16 %v3103, %v3102
      %s3122 = scalar_lea.vmem %s3, 320
      %v3123 = vld [vmem:[%s3122] sm:$0xf]
      %v3124 = vld [vmem:[%s3122 + $0x4] sm:$0xf]
      %v3125 = vld [vmem:[%s3122 + $0x8] sm:$0xf]
      %v3126 = vld [vmem:[%s3122 + $0xc] sm:$0xf]
      %v3127 = vld [vmem:[%s3122 + $0x10] sm:$0xf]
      %v3128 = vld [vmem:[%s3122 + $0x14] sm:$0xf]
      %v3129 = vld [vmem:[%s3122 + $0x18] sm:$0xf]
      %v3130 = vld [vmem:[%s3122 + $0x1c] sm:$0xf]
      %v3131 = vld [vmem:[%s3122 + $0x20] sm:$0xf]
      %v3132 = vld [vmem:[%s3122 + $0x24] sm:$0xf]
      %v3133 = vld [vmem:[%s3122 + $0x28] sm:$0xf]
      %v3134 = vld [vmem:[%s3122 + $0x2c] sm:$0xf]
      %v3135 = vld [vmem:[%s3122 + $0x30] sm:$0xf]
      %v3136 = vld [vmem:[%s3122 + $0x34] sm:$0xf]
      %v3137 = vld [vmem:[%s3122 + $0x38] sm:$0xf]
      %v3138 = vld [vmem:[%s3122 + $0x3c] sm:$0xf]
      %v3155 = vunpack.c.l.b16 %v3123
      %v3156 = vunpack.c.l.b16 %v3124
      %v3157 = vunpack.c.l.b16 %v3125
      %v3158 = vunpack.c.l.b16 %v3126
      %v3159 = vunpack.c.l.b16 %v3127
      %v3160 = vunpack.c.l.b16 %v3128
      %v3161 = vunpack.c.l.b16 %v3129
      %v3162 = vunpack.c.l.b16 %v3130
      %v3163 = vunpack.c.l.b16 %v3131
      %v3164 = vunpack.c.l.b16 %v3132
      %v3165 = vunpack.c.l.b16 %v3133
      %v3166 = vunpack.c.l.b16 %v3134
      %v3167 = vunpack.c.l.b16 %v3135
      %v3168 = vunpack.c.l.b16 %v3136
      %v3169 = vunpack.c.l.b16 %v3137
      %v3170 = vunpack.c.l.b16 %v3138
      %v3171 = vpack.c.b16 %v3156, %v3155
      %v3172 = vpack.c.b16 %v3158, %v3157
      %v3173 = vpack.c.b16 %v3160, %v3159
      %v3174 = vpack.c.b16 %v3162, %v3161
      %v3175 = vpack.c.b16 %v3164, %v3163
      %v3176 = vpack.c.b16 %v3166, %v3165
      %v3177 = vpack.c.b16 %v3168, %v3167
      %v3178 = vpack.c.b16 %v3170, %v3169
      %3187 = vmatprep.subr.bf16.mxu0 0
      %3188 = vmatpush1.bf16.msra.mxu0 %v3171
      %3189 = vmatprep.subr.bf16.mxu0 0
      %3190 = vmatpush1.bf16.msra.mxu0 %v3172
      %3191 = vmatprep.subr.bf16.mxu0 0
      %3192 = vmatpush1.bf16.msra.mxu0 %v3173
      %3193 = vmatprep.subr.bf16.mxu0 0
      %3194 = vmatpush1.bf16.msra.mxu0 %v3174
      %3195 = vmatprep.subr.bf16.mxu0 0
      %3196 = vmatpush1.bf16.msra.mxu0 %v3175
      %3197 = vmatprep.subr.bf16.mxu0 0
      %3198 = vmatpush1.bf16.msra.mxu0 %v3176
      %3199 = vmatprep.subr.bf16.mxu0 0
      %3200 = vmatpush1.bf16.msra.mxu0 %v3177
      %3201 = vmatprep.subr.bf16.mxu0 0
      %3202 = vmatpush1.bf16.msra.mxu0 %v3178
      %3203 = vmatprep.subr.bf16.mxu0 0
      %3204 = vmatpush1.bf16.msra.mxu0 0
      %3205 = vmatprep.subr.bf16.mxu0 0
      %3206 = vmatpush1.bf16.msra.mxu0 0
      %3207 = vmatprep.subr.bf16.mxu0 0
      %3208 = vmatpush1.bf16.msra.mxu0 0
      %3209 = vmatprep.subr.bf16.mxu0 0
      %3210 = vmatpush1.bf16.msra.mxu0 0
      %3211 = vmatprep.subr.bf16.mxu0 0
      %3212 = vmatpush1.bf16.msra.mxu0 0
      %3213 = vmatprep.subr.bf16.mxu0 0
      %3214 = vmatpush1.bf16.msra.mxu0 0
      %3215 = vmatprep.subr.bf16.mxu0 0
      %3216 = vmatpush1.bf16.msra.mxu0 0
      %3217 = vmatprep.subr.bf16.mxu0 0
      %3218 = vmatpush1.bf16.msra.mxu0 0
      %3219 = vmatprep.mubr.bf16.mxu0 0
      %3220 = vmatmul.mubr.bf16.gmra.mrb[0].mxu0 %v3104
      %v3221 = vpop.f32.mrb[0].mxu0
      %v3222 = vadd.f32 0.0, %v3221
      %v3223 = vpop.f32.mrb[0].mxu0
      %v3224 = vpop.f32.mrb[0].mxu0
      %v3225 = vadd.f32 0.0, %v3224
      %v3226 = vpop.f32.mrb[0].mxu0
      %3227 = vmatprep.mubr.bf16.mxu0 0
      %3228 = vmatmul.mubr.bf16.gmra.mrb[0].mxu0 %v3105
      %v3229 = vpop.f32.mrb[0].mxu0
      %v3230 = vadd.f32 0.0, %v3229
      %v3231 = vpop.f32.mrb[0].mxu0
      %v3232 = vpop.f32.mrb[0].mxu0
      %v3233 = vadd.f32 0.0, %v3232
      %v3234 = vpop.f32.mrb[0].mxu0
      %3235 = vmatprep.mubr.bf16.mxu0 0
      %3236 = vmatmul.mubr.bf16.gmra.mrb[0].mxu0 %v3106
      %v3237 = vpop.f32.mrb[0].mxu0
      %v3238 = vadd.f32 0.0, %v3237
      %v3239 = vpop.f32.mrb[0].mxu0
      %v3240 = vpop.f32.mrb[0].mxu0
      %v3241 = vadd.f32 0.0, %v3240
      %v3242 = vpop.f32.mrb[0].mxu0
      %3243 = vmatprep.mubr.bf16.mxu0 0
      %3244 = vmatmul.mubr.bf16.gmra.mrb[0].mxu0 %v3107
      %v3245 = vpop.f32.mrb[0].mxu0
      %v3246 = vadd.f32 0.0, %v3245
      %v3247 = vpop.f32.mrb[0].mxu0
      %v3248 = vpop.f32.mrb[0].mxu0
      %v3249 = vadd.f32 0.0, %v3248
      %v3250 = vpop.f32.mrb[0].mxu0
      %3251 = vmatprep.mubr.bf16.mxu0 0
      %3252 = vmatmul.mubr.bf16.gmra.mrb[0].mxu0 %v3108
      %v3253 = vpop.f32.mrb[0].mxu0
      %v3254 = vadd.f32 0.0, %v3253
      %v3255 = vpop.f32.mrb[0].mxu0
      %v3256 = vpop.f32.mrb[0].mxu0
      %v3257 = vadd.f32 0.0, %v3256
      %v3258 = vpop.f32.mrb[0].mxu0
      %3259 = vmatprep.mubr.bf16.mxu0 0
      %3260 = vmatmul.mubr.bf16.gmra.mrb[0].mxu0 %v3109
      %v3261 = vpop.f32.mrb[0].mxu0
      %v3262 = vadd.f32 0.0, %v3261
      %v3263 = vpop.f32.mrb[0].mxu0
      %v3264 = vpop.f32.mrb[0].mxu0
      %v3265 = vadd.f32 0.0, %v3264
      %v3266 = vpop.f32.mrb[0].mxu0
      %3267 = vmatprep.mubr.bf16.mxu0 0
      %3268 = vmatmul.mubr.bf16.gmra.mrb[0].mxu0 %v3110
      %v3269 = vpop.f32.mrb[0].mxu0
      %v3270 = vadd.f32 0.0, %v3269
      %v3271 = vpop.f32.mrb[0].mxu0
      %v3272 = vpop.f32.mrb[0].mxu0
      %v3273 = vadd.f32 0.0, %v3272
      %v3274 = vpop.f32.mrb[0].mxu0
      %3275 = vmatprep.mubr.bf16.mxu0 0
      %3276 = vmatmul.mubr.bf16.gmra.mrb[0].mxu0 %v3111
      %v3277 = vpop.f32.mrb[0].mxu0
      %v3278 = vadd.f32 0.0, %v3277
      %v3279 = vpop.f32.mrb[0].mxu0
      %v3280 = vpop.f32.mrb[0].mxu0
      %v3281 = vadd.f32 0.0, %v3280
      %v3282 = vpop.f32.mrb[0].mxu0
      %3283 = vmatprep.mubr.bf16.mxu0 0
      %3284 = vmatmul.mubr.bf16.gmra.mrb[0].mxu0 %v3112
      %v3285 = vpop.f32.mrb[0].mxu0
      %v3286 = vadd.f32 0.0, %v3285
      %v3287 = vpop.f32.mrb[0].mxu0
      %v3288 = vpop.f32.mrb[0].mxu0
      %v3289 = vadd.f32 0.0, %v3288
      %v3290 = vpop.f32.mrb[0].mxu0
      %3291 = vmatprep.mubr.bf16.mxu0 0
      %3292 = vmatmul.mubr.bf16.gmra.mrb[0].mxu0 %v3113
      %v3293 = vpop.f32.mrb[0].mxu0
      %v3294 = vadd.f32 0.0, %v3293
      %v3295 = vpop.f32.mrb[0].mxu0
      %v3296 = vpop.f32.mrb[0].mxu0
      %v3297 = vadd.f32 0.0, %v3296
      %v3298 = vpop.f32.mrb[0].mxu0
      %3299 = vmatprep.mubr.bf16.mxu0 0
      %3300 = vmatmul.mubr.bf16.gmra.mrb[0].mxu0 %v3114
      %v3301 = vpop.f32.mrb[0].mxu0
      %v3302 = vadd.f32 0.0, %v3301
      %v3303 = vpop.f32.mrb[0].mxu0
      %v3304 = vpop.f32.mrb[0].mxu0
      %v3305 = vadd.f32 0.0, %v3304
      %v3306 = vpop.f32.mrb[0].mxu0
      %3307 = vmatprep.mubr.bf16.mxu0 0
      %3308 = vmatmul.mubr.bf16.gmra.mrb[0].mxu0 %v3115
      %v3309 = vpop.f32.mrb[0].mxu0
      %v3310 = vadd.f32 0.0, %v3309
      %v3311 = vpop.f32.mrb[0].mxu0
      %v3312 = vpop.f32.mrb[0].mxu0
      %v3313 = vadd.f32 0.0, %v3312
      %v3314 = vpop.f32.mrb[0].mxu0
      %3315 = vmatprep.mubr.bf16.mxu0 0
      %3316 = vmatmul.mubr.bf16.gmra.mrb[0].mxu0 %v3116
      %v3317 = vpop.f32.mrb[0].mxu0
      %v3318 = vadd.f32 0.0, %v3317
      %v3319 = vpop.f32.mrb[0].mxu0
      %v3320 = vpop.f32.mrb[0].mxu0
      %v3321 = vadd.f32 0.0, %v3320
      %v3322 = vpop.f32.mrb[0].mxu0
      %3323 = vmatprep.mubr.bf16.mxu0 0
      %3324 = vmatmul.mubr.bf16.gmra.mrb[0].mxu0 %v3117
      %v3325 = vpop.f32.mrb[0].mxu0
      %v3326 = vadd.f32 0.0, %v3325
      %v3327 = vpop.f32.mrb[0].mxu0
      %v3328 = vpop.f32.mrb[0].mxu0
      %v3329 = vadd.f32 0.0, %v3328
      %v3330 = vpop.f32.mrb[0].mxu0
      %3331 = vmatprep.mubr.bf16.mxu0 0
      %3332 = vmatmul.mubr.bf16.gmra.mrb[0].mxu0 %v3118
      %v3333 = vpop.f32.mrb[0].mxu0
      %v3334 = vadd.f32 0.0, %v3333
      %v3335 = vpop.f32.mrb[0].mxu0
      %v3336 = vpop.f32.mrb[0].mxu0
      %v3337 = vadd.f32 0.0, %v3336
      %v3338 = vpop.f32.mrb[0].mxu0
      %3339 = vmatprep.mubr.bf16.mxu0 0
      %3340 = vmatmul.mubr.bf16.gmra.mrb[0].mxu0 %v3119
      %v3341 = vpop.f32.mrb[0].mxu0
      %v3342 = vadd.f32 0.0, %v3341
      %v3343 = vpop.f32.mrb[0].mxu0
      %v3344 = vpop.f32.mrb[0].mxu0
      %v3345 = vadd.f32 0.0, %v3344
      %v3346 = vpop.f32.mrb[0].mxu0
      %3347 = vmatprep.mubr.bf16.mxu0 0
      %3348 = vmatmul.mubr.bf16.gmra.mrb[0].mxu0 %v3120
      %v3349 = vpop.f32.mrb[0].mxu0
      %v3350 = vadd.f32 0.0, %v3349
      %v3351 = vpop.f32.mrb[0].mxu0
      %v3352 = vpop.f32.mrb[0].mxu0
      %v3353 = vadd.f32 0.0, %v3352
      %v3354 = vpop.f32.mrb[0].mxu0
      %3355 = vmatprep.mubr.bf16.mxu0 0
      %3356 = vmatmul.mubr.bf16.gmra.mrb[0].mxu0 %v3121
      %v3357 = vpop.f32.mrb[0].mxu0
      %v3358 = vadd.f32 0.0, %v3357
      %v3359 = vpop.f32.mrb[0].mxu0
      %v3360 = vpop.f32.mrb[0].mxu0
      %v3361 = vadd.f32 0.0, %v3360
      %v3362 = vpop.f32.mrb[0].mxu0
      %3363 = vdwg.mxu0
      %v3364 = vadd.f32 %v3032, %v3222
      %v3365 = vadd.f32 %v3033, %v3225
      %v3366 = vadd.f32 %v3034, %v3230
      %v3367 = vadd.f32 %v3035, %v3233
      %v3368 = vadd.f32 %v3036, %v3238
      %v3369 = vadd.f32 %v3037, %v3241
      %v3370 = vadd.f32 %v3038, %v3246
      %v3371 = vadd.f32 %v3039, %v3249
      %v3372 = vadd.f32 %v3040, %v3254
      %v3373 = vadd.f32 %v3041, %v3257
      %v3374 = vadd.f32 %v3042, %v3262
      %v3375 = vadd.f32 %v3043, %v3265
      %v3376 = vadd.f32 %v3044, %v3270
      %v3377 = vadd.f32 %v3045, %v3273
      %v3378 = vadd.f32 %v3046, %v3278
      %v3379 = vadd.f32 %v3047, %v3281
      %v3380 = vadd.f32 %v3048, %v3286
      %v3381 = vadd.f32 %v3049, %v3289
      %v3382 = vadd.f32 %v3050, %v3294
      %v3383 = vadd.f32 %v3051, %v3297
      %v3384 = vadd.f32 %v3052, %v3302
      %v3385 = vadd.f32 %v3053, %v3305
      %v3386 = vadd.f32 %v3054, %v3310
      %v3387 = vadd.f32 %v3055, %v3313
      %v3388 = vadd.f32 %v3056, %v3318
      %v3389 = vadd.f32 %v3057, %v3321
      %v3390 = vadd.f32 %v3058, %v3326
      %v3391 = vadd.f32 %v3059, %v3329
      %v3392 = vadd.f32 %v3060, %v3334
      %v3393 = vadd.f32 %v3061, %v3337
      %v3394 = vadd.f32 %v3062, %v3342
      %v3395 = vadd.f32 %v3063, %v3345
      %v3396 = vadd.f32 %v3064, %v3350
      %v3397 = vadd.f32 %v3065, %v3353
      %v3398 = vadd.f32 %v3066, %v3358
      %v3399 = vadd.f32 %v3067, %v3361
      %v3400 = vld [vmem:[#allocation2 + $0x24] sm:$0xff]
      %v3401 = vld [vmem:[#allocation2 + $0x2c] sm:$0xff]
      %v3402 = vld [vmem:[#allocation2 + $0x34] sm:$0xff]
      %v3403 = vld [vmem:[#allocation2 + $0x3c] sm:$0xff]
      %v3404 = vld [vmem:[#allocation2 + $0x44] sm:$0xff]
      %v3405 = vld [vmem:[#allocation2 + $0x4c] sm:$0xff]
      %v3406 = vld [vmem:[#allocation2 + $0x54] sm:$0xff]
      %v3407 = vld [vmem:[#allocation2 + $0x5c] sm:$0xff]
      %v3408 = vld [vmem:[#allocation2 + $0x64] sm:$0xff]
      %v3409 = vld [vmem:[#allocation2 + $0x6c] sm:$0xff]
      %v3410 = vld [vmem:[#allocation2 + $0x74] sm:$0xff]
      %v3411 = vld [vmem:[#allocation2 + $0x7c] sm:$0xff]
      %v3412 = vld [vmem:[#allocation2 + $0x84] sm:$0xff]
      %v3413 = vld [vmem:[#allocation2 + $0x8c] sm:$0xff]
      %v3414 = vld [vmem:[#allocation2 + $0x94] sm:$0xff]
      %v3415 = vld [vmem:[#allocation2 + $0x9c] sm:$0xff]
      %v3416 = vld [vmem:[#allocation2 + $0xa4] sm:$0xff]
      %v3417 = vld [vmem:[#allocation2 + $0xac] sm:$0xff]
      %v3418 = vld [vmem:[#allocation2 + $0xb4] sm:$0xff]
      %v3419 = vld [vmem:[#allocation2 + $0xbc] sm:$0xff]
      %v3420 = vld [vmem:[#allocation2 + $0xc4] sm:$0xff]
      %v3421 = vld [vmem:[#allocation2 + $0xcc] sm:$0xff]
      %v3422 = vld [vmem:[#allocation2 + $0xd4] sm:$0xff]
      %v3423 = vld [vmem:[#allocation2 + $0xdc] sm:$0xff]
      %v3424 = vld [vmem:[#allocation2 + $0xe4] sm:$0xff]
      %v3425 = vld [vmem:[#allocation2 + $0xec] sm:$0xff]
      %v3426 = vld [vmem:[#allocation2 + $0xf4] sm:$0xff]
      %v3427 = vld [vmem:[#allocation2 + $0xfc] sm:$0xff]
      %v3428 = vld [vmem:[#allocation2 + $0x104] sm:$0xff]
      %v3429 = vld [vmem:[#allocation2 + $0x10c] sm:$0xff]
      %v3430 = vld [vmem:[#allocation2 + $0x114] sm:$0xff]
      %v3431 = vld [vmem:[#allocation2 + $0x11c] sm:$0xff]
      %v3432 = vld [vmem:[#allocation2 + $0x124] sm:$0xff]
      %v3433 = vld [vmem:[#allocation2 + $0x12c] sm:$0xff]
      %v3434 = vld [vmem:[#allocation2 + $0x134] sm:$0xff]
      %v3435 = vld [vmem:[#allocation2 + $0x13c] sm:$0xff]
      %v3436 = vpack.c.bf16 %v3401, %v3400
      %v3437 = vpack.c.bf16 %v3403, %v3402
      %v3438 = vpack.c.bf16 %v3405, %v3404
      %v3439 = vpack.c.bf16 %v3407, %v3406
      %v3440 = vpack.c.bf16 %v3409, %v3408
      %v3441 = vpack.c.bf16 %v3411, %v3410
      %v3442 = vpack.c.bf16 %v3413, %v3412
      %v3443 = vpack.c.bf16 %v3415, %v3414
      %v3444 = vpack.c.bf16 %v3417, %v3416
      %v3445 = vpack.c.bf16 %v3419, %v3418
      %v3446 = vpack.c.bf16 %v3421, %v3420
      %v3447 = vpack.c.bf16 %v3423, %v3422
      %v3448 = vpack.c.bf16 %v3425, %v3424
      %v3449 = vpack.c.bf16 %v3427, %v3426
      %v3450 = vpack.c.bf16 %v3429, %v3428
      %v3451 = vpack.c.bf16 %v3431, %v3430
      %v3452 = vpack.c.bf16 %v3433, %v3432
      %v3453 = vpack.c.bf16 %v3435, %v3434
      %s3454 = scalar_lea.vmem %s3, 384
      %v3455 = vld [vmem:[%s3454] sm:$0xf]
      %v3456 = vld [vmem:[%s3454 + $0x4] sm:$0xf]
      %v3457 = vld [vmem:[%s3454 + $0x8] sm:$0xf]
      %v3458 = vld [vmem:[%s3454 + $0xc] sm:$0xf]
      %v3459 = vld [vmem:[%s3454 + $0x10] sm:$0xf]
      %v3460 = vld [vmem:[%s3454 + $0x14] sm:$0xf]
      %v3461 = vld [vmem:[%s3454 + $0x18] sm:$0xf]
      %v3462 = vld [vmem:[%s3454 + $0x1c] sm:$0xf]
      %v3463 = vld [vmem:[%s3454 + $0x20] sm:$0xf]
      %v3464 = vld [vmem:[%s3454 + $0x24] sm:$0xf]
      %v3465 = vld [vmem:[%s3454 + $0x28] sm:$0xf]
      %v3466 = vld [vmem:[%s3454 + $0x2c] sm:$0xf]
      %v3467 = vld [vmem:[%s3454 + $0x30] sm:$0xf]
      %v3468 = vld [vmem:[%s3454 + $0x34] sm:$0xf]
      %v3469 = vld [vmem:[%s3454 + $0x38] sm:$0xf]
      %v3470 = vld [vmem:[%s3454 + $0x3c] sm:$0xf]
      %v3487 = vunpack.c.l.b16 %v3455
      %v3488 = vunpack.c.l.b16 %v3456
      %v3489 = vunpack.c.l.b16 %v3457
      %v3490 = vunpack.c.l.b16 %v3458
      %v3491 = vunpack.c.l.b16 %v3459
      %v3492 = vunpack.c.l.b16 %v3460
      %v3493 = vunpack.c.l.b16 %v3461
      %v3494 = vunpack.c.l.b16 %v3462
      %v3495 = vunpack.c.l.b16 %v3463
      %v3496 = vunpack.c.l.b16 %v3464
      %v3497 = vunpack.c.l.b16 %v3465
      %v3498 = vunpack.c.l.b16 %v3466
      %v3499 = vunpack.c.l.b16 %v3467
      %v3500 = vunpack.c.l.b16 %v3468
      %v3501 = vunpack.c.l.b16 %v3469
      %v3502 = vunpack.c.l.b16 %v3470
      %v3503 = vpack.c.b16 %v3488, %v3487
      %v3504 = vpack.c.b16 %v3490, %v3489
      %v3505 = vpack.c.b16 %v3492, %v3491
      %v3506 = vpack.c.b16 %v3494, %v3493
      %v3507 = vpack.c.b16 %v3496, %v3495
      %v3508 = vpack.c.b16 %v3498, %v3497
      %v3509 = vpack.c.b16 %v3500, %v3499
      %v3510 = vpack.c.b16 %v3502, %v3501
      %3519 = vmatprep.subr.bf16.mxu0 0
      %3520 = vmatpush1.bf16.msra.mxu0 %v3503
      %3521 = vmatprep.subr.bf16.mxu0 0
      %3522 = vmatpush1.bf16.msra.mxu0 %v3504
      %3523 = vmatprep.subr.bf16.mxu0 0
      %3524 = vmatpush1.bf16.msra.mxu0 %v3505
      %3525 = vmatprep.subr.bf16.mxu0 0
      %3526 = vmatpush1.bf16.msra.mxu0 %v3506
      %3527 = vmatprep.subr.bf16.mxu0 0
      %3528 = vmatpush1.bf16.msra.mxu0 %v3507
      %3529 = vmatprep.subr.bf16.mxu0 0
      %3530 = vmatpush1.bf16.msra.mxu0 %v3508
      %3531 = vmatprep.subr.bf16.mxu0 0
      %3532 = vmatpush1.bf16.msra.mxu0 %v3509
      %3533 = vmatprep.subr.bf16.mxu0 0
      %3534 = vmatpush1.bf16.msra.mxu0 %v3510
      %3535 = vmatprep.subr.bf16.mxu0 0
      %3536 = vmatpush1.bf16.msra.mxu0 0
      %3537 = vmatprep.subr.bf16.mxu0 0
      %3538 = vmatpush1.bf16.msra.mxu0 0
      %3539 = vmatprep.subr.bf16.mxu0 0
      %3540 = vmatpush1.bf16.msra.mxu0 0
      %3541 = vmatprep.subr.bf16.mxu0 0
      %3542 = vmatpush1.bf16.msra.mxu0 0
      %3543 = vmatprep.subr.bf16.mxu0 0
      %3544 = vmatpush1.bf16.msra.mxu0 0
      %3545 = vmatprep.subr.bf16.mxu0 0
      %3546 = vmatpush1.bf16.msra.mxu0 0
      %3547 = vmatprep.subr.bf16.mxu0 0
      %3548 = vmatpush1.bf16.msra.mxu0 0
      %3549 = vmatprep.subr.bf16.mxu0 0
      %3550 = vmatpush1.bf16.msra.mxu0 0
      %3551 = vmatprep.mubr.bf16.mxu0 0
      %3552 = vmatmul.mubr.bf16.gmra.mrb[0].mxu0 %v3436
      %v3553 = vpop.f32.mrb[0].mxu0
      %v3554 = vadd.f32 0.0, %v3553
      %v3555 = vpop.f32.mrb[0].mxu0
      %v3556 = vpop.f32.mrb[0].mxu0
      %v3557 = vadd.f32 0.0, %v3556
      %v3558 = vpop.f32.mrb[0].mxu0
      %3559 = vmatprep.mubr.bf16.mxu0 0
      %3560 = vmatmul.mubr.bf16.gmra.mrb[0].mxu0 %v3437
      %v3561 = vpop.f32.mrb[0].mxu0
      %v3562 = vadd.f32 0.0, %v3561
      %v3563 = vpop.f32.mrb[0].mxu0
      %v3564 = vpop.f32.mrb[0].mxu0
      %v3565 = vadd.f32 0.0, %v3564
      %v3566 = vpop.f32.mrb[0].mxu0
      %3567 = vmatprep.mubr.bf16.mxu0 0
      %3568 = vmatmul.mubr.bf16.gmra.mrb[0].mxu0 %v3438
      %v3569 = vpop.f32.mrb[0].mxu0
      %v3570 = vadd.f32 0.0, %v3569
      %v3571 = vpop.f32.mrb[0].mxu0
      %v3572 = vpop.f32.mrb[0].mxu0
      %v3573 = vadd.f32 0.0, %v3572
      %v3574 = vpop.f32.mrb[0].mxu0
      %3575 = vmatprep.mubr.bf16.mxu0 0
      %3576 = vmatmul.mubr.bf16.gmra.mrb[0].mxu0 %v3439
      %v3577 = vpop.f32.mrb[0].mxu0
      %v3578 = vadd.f32 0.0, %v3577
      %v3579 = vpop.f32.mrb[0].mxu0
      %v3580 = vpop.f32.mrb[0].mxu0
      %v3581 = vadd.f32 0.0, %v3580
      %v3582 = vpop.f32.mrb[0].mxu0
      %3583 = vmatprep.mubr.bf16.mxu0 0
      %3584 = vmatmul.mubr.bf16.gmra.mrb[0].mxu0 %v3440
      %v3585 = vpop.f32.mrb[0].mxu0
      %v3586 = vadd.f32 0.0, %v3585
      %v3587 = vpop.f32.mrb[0].mxu0
      %v3588 = vpop.f32.mrb[0].mxu0
      %v3589 = vadd.f32 0.0, %v3588
      %v3590 = vpop.f32.mrb[0].mxu0
      %3591 = vmatprep.mubr.bf16.mxu0 0
      %3592 = vmatmul.mubr.bf16.gmra.mrb[0].mxu0 %v3441
      %v3593 = vpop.f32.mrb[0].mxu0
      %v3594 = vadd.f32 0.0, %v3593
      %v3595 = vpop.f32.mrb[0].mxu0
      %v3596 = vpop.f32.mrb[0].mxu0
      %v3597 = vadd.f32 0.0, %v3596
      %v3598 = vpop.f32.mrb[0].mxu0
      %3599 = vmatprep.mubr.bf16.mxu0 0
      %3600 = vmatmul.mubr.bf16.gmra.mrb[0].mxu0 %v3442
      %v3601 = vpop.f32.mrb[0].mxu0
      %v3602 = vadd.f32 0.0, %v3601
      %v3603 = vpop.f32.mrb[0].mxu0
      %v3604 = vpop.f32.mrb[0].mxu0
      %v3605 = vadd.f32 0.0, %v3604
      %v3606 = vpop.f32.mrb[0].mxu0
      %3607 = vmatprep.mubr.bf16.mxu0 0
      %3608 = vmatmul.mubr.bf16.gmra.mrb[0].mxu0 %v3443
      %v3609 = vpop.f32.mrb[0].mxu0
      %v3610 = vadd.f32 0.0, %v3609
      %v3611 = vpop.f32.mrb[0].mxu0
      %v3612 = vpop.f32.mrb[0].mxu0
      %v3613 = vadd.f32 0.0, %v3612
      %v3614 = vpop.f32.mrb[0].mxu0
      %3615 = vmatprep.mubr.bf16.mxu0 0
      %3616 = vmatmul.mubr.bf16.gmra.mrb[0].mxu0 %v3444
      %v3617 = vpop.f32.mrb[0].mxu0
      %v3618 = vadd.f32 0.0, %v3617
      %v3619 = vpop.f32.mrb[0].mxu0
      %v3620 = vpop.f32.mrb[0].mxu0
      %v3621 = vadd.f32 0.0, %v3620
      %v3622 = vpop.f32.mrb[0].mxu0
      %3623 = vmatprep.mubr.bf16.mxu0 0
      %3624 = vmatmul.mubr.bf16.gmra.mrb[0].mxu0 %v3445
      %v3625 = vpop.f32.mrb[0].mxu0
      %v3626 = vadd.f32 0.0, %v3625
      %v3627 = vpop.f32.mrb[0].mxu0
      %v3628 = vpop.f32.mrb[0].mxu0
      %v3629 = vadd.f32 0.0, %v3628
      %v3630 = vpop.f32.mrb[0].mxu0
      %3631 = vmatprep.mubr.bf16.mxu0 0
      %3632 = vmatmul.mubr.bf16.gmra.mrb[0].mxu0 %v3446
      %v3633 = vpop.f32.mrb[0].mxu0
      %v3634 = vadd.f32 0.0, %v3633
      %v3635 = vpop.f32.mrb[0].mxu0
      %v3636 = vpop.f32.mrb[0].mxu0
      %v3637 = vadd.f32 0.0, %v3636
      %v3638 = vpop.f32.mrb[0].mxu0
      %3639 = vmatprep.mubr.bf16.mxu0 0
      %3640 = vmatmul.mubr.bf16.gmra.mrb[0].mxu0 %v3447
      %v3641 = vpop.f32.mrb[0].mxu0
      %v3642 = vadd.f32 0.0, %v3641
      %v3643 = vpop.f32.mrb[0].mxu0
      %v3644 = vpop.f32.mrb[0].mxu0
      %v3645 = vadd.f32 0.0, %v3644
      %v3646 = vpop.f32.mrb[0].mxu0
      %3647 = vmatprep.mubr.bf16.mxu0 0
      %3648 = vmatmul.mubr.bf16.gmra.mrb[0].mxu0 %v3448
      %v3649 = vpop.f32.mrb[0].mxu0
      %v3650 = vadd.f32 0.0, %v3649
      %v3651 = vpop.f32.mrb[0].mxu0
      %v3652 = vpop.f32.mrb[0].mxu0
      %v3653 = vadd.f32 0.0, %v3652
      %v3654 = vpop.f32.mrb[0].mxu0
      %3655 = vmatprep.mubr.bf16.mxu0 0
      %3656 = vmatmul.mubr.bf16.gmra.mrb[0].mxu0 %v3449
      %v3657 = vpop.f32.mrb[0].mxu0
      %v3658 = vadd.f32 0.0, %v3657
      %v3659 = vpop.f32.mrb[0].mxu0
      %v3660 = vpop.f32.mrb[0].mxu0
      %v3661 = vadd.f32 0.0, %v3660
      %v3662 = vpop.f32.mrb[0].mxu0
      %3663 = vmatprep.mubr.bf16.mxu0 0
      %3664 = vmatmul.mubr.bf16.gmra.mrb[0].mxu0 %v3450
      %v3665 = vpop.f32.mrb[0].mxu0
      %v3666 = vadd.f32 0.0, %v3665
      %v3667 = vpop.f32.mrb[0].mxu0
      %v3668 = vpop.f32.mrb[0].mxu0
      %v3669 = vadd.f32 0.0, %v3668
      %v3670 = vpop.f32.mrb[0].mxu0
      %3671 = vmatprep.mubr.bf16.mxu0 0
      %3672 = vmatmul.mubr.bf16.gmra.mrb[0].mxu0 %v3451
      %v3673 = vpop.f32.mrb[0].mxu0
      %v3674 = vadd.f32 0.0, %v3673
      %v3675 = vpop.f32.mrb[0].mxu0
      %v3676 = vpop.f32.mrb[0].mxu0
      %v3677 = vadd.f32 0.0, %v3676
      %v3678 = vpop.f32.mrb[0].mxu0
      %3679 = vmatprep.mubr.bf16.mxu0 0
      %3680 = vmatmul.mubr.bf16.gmra.mrb[0].mxu0 %v3452
      %v3681 = vpop.f32.mrb[0].mxu0
      %v3682 = vadd.f32 0.0, %v3681
      %v3683 = vpop.f32.mrb[0].mxu0
      %v3684 = vpop.f32.mrb[0].mxu0
      %v3685 = vadd.f32 0.0, %v3684
      %v3686 = vpop.f32.mrb[0].mxu0
      %3687 = vmatprep.mubr.bf16.mxu0 0
      %3688 = vmatmul.mubr.bf16.gmra.mrb[0].mxu0 %v3453
      %v3689 = vpop.f32.mrb[0].mxu0
      %v3690 = vadd.f32 0.0, %v3689
      %v3691 = vpop.f32.mrb[0].mxu0
      %v3692 = vpop.f32.mrb[0].mxu0
      %v3693 = vadd.f32 0.0, %v3692
      %v3694 = vpop.f32.mrb[0].mxu0
      %3695 = vdwg.mxu0
      %v3696 = vadd.f32 %v3364, %v3554
      %v3697 = vadd.f32 %v3365, %v3557
      %v3698 = vadd.f32 %v3366, %v3562
      %v3699 = vadd.f32 %v3367, %v3565
      %v3700 = vadd.f32 %v3368, %v3570
      %v3701 = vadd.f32 %v3369, %v3573
      %v3702 = vadd.f32 %v3370, %v3578
      %v3703 = vadd.f32 %v3371, %v3581
      %v3704 = vadd.f32 %v3372, %v3586
      %v3705 = vadd.f32 %v3373, %v3589
      %v3706 = vadd.f32 %v3374, %v3594
      %v3707 = vadd.f32 %v3375, %v3597
      %v3708 = vadd.f32 %v3376, %v3602
      %v3709 = vadd.f32 %v3377, %v3605
      %v3710 = vadd.f32 %v3378, %v3610
      %v3711 = vadd.f32 %v3379, %v3613
      %v3712 = vadd.f32 %v3380, %v3618
      %v3713 = vadd.f32 %v3381, %v3621
      %v3714 = vadd.f32 %v3382, %v3626
      %v3715 = vadd.f32 %v3383, %v3629
      %v3716 = vadd.f32 %v3384, %v3634
      %v3717 = vadd.f32 %v3385, %v3637
      %v3718 = vadd.f32 %v3386, %v3642
      %v3719 = vadd.f32 %v3387, %v3645
      %v3720 = vadd.f32 %v3388, %v3650
      %v3721 = vadd.f32 %v3389, %v3653
      %v3722 = vadd.f32 %v3390, %v3658
      %v3723 = vadd.f32 %v3391, %v3661
      %v3724 = vadd.f32 %v3392, %v3666
      %v3725 = vadd.f32 %v3393, %v3669
      %v3726 = vadd.f32 %v3394, %v3674
      %v3727 = vadd.f32 %v3395, %v3677
      %v3728 = vadd.f32 %v3396, %v3682
      %v3729 = vadd.f32 %v3397, %v3685
      %v3730 = vadd.f32 %v3398, %v3690
      %v3731 = vadd.f32 %v3399, %v3693
      %v3732 = vld [vmem:[#allocation2 + $0x25] sm:$0xff]
      %v3733 = vld [vmem:[#allocation2 + $0x2d] sm:$0xff]
      %v3734 = vld [vmem:[#allocation2 + $0x35] sm:$0xff]
      %v3735 = vld [vmem:[#allocation2 + $0x3d] sm:$0xff]
      %v3736 = vld [vmem:[#allocation2 + $0x45] sm:$0xff]
      %v3737 = vld [vmem:[#allocation2 + $0x4d] sm:$0xff]
      %v3738 = vld [vmem:[#allocation2 + $0x55] sm:$0xff]
      %v3739 = vld [vmem:[#allocation2 + $0x5d] sm:$0xff]
      %v3740 = vld [vmem:[#allocation2 + $0x65] sm:$0xff]
      %v3741 = vld [vmem:[#allocation2 + $0x6d] sm:$0xff]
      %v3742 = vld [vmem:[#allocation2 + $0x75] sm:$0xff]
      %v3743 = vld [vmem:[#allocation2 + $0x7d] sm:$0xff]
      %v3744 = vld [vmem:[#allocation2 + $0x85] sm:$0xff]
      %v3745 = vld [vmem:[#allocation2 + $0x8d] sm:$0xff]
      %v3746 = vld [vmem:[#allocation2 + $0x95] sm:$0xff]
      %v3747 = vld [vmem:[#allocation2 + $0x9d] sm:$0xff]
      %v3748 = vld [vmem:[#allocation2 + $0xa5] sm:$0xff]
      %v3749 = vld [vmem:[#allocation2 + $0xad] sm:$0xff]
      %v3750 = vld [vmem:[#allocation2 + $0xb5] sm:$0xff]
      %v3751 = vld [vmem:[#allocation2 + $0xbd] sm:$0xff]
      %v3752 = vld [vmem:[#allocation2 + $0xc5] sm:$0xff]
      %v3753 = vld [vmem:[#allocation2 + $0xcd] sm:$0xff]
      %v3754 = vld [vmem:[#allocation2 + $0xd5] sm:$0xff]
      %v3755 = vld [vmem:[#allocation2 + $0xdd] sm:$0xff]
      %v3756 = vld [vmem:[#allocation2 + $0xe5] sm:$0xff]
      %v3757 = vld [vmem:[#allocation2 + $0xed] sm:$0xff]
      %v3758 = vld [vmem:[#allocation2 + $0xf5] sm:$0xff]
      %v3759 = vld [vmem:[#allocation2 + $0xfd] sm:$0xff]
      %v3760 = vld [vmem:[#allocation2 + $0x105] sm:$0xff]
      %v3761 = vld [vmem:[#allocation2 + $0x10d] sm:$0xff]
      %v3762 = vld [vmem:[#allocation2 + $0x115] sm:$0xff]
      %v3763 = vld [vmem:[#allocation2 + $0x11d] sm:$0xff]
      %v3764 = vld [vmem:[#allocation2 + $0x125] sm:$0xff]
      %v3765 = vld [vmem:[#allocation2 + $0x12d] sm:$0xff]
      %v3766 = vld [vmem:[#allocation2 + $0x135] sm:$0xff]
      %v3767 = vld [vmem:[#allocation2 + $0x13d] sm:$0xff]
      %v3768 = vpack.c.bf16 %v3733, %v3732
      %v3769 = vpack.c.bf16 %v3735, %v3734
      %v3770 = vpack.c.bf16 %v3737, %v3736
      %v3771 = vpack.c.bf16 %v3739, %v3738
      %v3772 = vpack.c.bf16 %v3741, %v3740
      %v3773 = vpack.c.bf16 %v3743, %v3742
      %v3774 = vpack.c.bf16 %v3745, %v3744
      %v3775 = vpack.c.bf16 %v3747, %v3746
      %v3776 = vpack.c.bf16 %v3749, %v3748
      %v3777 = vpack.c.bf16 %v3751, %v3750
      %v3778 = vpack.c.bf16 %v3753, %v3752
      %v3779 = vpack.c.bf16 %v3755, %v3754
      %v3780 = vpack.c.bf16 %v3757, %v3756
      %v3781 = vpack.c.bf16 %v3759, %v3758
      %v3782 = vpack.c.bf16 %v3761, %v3760
      %v3783 = vpack.c.bf16 %v3763, %v3762
      %v3784 = vpack.c.bf16 %v3765, %v3764
      %v3785 = vpack.c.bf16 %v3767, %v3766
      %s3786 = scalar_lea.vmem %s3, 448
      %v3787 = vld [vmem:[%s3786] sm:$0xf]
      %v3788 = vld [vmem:[%s3786 + $0x4] sm:$0xf]
      %v3789 = vld [vmem:[%s3786 + $0x8] sm:$0xf]
      %v3790 = vld [vmem:[%s3786 + $0xc] sm:$0xf]
      %v3791 = vld [vmem:[%s3786 + $0x10] sm:$0xf]
      %v3792 = vld [vmem:[%s3786 + $0x14] sm:$0xf]
      %v3793 = vld [vmem:[%s3786 + $0x18] sm:$0xf]
      %v3794 = vld [vmem:[%s3786 + $0x1c] sm:$0xf]
      %v3795 = vld [vmem:[%s3786 + $0x20] sm:$0xf]
      %v3796 = vld [vmem:[%s3786 + $0x24] sm:$0xf]
      %v3797 = vld [vmem:[%s3786 + $0x28] sm:$0xf]
      %v3798 = vld [vmem:[%s3786 + $0x2c] sm:$0xf]
      %v3799 = vld [vmem:[%s3786 + $0x30] sm:$0xf]
      %v3800 = vld [vmem:[%s3786 + $0x34] sm:$0xf]
      %v3801 = vld [vmem:[%s3786 + $0x38] sm:$0xf]
      %v3802 = vld [vmem:[%s3786 + $0x3c] sm:$0xf]
      %v3819 = vunpack.c.l.b16 %v3787
      %v3820 = vunpack.c.l.b16 %v3788
      %v3821 = vunpack.c.l.b16 %v3789
      %v3822 = vunpack.c.l.b16 %v3790
      %v3823 = vunpack.c.l.b16 %v3791
      %v3824 = vunpack.c.l.b16 %v3792
      %v3825 = vunpack.c.l.b16 %v3793
      %v3826 = vunpack.c.l.b16 %v3794
      %v3827 = vunpack.c.l.b16 %v3795
      %v3828 = vunpack.c.l.b16 %v3796
      %v3829 = vunpack.c.l.b16 %v3797
      %v3830 = vunpack.c.l.b16 %v3798
      %v3831 = vunpack.c.l.b16 %v3799
      %v3832 = vunpack.c.l.b16 %v3800
      %v3833 = vunpack.c.l.b16 %v3801
      %v3834 = vunpack.c.l.b16 %v3802
      %v3835 = vpack.c.b16 %v3820, %v3819
      %v3836 = vpack.c.b16 %v3822, %v3821
      %v3837 = vpack.c.b16 %v3824, %v3823
      %v3838 = vpack.c.b16 %v3826, %v3825
      %v3839 = vpack.c.b16 %v3828, %v3827
      %v3840 = vpack.c.b16 %v3830, %v3829
      %v3841 = vpack.c.b16 %v3832, %v3831
      %v3842 = vpack.c.b16 %v3834, %v3833
      %3851 = vmatprep.subr.bf16.mxu0 0
      %3852 = vmatpush1.bf16.msra.mxu0 %v3835
      %3853 = vmatprep.subr.bf16.mxu0 0
      %3854 = vmatpush1.bf16.msra.mxu0 %v3836
      %3855 = vmatprep.subr.bf16.mxu0 0
      %3856 = vmatpush1.bf16.msra.mxu0 %v3837
      %3857 = vmatprep.subr.bf16.mxu0 0
      %3858 = vmatpush1.bf16.msra.mxu0 %v3838
      %3859 = vmatprep.subr.bf16.mxu0 0
      %3860 = vmatpush1.bf16.msra.mxu0 %v3839
      %3861 = vmatprep.subr.bf16.mxu0 0
      %3862 = vmatpush1.bf16.msra.mxu0 %v3840
      %3863 = vmatprep.subr.bf16.mxu0 0
      %3864 = vmatpush1.bf16.msra.mxu0 %v3841
      %3865 = vmatprep.subr.bf16.mxu0 0
      %3866 = vmatpush1.bf16.msra.mxu0 %v3842
      %3867 = vmatprep.subr.bf16.mxu0 0
      %3868 = vmatpush1.bf16.msra.mxu0 0
      %3869 = vmatprep.subr.bf16.mxu0 0
      %3870 = vmatpush1.bf16.msra.mxu0 0
      %3871 = vmatprep.subr.bf16.mxu0 0
      %3872 = vmatpush1.bf16.msra.mxu0 0
      %3873 = vmatprep.subr.bf16.mxu0 0
      %3874 = vmatpush1.bf16.msra.mxu0 0
      %3875 = vmatprep.subr.bf16.mxu0 0
      %3876 = vmatpush1.bf16.msra.mxu0 0
      %3877 = vmatprep.subr.bf16.mxu0 0
      %3878 = vmatpush1.bf16.msra.mxu0 0
      %3879 = vmatprep.subr.bf16.mxu0 0
      %3880 = vmatpush1.bf16.msra.mxu0 0
      %3881 = vmatprep.subr.bf16.mxu0 0
      %3882 = vmatpush1.bf16.msra.mxu0 0
      %3883 = vmatprep.mubr.bf16.mxu0 0
      %3884 = vmatmul.mubr.bf16.gmra.mrb[0].mxu0 %v3768
      %v3885 = vpop.f32.mrb[0].mxu0
      %v3886 = vadd.f32 0.0, %v3885
      %v3887 = vpop.f32.mrb[0].mxu0
      %v3888 = vpop.f32.mrb[0].mxu0
      %v3889 = vadd.f32 0.0, %v3888
      %v3890 = vpop.f32.mrb[0].mxu0
      %3891 = vmatprep.mubr.bf16.mxu0 0
      %3892 = vmatmul.mubr.bf16.gmra.mrb[0].mxu0 %v3769
      %v3893 = vpop.f32.mrb[0].mxu0
      %v3894 = vadd.f32 0.0, %v3893
      %v3895 = vpop.f32.mrb[0].mxu0
      %v3896 = vpop.f32.mrb[0].mxu0
      %v3897 = vadd.f32 0.0, %v3896
      %v3898 = vpop.f32.mrb[0].mxu0
      %3899 = vmatprep.mubr.bf16.mxu0 0
      %3900 = vmatmul.mubr.bf16.gmra.mrb[0].mxu0 %v3770
      %v3901 = vpop.f32.mrb[0].mxu0
      %v3902 = vadd.f32 0.0, %v3901
      %v3903 = vpop.f32.mrb[0].mxu0
      %v3904 = vpop.f32.mrb[0].mxu0
      %v3905 = vadd.f32 0.0, %v3904
      %v3906 = vpop.f32.mrb[0].mxu0
      %3907 = vmatprep.mubr.bf16.mxu0 0
      %3908 = vmatmul.mubr.bf16.gmra.mrb[0].mxu0 %v3771
      %v3909 = vpop.f32.mrb[0].mxu0
      %v3910 = vadd.f32 0.0, %v3909
      %v3911 = vpop.f32.mrb[0].mxu0
      %v3912 = vpop.f32.mrb[0].mxu0
      %v3913 = vadd.f32 0.0, %v3912
      %v3914 = vpop.f32.mrb[0].mxu0
      %3915 = vmatprep.mubr.bf16.mxu0 0
      %3916 = vmatmul.mubr.bf16.gmra.mrb[0].mxu0 %v3772
      %v3917 = vpop.f32.mrb[0].mxu0
      %v3918 = vadd.f32 0.0, %v3917
      %v3919 = vpop.f32.mrb[0].mxu0
      %v3920 = vpop.f32.mrb[0].mxu0
      %v3921 = vadd.f32 0.0, %v3920
      %v3922 = vpop.f32.mrb[0].mxu0
      %3923 = vmatprep.mubr.bf16.mxu0 0
      %3924 = vmatmul.mubr.bf16.gmra.mrb[0].mxu0 %v3773
      %v3925 = vpop.f32.mrb[0].mxu0
      %v3926 = vadd.f32 0.0, %v3925
      %v3927 = vpop.f32.mrb[0].mxu0
      %v3928 = vpop.f32.mrb[0].mxu0
      %v3929 = vadd.f32 0.0, %v3928
      %v3930 = vpop.f32.mrb[0].mxu0
      %3931 = vmatprep.mubr.bf16.mxu0 0
      %3932 = vmatmul.mubr.bf16.gmra.mrb[0].mxu0 %v3774
      %v3933 = vpop.f32.mrb[0].mxu0
      %v3934 = vadd.f32 0.0, %v3933
      %v3935 = vpop.f32.mrb[0].mxu0
      %v3936 = vpop.f32.mrb[0].mxu0
      %v3937 = vadd.f32 0.0, %v3936
      %v3938 = vpop.f32.mrb[0].mxu0
      %3939 = vmatprep.mubr.bf16.mxu0 0
      %3940 = vmatmul.mubr.bf16.gmra.mrb[0].mxu0 %v3775
      %v3941 = vpop.f32.mrb[0].mxu0
      %v3942 = vadd.f32 0.0, %v3941
      %v3943 = vpop.f32.mrb[0].mxu0
      %v3944 = vpop.f32.mrb[0].mxu0
      %v3945 = vadd.f32 0.0, %v3944
      %v3946 = vpop.f32.mrb[0].mxu0
      %3947 = vmatprep.mubr.bf16.mxu0 0
      %3948 = vmatmul.mubr.bf16.gmra.mrb[0].mxu0 %v3776
      %v3949 = vpop.f32.mrb[0].mxu0
      %v3950 = vadd.f32 0.0, %v3949
      %v3951 = vpop.f32.mrb[0].mxu0
      %v3952 = vpop.f32.mrb[0].mxu0
      %v3953 = vadd.f32 0.0, %v3952
      %v3954 = vpop.f32.mrb[0].mxu0
      %3955 = vmatprep.mubr.bf16.mxu0 0
      %3956 = vmatmul.mubr.bf16.gmra.mrb[0].mxu0 %v3777
      %v3957 = vpop.f32.mrb[0].mxu0
      %v3958 = vadd.f32 0.0, %v3957
      %v3959 = vpop.f32.mrb[0].mxu0
      %v3960 = vpop.f32.mrb[0].mxu0
      %v3961 = vadd.f32 0.0, %v3960
      %v3962 = vpop.f32.mrb[0].mxu0
      %3963 = vmatprep.mubr.bf16.mxu0 0
      %3964 = vmatmul.mubr.bf16.gmra.mrb[0].mxu0 %v3778
      %v3965 = vpop.f32.mrb[0].mxu0
      %v3966 = vadd.f32 0.0, %v3965
      %v3967 = vpop.f32.mrb[0].mxu0
      %v3968 = vpop.f32.mrb[0].mxu0
      %v3969 = vadd.f32 0.0, %v3968
      %v3970 = vpop.f32.mrb[0].mxu0
      %3971 = vmatprep.mubr.bf16.mxu0 0
      %3972 = vmatmul.mubr.bf16.gmra.mrb[0].mxu0 %v3779
      %v3973 = vpop.f32.mrb[0].mxu0
      %v3974 = vadd.f32 0.0, %v3973
      %v3975 = vpop.f32.mrb[0].mxu0
      %v3976 = vpop.f32.mrb[0].mxu0
      %v3977 = vadd.f32 0.0, %v3976
      %v3978 = vpop.f32.mrb[0].mxu0
      %3979 = vmatprep.mubr.bf16.mxu0 0
      %3980 = vmatmul.mubr.bf16.gmra.mrb[0].mxu0 %v3780
      %v3981 = vpop.f32.mrb[0].mxu0
      %v3982 = vadd.f32 0.0, %v3981
      %v3983 = vpop.f32.mrb[0].mxu0
      %v3984 = vpop.f32.mrb[0].mxu0
      %v3985 = vadd.f32 0.0, %v3984
      %v3986 = vpop.f32.mrb[0].mxu0
      %3987 = vmatprep.mubr.bf16.mxu0 0
      %3988 = vmatmul.mubr.bf16.gmra.mrb[0].mxu0 %v3781
      %v3989 = vpop.f32.mrb[0].mxu0
      %v3990 = vadd.f32 0.0, %v3989
      %v3991 = vpop.f32.mrb[0].mxu0
      %v3992 = vpop.f32.mrb[0].mxu0
      %v3993 = vadd.f32 0.0, %v3992
      %v3994 = vpop.f32.mrb[0].mxu0
      %3995 = vmatprep.mubr.bf16.mxu0 0
      %3996 = vmatmul.mubr.bf16.gmra.mrb[0].mxu0 %v3782
      %v3997 = vpop.f32.mrb[0].mxu0
      %v3998 = vadd.f32 0.0, %v3997
      %v3999 = vpop.f32.mrb[0].mxu0
      %v4000 = vpop.f32.mrb[0].mxu0
      %v4001 = vadd.f32 0.0, %v4000
      %v4002 = vpop.f32.mrb[0].mxu0
      %4003 = vmatprep.mubr.bf16.mxu0 0
      %4004 = vmatmul.mubr.bf16.gmra.mrb[0].mxu0 %v3783
      %v4005 = vpop.f32.mrb[0].mxu0
      %v4006 = vadd.f32 0.0, %v4005
      %v4007 = vpop.f32.mrb[0].mxu0
      %v4008 = vpop.f32.mrb[0].mxu0
      %v4009 = vadd.f32 0.0, %v4008
      %v4010 = vpop.f32.mrb[0].mxu0
      %4011 = vmatprep.mubr.bf16.mxu0 0
      %4012 = vmatmul.mubr.bf16.gmra.mrb[0].mxu0 %v3784
      %v4013 = vpop.f32.mrb[0].mxu0
      %v4014 = vadd.f32 0.0, %v4013
      %v4015 = vpop.f32.mrb[0].mxu0
      %v4016 = vpop.f32.mrb[0].mxu0
      %v4017 = vadd.f32 0.0, %v4016
      %v4018 = vpop.f32.mrb[0].mxu0
      %4019 = vmatprep.mubr.bf16.mxu0 0
      %4020 = vmatmul.mubr.bf16.gmra.mrb[0].mxu0 %v3785
      %v4021 = vpop.f32.mrb[0].mxu0
      %v4022 = vadd.f32 0.0, %v4021
      %v4023 = vpop.f32.mrb[0].mxu0
      %v4024 = vpop.f32.mrb[0].mxu0
      %v4025 = vadd.f32 0.0, %v4024
      %v4026 = vpop.f32.mrb[0].mxu0
      %4027 = vdwg.mxu0
      %v4028 = vadd.f32 %v3696, %v3886
      %v4029 = vadd.f32 %v3697, %v3889
      %v4030 = vadd.f32 %v3698, %v3894
      %v4031 = vadd.f32 %v3699, %v3897
      %v4032 = vadd.f32 %v3700, %v3902
      %v4033 = vadd.f32 %v3701, %v3905
      %v4034 = vadd.f32 %v3702, %v3910
      %v4035 = vadd.f32 %v3703, %v3913
      %v4036 = vadd.f32 %v3704, %v3918
      %v4037 = vadd.f32 %v3705, %v3921
      %v4038 = vadd.f32 %v3706, %v3926
      %v4039 = vadd.f32 %v3707, %v3929
      %v4040 = vadd.f32 %v3708, %v3934
      %v4041 = vadd.f32 %v3709, %v3937
      %v4042 = vadd.f32 %v3710, %v3942
      %v4043 = vadd.f32 %v3711, %v3945
      %v4044 = vadd.f32 %v3712, %v3950
      %v4045 = vadd.f32 %v3713, %v3953
      %v4046 = vadd.f32 %v3714, %v3958
      %v4047 = vadd.f32 %v3715, %v3961
      %v4048 = vadd.f32 %v3716, %v3966
      %v4049 = vadd.f32 %v3717, %v3969
      %v4050 = vadd.f32 %v3718, %v3974
      %v4051 = vadd.f32 %v3719, %v3977
      %v4052 = vadd.f32 %v3720, %v3982
      %v4053 = vadd.f32 %v3721, %v3985
      %v4054 = vadd.f32 %v3722, %v3990
      %v4055 = vadd.f32 %v3723, %v3993
      %v4056 = vadd.f32 %v3724, %v3998
      %v4057 = vadd.f32 %v3725, %v4001
      %v4058 = vadd.f32 %v3726, %v4006
      %v4059 = vadd.f32 %v3727, %v4009
      %v4060 = vadd.f32 %v3728, %v4014
      %v4061 = vadd.f32 %v3729, %v4017
      %v4062 = vadd.f32 %v3730, %v4022
      %v4063 = vadd.f32 %v3731, %v4025
      %v4064 = vld [vmem:[#allocation2 + $0x26] sm:$0xff]
      %v4065 = vld [vmem:[#allocation2 + $0x2e] sm:$0xff]
      %v4066 = vld [vmem:[#allocation2 + $0x36] sm:$0xff]
      %v4067 = vld [vmem:[#allocation2 + $0x3e] sm:$0xff]
      %v4068 = vld [vmem:[#allocation2 + $0x46] sm:$0xff]
      %v4069 = vld [vmem:[#allocation2 + $0x4e] sm:$0xff]
      %v4070 = vld [vmem:[#allocation2 + $0x56] sm:$0xff]
      %v4071 = vld [vmem:[#allocation2 + $0x5e] sm:$0xff]
      %v4072 = vld [vmem:[#allocation2 + $0x66] sm:$0xff]
      %v4073 = vld [vmem:[#allocation2 + $0x6e] sm:$0xff]
      %v4074 = vld [vmem:[#allocation2 + $0x76] sm:$0xff]
      %v4075 = vld [vmem:[#allocation2 + $0x7e] sm:$0xff]
      %v4076 = vld [vmem:[#allocation2 + $0x86] sm:$0xff]
      %v4077 = vld [vmem:[#allocation2 + $0x8e] sm:$0xff]
      %v4078 = vld [vmem:[#allocation2 + $0x96] sm:$0xff]
      %v4079 = vld [vmem:[#allocation2 + $0x9e] sm:$0xff]
      %v4080 = vld [vmem:[#allocation2 + $0xa6] sm:$0xff]
      %v4081 = vld [vmem:[#allocation2 + $0xae] sm:$0xff]
      %v4082 = vld [vmem:[#allocation2 + $0xb6] sm:$0xff]
      %v4083 = vld [vmem:[#allocation2 + $0xbe] sm:$0xff]
      %v4084 = vld [vmem:[#allocation2 + $0xc6] sm:$0xff]
      %v4085 = vld [vmem:[#allocation2 + $0xce] sm:$0xff]
      %v4086 = vld [vmem:[#allocation2 + $0xd6] sm:$0xff]
      %v4087 = vld [vmem:[#allocation2 + $0xde] sm:$0xff]
      %v4088 = vld [vmem:[#allocation2 + $0xe6] sm:$0xff]
      %v4089 = vld [vmem:[#allocation2 + $0xee] sm:$0xff]
      %v4090 = vld [vmem:[#allocation2 + $0xf6] sm:$0xff]
      %v4091 = vld [vmem:[#allocation2 + $0xfe] sm:$0xff]
      %v4092 = vld [vmem:[#allocation2 + $0x106] sm:$0xff]
      %v4093 = vld [vmem:[#allocation2 + $0x10e] sm:$0xff]
      %v4094 = vld [vmem:[#allocation2 + $0x116] sm:$0xff]
      %v4095 = vld [vmem:[#allocation2 + $0x11e] sm:$0xff]
      %v4096 = vld [vmem:[#allocation2 + $0x126] sm:$0xff]
      %v4097 = vld [vmem:[#allocation2 + $0x12e] sm:$0xff]
      %v4098 = vld [vmem:[#allocation2 + $0x136] sm:$0xff]
      %v4099 = vld [vmem:[#allocation2 + $0x13e] sm:$0xff]
      %v4100 = vpack.c.bf16 %v4065, %v4064
      %v4101 = vpack.c.bf16 %v4067, %v4066
      %v4102 = vpack.c.bf16 %v4069, %v4068
      %v4103 = vpack.c.bf16 %v4071, %v4070
      %v4104 = vpack.c.bf16 %v4073, %v4072
      %v4105 = vpack.c.bf16 %v4075, %v4074
      %v4106 = vpack.c.bf16 %v4077, %v4076
      %v4107 = vpack.c.bf16 %v4079, %v4078
      %v4108 = vpack.c.bf16 %v4081, %v4080
      %v4109 = vpack.c.bf16 %v4083, %v4082
      %v4110 = vpack.c.bf16 %v4085, %v4084
      %v4111 = vpack.c.bf16 %v4087, %v4086
      %v4112 = vpack.c.bf16 %v4089, %v4088
      %v4113 = vpack.c.bf16 %v4091, %v4090
      %v4114 = vpack.c.bf16 %v4093, %v4092
      %v4115 = vpack.c.bf16 %v4095, %v4094
      %v4116 = vpack.c.bf16 %v4097, %v4096
      %v4117 = vpack.c.bf16 %v4099, %v4098
      %s4118 = scalar_lea.vmem %s3, 512
      %v4119 = vld [vmem:[%s4118] sm:$0xf]
      %v4120 = vld [vmem:[%s4118 + $0x4] sm:$0xf]
      %v4121 = vld [vmem:[%s4118 + $0x8] sm:$0xf]
      %v4122 = vld [vmem:[%s4118 + $0xc] sm:$0xf]
      %v4123 = vld [vmem:[%s4118 + $0x10] sm:$0xf]
      %v4124 = vld [vmem:[%s4118 + $0x14] sm:$0xf]
      %v4125 = vld [vmem:[%s4118 + $0x18] sm:$0xf]
      %v4126 = vld [vmem:[%s4118 + $0x1c] sm:$0xf]
      %v4127 = vld [vmem:[%s4118 + $0x20] sm:$0xf]
      %v4128 = vld [vmem:[%s4118 + $0x24] sm:$0xf]
      %v4129 = vld [vmem:[%s4118 + $0x28] sm:$0xf]
      %v4130 = vld [vmem:[%s4118 + $0x2c] sm:$0xf]
      %v4131 = vld [vmem:[%s4118 + $0x30] sm:$0xf]
      %v4132 = vld [vmem:[%s4118 + $0x34] sm:$0xf]
      %v4133 = vld [vmem:[%s4118 + $0x38] sm:$0xf]
      %v4134 = vld [vmem:[%s4118 + $0x3c] sm:$0xf]
      %v4151 = vunpack.c.l.b16 %v4119
      %v4152 = vunpack.c.l.b16 %v4120
      %v4153 = vunpack.c.l.b16 %v4121
      %v4154 = vunpack.c.l.b16 %v4122
      %v4155 = vunpack.c.l.b16 %v4123
      %v4156 = vunpack.c.l.b16 %v4124
      %v4157 = vunpack.c.l.b16 %v4125
      %v4158 = vunpack.c.l.b16 %v4126
      %v4159 = vunpack.c.l.b16 %v4127
      %v4160 = vunpack.c.l.b16 %v4128
      %v4161 = vunpack.c.l.b16 %v4129
      %v4162 = vunpack.c.l.b16 %v4130
      %v4163 = vunpack.c.l.b16 %v4131
      %v4164 = vunpack.c.l.b16 %v4132
      %v4165 = vunpack.c.l.b16 %v4133
      %v4166 = vunpack.c.l.b16 %v4134
      %v4167 = vpack.c.b16 %v4152, %v4151
      %v4168 = vpack.c.b16 %v4154, %v4153
      %v4169 = vpack.c.b16 %v4156, %v4155
      %v4170 = vpack.c.b16 %v4158, %v4157
      %v4171 = vpack.c.b16 %v4160, %v4159
      %v4172 = vpack.c.b16 %v4162, %v4161
      %v4173 = vpack.c.b16 %v4164, %v4163
      %v4174 = vpack.c.b16 %v4166, %v4165
      %4183 = vmatprep.subr.bf16.mxu0 0
      %4184 = vmatpush1.bf16.msra.mxu0 %v4167
      %4185 = vmatprep.subr.bf16.mxu0 0
      %4186 = vmatpush1.bf16.msra.mxu0 %v4168
      %4187 = vmatprep.subr.bf16.mxu0 0
      %4188 = vmatpush1.bf16.msra.mxu0 %v4169
      %4189 = vmatprep.subr.bf16.mxu0 0
      %4190 = vmatpush1.bf16.msra.mxu0 %v4170
      %4191 = vmatprep.subr.bf16.mxu0 0
      %4192 = vmatpush1.bf16.msra.mxu0 %v4171
      %4193 = vmatprep.subr.bf16.mxu0 0
      %4194 = vmatpush1.bf16.msra.mxu0 %v4172
      %4195 = vmatprep.subr.bf16.mxu0 0
      %4196 = vmatpush1.bf16.msra.mxu0 %v4173
      %4197 = vmatprep.subr.bf16.mxu0 0
      %4198 = vmatpush1.bf16.msra.mxu0 %v4174
      %4199 = vmatprep.subr.bf16.mxu0 0
      %4200 = vmatpush1.bf16.msra.mxu0 0
      %4201 = vmatprep.subr.bf16.mxu0 0
      %4202 = vmatpush1.bf16.msra.mxu0 0
      %4203 = vmatprep.subr.bf16.mxu0 0
      %4204 = vmatpush1.bf16.msra.mxu0 0
      %4205 = vmatprep.subr.bf16.mxu0 0
      %4206 = vmatpush1.bf16.msra.mxu0 0
      %4207 = vmatprep.subr.bf16.mxu0 0
      %4208 = vmatpush1.bf16.msra.mxu0 0
      %4209 = vmatprep.subr.bf16.mxu0 0
      %4210 = vmatpush1.bf16.msra.mxu0 0
      %4211 = vmatprep.subr.bf16.mxu0 0
      %4212 = vmatpush1.bf16.msra.mxu0 0
      %4213 = vmatprep.subr.bf16.mxu0 0
      %4214 = vmatpush1.bf16.msra.mxu0 0
      %4215 = vmatprep.mubr.bf16.mxu0 0
      %4216 = vmatmul.mubr.bf16.gmra.mrb[0].mxu0 %v4100
      %v4217 = vpop.f32.mrb[0].mxu0
      %v4218 = vadd.f32 0.0, %v4217
      %v4219 = vpop.f32.mrb[0].mxu0
      %v4220 = vpop.f32.mrb[0].mxu0
      %v4221 = vadd.f32 0.0, %v4220
      %v4222 = vpop.f32.mrb[0].mxu0
      %4223 = vmatprep.mubr.bf16.mxu0 0
      %4224 = vmatmul.mubr.bf16.gmra.mrb[0].mxu0 %v4101
      %v4225 = vpop.f32.mrb[0].mxu0
      %v4226 = vadd.f32 0.0, %v4225
      %v4227 = vpop.f32.mrb[0].mxu0
      %v4228 = vpop.f32.mrb[0].mxu0
      %v4229 = vadd.f32 0.0, %v4228
      %v4230 = vpop.f32.mrb[0].mxu0
      %4231 = vmatprep.mubr.bf16.mxu0 0
      %4232 = vmatmul.mubr.bf16.gmra.mrb[0].mxu0 %v4102
      %v4233 = vpop.f32.mrb[0].mxu0
      %v4234 = vadd.f32 0.0, %v4233
      %v4235 = vpop.f32.mrb[0].mxu0
      %v4236 = vpop.f32.mrb[0].mxu0
      %v4237 = vadd.f32 0.0, %v4236
      %v4238 = vpop.f32.mrb[0].mxu0
      %4239 = vmatprep.mubr.bf16.mxu0 0
      %4240 = vmatmul.mubr.bf16.gmra.mrb[0].mxu0 %v4103
      %v4241 = vpop.f32.mrb[0].mxu0
      %v4242 = vadd.f32 0.0, %v4241
      %v4243 = vpop.f32.mrb[0].mxu0
      %v4244 = vpop.f32.mrb[0].mxu0
      %v4245 = vadd.f32 0.0, %v4244
      %v4246 = vpop.f32.mrb[0].mxu0
      %4247 = vmatprep.mubr.bf16.mxu0 0
      %4248 = vmatmul.mubr.bf16.gmra.mrb[0].mxu0 %v4104
      %v4249 = vpop.f32.mrb[0].mxu0
      %v4250 = vadd.f32 0.0, %v4249
      %v4251 = vpop.f32.mrb[0].mxu0
      %v4252 = vpop.f32.mrb[0].mxu0
      %v4253 = vadd.f32 0.0, %v4252
      %v4254 = vpop.f32.mrb[0].mxu0
      %4255 = vmatprep.mubr.bf16.mxu0 0
      %4256 = vmatmul.mubr.bf16.gmra.mrb[0].mxu0 %v4105
      %v4257 = vpop.f32.mrb[0].mxu0
      %v4258 = vadd.f32 0.0, %v4257
      %v4259 = vpop.f32.mrb[0].mxu0
      %v4260 = vpop.f32.mrb[0].mxu0
      %v4261 = vadd.f32 0.0, %v4260
      %v4262 = vpop.f32.mrb[0].mxu0
      %4263 = vmatprep.mubr.bf16.mxu0 0
      %4264 = vmatmul.mubr.bf16.gmra.mrb[0].mxu0 %v4106
      %v4265 = vpop.f32.mrb[0].mxu0
      %v4266 = vadd.f32 0.0, %v4265
      %v4267 = vpop.f32.mrb[0].mxu0
      %v4268 = vpop.f32.mrb[0].mxu0
      %v4269 = vadd.f32 0.0, %v4268
      %v4270 = vpop.f32.mrb[0].mxu0
      %4271 = vmatprep.mubr.bf16.mxu0 0
      %4272 = vmatmul.mubr.bf16.gmra.mrb[0].mxu0 %v4107
      %v4273 = vpop.f32.mrb[0].mxu0
      %v4274 = vadd.f32 0.0, %v4273
      %v4275 = vpop.f32.mrb[0].mxu0
      %v4276 = vpop.f32.mrb[0].mxu0
      %v4277 = vadd.f32 0.0, %v4276
      %v4278 = vpop.f32.mrb[0].mxu0
      %4279 = vmatprep.mubr.bf16.mxu0 0
      %4280 = vmatmul.mubr.bf16.gmra.mrb[0].mxu0 %v4108
      %v4281 = vpop.f32.mrb[0].mxu0
      %v4282 = vadd.f32 0.0, %v4281
      %v4283 = vpop.f32.mrb[0].mxu0
      %v4284 = vpop.f32.mrb[0].mxu0
      %v4285 = vadd.f32 0.0, %v4284
      %v4286 = vpop.f32.mrb[0].mxu0
      %4287 = vmatprep.mubr.bf16.mxu0 0
      %4288 = vmatmul.mubr.bf16.gmra.mrb[0].mxu0 %v4109
      %v4289 = vpop.f32.mrb[0].mxu0
      %v4290 = vadd.f32 0.0, %v4289
      %v4291 = vpop.f32.mrb[0].mxu0
      %v4292 = vpop.f32.mrb[0].mxu0
      %v4293 = vadd.f32 0.0, %v4292
      %v4294 = vpop.f32.mrb[0].mxu0
      %4295 = vmatprep.mubr.bf16.mxu0 0
      %4296 = vmatmul.mubr.bf16.gmra.mrb[0].mxu0 %v4110
      %v4297 = vpop.f32.mrb[0].mxu0
      %v4298 = vadd.f32 0.0, %v4297
      %v4299 = vpop.f32.mrb[0].mxu0
      %v4300 = vpop.f32.mrb[0].mxu0
      %v4301 = vadd.f32 0.0, %v4300
      %v4302 = vpop.f32.mrb[0].mxu0
      %4303 = vmatprep.mubr.bf16.mxu0 0
      %4304 = vmatmul.mubr.bf16.gmra.mrb[0].mxu0 %v4111
      %v4305 = vpop.f32.mrb[0].mxu0
      %v4306 = vadd.f32 0.0, %v4305
      %v4307 = vpop.f32.mrb[0].mxu0
      %v4308 = vpop.f32.mrb[0].mxu0
      %v4309 = vadd.f32 0.0, %v4308
      %v4310 = vpop.f32.mrb[0].mxu0
      %4311 = vmatprep.mubr.bf16.mxu0 0
      %4312 = vmatmul.mubr.bf16.gmra.mrb[0].mxu0 %v4112
      %v4313 = vpop.f32.mrb[0].mxu0
      %v4314 = vadd.f32 0.0, %v4313
      %v4315 = vpop.f32.mrb[0].mxu0
      %v4316 = vpop.f32.mrb[0].mxu0
      %v4317 = vadd.f32 0.0, %v4316
      %v4318 = vpop.f32.mrb[0].mxu0
      %4319 = vmatprep.mubr.bf16.mxu0 0
      %4320 = vmatmul.mubr.bf16.gmra.mrb[0].mxu0 %v4113
      %v4321 = vpop.f32.mrb[0].mxu0
      %v4322 = vadd.f32 0.0, %v4321
      %v4323 = vpop.f32.mrb[0].mxu0
      %v4324 = vpop.f32.mrb[0].mxu0
      %v4325 = vadd.f32 0.0, %v4324
      %v4326 = vpop.f32.mrb[0].mxu0
      %4327 = vmatprep.mubr.bf16.mxu0 0
      %4328 = vmatmul.mubr.bf16.gmra.mrb[0].mxu0 %v4114
      %v4329 = vpop.f32.mrb[0].mxu0
      %v4330 = vadd.f32 0.0, %v4329
      %v4331 = vpop.f32.mrb[0].mxu0
      %v4332 = vpop.f32.mrb[0].mxu0
      %v4333 = vadd.f32 0.0, %v4332
      %v4334 = vpop.f32.mrb[0].mxu0
      %4335 = vmatprep.mubr.bf16.mxu0 0
      %4336 = vmatmul.mubr.bf16.gmra.mrb[0].mxu0 %v4115
      %v4337 = vpop.f32.mrb[0].mxu0
      %v4338 = vadd.f32 0.0, %v4337
      %v4339 = vpop.f32.mrb[0].mxu0
      %v4340 = vpop.f32.mrb[0].mxu0
      %v4341 = vadd.f32 0.0, %v4340
      %v4342 = vpop.f32.mrb[0].mxu0
      %4343 = vmatprep.mubr.bf16.mxu0 0
      %4344 = vmatmul.mubr.bf16.gmra.mrb[0].mxu0 %v4116
      %v4345 = vpop.f32.mrb[0].mxu0
      %v4346 = vadd.f32 0.0, %v4345
      %v4347 = vpop.f32.mrb[0].mxu0
      %v4348 = vpop.f32.mrb[0].mxu0
      %v4349 = vadd.f32 0.0, %v4348
      %v4350 = vpop.f32.mrb[0].mxu0
      %4351 = vmatprep.mubr.bf16.mxu0 0
      %4352 = vmatmul.mubr.bf16.gmra.mrb[0].mxu0 %v4117
      %v4353 = vpop.f32.mrb[0].mxu0
      %v4354 = vadd.f32 0.0, %v4353
      %v4355 = vpop.f32.mrb[0].mxu0
      %v4356 = vpop.f32.mrb[0].mxu0
      %v4357 = vadd.f32 0.0, %v4356
      %v4358 = vpop.f32.mrb[0].mxu0
      %4359 = vdwg.mxu0
      %v4360 = vadd.f32 %v4028, %v4218
      %v4361 = vadd.f32 %v4029, %v4221
      %v4362 = vadd.f32 %v4030, %v4226
      %v4363 = vadd.f32 %v4031, %v4229
      %v4364 = vadd.f32 %v4032, %v4234
      %v4365 = vadd.f32 %v4033, %v4237
      %v4366 = vadd.f32 %v4034, %v4242
      %v4367 = vadd.f32 %v4035, %v4245
      %v4368 = vadd.f32 %v4036, %v4250
      %v4369 = vadd.f32 %v4037, %v4253
      %v4370 = vadd.f32 %v4038, %v4258
      %v4371 = vadd.f32 %v4039, %v4261
      %v4372 = vadd.f32 %v4040, %v4266
      %v4373 = vadd.f32 %v4041, %v4269
      %v4374 = vadd.f32 %v4042, %v4274
      %v4375 = vadd.f32 %v4043, %v4277
      %v4376 = vadd.f32 %v4044, %v4282
      %v4377 = vadd.f32 %v4045, %v4285
      %v4378 = vadd.f32 %v4046, %v4290
      %v4379 = vadd.f32 %v4047, %v4293
      %v4380 = vadd.f32 %v4048, %v4298
      %v4381 = vadd.f32 %v4049, %v4301
      %v4382 = vadd.f32 %v4050, %v4306
      %v4383 = vadd.f32 %v4051, %v4309
      %v4384 = vadd.f32 %v4052, %v4314
      %v4385 = vadd.f32 %v4053, %v4317
      %v4386 = vadd.f32 %v4054, %v4322
      %v4387 = vadd.f32 %v4055, %v4325
      %v4388 = vadd.f32 %v4056, %v4330
      %v4389 = vadd.f32 %v4057, %v4333
      %v4390 = vadd.f32 %v4058, %v4338
      %v4391 = vadd.f32 %v4059, %v4341
      %v4392 = vadd.f32 %v4060, %v4346
      %v4393 = vadd.f32 %v4061, %v4349
      %v4394 = vadd.f32 %v4062, %v4354
      %v4395 = vadd.f32 %v4063, %v4357
      %v4396 = vpack.c.bf16 %v4361, %v4360
      %v4397 = vpack.c.bf16 %v4363, %v4362
      %v4398 = vpack.c.bf16 %v4365, %v4364
      %v4399 = vpack.c.bf16 %v4367, %v4366
      %v4400 = vpack.c.bf16 %v4369, %v4368
      %v4401 = vpack.c.bf16 %v4371, %v4370
      %v4402 = vpack.c.bf16 %v4373, %v4372
      %v4403 = vpack.c.bf16 %v4375, %v4374
      %v4404 = vpack.c.bf16 %v4377, %v4376
      %v4405 = vpack.c.bf16 %v4379, %v4378
      %v4406 = vpack.c.bf16 %v4381, %v4380
      %v4407 = vpack.c.bf16 %v4383, %v4382
      %v4408 = vpack.c.bf16 %v4385, %v4384
      %v4409 = vpack.c.bf16 %v4387, %v4386
      %v4410 = vpack.c.bf16 %v4389, %v4388
      %v4411 = vpack.c.bf16 %v4391, %v4390
      %v4412 = vpack.c.bf16 %v4393, %v4392
      %v4413 = vpack.c.bf16 %v4395, %v4394
      %v4432 = vunpack.c.l.b16 %v4396
      %v4433 = vunpack.c.h.b16 %v4396
      %v4434 = vunpack.c.l.b16 %v4397
      %v4435 = vunpack.c.h.b16 %v4397
      %v4436 = vunpack.c.l.b16 %v4398
      %v4437 = vunpack.c.h.b16 %v4398
      %v4438 = vunpack.c.l.b16 %v4399
      %v4439 = vunpack.c.h.b16 %v4399
      %v4440 = vunpack.c.l.b16 %v4400
      %v4441 = vunpack.c.h.b16 %v4400
      %v4442 = vunpack.c.l.b16 %v4401
      %v4443 = vunpack.c.h.b16 %v4401
      %v4444 = vunpack.c.l.b16 %v4402
      %v4445 = vunpack.c.h.b16 %v4402
      %v4446 = vunpack.c.l.b16 %v4403
      %v4447 = vunpack.c.h.b16 %v4403
      %v4448 = vunpack.c.l.b16 %v4404
      %v4449 = vunpack.c.h.b16 %v4404
      %v4450 = vunpack.c.l.b16 %v4405
      %v4451 = vunpack.c.h.b16 %v4405
      %v4452 = vunpack.c.l.b16 %v4406
      %v4453 = vunpack.c.h.b16 %v4406
      %v4454 = vunpack.c.l.b16 %v4407
      %v4455 = vunpack.c.h.b16 %v4407
      %v4456 = vunpack.c.l.b16 %v4408
      %v4457 = vunpack.c.h.b16 %v4408
      %v4458 = vunpack.c.l.b16 %v4409
      %v4459 = vunpack.c.h.b16 %v4409
      %v4460 = vunpack.c.l.b16 %v4410
      %v4461 = vunpack.c.h.b16 %v4410
      %v4462 = vunpack.c.l.b16 %v4411
      %v4463 = vunpack.c.h.b16 %v4411
      %v4464 = vunpack.c.l.b16 %v4412
      %v4465 = vunpack.c.h.b16 %v4412
      %v4466 = vunpack.c.l.b16 %v4413
      %v4467 = vunpack.c.h.b16 %v4413
      %v4468 = vpack.c.b16 %v4432, %v4432
      %v4469 = vpack.c.b16 %v4433, %v4433
      %v4470 = vpack.c.b16 %v4434, %v4434
      %v4471 = vpack.c.b16 %v4435, %v4435
      %v4472 = vpack.c.b16 %v4436, %v4436
      %v4473 = vpack.c.b16 %v4437, %v4437
      %v4474 = vpack.c.b16 %v4438, %v4438
      %v4475 = vpack.c.b16 %v4439, %v4439
      %v4476 = vpack.c.b16 %v4440, %v4440
      %v4477 = vpack.c.b16 %v4441, %v4441
      %v4478 = vpack.c.b16 %v4442, %v4442
      %v4479 = vpack.c.b16 %v4443, %v4443
      %v4480 = vpack.c.b16 %v4444, %v4444
      %v4481 = vpack.c.b16 %v4445, %v4445
      %v4482 = vpack.c.b16 %v4446, %v4446
      %v4483 = vpack.c.b16 %v4447, %v4447
      %v4484 = vpack.c.b16 %v4448, %v4448
      %v4485 = vpack.c.b16 %v4449, %v4449
      %v4486 = vpack.c.b16 %v4450, %v4450
      %v4487 = vpack.c.b16 %v4451, %v4451
      %v4488 = vpack.c.b16 %v4452, %v4452
      %v4489 = vpack.c.b16 %v4453, %v4453
      %v4490 = vpack.c.b16 %v4454, %v4454
      %v4491 = vpack.c.b16 %v4455, %v4455
      %v4492 = vpack.c.b16 %v4456, %v4456
      %v4493 = vpack.c.b16 %v4457, %v4457
      %v4494 = vpack.c.b16 %v4458, %v4458
      %v4495 = vpack.c.b16 %v4459, %v4459
      %v4496 = vpack.c.b16 %v4460, %v4460
      %v4497 = vpack.c.b16 %v4461, %v4461
      %v4498 = vpack.c.b16 %v4462, %v4462
      %v4499 = vpack.c.b16 %v4463, %v4463
      %v4500 = vpack.c.b16 %v4464, %v4464
      %v4501 = vpack.c.b16 %v4465, %v4465
      %v4502 = vpack.c.b16 %v4466, %v4466
      %v4503 = vpack.c.b16 %v4467, %v4467
      %vm4540 = vcmask 519168
      %4541 = vst.msk [vmem:[%s251] sm:$0xf] %vm4540, %v4468
      %4542 = vst.msk [vmem:[%s251 + $0x4] sm:$0xf] %vm4540, %v4469
      %4543 = vst.msk [vmem:[%s251 + $0x8] sm:$0xf] %vm4540, %v4470
      %4544 = vst.msk [vmem:[%s251 + $0xc] sm:$0xf] %vm4540, %v4471
      %4545 = vst.msk [vmem:[%s251 + $0x10] sm:$0xf] %vm4540, %v4472
      %4546 = vst.msk [vmem:[%s251 + $0x14] sm:$0xf] %vm4540, %v4473
      %4547 = vst.msk [vmem:[%s251 + $0x18] sm:$0xf] %vm4540, %v4474
      %4548 = vst.msk [vmem:[%s251 + $0x1c] sm:$0xf] %vm4540, %v4475
      %4549 = vst.msk [vmem:[%s251 + $0x20] sm:$0xf] %vm4540, %v4476
      %4550 = vst.msk [vmem:[%s251 + $0x24] sm:$0xf] %vm4540, %v4477
      %4551 = vst.msk [vmem:[%s251 + $0x28] sm:$0xf] %vm4540, %v4478
      %4552 = vst.msk [vmem:[%s251 + $0x2c] sm:$0xf] %vm4540, %v4479
      %4553 = vst.msk [vmem:[%s251 + $0x30] sm:$0xf] %vm4540, %v4480
      %4554 = vst.msk [vmem:[%s251 + $0x34] sm:$0xf] %vm4540, %v4481
      %4555 = vst.msk [vmem:[%s251 + $0x38] sm:$0xf] %vm4540, %v4482
      %4556 = vst.msk [vmem:[%s251 + $0x3c] sm:$0xf] %vm4540, %v4483
      %4557 = vst.msk [vmem:[%s251 + $0x40] sm:$0xf] %vm4540, %v4484
      %4558 = vst.msk [vmem:[%s251 + $0x44] sm:$0xf] %vm4540, %v4485
      %4559 = vst.msk [vmem:[%s251 + $0x48] sm:$0xf] %vm4540, %v4486
      %4560 = vst.msk [vmem:[%s251 + $0x4c] sm:$0xf] %vm4540, %v4487
      %4561 = vst.msk [vmem:[%s251 + $0x50] sm:$0xf] %vm4540, %v4488
      %4562 = vst.msk [vmem:[%s251 + $0x54] sm:$0xf] %vm4540, %v4489
      %4563 = vst.msk [vmem:[%s251 + $0x58] sm:$0xf] %vm4540, %v4490
      %4564 = vst.msk [vmem:[%s251 + $0x5c] sm:$0xf] %vm4540, %v4491
      %4565 = vst.msk [vmem:[%s251 + $0x60] sm:$0xf] %vm4540, %v4492
      %4566 = vst.msk [vmem:[%s251 + $0x64] sm:$0xf] %vm4540, %v4493
      %4567 = vst.msk [vmem:[%s251 + $0x68] sm:$0xf] %vm4540, %v4494
      %4568 = vst.msk [vmem:[%s251 + $0x6c] sm:$0xf] %vm4540, %v4495
      %4569 = vst.msk [vmem:[%s251 + $0x70] sm:$0xf] %vm4540, %v4496
      %4570 = vst.msk [vmem:[%s251 + $0x74] sm:$0xf] %vm4540, %v4497
      %4571 = vst.msk [vmem:[%s251 + $0x78] sm:$0xf] %vm4540, %v4498
      %4572 = vst.msk [vmem:[%s251 + $0x7c] sm:$0xf] %vm4540, %v4499
      %4573 = vst.msk [vmem:[%s251 + $0x80] sm:$0xf] %vm4540, %v4500
      %4574 = vst.msk [vmem:[%s251 + $0x84] sm:$0xf] %vm4540, %v4501
      %4575 = vst.msk [vmem:[%s251 + $0x88] sm:$0xf] %vm4540, %v4502
      %4576 = vst.msk [vmem:[%s251 + $0x8c] sm:$0xf] %vm4540, %v4503
      %v4577 = vld [vmem:[%s4] sm:$0xff]
      %v4578 = vld [vmem:[%s4 + $0x8] sm:$0xff]
      %v4579 = vld [vmem:[%s4 + $0x10] sm:$0xff]
      %v4580 = vld [vmem:[%s4 + $0x18] sm:$0xff]
      %v4581 = vld [vmem:[%s4 + $0x20] sm:$0xff]
      %v4582 = vld [vmem:[%s4 + $0x28] sm:$0xff]
      %v4583 = vld [vmem:[%s4 + $0x30] sm:$0xff]
      %v4584 = vld [vmem:[%s4 + $0x38] sm:$0xff]
      %v4585 = vld [vmem:[%s4 + $0x40] sm:$0xff]
      %v4586 = vld [vmem:[%s4 + $0x48] sm:$0xff]
      %v4587 = vld [vmem:[%s4 + $0x50] sm:$0xff]
      %v4588 = vld [vmem:[%s4 + $0x58] sm:$0xff]
      %v4589 = vld [vmem:[%s4 + $0x60] sm:$0xff]
      %v4590 = vld [vmem:[%s4 + $0x68] sm:$0xff]
      %v4591 = vld [vmem:[%s4 + $0x70] sm:$0xff]
      %v4592 = vld [vmem:[%s4 + $0x78] sm:$0xff]
      %v4593 = vld [vmem:[%s4 + $0x80] sm:$0xff]
      %v4594 = vld [vmem:[%s4 + $0x88] sm:$0xff]
      %v4595 = vld [vmem:[%s4 + $0x90] sm:$0xff]
      %v4596 = vld [vmem:[%s4 + $0x98] sm:$0xff]
      %v4597 = vld [vmem:[%s4 + $0xa0] sm:$0xff]
      %v4598 = vld [vmem:[%s4 + $0xa8] sm:$0xff]
      %v4599 = vld [vmem:[%s4 + $0xb0] sm:$0xff]
      %v4600 = vld [vmem:[%s4 + $0xb8] sm:$0xff]
      %v4601 = vld [vmem:[%s4 + $0xc0] sm:$0xff]
      %v4602 = vld [vmem:[%s4 + $0xc8] sm:$0xff]
      %v4603 = vld [vmem:[%s4 + $0xd0] sm:$0xff]
      %v4604 = vld [vmem:[%s4 + $0xd8] sm:$0xff]
      %v4605 = vld [vmem:[%s4 + $0xe0] sm:$0xff]
      %v4606 = vld [vmem:[%s4 + $0xe8] sm:$0xff]
      %v4607 = vld [vmem:[%s4 + $0xf0] sm:$0xff]
      %v4608 = vld [vmem:[%s4 + $0xf8] sm:$0xff]
      %v4609 = vld [vmem:[%s4 + $0x100] sm:$0xff]
      %v4610 = vld [vmem:[%s4 + $0x108] sm:$0xff]
      %v4611 = vld [vmem:[%s4 + $0x110] sm:$0xff]
      %v4612 = vld [vmem:[%s4 + $0x118] sm:$0xff]
      %4614 = vset.pattern.permute.xlu0 0
      %4615 = vperm.xlu0 %4614, %v4577
      %v4616 = vpop.permute.xlu0 %4615
      %4619 = vset.pattern.permute.xlu0 0
      %4620 = vperm.xlu0 %4619, %v4578
      %v4621 = vpop.permute.xlu0 %4620
      %4624 = vset.pattern.permute.xlu0 0
      %4625 = vperm.xlu0 %4624, %v4579
      %v4626 = vpop.permute.xlu0 %4625
      %4629 = vset.pattern.permute.xlu0 0
      %4630 = vperm.xlu0 %4629, %v4580
      %v4631 = vpop.permute.xlu0 %4630
      %4634 = vset.pattern.permute.xlu0 0
      %4635 = vperm.xlu0 %4634, %v4581
      %v4636 = vpop.permute.xlu0 %4635
      %4639 = vset.pattern.permute.xlu0 0
      %4640 = vperm.xlu0 %4639, %v4582
      %v4641 = vpop.permute.xlu0 %4640
      %4644 = vset.pattern.permute.xlu0 0
      %4645 = vperm.xlu0 %4644, %v4583
      %v4646 = vpop.permute.xlu0 %4645
      %4649 = vset.pattern.permute.xlu0 0
      %4650 = vperm.xlu0 %4649, %v4584
      %v4651 = vpop.permute.xlu0 %4650
      %4654 = vset.pattern.permute.xlu0 0
      %4655 = vperm.xlu0 %4654, %v4585
      %v4656 = vpop.permute.xlu0 %4655
      %4659 = vset.pattern.permute.xlu0 0
      %4660 = vperm.xlu0 %4659, %v4586
      %v4661 = vpop.permute.xlu0 %4660
      %4664 = vset.pattern.permute.xlu0 0
      %4665 = vperm.xlu0 %4664, %v4587
      %v4666 = vpop.permute.xlu0 %4665
      %4669 = vset.pattern.permute.xlu0 0
      %4670 = vperm.xlu0 %4669, %v4588
      %v4671 = vpop.permute.xlu0 %4670
      %4674 = vset.pattern.permute.xlu0 0
      %4675 = vperm.xlu0 %4674, %v4589
      %v4676 = vpop.permute.xlu0 %4675
      %4679 = vset.pattern.permute.xlu0 0
      %4680 = vperm.xlu0 %4679, %v4590
      %v4681 = vpop.permute.xlu0 %4680
      %4684 = vset.pattern.permute.xlu0 0
      %4685 = vperm.xlu0 %4684, %v4591
      %v4686 = vpop.permute.xlu0 %4685
      %4689 = vset.pattern.permute.xlu0 0
      %4690 = vperm.xlu0 %4689, %v4592
      %v4691 = vpop.permute.xlu0 %4690
      %4694 = vset.pattern.permute.xlu0 0
      %4695 = vperm.xlu0 %4694, %v4593
      %v4696 = vpop.permute.xlu0 %4695
      %4699 = vset.pattern.permute.xlu0 0
      %4700 = vperm.xlu0 %4699, %v4594
      %v4701 = vpop.permute.xlu0 %4700
      %4704 = vset.pattern.permute.xlu0 0
      %4705 = vperm.xlu0 %4704, %v4595
      %v4706 = vpop.permute.xlu0 %4705
      %4709 = vset.pattern.permute.xlu0 0
      %4710 = vperm.xlu0 %4709, %v4596
      %v4711 = vpop.permute.xlu0 %4710
      %4714 = vset.pattern.permute.xlu0 0
      %4715 = vperm.xlu0 %4714, %v4597
      %v4716 = vpop.permute.xlu0 %4715
      %4719 = vset.pattern.permute.xlu0 0
      %4720 = vperm.xlu0 %4719, %v4598
      %v4721 = vpop.permute.xlu0 %4720
      %4724 = vset.pattern.permute.xlu0 0
      %4725 = vperm.xlu0 %4724, %v4599
      %v4726 = vpop.permute.xlu0 %4725
      %4729 = vset.pattern.permute.xlu0 0
      %4730 = vperm.xlu0 %4729, %v4600
      %v4731 = vpop.permute.xlu0 %4730
      %4734 = vset.pattern.permute.xlu0 0
      %4735 = vperm.xlu0 %4734, %v4601
      %v4736 = vpop.permute.xlu0 %4735
      %4739 = vset.pattern.permute.xlu0 0
      %4740 = vperm.xlu0 %4739, %v4602
      %v4741 = vpop.permute.xlu0 %4740
      %4744 = vset.pattern.permute.xlu0 0
      %4745 = vperm.xlu0 %4744, %v4603
      %v4746 = vpop.permute.xlu0 %4745
      %4749 = vset.pattern.permute.xlu0 0
      %4750 = vperm.xlu0 %4749, %v4604
      %v4751 = vpop.permute.xlu0 %4750
      %4754 = vset.pattern.permute.xlu0 0
      %4755 = vperm.xlu0 %4754, %v4605
      %v4756 = vpop.permute.xlu0 %4755
      %4759 = vset.pattern.permute.xlu0 0
      %4760 = vperm.xlu0 %4759, %v4606
      %v4761 = vpop.permute.xlu0 %4760
      %4764 = vset.pattern.permute.xlu0 0
      %4765 = vperm.xlu0 %4764, %v4607
      %v4766 = vpop.permute.xlu0 %4765
      %4769 = vset.pattern.permute.xlu0 0
      %4770 = vperm.xlu0 %4769, %v4608
      %v4771 = vpop.permute.xlu0 %4770
      %4774 = vset.pattern.permute.xlu0 0
      %4775 = vperm.xlu0 %4774, %v4609
      %v4776 = vpop.permute.xlu0 %4775
      %4779 = vset.pattern.permute.xlu0 0
      %4780 = vperm.xlu0 %4779, %v4610
      %v4781 = vpop.permute.xlu0 %4780
      %4784 = vset.pattern.permute.xlu0 0
      %4785 = vperm.xlu0 %4784, %v4611
      %v4786 = vpop.permute.xlu0 %4785
      %4789 = vset.pattern.permute.xlu0 0
      %4790 = vperm.xlu0 %4789, %v4612
      %v4791 = vpop.permute.xlu0 %4790
      %v4793 = vmul.f32 %v4360, %v4616
      %v4794 = vmul.f32 %v4361, %v4621
      %v4795 = vmul.f32 %v4362, %v4626
      %v4796 = vmul.f32 %v4363, %v4631
      %v4797 = vmul.f32 %v4364, %v4636
      %v4798 = vmul.f32 %v4365, %v4641
      %v4799 = vmul.f32 %v4366, %v4646
      %v4800 = vmul.f32 %v4367, %v4651
      %v4801 = vmul.f32 %v4368, %v4656
      %v4802 = vmul.f32 %v4369, %v4661
      %v4803 = vmul.f32 %v4370, %v4666
      %v4804 = vmul.f32 %v4371, %v4671
      %v4805 = vmul.f32 %v4372, %v4676
      %v4806 = vmul.f32 %v4373, %v4681
      %v4807 = vmul.f32 %v4374, %v4686
      %v4808 = vmul.f32 %v4375, %v4691
      %v4809 = vmul.f32 %v4376, %v4696
      %v4810 = vmul.f32 %v4377, %v4701
      %v4811 = vmul.f32 %v4378, %v4706
      %v4812 = vmul.f32 %v4379, %v4711
      %v4813 = vmul.f32 %v4380, %v4716
      %v4814 = vmul.f32 %v4381, %v4721
      %v4815 = vmul.f32 %v4382, %v4726
      %v4816 = vmul.f32 %v4383, %v4731
      %v4817 = vmul.f32 %v4384, %v4736
      %v4818 = vmul.f32 %v4385, %v4741
      %v4819 = vmul.f32 %v4386, %v4746
      %v4820 = vmul.f32 %v4387, %v4751
      %v4821 = vmul.f32 %v4388, %v4756
      %v4822 = vmul.f32 %v4389, %v4761
      %v4823 = vmul.f32 %v4390, %v4766
      %v4824 = vmul.f32 %v4391, %v4771
      %v4825 = vmul.f32 %v4392, %v4776
      %v4826 = vmul.f32 %v4393, %v4781
      %v4827 = vmul.f32 %v4394, %v4786
      %v4828 = vmul.f32 %v4395, %v4791
      %v4829 = vld [vmem:[%s6] sm:$0x1]
      %vm4830 = vcmask 523264
      %v4831 = vsel %vm4830, %v4793, 0.0
      %v4832 = vsel %vm4830, %v4794, 0.0
      %v4833 = vadd.f32 %v4831, %v4832
      %v4834 = vsel %vm4830, %v4795, 0.0
      %v4835 = vadd.f32 %v4833, %v4834
      %v4836 = vsel %vm4830, %v4796, 0.0
      %v4837 = vadd.f32 %v4835, %v4836
      %v4838 = vsel %vm4830, %v4797, 0.0
      %v4839 = vadd.f32 %v4837, %v4838
      %v4840 = vsel %vm4830, %v4798, 0.0
      %v4841 = vadd.f32 %v4839, %v4840
      %v4842 = vsel %vm4830, %v4799, 0.0
      %v4843 = vadd.f32 %v4841, %v4842
      %v4844 = vsel %vm4830, %v4800, 0.0
      %v4845 = vadd.f32 %v4843, %v4844
      %v4846 = vsel %vm4830, %v4801, 0.0
      %v4847 = vadd.f32 %v4845, %v4846
      %v4848 = vsel %vm4830, %v4802, 0.0
      %v4849 = vadd.f32 %v4847, %v4848
      %v4850 = vsel %vm4830, %v4803, 0.0
      %v4851 = vadd.f32 %v4849, %v4850
      %v4852 = vsel %vm4830, %v4804, 0.0
      %v4853 = vadd.f32 %v4851, %v4852
      %v4854 = vsel %vm4830, %v4805, 0.0
      %v4855 = vadd.f32 %v4853, %v4854
      %v4856 = vsel %vm4830, %v4806, 0.0
      %v4857 = vadd.f32 %v4855, %v4856
      %v4858 = vsel %vm4830, %v4807, 0.0
      %v4859 = vadd.f32 %v4857, %v4858
      %v4860 = vsel %vm4830, %v4808, 0.0
      %v4861 = vadd.f32 %v4859, %v4860
      %v4862 = vsel %vm4830, %v4809, 0.0
      %v4863 = vadd.f32 %v4861, %v4862
      %v4864 = vsel %vm4830, %v4810, 0.0
      %v4865 = vadd.f32 %v4863, %v4864
      %v4866 = vsel %vm4830, %v4811, 0.0
      %v4867 = vadd.f32 %v4865, %v4866
      %v4868 = vsel %vm4830, %v4812, 0.0
      %v4869 = vadd.f32 %v4867, %v4868
      %v4870 = vsel %vm4830, %v4813, 0.0
      %v4871 = vadd.f32 %v4869, %v4870
      %v4872 = vsel %vm4830, %v4814, 0.0
      %v4873 = vadd.f32 %v4871, %v4872
      %v4874 = vsel %vm4830, %v4815, 0.0
      %v4875 = vadd.f32 %v4873, %v4874
      %v4876 = vsel %vm4830, %v4816, 0.0
      %v4877 = vadd.f32 %v4875, %v4876
      %v4878 = vsel %vm4830, %v4817, 0.0
      %v4879 = vadd.f32 %v4877, %v4878
      %v4880 = vsel %vm4830, %v4818, 0.0
      %v4881 = vadd.f32 %v4879, %v4880
      %v4882 = vsel %vm4830, %v4819, 0.0
      %v4883 = vadd.f32 %v4881, %v4882
      %v4884 = vsel %vm4830, %v4820, 0.0
      %v4885 = vadd.f32 %v4883, %v4884
      %v4886 = vsel %vm4830, %v4821, 0.0
      %v4887 = vadd.f32 %v4885, %v4886
      %v4888 = vsel %vm4830, %v4822, 0.0
      %v4889 = vadd.f32 %v4887, %v4888
      %v4890 = vsel %vm4830, %v4823, 0.0
      %v4891 = vadd.f32 %v4889, %v4890
      %v4892 = vsel %vm4830, %v4824, 0.0
      %v4893 = vadd.f32 %v4891, %v4892
      %v4894 = vsel %vm4830, %v4825, 0.0
      %v4895 = vadd.f32 %v4893, %v4894
      %v4896 = vsel %vm4830, %v4826, 0.0
      %v4897 = vadd.f32 %v4895, %v4896
      %v4898 = vsel %vm4830, %v4827, 0.0
      %v4899 = vadd.f32 %v4897, %v4898
      %v4900 = vsel %vm4830, %v4828, 0.0
      %v4901 = vadd.f32 %v4899, %v4900
      %v4902 = vrot.slane %v4901, 4
      %v4903 = vadd.f32 %v4901, %v4902
      %v4904 = vrot.slane %v4903, 2
      %v4905 = vadd.f32 %v4903, %v4904
      %v4906 = vrot.slane %v4905, 1
      %v4907 = vadd.f32 %v4905, %v4906
      %v4908 = vadd.f32 %v4829, %v4907
      %vm4909 = vcmask 516096
      %4910 = vst.msk [vmem:[%s6] sm:$0x1] %vm4909, %v4908
      %v4911 = vld [vmem:[%s6 + $0x1] sm:$0x1]
      %v4912 = vmul.f32 %v4793, %v4360
      %v4913 = vmul.f32 %v4794, %v4361
      %v4914 = vmul.f32 %v4795, %v4362
      %v4915 = vmul.f32 %v4796, %v4363
      %v4916 = vmul.f32 %v4797, %v4364
      %v4917 = vmul.f32 %v4798, %v4365
      %v4918 = vmul.f32 %v4799, %v4366
      %v4919 = vmul.f32 %v4800, %v4367
      %v4920 = vmul.f32 %v4801, %v4368
      %v4921 = vmul.f32 %v4802, %v4369
      %v4922 = vmul.f32 %v4803, %v4370
      %v4923 = vmul.f32 %v4804, %v4371
      %v4924 = vmul.f32 %v4805, %v4372
      %v4925 = vmul.f32 %v4806, %v4373
      %v4926 = vmul.f32 %v4807, %v4374
      %v4927 = vmul.f32 %v4808, %v4375
      %v4928 = vmul.f32 %v4809, %v4376
      %v4929 = vmul.f32 %v4810, %v4377
      %v4930 = vmul.f32 %v4811, %v4378
      %v4931 = vmul.f32 %v4812, %v4379
      %v4932 = vmul.f32 %v4813, %v4380
      %v4933 = vmul.f32 %v4814, %v4381
      %v4934 = vmul.f32 %v4815, %v4382
      %v4935 = vmul.f32 %v4816, %v4383
      %v4936 = vmul.f32 %v4817, %v4384
      %v4937 = vmul.f32 %v4818, %v4385
      %v4938 = vmul.f32 %v4819, %v4386
      %v4939 = vmul.f32 %v4820, %v4387
      %v4940 = vmul.f32 %v4821, %v4388
      %v4941 = vmul.f32 %v4822, %v4389
      %v4942 = vmul.f32 %v4823, %v4390
      %v4943 = vmul.f32 %v4824, %v4391
      %v4944 = vmul.f32 %v4825, %v4392
      %v4945 = vmul.f32 %v4826, %v4393
      %v4946 = vmul.f32 %v4827, %v4394
      %v4947 = vmul.f32 %v4828, %v4395
      %v4948 = vsel %vm4830, %v4912, 0.0
      %v4949 = vsel %vm4830, %v4913, 0.0
      %v4950 = vadd.f32 %v4948, %v4949
      %v4951 = vsel %vm4830, %v4914, 0.0
      %v4952 = vadd.f32 %v4950, %v4951
      %v4953 = vsel %vm4830, %v4915, 0.0
      %v4954 = vadd.f32 %v4952, %v4953
      %v4955 = vsel %vm4830, %v4916, 0.0
      %v4956 = vadd.f32 %v4954, %v4955
      %v4957 = vsel %vm4830, %v4917, 0.0
      %v4958 = vadd.f32 %v4956, %v4957
      %v4959 = vsel %vm4830, %v4918, 0.0
      %v4960 = vadd.f32 %v4958, %v4959
      %v4961 = vsel %vm4830, %v4919, 0.0
      %v4962 = vadd.f32 %v4960, %v4961
      %v4963 = vsel %vm4830, %v4920, 0.0
      %v4964 = vadd.f32 %v4962, %v4963
      %v4965 = vsel %vm4830, %v4921, 0.0
      %v4966 = vadd.f32 %v4964, %v4965
      %v4967 = vsel %vm4830, %v4922, 0.0
      %v4968 = vadd.f32 %v4966, %v4967
      %v4969 = vsel %vm4830, %v4923, 0.0
      %v4970 = vadd.f32 %v4968, %v4969
      %v4971 = vsel %vm4830, %v4924, 0.0
      %v4972 = vadd.f32 %v4970, %v4971
      %v4973 = vsel %vm4830, %v4925, 0.0
      %v4974 = vadd.f32 %v4972, %v4973
      %v4975 = vsel %vm4830, %v4926, 0.0
      %v4976 = vadd.f32 %v4974, %v4975
      %v4977 = vsel %vm4830, %v4927, 0.0
      %v4978 = vadd.f32 %v4976, %v4977
      %v4979 = vsel %vm4830, %v4928, 0.0
      %v4980 = vadd.f32 %v4978, %v4979
      %v4981 = vsel %vm4830, %v4929, 0.0
      %v4982 = vadd.f32 %v4980, %v4981
      %v4983 = vsel %vm4830, %v4930, 0.0
      %v4984 = vadd.f32 %v4982, %v4983
      %v4985 = vsel %vm4830, %v4931, 0.0
      %v4986 = vadd.f32 %v4984, %v4985
      %v4987 = vsel %vm4830, %v4932, 0.0
      %v4988 = vadd.f32 %v4986, %v4987
      %v4989 = vsel %vm4830, %v4933, 0.0
      %v4990 = vadd.f32 %v4988, %v4989
      %v4991 = vsel %vm4830, %v4934, 0.0
      %v4992 = vadd.f32 %v4990, %v4991
      %v4993 = vsel %vm4830, %v4935, 0.0
      %v4994 = vadd.f32 %v4992, %v4993
      %v4995 = vsel %vm4830, %v4936, 0.0
      %v4996 = vadd.f32 %v4994, %v4995
      %v4997 = vsel %vm4830, %v4937, 0.0
      %v4998 = vadd.f32 %v4996, %v4997
      %v4999 = vsel %vm4830, %v4938, 0.0
      %v5000 = vadd.f32 %v4998, %v4999
      %v5001 = vsel %vm4830, %v4939, 0.0
      %v5002 = vadd.f32 %v5000, %v5001
      %v5003 = vsel %vm4830, %v4940, 0.0
      %v5004 = vadd.f32 %v5002, %v5003
      %v5005 = vsel %vm4830, %v4941, 0.0
      %v5006 = vadd.f32 %v5004, %v5005
      %v5007 = vsel %vm4830, %v4942, 0.0
      %v5008 = vadd.f32 %v5006, %v5007
      %v5009 = vsel %vm4830, %v4943, 0.0
      %v5010 = vadd.f32 %v5008, %v5009
      %v5011 = vsel %vm4830, %v4944, 0.0
      %v5012 = vadd.f32 %v5010, %v5011
      %v5013 = vsel %vm4830, %v4945, 0.0
      %v5014 = vadd.f32 %v5012, %v5013
      %v5015 = vsel %vm4830, %v4946, 0.0
      %v5016 = vadd.f32 %v5014, %v5015
      %v5017 = vsel %vm4830, %v4947, 0.0
      %v5018 = vadd.f32 %v5016, %v5017
      %v5019 = vrot.slane %v5018, 4
      %v5020 = vadd.f32 %v5018, %v5019
      %v5021 = vrot.slane %v5020, 2
      %v5022 = vadd.f32 %v5020, %v5021
      %v5023 = vrot.slane %v5022, 1
      %v5024 = vadd.f32 %v5022, %v5023
      %v5025 = vadd.f32 %v4911, %v5024
      %5026 = vst.msk [vmem:[%s6 + $0x1] sm:$0x1] %vm4909, %v5025
      %p5027 = scmp.eq.s32.totalorder %s18, 1
      // Predicated region
      $region45: #{conv_generator_upsample.8} parent=39 // pred_check
        %p5028 = pneg %p5027
      $region46: #{conv_generator_upsample.8} parent=39 // pred_check_branch
        %5030 = sbr.rel (%p5028) target = $region48
      $region47: #{conv_generator_upsample.8} parent=39 // pred_region
        %v5031 = vld [vmem:[%s6] sm:$0x1]
        %v5032 = vrcp.pop 512.0
        %v5033 = vmul.f32 %v5031, %v5032
        %v5034 = vld [vmem:[%s6 + $0x1] sm:$0x1]
        %v5035 = vmul.f32 %v5034, %v5032
        %v5036 = vmul.f32 %v5033, %v5033
        %v5037 = vsub.f32 %v5035, %v5036
        %v5038 = vadd.f32 %v5037, 0.8
        %v5039 = vrsqrt.pop %v5038
        %v5040 = vld [vmem:[%s2] sm:$0x1]
        %v5041 = vmul.f32 %v5040, %v5039
        %5042 = vst.msk [vmem:[%s6] sm:$0x1] %vm4909, %v5041
        %v5043 = vld [vmem:[%s2 + $0x1] sm:$0x1]
        %v5044 = vmul.f32 %v5033, %v5041
        %v5045 = vsub.f32 %v5043, %v5044
        %5046 = vst.msk [vmem:[%s6 + $0x1] sm:$0x1] %vm4909, %v5045
      $region48: #{conv_generator_upsample.8} parent=39 // pred_fallthru
        _
      %s5047 = smul.u32 36, %s18
      %p5048 = scmp.lt.s32.totalorder %s5047, 71
      %s5049 = scalar_select %p5048, %s5047, 71
      %s5050 = smul.addr %s5049, 4
      %s5051 = scalar_lea.vmem %s5, %s5050
      // Predicated region
      $region49: #{conv_generator_upsample.8} parent=39 // pred_check
        %p5052 = pneg %p146
      $region50: #{conv_generator_upsample.8} parent=39 // pred_check_branch
        %5054 = sbr.rel (%p5052) target = $region52
      $region51: #{conv_generator_upsample.8} parent=39 // pred_region
        %s5055 = smul.u32 36, %s18
      $region52: #{conv_generator_upsample.8} parent=39 // pred_fallthru
        _
      // Predicated region
      $region53: #{conv_generator_upsample.8} parent=39 // pred_check
        %p5056 = pneg %p167
      $region54: #{conv_generator_upsample.8} parent=39 // pred_check_branch
        %5058 = sbr.rel (%p5056) target = $region56
      $region55: #{conv_generator_upsample.8} parent=39 // pred_region
        _
      $region56: #{conv_generator_upsample.8} parent=39 // pred_fallthru
        _
      // Predicated region
      $region57: #{conv_generator_upsample.8} parent=39 // pred_check
        %p5059 = pneg %p167
      $region58: #{conv_generator_upsample.8} parent=39 // pred_check_branch
        %5061 = sbr.rel (%p5059) target = $region60
      $region59: #{conv_generator_upsample.8} parent=39 // pred_region
        _
      $region60: #{conv_generator_upsample.8} parent=39 // pred_fallthru
        _
    $region40: #{conv_generator_upsample.8} parent=5 // pred_fallthru
      _
    %p5062 = scmp.le.s32.totalorder 2, %s13
    // Predicated region
    $region61: #{conv_generator_upsample.8} parent=5 // pred_check
      %p5063 = pneg %p5062
    $region62: #{conv_generator_upsample.8} parent=5 // pred_check_branch
      %5065 = sbr.rel (%p5063) target = $region64
    $region63: #{conv_generator_upsample.8} parent=5 // pred_region
      %s5066 = ssub.s32 %s13, 2
      // Predicated region
      $region65: #{conv_generator_upsample.8} parent=63 // pred_check
        %p5067 = pneg %p152
      $region66: #{conv_generator_upsample.8} parent=63 // pred_check_branch
        %5069 = sbr.rel (%p5067) target = $region68
      $region67: #{conv_generator_upsample.8} parent=63 // pred_region
        %s5070 = smul.u32 36, %s19
        %p5071 = scmp.lt.s32.totalorder %s5070, 71
        %s5072 = scalar_select %p5071, %s5070, 71
        %s5073 = smul.addr %s5072, 4
        %s5074 = scalar_lea.vmem %s5, %s5073
      $region68: #{conv_generator_upsample.8} parent=63 // pred_fallthru
        _
    $region64: #{conv_generator_upsample.8} parent=5 // pred_fallthru
      _
  $region6: #{conv_generator_upsample.8} parent=0 // loop_footer
    %s17 = sadd.s32 1, %s13
  $region7: #{conv_generator_upsample.8} parent=0 // loop_footer_branch
    %12 = sbr.rel target = $region3
  $region8: #{conv_generator_upsample.8} parent=0 // loop_exit
    _

</llo_original>
